<compile_context>
chip_gen: v5e
topology: v5e:2x2
jax: 0.10.0
libtpu: 0.0.40
codegen_flags: <defaults>
</compile_context>

<pallas_src>
import math

import jax
import jax.numpy as jnp
import numpy as np
from jax import lax
from jax.experimental import pallas as pl
from jax.experimental.pallas import tpu as pltpu

# ---------------- small config consistent with the module -------------------
D_MODEL = 32
D_FFN = 64
N_HEADS = 4
N_LEVELS = 2
N_POINTS = 2
D_HEAD = D_MODEL // N_HEADS
SPATIAL_SHAPES = ((8, 8), (4, 4))                       # (H_l, W_l) per level
LEVEL_START = tuple(
    int(s) for s in np.cumsum([0] + [h * w for h, w in SPATIAL_SHAPES])[:-1])
LEN_IN = sum(h * w for h, w in SPATIAL_SHAPES)
BATCH = 2
LEN_Q = LEN_IN                                          # encoder: queries == src
EPS = 1e-5
N_OFF = N_HEADS * N_LEVELS * N_POINTS * 2               # 32
N_ATTN = N_HEADS * N_LEVELS * N_POINTS                  # 16
LP = N_LEVELS * N_POINTS                                # softmax width per head
MAX_HW = max(h * w for h, w in SPATIAL_SHAPES)          # 64
N_BIG = D_MODEL + N_OFF + N_ATTN                        # 80 fused-projection width
LOG2_LP = LP.bit_length() - 1
LOG2_DHEAD = D_HEAD.bit_length() - 1
# power-of-two widths let the in-kernel y/x decode use shift/and on the VPU
assert all((w & (w - 1)) == 0 for _, w in SPATIAL_SHAPES)
assert (LP & (LP - 1)) == 0 and (D_HEAD & (D_HEAD - 1)) == 0


def _ln(z, g, b):
    mu = jnp.mean(z, axis=-1, keepdims=True)
    zc = z - mu
    var = jnp.mean(zc * zc, axis=-1, keepdims=True)
    return zc * lax.rsqrt(var + EPS) * g + b


# --------------------------- the single fused kernel -------------------------
def _fused_layer_kernel(src_ref, pos_ref, refpix_ref, mask_ref,
                        wbig_ref, bbig_ref,
                        wo_ref, bo_ref, g1_ref, be1_ref,
                        w1_ref, b1_ref, w2_ref, b2_ref, g2_ref, be2_ref,
                        o_ref, w_scratch):
    src = src_ref[0]                                    # (Lq, C)
    pos = pos_ref[0]
    lq = src.shape[0]

    # ---- fused input projections: one K=2C matmul -> [value | pix_off | attn]
    xin = jnp.concatenate([src, pos], axis=-1)          # (Lq, 2C)
    big = (jnp.dot(xin, wbig_ref[...], preferred_element_type=jnp.float32)
           + bbig_ref[...])                             # (Lq, C+N_OFF+N_ATTN)
    value = big[:, :D_MODEL] * (1.0 - mask_ref[0])      # padding rows -> 0
    pix = big[:, D_MODEL:D_MODEL + N_OFF] + refpix_ref[0]     # pixel coords
    logits = big[:, D_MODEL + N_OFF:]                   # (Lq, N_ATTN)

    # ---- per-head softmax over (levels*points), one exp over all heads
    m = jnp.max(logits, axis=-1, keepdims=True)         # global max is a valid
    e = jnp.exp(logits - m)                             # per-group stabilizer
    gi = lax.broadcasted_iota(jnp.int32, (N_ATTN, N_ATTN), 0) >> LOG2_LP
    gj = lax.broadcasted_iota(jnp.int32, (N_ATTN, N_ATTN), 1) >> LOG2_LP
    gmat = (gi == gj).astype(jnp.float32)               # per-head group-sum matrix
    denom = jnp.dot(e, gmat, preferred_element_type=jnp.float32)
    probs = e / denom                                   # (Lq, N_ATTN)

    # ---- bilinear corner decomposition for all taps at once (lane dense)
    p0 = jnp.floor(pix)
    frac = pix - p0
    idx0 = p0.astype(jnp.int32)

    core = jnp.zeros((lq, D_MODEL), jnp.float32)
    for l, (hl, wl) in enumerate(SPATIAL_SHAPES):
        hw = hl * wl
        log2_wl = wl.bit_length() - 1
        # hoisted per-level lane iotas (full width of the level slab)
        ii = lax.broadcasted_iota(jnp.int32, (lq, hw), 1)
        iota_y = ii >> log2_wl
        iota_x = ii & (wl - 1)
        for h in range(N_HEADS):
            w2d = jnp.zeros((lq, hw), jnp.float32)
            for p in range(N_POINTS):
                base = ((h * N_LEVELS + l) * N_POINTS + p) * 2
                x0 = idx0[:, base:base + 1]
                y0 = idx0[:, base + 1:base + 2]
                fx = frac[:, base:base + 1]
                fy = frac[:, base + 1:base + 2]
                a_i = h * LP + l * N_POINTS + p
                aw = probs[:, a_i:a_i + 1]
                # separable bilinear weights built lane-dense over the whole
                # level slab; out-of-range corners never match the iota ->
                # zero contribution (grid_sample padding_mode='zeros')
                ry = (jnp.where(iota_y == y0, 1.0 - fy, 0.0)
                      + jnp.where(iota_y == y0 + 1, fy, 0.0))
                rx = (jnp.where(iota_x == x0, 1.0 - fx, 0.0)
                      + jnp.where(iota_x == x0 + 1, fx, 0.0))
                w2d = w2d + (aw * ry) * rx
            # stage per-head weights in VMEM to bound vreg live ranges
            w_scratch[:, h * hw:(h + 1) * hw] = w2d

        # block-diagonal value slab: head h rows feed only head h's lanes.
        # value is consumed in its natural (hw, C) layout — no re-layout.
        v_l = value[LEVEL_START[l]:LEVEL_START[l] + hw, :]
        lane_head = lax.broadcasted_iota(jnp.int32, (hw, D_MODEL), 1) >> LOG2_DHEAD
        v_blk = jnp.concatenate(
            [jnp.where(lane_head == h, v_l, 0.0) for h in range(N_HEADS)], axis=0)
        # one MXU push per level for ALL heads: (Lq, H*hw) @ (H*hw, C)
        core = core + jnp.dot(w_scratch[:, :N_HEADS * hw], v_blk,
                              preferred_element_type=jnp.float32)

    # ---- epilogue: output proj + residual + LN1 + FFN + residual + LN2
    attn_out = (jnp.dot(core, wo_ref[...], preferred_element_type=jnp.float32)
                + bo_ref[...])
    x = _ln(src + attn_out, g1_ref[...], be1_ref[...])
    hid = jnp.maximum(
        jnp.dot(x, w1_ref[...], preferred_element_type=jnp.float32) + b1_ref[...],
        0.0)
    y = jnp.dot(hid, w2_ref[...], preferred_element_type=jnp.float32) + b2_ref[...]
    o_ref[0] = _ln(x + y, g2_ref[...], be2_ref[...]).astype(o_ref.dtype)


# ------------------------------ full layer forward ---------------------------
def deformable_encoder_layer_forward(params, src, pos, reference_points,
                                     padding_mask=None):
    n, len_q, c = src.shape

    # reference points -> grid_sample(align_corners=False) pixel coords, broadcast
    # to the (head, level, point, xy) tap layout used by the sampling offsets.
    wh = jnp.array([[w, h] for (h, w) in SPATIAL_SHAPES], jnp.float32)   # (L, 2)
    ref_pix = (reference_points[:, :, None, :, None, :]
               * wh[None, None, None, :, None, :] - 0.5)
    ref_pix = jnp.broadcast_to(
        ref_pix, (n, len_q, N_HEADS, N_LEVELS, N_POINTS, 2)
    ).reshape(n, len_q, N_OFF)

    if padding_mask is None:
        mask = jnp.zeros((n, len_q, 1), jnp.float32)
    else:
        mask = padding_mask.astype(jnp.float32).reshape(n, len_q, 1)

    # one fused projection weight: value uses src only, offsets/attn use src+pos
    w_big = jnp.concatenate([
        jnp.concatenate([params["w_value"], params["w_off"], params["w_attn"]],
                        axis=1),
        jnp.concatenate([jnp.zeros_like(params["w_value"]), params["w_off"],
                         params["w_attn"]], axis=1),
    ], axis=0)                                                       # (2C, N_BIG)
    b_big = jnp.concatenate(
        [params["b_value"], params["b_off"], params["b_attn"]]).reshape(1, -1)

    args = (src, pos, ref_pix, mask, w_big, b_big,
            params["w_out"], params["b_out"].reshape(1, -1),
            params["g1"].reshape(1, -1), params["be1"].reshape(1, -1),
            params["w1"], params["b1"].reshape(1, -1),
            params["w2"], params["b2"].reshape(1, -1),
            params["g2"].reshape(1, -1), params["be2"].reshape(1, -1))

    in_specs = (
        [pl.BlockSpec((1, len_q, a.shape[-1]), lambda b: (b, 0, 0))
         for a in args[:4]]                                    # per-batch tensors
        + [pl.BlockSpec(a.shape, lambda b: (0, 0)) for a in args[4:]])  # weights

    out = pl.pallas_call(
        _fused_layer_kernel,
        out_shape=jax.ShapeDtypeStruct((n, len_q, c), jnp.float32),
        grid=(n,),
        in_specs=in_specs,
        out_specs=pl.BlockSpec((1, len_q, c), lambda b: (b, 0, 0)),
        scratch_shapes=[pltpu.VMEM((len_q, N_HEADS * MAX_HW), jnp.float32)],
        compiler_params=pltpu.CompilerParams(dimension_semantics=("parallel",)),
    )(*args)
    return out


# --------------------------- deterministic parameters ------------------------
def init_params(key):
    ks = jax.random.split(key, 6)

    def xavier(k, fan_in, fan_out):
        bound = math.sqrt(6.0 / (fan_in + fan_out))
        return jax.random.uniform(k, (fan_in, fan_out), jnp.float32, -bound, bound)

    c = D_MODEL

    # sampling_offsets bias: directional grid init from MSDeformAttn._reset_parameters.
    thetas = jnp.arange(N_HEADS, dtype=jnp.float32) * (2.0 * math.pi / N_HEADS)
    grid = jnp.stack([jnp.cos(thetas), jnp.sin(thetas)], -1)
    grid = grid / jnp.max(jnp.abs(grid), axis=-1, keepdims=True)
    grid = jnp.tile(grid[:, None, None, :], (1, N_LEVELS, N_POINTS, 1))
    grid = grid * jnp.arange(1, N_POINTS + 1, dtype=jnp.float32)[None, None, :, None]

    # NOTE: the module inits sampling_offsets/attention_weights weights to 0;
    # small deterministic random weights are used so the projection path is exercised.
    return dict(
        w_off=0.01 * jax.random.normal(ks[0], (c, N_OFF), jnp.float32),
        b_off=grid.reshape(-1),
        w_attn=0.01 * jax.random.normal(ks[1], (c, N_ATTN), jnp.float32),
        b_attn=jnp.zeros((N_ATTN,), jnp.float32),
        w_value=xavier(ks[2], c, c),
        b_value=jnp.zeros((c,), jnp.float32),
        w_out=xavier(ks[3], c, c),
        b_out=jnp.zeros((c,), jnp.float32),
        g1=jnp.ones((c,), jnp.float32),
        be1=jnp.zeros((c,), jnp.float32),
        w1=xavier(ks[4], c, D_FFN),
        b1=jnp.zeros((D_FFN,), jnp.float32),
        w2=xavier(ks[5], D_FFN, c),
        b2=jnp.zeros((c,), jnp.float32),
        g2=jnp.ones((c,), jnp.float32),
        be2=jnp.zeros((c,), jnp.float32),
    )


# ------------------------------ pure-JAX reference ---------------------------
def _ref_msda_core(value, loc, attn):
    n, _, nh, dh = value.shape
    lq = loc.shape[1]
    out = jnp.zeros((n, lq, nh, dh), jnp.float32)
    b_idx = jnp.arange(n)[:, None, None, None]
    h_idx = jnp.arange(nh)[None, None, :, None]
    for l, (hl, wl) in enumerate(SPATIAL_SHAPES):
        start = LEVEL_START[l]
        v_l = value[:, start:start + hl * wl]                  # (N, hl*wl, H, Dh)
        x = loc[:, :, :, l, :, 0] * wl - 0.5                   # (N, Lq, H, P)
        y = loc[:, :, :, l, :, 1] * hl - 0.5
        x0 = jnp.floor(x)
        y0 = jnp.floor(y)
        fx = x - x0
        fy = y - y0
        x0 = x0.astype(jnp.int32)
        y0 = y0.astype(jnp.int32)
        for dy in (0, 1):
            for dx in (0, 1):
                xi = x0 + dx
                yi = y0 + dy
                wx = fx if dx else 1.0 - fx
                wy = fy if dy else 1.0 - fy
                valid = (xi >= 0) & (xi < wl) & (yi >= 0) & (yi < hl)
                idx = jnp.clip(yi, 0, hl - 1) * wl + jnp.clip(xi, 0, wl - 1)
                g = v_l[b_idx, idx, h_idx, :]                  # (N, Lq, H, P, Dh)
                w = (wx * wy * attn[:, :, :, l, :] * valid)[..., None]
                out = out + jnp.sum(w * g, axis=3)
    return out.reshape(n, lq, nh * dh)


def ref_forward(params, src, pos, reference_points, spatial_shapes_i32, _level_start):
    n, lq, c = src.shape
    query = src + pos
    value = src @ params["w_value"] + params["b_value"]
    off = (query @ params["w_off"] + params["b_off"]).reshape(
        n, lq, N_HEADS, N_LEVELS, N_POINTS, 2)
    attn_logits = (query @ params["w_attn"] + params["b_attn"]).reshape(
        n, lq, N_HEADS, N_LEVELS * N_POINTS)
    attn = jax.nn.softmax(attn_logits, axis=-1).reshape(
        n, lq, N_HEADS, N_LEVELS, N_POINTS)
    normalizer = jnp.stack(
        [spatial_shapes_i32[:, 1], spatial_shapes_i32[:, 0]], -1).astype(jnp.float32)
    loc = (reference_points[:, :, None, :, None, :]
           + off / normalizer[None, None, None, :, None, :])
    core = _ref_msda_core(value.reshape(n, lq, N_HEADS, D_HEAD), loc, attn)
    attn_out = core @ params["w_out"] + params["b_out"]

    def ln(z, g, b):
        mu = jnp.mean(z, -1, keepdims=True)
        var = jnp.mean((z - mu) ** 2, -1, keepdims=True)
        return (z - mu) / jnp.sqrt(var + EPS) * g + b

    x = ln(src + attn_out, params["g1"], params["be1"])
    h = jax.nn.relu(x @ params["w1"] + params["b1"])
    y = h @ params["w2"] + params["b2"]
    return ln(x + y, params["g2"], params["be2"])


# ----------------------------------- main ------------------------------------
if __name__ == "__main__":
    key = jax.random.PRNGKey(0)
    kp, ksrc, kpos = jax.random.split(key, 3)
    params = init_params(kp)

    src = jax.random.normal(ksrc, (BATCH, LEN_IN, D_MODEL), jnp.float32)
    pos = 0.1 * jax.random.normal(kpos, (BATCH, LEN_IN, D_MODEL), jnp.float32)

    spatial_shapes_i32 = jnp.array(SPATIAL_SHAPES, jnp.int32)

    # reference points = normalized pixel centers per level (valid_ratios == 1)
    ref_pts = []
    for hl, wl in SPATIAL_SHAPES:
        ys = (jnp.arange(hl, dtype=jnp.float32) + 0.5) / hl
        xs = (jnp.arange(wl, dtype=jnp.float32) + 0.5) / wl
        yy, xx = jnp.meshgrid(ys, xs, indexing="ij")
        ref_pts.append(jnp.stack([xx.reshape(-1), yy.reshape(-1)], -1))
    ref_pts = jnp.concatenate(ref_pts, axis=0)                 # (Len_in, 2)
    reference_points = jnp.broadcast_to(
        ref_pts[None, :, None, :], (BATCH, LEN_IN, N_LEVELS, 2))

    fwd = jax.jit(deformable_encoder_layer_forward)
    out = jax.block_until_ready(fwd(params, src, pos, reference_points))

    expected = jax.block_until_ready(
        ref_forward(params, src, pos, reference_points, spatial_shapes_i32, None))

    assert out.shape == (BATCH, LEN_Q, D_MODEL)
    assert bool(jnp.all(jnp.isfinite(out)))
    np.testing.assert_allclose(np.asarray(out), np.asarray(expected),
                               rtol=2e-3, atol=2e-3)
    print("KERNEL_OK")
</pallas_src>

<mosaic_0001>
module attributes {stable_mosaic.version = 11 : i64} {
  func.func @_fused_layer_kernel(%arg0: i32, %arg1: memref<1x80x32xf32, #tpu.memory_space<vmem>>, %arg2: memref<1x80x32xf32, #tpu.memory_space<vmem>>, %arg3: memref<1x80x32xf32, #tpu.memory_space<vmem>>, %arg4: memref<1x80x1xf32, #tpu.memory_space<vmem>>, %arg5: memref<64x80xf32, #tpu.memory_space<vmem>>, %arg6: memref<1x80xf32, #tpu.memory_space<vmem>>, %arg7: memref<32x32xf32, #tpu.memory_space<vmem>>, %arg8: memref<1x32xf32, #tpu.memory_space<vmem>>, %arg9: memref<1x32xf32, #tpu.memory_space<vmem>>, %arg10: memref<1x32xf32, #tpu.memory_space<vmem>>, %arg11: memref<32x64xf32, #tpu.memory_space<vmem>>, %arg12: memref<1x64xf32, #tpu.memory_space<vmem>>, %arg13: memref<64x32xf32, #tpu.memory_space<vmem>>, %arg14: memref<1x32xf32, #tpu.memory_space<vmem>>, %arg15: memref<1x32xf32, #tpu.memory_space<vmem>>, %arg16: memref<1x32xf32, #tpu.memory_space<vmem>>, %arg17: memref<1x80x32xf32, #tpu.memory_space<vmem>>, %arg18: memref<80x256xf32, #tpu.memory_space<vmem>>) attributes {dimension_semantics = [#tpu.dimension_semantics<parallel>], iteration_bounds = array<i64: 2>, scalar_prefetch = 0 : i64, scratch_operands = 1 : i64, tpu.core_type = #tpu.core_type<tc>, window_params = [{transform_indices = @transform_0, window_bounds = array<i64: 1, 80, 32>}, {transform_indices = @transform_1, window_bounds = array<i64: 1, 80, 32>}, {transform_indices = @transform_2, window_bounds = array<i64: 1, 80, 32>}, {transform_indices = @transform_3, window_bounds = array<i64: 1, 80, 1>}, {pipeline_mode = #tpu.pipeline_mode<synchronous>, transform_indices = @transform_4, window_bounds = array<i64: 64, 80>}, {pipeline_mode = #tpu.pipeline_mode<synchronous>, transform_indices = @transform_5, window_bounds = array<i64: 1, 80>}, {pipeline_mode = #tpu.pipeline_mode<synchronous>, transform_indices = @transform_6, window_bounds = array<i64: 32, 32>}, {pipeline_mode = #tpu.pipeline_mode<synchronous>, transform_indices = @transform_7, window_bounds = array<i64: 1, 32>}, {pipeline_mode = #tpu.pipeline_mode<synchronous>, transform_indices = @transform_8, window_bounds = array<i64: 1, 32>}, {pipeline_mode = #tpu.pipeline_mode<synchronous>, transform_indices = @transform_9, window_bounds = array<i64: 1, 32>}, {pipeline_mode = #tpu.pipeline_mode<synchronous>, transform_indices = @transform_10, window_bounds = array<i64: 32, 64>}, {pipeline_mode = #tpu.pipeline_mode<synchronous>, transform_indices = @transform_11, window_bounds = array<i64: 1, 64>}, {pipeline_mode = #tpu.pipeline_mode<synchronous>, transform_indices = @transform_12, window_bounds = array<i64: 64, 32>}, {pipeline_mode = #tpu.pipeline_mode<synchronous>, transform_indices = @transform_13, window_bounds = array<i64: 1, 32>}, {pipeline_mode = #tpu.pipeline_mode<synchronous>, transform_indices = @transform_14, window_bounds = array<i64: 1, 32>}, {pipeline_mode = #tpu.pipeline_mode<synchronous>, transform_indices = @transform_15, window_bounds = array<i64: 1, 32>}, {transform_indices = @transform_16, window_bounds = array<i64: 1, 80, 32>}]} {
    %c0 = arith.constant 0 : index
    %c0_0 = arith.constant 0 : index
    %c0_1 = arith.constant 0 : index
    %0 = vector.load %arg1[%c0, %c0_0, %c0_1] : memref<1x80x32xf32, #tpu.memory_space<vmem>>, vector<1x80x32xf32>
    %1 = vector.shape_cast %0 : vector<1x80x32xf32> to vector<80x32xf32>
    %c0_2 = arith.constant 0 : index
    %c0_3 = arith.constant 0 : index
    %c0_4 = arith.constant 0 : index
    %2 = vector.load %arg2[%c0_2, %c0_3, %c0_4] : memref<1x80x32xf32, #tpu.memory_space<vmem>>, vector<1x80x32xf32>
    %3 = vector.shape_cast %2 : vector<1x80x32xf32> to vector<80x32xf32>
    %4 = tpu.concatenate %1, %3 in 1 : vector<80x32xf32>, vector<80x32xf32> -> vector<80x64xf32>
    %c0_5 = arith.constant 0 : index
    %c0_6 = arith.constant 0 : index
    %5 = vector.load %arg5[%c0_5, %c0_6] : memref<64x80xf32, #tpu.memory_space<vmem>>, vector<64x80xf32>
    %cst = arith.constant dense<0.000000e+00> : vector<80x80xf32>
    %6 = tpu.matmul %4, %5, %cst {dimension_numbers = #tpu.dot_dimension_numbers<[1], [0], [0], [1], [0, 0, 1, 1], [], []>} : vector<80x64xf32>, vector<64x80xf32>, vector<80x80xf32> -> vector<80x80xf32>
    %c0_7 = arith.constant 0 : index
    %c0_8 = arith.constant 0 : index
    %7 = vector.load %arg6[%c0_7, %c0_8] : memref<1x80xf32, #tpu.memory_space<vmem>>, vector<1x80xf32>
    %8 = vector.broadcast %7 : vector<1x80xf32> to vector<80x80xf32>
    %9 = arith.addf %6, %8 : vector<80x80xf32>
    %10 = vector.extract_strided_slice %9 {offsets = [0, 0], sizes = [80, 32], strides = [1, 1]} : vector<80x80xf32> to vector<80x32xf32>
    %c0_9 = arith.constant 0 : index
    %c0_10 = arith.constant 0 : index
    %c0_11 = arith.constant 0 : index
    %11 = vector.load %arg4[%c0_9, %c0_10, %c0_11] : memref<1x80x1xf32, #tpu.memory_space<vmem>>, vector<1x80x1xf32>
    %12 = vector.shape_cast %11 : vector<1x80x1xf32> to vector<80x1xf32>
    %cst_12 = arith.constant 1.000000e+00 : f32
    %13 = vector.broadcast %cst_12 : f32 to vector<80x1xf32>
    %14 = arith.subf %13, %12 : vector<80x1xf32>
    %15 = vector.broadcast %14 : vector<80x1xf32> to vector<80x32xf32>
    %16 = arith.mulf %10, %15 : vector<80x32xf32>
    %17 = vector.extract_strided_slice %9 {offsets = [0, 32], sizes = [80, 32], strides = [1, 1]} : vector<80x80xf32> to vector<80x32xf32>
    %c0_13 = arith.constant 0 : index
    %c0_14 = arith.constant 0 : index
    %c0_15 = arith.constant 0 : index
    %18 = vector.load %arg3[%c0_13, %c0_14, %c0_15] : memref<1x80x32xf32, #tpu.memory_space<vmem>>, vector<1x80x32xf32>
    %19 = vector.shape_cast %18 : vector<1x80x32xf32> to vector<80x32xf32>
    %20 = arith.addf %17, %19 : vector<80x32xf32>
    %21 = vector.extract_strided_slice %9 {offsets = [0, 64], sizes = [80, 16], strides = [1, 1]} : vector<80x80xf32> to vector<80x16xf32>
    %cst_16 = arith.constant dense<0xFF800000> : vector<80xf32>
    %22 = vector.multi_reduction <maximumf>, %21, %cst_16 [1] : vector<80x16xf32> to vector<80xf32>
    %23 = vector.shape_cast %22 : vector<80xf32> to vector<80x1xf32>
    %24 = vector.broadcast %23 : vector<80x1xf32> to vector<80x16xf32>
    %25 = arith.subf %21, %24 : vector<80x16xf32>
    %26 = math.exp %25 : vector<80x16xf32>
    %27 = tpu.iota {dimensions = array<i32: 0>} : vector<16x16xi32>
    %c2_i32 = arith.constant 2 : i32
    %28 = vector.broadcast %c2_i32 : i32 to vector<16x16xi32>
    %29 = arith.shrsi %27, %28 : vector<16x16xi32>
    %30 = tpu.iota {dimensions = array<i32: 1>} : vector<16x16xi32>
    %c2_i32_17 = arith.constant 2 : i32
    %31 = vector.broadcast %c2_i32_17 : i32 to vector<16x16xi32>
    %32 = arith.shrsi %30, %31 : vector<16x16xi32>
    %33 = arith.cmpi eq, %29, %32 : vector<16x16xi32>
    %34 = arith.extui %33 : vector<16x16xi1> to vector<16x16xi32>
    %35 = arith.sitofp %34 : vector<16x16xi32> to vector<16x16xf32>
    %cst_18 = arith.constant dense<0.000000e+00> : vector<80x16xf32>
    %36 = tpu.matmul %26, %35, %cst_18 {dimension_numbers = #tpu.dot_dimension_numbers<[1], [0], [0], [1], [0, 0, 1, 1], [], []>} : vector<80x16xf32>, vector<16x16xf32>, vector<80x16xf32> -> vector<80x16xf32>
    %37 = arith.divf %26, %36 : vector<80x16xf32>
    %38 = math.floor %20 : vector<80x32xf32>
    %39 = arith.subf %20, %38 : vector<80x32xf32>
    %40 = arith.fptosi %38 : vector<80x32xf32> to vector<80x32xi32>
    %cst_19 = arith.constant 0.000000e+00 : f32
    %41 = vector.broadcast %cst_19 : f32 to vector<80x32xf32>
    %42 = tpu.iota {dimensions = array<i32: 1>} : vector<80x64xi32>
    %c3_i32 = arith.constant 3 : i32
    %43 = vector.broadcast %c3_i32 : i32 to vector<80x64xi32>
    %44 = arith.shrsi %42, %43 : vector<80x64xi32>
    %c7_i32 = arith.constant 7 : i32
    %45 = vector.broadcast %c7_i32 : i32 to vector<80x64xi32>
    %46 = arith.andi %42, %45 : vector<80x64xi32>
    %cst_20 = arith.constant 0.000000e+00 : f32
    %47 = vector.broadcast %cst_20 : f32 to vector<80x64xf32>
    %48 = vector.extract_strided_slice %40 {offsets = [0, 0], sizes = [80, 1], strides = [1, 1]} : vector<80x32xi32> to vector<80x1xi32>
    %49 = vector.extract_strided_slice %40 {offsets = [0, 1], sizes = [80, 1], strides = [1, 1]} : vector<80x32xi32> to vector<80x1xi32>
    %50 = vector.extract_strided_slice %39 {offsets = [0, 0], sizes = [80, 1], strides = [1, 1]} : vector<80x32xf32> to vector<80x1xf32>
    %51 = vector.extract_strided_slice %39 {offsets = [0, 1], sizes = [80, 1], strides = [1, 1]} : vector<80x32xf32> to vector<80x1xf32>
    %52 = vector.extract_strided_slice %37 {offsets = [0, 0], sizes = [80, 1], strides = [1, 1]} : vector<80x16xf32> to vector<80x1xf32>
    %53 = vector.broadcast %49 : vector<80x1xi32> to vector<80x64xi32>
    %54 = arith.cmpi eq, %44, %53 : vector<80x64xi32>
    %cst_21 = arith.constant 1.000000e+00 : f32
    %55 = vector.broadcast %cst_21 : f32 to vector<80x1xf32>
    %56 = arith.subf %55, %51 : vector<80x1xf32>
    %cst_22 = arith.constant 0.000000e+00 : f32
    %57 = vector.shape_cast %56 : vector<80x1xf32> to vector<80x1xf32>
    %58 = vector.broadcast %57 : vector<80x1xf32> to vector<80x64xf32>
    %59 = vector.broadcast %cst_22 : f32 to vector<80x64xf32>
    %60 = arith.select %54, %58, %59 : vector<80x64xi1>, vector<80x64xf32>
    %c1_i32 = arith.constant 1 : i32
    %61 = vector.broadcast %c1_i32 : i32 to vector<80x1xi32>
    %62 = arith.addi %49, %61 : vector<80x1xi32>
    %63 = vector.broadcast %62 : vector<80x1xi32> to vector<80x64xi32>
    %64 = arith.cmpi eq, %44, %63 : vector<80x64xi32>
    %cst_23 = arith.constant 0.000000e+00 : f32
    %65 = vector.shape_cast %51 : vector<80x1xf32> to vector<80x1xf32>
    %66 = vector.broadcast %65 : vector<80x1xf32> to vector<80x64xf32>
    %67 = vector.broadcast %cst_23 : f32 to vector<80x64xf32>
    %68 = arith.select %64, %66, %67 : vector<80x64xi1>, vector<80x64xf32>
    %69 = arith.addf %60, %68 : vector<80x64xf32>
    %70 = vector.broadcast %48 : vector<80x1xi32> to vector<80x64xi32>
    %71 = arith.cmpi eq, %46, %70 : vector<80x64xi32>
    %cst_24 = arith.constant 1.000000e+00 : f32
    %72 = vector.broadcast %cst_24 : f32 to vector<80x1xf32>
    %73 = arith.subf %72, %50 : vector<80x1xf32>
    %cst_25 = arith.constant 0.000000e+00 : f32
    %74 = vector.shape_cast %73 : vector<80x1xf32> to vector<80x1xf32>
    %75 = vector.broadcast %74 : vector<80x1xf32> to vector<80x64xf32>
    %76 = vector.broadcast %cst_25 : f32 to vector<80x64xf32>
    %77 = arith.select %71, %75, %76 : vector<80x64xi1>, vector<80x64xf32>
    %c1_i32_26 = arith.constant 1 : i32
    %78 = vector.broadcast %c1_i32_26 : i32 to vector<80x1xi32>
    %79 = arith.addi %48, %78 : vector<80x1xi32>
    %80 = vector.broadcast %79 : vector<80x1xi32> to vector<80x64xi32>
    %81 = arith.cmpi eq, %46, %80 : vector<80x64xi32>
    %cst_27 = arith.constant 0.000000e+00 : f32
    %82 = vector.shape_cast %50 : vector<80x1xf32> to vector<80x1xf32>
    %83 = vector.broadcast %82 : vector<80x1xf32> to vector<80x64xf32>
    %84 = vector.broadcast %cst_27 : f32 to vector<80x64xf32>
    %85 = arith.select %81, %83, %84 : vector<80x64xi1>, vector<80x64xf32>
    %86 = arith.addf %77, %85 : vector<80x64xf32>
    %87 = vector.broadcast %52 : vector<80x1xf32> to vector<80x64xf32>
    %88 = arith.mulf %87, %69 : vector<80x64xf32>
    %89 = arith.mulf %88, %86 : vector<80x64xf32>
    %90 = arith.addf %47, %89 : vector<80x64xf32>
    %91 = vector.extract_strided_slice %40 {offsets = [0, 2], sizes = [80, 1], strides = [1, 1]} : vector<80x32xi32> to vector<80x1xi32>
    %92 = vector.extract_strided_slice %40 {offsets = [0, 3], sizes = [80, 1], strides = [1, 1]} : vector<80x32xi32> to vector<80x1xi32>
    %93 = vector.extract_strided_slice %39 {offsets = [0, 2], sizes = [80, 1], strides = [1, 1]} : vector<80x32xf32> to vector<80x1xf32>
    %94 = vector.extract_strided_slice %39 {offsets = [0, 3], sizes = [80, 1], strides = [1, 1]} : vector<80x32xf32> to vector<80x1xf32>
    %95 = vector.extract_strided_slice %37 {offsets = [0, 1], sizes = [80, 1], strides = [1, 1]} : vector<80x16xf32> to vector<80x1xf32>
    %96 = vector.broadcast %92 : vector<80x1xi32> to vector<80x64xi32>
    %97 = arith.cmpi eq, %44, %96 : vector<80x64xi32>
    %cst_28 = arith.constant 1.000000e+00 : f32
    %98 = vector.broadcast %cst_28 : f32 to vector<80x1xf32>
    %99 = arith.subf %98, %94 : vector<80x1xf32>
    %cst_29 = arith.constant 0.000000e+00 : f32
    %100 = vector.shape_cast %99 : vector<80x1xf32> to vector<80x1xf32>
    %101 = vector.broadcast %100 : vector<80x1xf32> to vector<80x64xf32>
    %102 = vector.broadcast %cst_29 : f32 to vector<80x64xf32>
    %103 = arith.select %97, %101, %102 : vector<80x64xi1>, vector<80x64xf32>
    %c1_i32_30 = arith.constant 1 : i32
    %104 = vector.broadcast %c1_i32_30 : i32 to vector<80x1xi32>
    %105 = arith.addi %92, %104 : vector<80x1xi32>
    %106 = vector.broadcast %105 : vector<80x1xi32> to vector<80x64xi32>
    %107 = arith.cmpi eq, %44, %106 : vector<80x64xi32>
    %cst_31 = arith.constant 0.000000e+00 : f32
    %108 = vector.shape_cast %94 : vector<80x1xf32> to vector<80x1xf32>
    %109 = vector.broadcast %108 : vector<80x1xf32> to vector<80x64xf32>
    %110 = vector.broadcast %cst_31 : f32 to vector<80x64xf32>
    %111 = arith.select %107, %109, %110 : vector<80x64xi1>, vector<80x64xf32>
    %112 = arith.addf %103, %111 : vector<80x64xf32>
    %113 = vector.broadcast %91 : vector<80x1xi32> to vector<80x64xi32>
    %114 = arith.cmpi eq, %46, %113 : vector<80x64xi32>
    %cst_32 = arith.constant 1.000000e+00 : f32
    %115 = vector.broadcast %cst_32 : f32 to vector<80x1xf32>
    %116 = arith.subf %115, %93 : vector<80x1xf32>
    %cst_33 = arith.constant 0.000000e+00 : f32
    %117 = vector.shape_cast %116 : vector<80x1xf32> to vector<80x1xf32>
    %118 = vector.broadcast %117 : vector<80x1xf32> to vector<80x64xf32>
    %119 = vector.broadcast %cst_33 : f32 to vector<80x64xf32>
    %120 = arith.select %114, %118, %119 : vector<80x64xi1>, vector<80x64xf32>
    %c1_i32_34 = arith.constant 1 : i32
    %121 = vector.broadcast %c1_i32_34 : i32 to vector<80x1xi32>
    %122 = arith.addi %91, %121 : vector<80x1xi32>
    %123 = vector.broadcast %122 : vector<80x1xi32> to vector<80x64xi32>
    %124 = arith.cmpi eq, %46, %123 : vector<80x64xi32>
    %cst_35 = arith.constant 0.000000e+00 : f32
    %125 = vector.shape_cast %93 : vector<80x1xf32> to vector<80x1xf32>
    %126 = vector.broadcast %125 : vector<80x1xf32> to vector<80x64xf32>
    %127 = vector.broadcast %cst_35 : f32 to vector<80x64xf32>
    %128 = arith.select %124, %126, %127 : vector<80x64xi1>, vector<80x64xf32>
    %129 = arith.addf %120, %128 : vector<80x64xf32>
    %130 = vector.broadcast %95 : vector<80x1xf32> to vector<80x64xf32>
    %131 = arith.mulf %130, %112 : vector<80x64xf32>
    %132 = arith.mulf %131, %129 : vector<80x64xf32>
    %133 = arith.addf %90, %132 : vector<80x64xf32>
    %c0_36 = arith.constant 0 : index
    %c0_37 = arith.constant 0 : index
    %134 = vector.load %arg18[%c0_36, %c0_37] : memref<80x256xf32, #tpu.memory_space<vmem>>, vector<80x64xf32>
    tpu.vector_store %arg18[%c0_36, %c0_37], %133 {strides = array<i32>} : memref<80x256xf32, #tpu.memory_space<vmem>>, vector<80x64xf32>,
    %cst_38 = arith.constant 0.000000e+00 : f32
    %135 = vector.broadcast %cst_38 : f32 to vector<80x64xf32>
    %136 = vector.extract_strided_slice %40 {offsets = [0, 8], sizes = [80, 1], strides = [1, 1]} : vector<80x32xi32> to vector<80x1xi32>
    %137 = vector.extract_strided_slice %40 {offsets = [0, 9], sizes = [80, 1], strides = [1, 1]} : vector<80x32xi32> to vector<80x1xi32>
    %138 = vector.extract_strided_slice %39 {offsets = [0, 8], sizes = [80, 1], strides = [1, 1]} : vector<80x32xf32> to vector<80x1xf32>
    %139 = vector.extract_strided_slice %39 {offsets = [0, 9], sizes = [80, 1], strides = [1, 1]} : vector<80x32xf32> to vector<80x1xf32>
    %140 = vector.extract_strided_slice %37 {offsets = [0, 4], sizes = [80, 1], strides = [1, 1]} : vector<80x16xf32> to vector<80x1xf32>
    %141 = vector.broadcast %137 : vector<80x1xi32> to vector<80x64xi32>
    %142 = arith.cmpi eq, %44, %141 : vector<80x64xi32>
    %cst_39 = arith.constant 1.000000e+00 : f32
    %143 = vector.broadcast %cst_39 : f32 to vector<80x1xf32>
    %144 = arith.subf %143, %139 : vector<80x1xf32>
    %cst_40 = arith.constant 0.000000e+00 : f32
    %145 = vector.shape_cast %144 : vector<80x1xf32> to vector<80x1xf32>
    %146 = vector.broadcast %145 : vector<80x1xf32> to vector<80x64xf32>
    %147 = vector.broadcast %cst_40 : f32 to vector<80x64xf32>
    %148 = arith.select %142, %146, %147 : vector<80x64xi1>, vector<80x64xf32>
    %c1_i32_41 = arith.constant 1 : i32
    %149 = vector.broadcast %c1_i32_41 : i32 to vector<80x1xi32>
    %150 = arith.addi %137, %149 : vector<80x1xi32>
    %151 = vector.broadcast %150 : vector<80x1xi32> to vector<80x64xi32>
    %152 = arith.cmpi eq, %44, %151 : vector<80x64xi32>
    %cst_42 = arith.constant 0.000000e+00 : f32
    %153 = vector.shape_cast %139 : vector<80x1xf32> to vector<80x1xf32>
    %154 = vector.broadcast %153 : vector<80x1xf32> to vector<80x64xf32>
    %155 = vector.broadcast %cst_42 : f32 to vector<80x64xf32>
    %156 = arith.select %152, %154, %155 : vector<80x64xi1>, vector<80x64xf32>
    %157 = arith.addf %148, %156 : vector<80x64xf32>
    %158 = vector.broadcast %136 : vector<80x1xi32> to vector<80x64xi32>
    %159 = arith.cmpi eq, %46, %158 : vector<80x64xi32>
    %cst_43 = arith.constant 1.000000e+00 : f32
    %160 = vector.broadcast %cst_43 : f32 to vector<80x1xf32>
    %161 = arith.subf %160, %138 : vector<80x1xf32>
    %cst_44 = arith.constant 0.000000e+00 : f32
    %162 = vector.shape_cast %161 : vector<80x1xf32> to vector<80x1xf32>
    %163 = vector.broadcast %162 : vector<80x1xf32> to vector<80x64xf32>
    %164 = vector.broadcast %cst_44 : f32 to vector<80x64xf32>
    %165 = arith.select %159, %163, %164 : vector<80x64xi1>, vector<80x64xf32>
    %c1_i32_45 = arith.constant 1 : i32
    %166 = vector.broadcast %c1_i32_45 : i32 to vector<80x1xi32>
    %167 = arith.addi %136, %166 : vector<80x1xi32>
    %168 = vector.broadcast %167 : vector<80x1xi32> to vector<80x64xi32>
    %169 = arith.cmpi eq, %46, %168 : vector<80x64xi32>
    %cst_46 = arith.constant 0.000000e+00 : f32
    %170 = vector.shape_cast %138 : vector<80x1xf32> to vector<80x1xf32>
    %171 = vector.broadcast %170 : vector<80x1xf32> to vector<80x64xf32>
    %172 = vector.broadcast %cst_46 : f32 to vector<80x64xf32>
    %173 = arith.select %169, %171, %172 : vector<80x64xi1>, vector<80x64xf32>
    %174 = arith.addf %165, %173 : vector<80x64xf32>
    %175 = vector.broadcast %140 : vector<80x1xf32> to vector<80x64xf32>
    %176 = arith.mulf %175, %157 : vector<80x64xf32>
    %177 = arith.mulf %176, %174 : vector<80x64xf32>
    %178 = arith.addf %135, %177 : vector<80x64xf32>
    %179 = vector.extract_strided_slice %40 {offsets = [0, 10], sizes = [80, 1], strides = [1, 1]} : vector<80x32xi32> to vector<80x1xi32>
    %180 = vector.extract_strided_slice %40 {offsets = [0, 11], sizes = [80, 1], strides = [1, 1]} : vector<80x32xi32> to vector<80x1xi32>
    %181 = vector.extract_strided_slice %39 {offsets = [0, 10], sizes = [80, 1], strides = [1, 1]} : vector<80x32xf32> to vector<80x1xf32>
    %182 = vector.extract_strided_slice %39 {offsets = [0, 11], sizes = [80, 1], strides = [1, 1]} : vector<80x32xf32> to vector<80x1xf32>
    %183 = vector.extract_strided_slice %37 {offsets = [0, 5], sizes = [80, 1], strides = [1, 1]} : vector<80x16xf32> to vector<80x1xf32>
    %184 = vector.broadcast %180 : vector<80x1xi32> to vector<80x64xi32>
    %185 = arith.cmpi eq, %44, %184 : vector<80x64xi32>
    %cst_47 = arith.constant 1.000000e+00 : f32
    %186 = vector.broadcast %cst_47 : f32 to vector<80x1xf32>
    %187 = arith.subf %186, %182 : vector<80x1xf32>
    %cst_48 = arith.constant 0.000000e+00 : f32
    %188 = vector.shape_cast %187 : vector<80x1xf32> to vector<80x1xf32>
    %189 = vector.broadcast %188 : vector<80x1xf32> to vector<80x64xf32>
    %190 = vector.broadcast %cst_48 : f32 to vector<80x64xf32>
    %191 = arith.select %185, %189, %190 : vector<80x64xi1>, vector<80x64xf32>
    %c1_i32_49 = arith.constant 1 : i32
    %192 = vector.broadcast %c1_i32_49 : i32 to vector<80x1xi32>
    %193 = arith.addi %180, %192 : vector<80x1xi32>
    %194 = vector.broadcast %193 : vector<80x1xi32> to vector<80x64xi32>
    %195 = arith.cmpi eq, %44, %194 : vector<80x64xi32>
    %cst_50 = arith.constant 0.000000e+00 : f32
    %196 = vector.shape_cast %182 : vector<80x1xf32> to vector<80x1xf32>
    %197 = vector.broadcast %196 : vector<80x1xf32> to vector<80x64xf32>
    %198 = vector.broadcast %cst_50 : f32 to vector<80x64xf32>
    %199 = arith.select %195, %197, %198 : vector<80x64xi1>, vector<80x64xf32>
    %200 = arith.addf %191, %199 : vector<80x64xf32>
    %201 = vector.broadcast %179 : vector<80x1xi32> to vector<80x64xi32>
    %202 = arith.cmpi eq, %46, %201 : vector<80x64xi32>
    %cst_51 = arith.constant 1.000000e+00 : f32
    %203 = vector.broadcast %cst_51 : f32 to vector<80x1xf32>
    %204 = arith.subf %203, %181 : vector<80x1xf32>
    %cst_52 = arith.constant 0.000000e+00 : f32
    %205 = vector.shape_cast %204 : vector<80x1xf32> to vector<80x1xf32>
    %206 = vector.broadcast %205 : vector<80x1xf32> to vector<80x64xf32>
    %207 = vector.broadcast %cst_52 : f32 to vector<80x64xf32>
    %208 = arith.select %202, %206, %207 : vector<80x64xi1>, vector<80x64xf32>
    %c1_i32_53 = arith.constant 1 : i32
    %209 = vector.broadcast %c1_i32_53 : i32 to vector<80x1xi32>
    %210 = arith.addi %179, %209 : vector<80x1xi32>
    %211 = vector.broadcast %210 : vector<80x1xi32> to vector<80x64xi32>
    %212 = arith.cmpi eq, %46, %211 : vector<80x64xi32>
    %cst_54 = arith.constant 0.000000e+00 : f32
    %213 = vector.shape_cast %181 : vector<80x1xf32> to vector<80x1xf32>
    %214 = vector.broadcast %213 : vector<80x1xf32> to vector<80x64xf32>
    %215 = vector.broadcast %cst_54 : f32 to vector<80x64xf32>
    %216 = arith.select %212, %214, %215 : vector<80x64xi1>, vector<80x64xf32>
    %217 = arith.addf %208, %216 : vector<80x64xf32>
    %218 = vector.broadcast %183 : vector<80x1xf32> to vector<80x64xf32>
    %219 = arith.mulf %218, %200 : vector<80x64xf32>
    %220 = arith.mulf %219, %217 : vector<80x64xf32>
    %221 = arith.addf %178, %220 : vector<80x64xf32>
    %c0_55 = arith.constant 0 : index
    %c64 = arith.constant 64 : index
    %222 = vector.load %arg18[%c0_55, %c64] : memref<80x256xf32, #tpu.memory_space<vmem>>, vector<80x64xf32>
    tpu.vector_store %arg18[%c0_55, %c64], %221 {strides = array<i32>} : memref<80x256xf32, #tpu.memory_space<vmem>>, vector<80x64xf32>,
    %cst_56 = arith.constant 0.000000e+00 : f32
    %223 = vector.broadcast %cst_56 : f32 to vector<80x64xf32>
    %224 = vector.extract_strided_slice %40 {offsets = [0, 16], sizes = [80, 1], strides = [1, 1]} : vector<80x32xi32> to vector<80x1xi32>
    %225 = vector.extract_strided_slice %40 {offsets = [0, 17], sizes = [80, 1], strides = [1, 1]} : vector<80x32xi32> to vector<80x1xi32>
    %226 = vector.extract_strided_slice %39 {offsets = [0, 16], sizes = [80, 1], strides = [1, 1]} : vector<80x32xf32> to vector<80x1xf32>
    %227 = vector.extract_strided_slice %39 {offsets = [0, 17], sizes = [80, 1], strides = [1, 1]} : vector<80x32xf32> to vector<80x1xf32>
    %228 = vector.extract_strided_slice %37 {offsets = [0, 8], sizes = [80, 1], strides = [1, 1]} : vector<80x16xf32> to vector<80x1xf32>
    %229 = vector.broadcast %225 : vector<80x1xi32> to vector<80x64xi32>
    %230 = arith.cmpi eq, %44, %229 : vector<80x64xi32>
    %cst_57 = arith.constant 1.000000e+00 : f32
    %231 = vector.broadcast %cst_57 : f32 to vector<80x1xf32>
    %232 = arith.subf %231, %227 : vector<80x1xf32>
    %cst_58 = arith.constant 0.000000e+00 : f32
    %233 = vector.shape_cast %232 : vector<80x1xf32> to vector<80x1xf32>
    %234 = vector.broadcast %233 : vector<80x1xf32> to vector<80x64xf32>
    %235 = vector.broadcast %cst_58 : f32 to vector<80x64xf32>
    %236 = arith.select %230, %234, %235 : vector<80x64xi1>, vector<80x64xf32>
    %c1_i32_59 = arith.constant 1 : i32
    %237 = vector.broadcast %c1_i32_59 : i32 to vector<80x1xi32>
    %238 = arith.addi %225, %237 : vector<80x1xi32>
    %239 = vector.broadcast %238 : vector<80x1xi32> to vector<80x64xi32>
    %240 = arith.cmpi eq, %44, %239 : vector<80x64xi32>
    %cst_60 = arith.constant 0.000000e+00 : f32
    %241 = vector.shape_cast %227 : vector<80x1xf32> to vector<80x1xf32>
    %242 = vector.broadcast %241 : vector<80x1xf32> to vector<80x64xf32>
    %243 = vector.broadcast %cst_60 : f32 to vector<80x64xf32>
    %244 = arith.select %240, %242, %243 : vector<80x64xi1>, vector<80x64xf32>
    %245 = arith.addf %236, %244 : vector<80x64xf32>
    %246 = vector.broadcast %224 : vector<80x1xi32> to vector<80x64xi32>
    %247 = arith.cmpi eq, %46, %246 : vector<80x64xi32>
    %cst_61 = arith.constant 1.000000e+00 : f32
    %248 = vector.broadcast %cst_61 : f32 to vector<80x1xf32>
    %249 = arith.subf %248, %226 : vector<80x1xf32>
    %cst_62 = arith.constant 0.000000e+00 : f32
    %250 = vector.shape_cast %249 : vector<80x1xf32> to vector<80x1xf32>
    %251 = vector.broadcast %250 : vector<80x1xf32> to vector<80x64xf32>
    %252 = vector.broadcast %cst_62 : f32 to vector<80x64xf32>
    %253 = arith.select %247, %251, %252 : vector<80x64xi1>, vector<80x64xf32>
    %c1_i32_63 = arith.constant 1 : i32
    %254 = vector.broadcast %c1_i32_63 : i32 to vector<80x1xi32>
    %255 = arith.addi %224, %254 : vector<80x1xi32>
    %256 = vector.broadcast %255 : vector<80x1xi32> to vector<80x64xi32>
    %257 = arith.cmpi eq, %46, %256 : vector<80x64xi32>
    %cst_64 = arith.constant 0.000000e+00 : f32
    %258 = vector.shape_cast %226 : vector<80x1xf32> to vector<80x1xf32>
    %259 = vector.broadcast %258 : vector<80x1xf32> to vector<80x64xf32>
    %260 = vector.broadcast %cst_64 : f32 to vector<80x64xf32>
    %261 = arith.select %257, %259, %260 : vector<80x64xi1>, vector<80x64xf32>
    %262 = arith.addf %253, %261 : vector<80x64xf32>
    %263 = vector.broadcast %228 : vector<80x1xf32> to vector<80x64xf32>
    %264 = arith.mulf %263, %245 : vector<80x64xf32>
    %265 = arith.mulf %264, %262 : vector<80x64xf32>
    %266 = arith.addf %223, %265 : vector<80x64xf32>
    %267 = vector.extract_strided_slice %40 {offsets = [0, 18], sizes = [80, 1], strides = [1, 1]} : vector<80x32xi32> to vector<80x1xi32>
    %268 = vector.extract_strided_slice %40 {offsets = [0, 19], sizes = [80, 1], strides = [1, 1]} : vector<80x32xi32> to vector<80x1xi32>
    %269 = vector.extract_strided_slice %39 {offsets = [0, 18], sizes = [80, 1], strides = [1, 1]} : vector<80x32xf32> to vector<80x1xf32>
    %270 = vector.extract_strided_slice %39 {offsets = [0, 19], sizes = [80, 1], strides = [1, 1]} : vector<80x32xf32> to vector<80x1xf32>
    %271 = vector.extract_strided_slice %37 {offsets = [0, 9], sizes = [80, 1], strides = [1, 1]} : vector<80x16xf32> to vector<80x1xf32>
    %272 = vector.broadcast %268 : vector<80x1xi32> to vector<80x64xi32>
    %273 = arith.cmpi eq, %44, %272 : vector<80x64xi32>
    %cst_65 = arith.constant 1.000000e+00 : f32
    %274 = vector.broadcast %cst_65 : f32 to vector<80x1xf32>
    %275 = arith.subf %274, %270 : vector<80x1xf32>
    %cst_66 = arith.constant 0.000000e+00 : f32
    %276 = vector.shape_cast %275 : vector<80x1xf32> to vector<80x1xf32>
    %277 = vector.broadcast %276 : vector<80x1xf32> to vector<80x64xf32>
    %278 = vector.broadcast %cst_66 : f32 to vector<80x64xf32>
    %279 = arith.select %273, %277, %278 : vector<80x64xi1>, vector<80x64xf32>
    %c1_i32_67 = arith.constant 1 : i32
    %280 = vector.broadcast %c1_i32_67 : i32 to vector<80x1xi32>
    %281 = arith.addi %268, %280 : vector<80x1xi32>
    %282 = vector.broadcast %281 : vector<80x1xi32> to vector<80x64xi32>
    %283 = arith.cmpi eq, %44, %282 : vector<80x64xi32>
    %cst_68 = arith.constant 0.000000e+00 : f32
    %284 = vector.shape_cast %270 : vector<80x1xf32> to vector<80x1xf32>
    %285 = vector.broadcast %284 : vector<80x1xf32> to vector<80x64xf32>
    %286 = vector.broadcast %cst_68 : f32 to vector<80x64xf32>
    %287 = arith.select %283, %285, %286 : vector<80x64xi1>, vector<80x64xf32>
    %288 = arith.addf %279, %287 : vector<80x64xf32>
    %289 = vector.broadcast %267 : vector<80x1xi32> to vector<80x64xi32>
    %290 = arith.cmpi eq, %46, %289 : vector<80x64xi32>
    %cst_69 = arith.constant 1.000000e+00 : f32
    %291 = vector.broadcast %cst_69 : f32 to vector<80x1xf32>
    %292 = arith.subf %291, %269 : vector<80x1xf32>
    %cst_70 = arith.constant 0.000000e+00 : f32
    %293 = vector.shape_cast %292 : vector<80x1xf32> to vector<80x1xf32>
    %294 = vector.broadcast %293 : vector<80x1xf32> to vector<80x64xf32>
    %295 = vector.broadcast %cst_70 : f32 to vector<80x64xf32>
    %296 = arith.select %290, %294, %295 : vector<80x64xi1>, vector<80x64xf32>
    %c1_i32_71 = arith.constant 1 : i32
    %297 = vector.broadcast %c1_i32_71 : i32 to vector<80x1xi32>
    %298 = arith.addi %267, %297 : vector<80x1xi32>
    %299 = vector.broadcast %298 : vector<80x1xi32> to vector<80x64xi32>
    %300 = arith.cmpi eq, %46, %299 : vector<80x64xi32>
    %cst_72 = arith.constant 0.000000e+00 : f32
    %301 = vector.shape_cast %269 : vector<80x1xf32> to vector<80x1xf32>
    %302 = vector.broadcast %301 : vector<80x1xf32> to vector<80x64xf32>
    %303 = vector.broadcast %cst_72 : f32 to vector<80x64xf32>
    %304 = arith.select %300, %302, %303 : vector<80x64xi1>, vector<80x64xf32>
    %305 = arith.addf %296, %304 : vector<80x64xf32>
    %306 = vector.broadcast %271 : vector<80x1xf32> to vector<80x64xf32>
    %307 = arith.mulf %306, %288 : vector<80x64xf32>
    %308 = arith.mulf %307, %305 : vector<80x64xf32>
    %309 = arith.addf %266, %308 : vector<80x64xf32>
    %c0_73 = arith.constant 0 : index
    %c128 = arith.constant 128 : index
    %310 = vector.load %arg18[%c0_73, %c128] : memref<80x256xf32, #tpu.memory_space<vmem>>, vector<80x64xf32>
    tpu.vector_store %arg18[%c0_73, %c128], %309 {strides = array<i32>} : memref<80x256xf32, #tpu.memory_space<vmem>>, vector<80x64xf32>,
    %cst_74 = arith.constant 0.000000e+00 : f32
    %311 = vector.broadcast %cst_74 : f32 to vector<80x64xf32>
    %312 = vector.extract_strided_slice %40 {offsets = [0, 24], sizes = [80, 1], strides = [1, 1]} : vector<80x32xi32> to vector<80x1xi32>
    %313 = vector.extract_strided_slice %40 {offsets = [0, 25], sizes = [80, 1], strides = [1, 1]} : vector<80x32xi32> to vector<80x1xi32>
    %314 = vector.extract_strided_slice %39 {offsets = [0, 24], sizes = [80, 1], strides = [1, 1]} : vector<80x32xf32> to vector<80x1xf32>
    %315 = vector.extract_strided_slice %39 {offsets = [0, 25], sizes = [80, 1], strides = [1, 1]} : vector<80x32xf32> to vector<80x1xf32>
    %316 = vector.extract_strided_slice %37 {offsets = [0, 12], sizes = [80, 1], strides = [1, 1]} : vector<80x16xf32> to vector<80x1xf32>
    %317 = vector.broadcast %313 : vector<80x1xi32> to vector<80x64xi32>
    %318 = arith.cmpi eq, %44, %317 : vector<80x64xi32>
    %cst_75 = arith.constant 1.000000e+00 : f32
    %319 = vector.broadcast %cst_75 : f32 to vector<80x1xf32>
    %320 = arith.subf %319, %315 : vector<80x1xf32>
    %cst_76 = arith.constant 0.000000e+00 : f32
    %321 = vector.shape_cast %320 : vector<80x1xf32> to vector<80x1xf32>
    %322 = vector.broadcast %321 : vector<80x1xf32> to vector<80x64xf32>
    %323 = vector.broadcast %cst_76 : f32 to vector<80x64xf32>
    %324 = arith.select %318, %322, %323 : vector<80x64xi1>, vector<80x64xf32>
    %c1_i32_77 = arith.constant 1 : i32
    %325 = vector.broadcast %c1_i32_77 : i32 to vector<80x1xi32>
    %326 = arith.addi %313, %325 : vector<80x1xi32>
    %327 = vector.broadcast %326 : vector<80x1xi32> to vector<80x64xi32>
    %328 = arith.cmpi eq, %44, %327 : vector<80x64xi32>
    %cst_78 = arith.constant 0.000000e+00 : f32
    %329 = vector.shape_cast %315 : vector<80x1xf32> to vector<80x1xf32>
    %330 = vector.broadcast %329 : vector<80x1xf32> to vector<80x64xf32>
    %331 = vector.broadcast %cst_78 : f32 to vector<80x64xf32>
    %332 = arith.select %328, %330, %331 : vector<80x64xi1>, vector<80x64xf32>
    %333 = arith.addf %324, %332 : vector<80x64xf32>
    %334 = vector.broadcast %312 : vector<80x1xi32> to vector<80x64xi32>
    %335 = arith.cmpi eq, %46, %334 : vector<80x64xi32>
    %cst_79 = arith.constant 1.000000e+00 : f32
    %336 = vector.broadcast %cst_79 : f32 to vector<80x1xf32>
    %337 = arith.subf %336, %314 : vector<80x1xf32>
    %cst_80 = arith.constant 0.000000e+00 : f32
    %338 = vector.shape_cast %337 : vector<80x1xf32> to vector<80x1xf32>
    %339 = vector.broadcast %338 : vector<80x1xf32> to vector<80x64xf32>
    %340 = vector.broadcast %cst_80 : f32 to vector<80x64xf32>
    %341 = arith.select %335, %339, %340 : vector<80x64xi1>, vector<80x64xf32>
    %c1_i32_81 = arith.constant 1 : i32
    %342 = vector.broadcast %c1_i32_81 : i32 to vector<80x1xi32>
    %343 = arith.addi %312, %342 : vector<80x1xi32>
    %344 = vector.broadcast %343 : vector<80x1xi32> to vector<80x64xi32>
    %345 = arith.cmpi eq, %46, %344 : vector<80x64xi32>
    %cst_82 = arith.constant 0.000000e+00 : f32
    %346 = vector.shape_cast %314 : vector<80x1xf32> to vector<80x1xf32>
    %347 = vector.broadcast %346 : vector<80x1xf32> to vector<80x64xf32>
    %348 = vector.broadcast %cst_82 : f32 to vector<80x64xf32>
    %349 = arith.select %345, %347, %348 : vector<80x64xi1>, vector<80x64xf32>
    %350 = arith.addf %341, %349 : vector<80x64xf32>
    %351 = vector.broadcast %316 : vector<80x1xf32> to vector<80x64xf32>
    %352 = arith.mulf %351, %333 : vector<80x64xf32>
    %353 = arith.mulf %352, %350 : vector<80x64xf32>
    %354 = arith.addf %311, %353 : vector<80x64xf32>
    %355 = vector.extract_strided_slice %40 {offsets = [0, 26], sizes = [80, 1], strides = [1, 1]} : vector<80x32xi32> to vector<80x1xi32>
    %356 = vector.extract_strided_slice %40 {offsets = [0, 27], sizes = [80, 1], strides = [1, 1]} : vector<80x32xi32> to vector<80x1xi32>
    %357 = vector.extract_strided_slice %39 {offsets = [0, 26], sizes = [80, 1], strides = [1, 1]} : vector<80x32xf32> to vector<80x1xf32>
    %358 = vector.extract_strided_slice %39 {offsets = [0, 27], sizes = [80, 1], strides = [1, 1]} : vector<80x32xf32> to vector<80x1xf32>
    %359 = vector.extract_strided_slice %37 {offsets = [0, 13], sizes = [80, 1], strides = [1, 1]} : vector<80x16xf32> to vector<80x1xf32>
    %360 = vector.broadcast %356 : vector<80x1xi32> to vector<80x64xi32>
    %361 = arith.cmpi eq, %44, %360 : vector<80x64xi32>
    %cst_83 = arith.constant 1.000000e+00 : f32
    %362 = vector.broadcast %cst_83 : f32 to vector<80x1xf32>
    %363 = arith.subf %362, %358 : vector<80x1xf32>
    %cst_84 = arith.constant 0.000000e+00 : f32
    %364 = vector.shape_cast %363 : vector<80x1xf32> to vector<80x1xf32>
    %365 = vector.broadcast %364 : vector<80x1xf32> to vector<80x64xf32>
    %366 = vector.broadcast %cst_84 : f32 to vector<80x64xf32>
    %367 = arith.select %361, %365, %366 : vector<80x64xi1>, vector<80x64xf32>
    %c1_i32_85 = arith.constant 1 : i32
    %368 = vector.broadcast %c1_i32_85 : i32 to vector<80x1xi32>
    %369 = arith.addi %356, %368 : vector<80x1xi32>
    %370 = vector.broadcast %369 : vector<80x1xi32> to vector<80x64xi32>
    %371 = arith.cmpi eq, %44, %370 : vector<80x64xi32>
    %cst_86 = arith.constant 0.000000e+00 : f32
    %372 = vector.shape_cast %358 : vector<80x1xf32> to vector<80x1xf32>
    %373 = vector.broadcast %372 : vector<80x1xf32> to vector<80x64xf32>
    %374 = vector.broadcast %cst_86 : f32 to vector<80x64xf32>
    %375 = arith.select %371, %373, %374 : vector<80x64xi1>, vector<80x64xf32>
    %376 = arith.addf %367, %375 : vector<80x64xf32>
    %377 = vector.broadcast %355 : vector<80x1xi32> to vector<80x64xi32>
    %378 = arith.cmpi eq, %46, %377 : vector<80x64xi32>
    %cst_87 = arith.constant 1.000000e+00 : f32
    %379 = vector.broadcast %cst_87 : f32 to vector<80x1xf32>
    %380 = arith.subf %379, %357 : vector<80x1xf32>
    %cst_88 = arith.constant 0.000000e+00 : f32
    %381 = vector.shape_cast %380 : vector<80x1xf32> to vector<80x1xf32>
    %382 = vector.broadcast %381 : vector<80x1xf32> to vector<80x64xf32>
    %383 = vector.broadcast %cst_88 : f32 to vector<80x64xf32>
    %384 = arith.select %378, %382, %383 : vector<80x64xi1>, vector<80x64xf32>
    %c1_i32_89 = arith.constant 1 : i32
    %385 = vector.broadcast %c1_i32_89 : i32 to vector<80x1xi32>
    %386 = arith.addi %355, %385 : vector<80x1xi32>
    %387 = vector.broadcast %386 : vector<80x1xi32> to vector<80x64xi32>
    %388 = arith.cmpi eq, %46, %387 : vector<80x64xi32>
    %cst_90 = arith.constant 0.000000e+00 : f32
    %389 = vector.shape_cast %357 : vector<80x1xf32> to vector<80x1xf32>
    %390 = vector.broadcast %389 : vector<80x1xf32> to vector<80x64xf32>
    %391 = vector.broadcast %cst_90 : f32 to vector<80x64xf32>
    %392 = arith.select %388, %390, %391 : vector<80x64xi1>, vector<80x64xf32>
    %393 = arith.addf %384, %392 : vector<80x64xf32>
    %394 = vector.broadcast %359 : vector<80x1xf32> to vector<80x64xf32>
    %395 = arith.mulf %394, %376 : vector<80x64xf32>
    %396 = arith.mulf %395, %393 : vector<80x64xf32>
    %397 = arith.addf %354, %396 : vector<80x64xf32>
    %c0_91 = arith.constant 0 : index
    %c192 = arith.constant 192 : index
    %398 = vector.load %arg18[%c0_91, %c192] : memref<80x256xf32, #tpu.memory_space<vmem>>, vector<80x64xf32>
    tpu.vector_store %arg18[%c0_91, %c192], %397 {strides = array<i32>} : memref<80x256xf32, #tpu.memory_space<vmem>>, vector<80x64xf32>,
    %399 = vector.extract_strided_slice %16 {offsets = [0, 0], sizes = [64, 32], strides = [1, 1]} : vector<80x32xf32> to vector<64x32xf32>
    %400 = tpu.iota {dimensions = array<i32: 1>} : vector<64x32xi32>
    %c3_i32_92 = arith.constant 3 : i32
    %401 = vector.broadcast %c3_i32_92 : i32 to vector<64x32xi32>
    %402 = arith.shrsi %400, %401 : vector<64x32xi32>
    %c0_i32 = arith.constant 0 : i32
    %403 = vector.broadcast %c0_i32 : i32 to vector<64x32xi32>
    %404 = arith.cmpi eq, %402, %403 : vector<64x32xi32>
    %cst_93 = arith.constant 0.000000e+00 : f32
    %405 = vector.broadcast %cst_93 : f32 to vector<64x32xf32>
    %406 = arith.select %404, %399, %405 : vector<64x32xi1>, vector<64x32xf32>
    %c1_i32_94 = arith.constant 1 : i32
    %407 = vector.broadcast %c1_i32_94 : i32 to vector<64x32xi32>
    %408 = arith.cmpi eq, %402, %407 : vector<64x32xi32>
    %cst_95 = arith.constant 0.000000e+00 : f32
    %409 = vector.broadcast %cst_95 : f32 to vector<64x32xf32>
    %410 = arith.select %408, %399, %409 : vector<64x32xi1>, vector<64x32xf32>
    %c2_i32_96 = arith.constant 2 : i32
    %411 = vector.broadcast %c2_i32_96 : i32 to vector<64x32xi32>
    %412 = arith.cmpi eq, %402, %411 : vector<64x32xi32>
    %cst_97 = arith.constant 0.000000e+00 : f32
    %413 = vector.broadcast %cst_97 : f32 to vector<64x32xf32>
    %414 = arith.select %412, %399, %413 : vector<64x32xi1>, vector<64x32xf32>
    %c3_i32_98 = arith.constant 3 : i32
    %415 = vector.broadcast %c3_i32_98 : i32 to vector<64x32xi32>
    %416 = arith.cmpi eq, %402, %415 : vector<64x32xi32>
    %cst_99 = arith.constant 0.000000e+00 : f32
    %417 = vector.broadcast %cst_99 : f32 to vector<64x32xf32>
    %418 = arith.select %416, %399, %417 : vector<64x32xi1>, vector<64x32xf32>
    %419 = tpu.concatenate %406, %410, %414, %418 in 0 : vector<64x32xf32>, vector<64x32xf32>, vector<64x32xf32>, vector<64x32xf32> -> vector<256x32xf32>
    %c0_100 = arith.constant 0 : index
    %c0_101 = arith.constant 0 : index
    %420 = vector.load %arg18[%c0_100, %c0_101] : memref<80x256xf32, #tpu.memory_space<vmem>>, vector<80x256xf32>
    %cst_102 = arith.constant dense<0.000000e+00> : vector<80x32xf32>
    %421 = tpu.matmul %420, %419, %cst_102 {dimension_numbers = #tpu.dot_dimension_numbers<[1], [0], [0], [1], [0, 0, 1, 1], [], []>} : vector<80x256xf32>, vector<256x32xf32>, vector<80x32xf32> -> vector<80x32xf32>
    %422 = arith.addf %41, %421 : vector<80x32xf32>
    %423 = tpu.iota {dimensions = array<i32: 1>} : vector<80x16xi32>
    %c2_i32_103 = arith.constant 2 : i32
    %424 = vector.broadcast %c2_i32_103 : i32 to vector<80x16xi32>
    %425 = arith.shrsi %423, %424 : vector<80x16xi32>
    %c3_i32_104 = arith.constant 3 : i32
    %426 = vector.broadcast %c3_i32_104 : i32 to vector<80x16xi32>
    %427 = arith.andi %423, %426 : vector<80x16xi32>
    %cst_105 = arith.constant 0.000000e+00 : f32
    %428 = vector.broadcast %cst_105 : f32 to vector<80x16xf32>
    %429 = vector.extract_strided_slice %40 {offsets = [0, 4], sizes = [80, 1], strides = [1, 1]} : vector<80x32xi32> to vector<80x1xi32>
    %430 = vector.extract_strided_slice %40 {offsets = [0, 5], sizes = [80, 1], strides = [1, 1]} : vector<80x32xi32> to vector<80x1xi32>
    %431 = vector.extract_strided_slice %39 {offsets = [0, 4], sizes = [80, 1], strides = [1, 1]} : vector<80x32xf32> to vector<80x1xf32>
    %432 = vector.extract_strided_slice %39 {offsets = [0, 5], sizes = [80, 1], strides = [1, 1]} : vector<80x32xf32> to vector<80x1xf32>
    %433 = vector.extract_strided_slice %37 {offsets = [0, 2], sizes = [80, 1], strides = [1, 1]} : vector<80x16xf32> to vector<80x1xf32>
    %434 = vector.broadcast %430 : vector<80x1xi32> to vector<80x16xi32>
    %435 = arith.cmpi eq, %425, %434 : vector<80x16xi32>
    %cst_106 = arith.constant 1.000000e+00 : f32
    %436 = vector.broadcast %cst_106 : f32 to vector<80x1xf32>
    %437 = arith.subf %436, %432 : vector<80x1xf32>
    %cst_107 = arith.constant 0.000000e+00 : f32
    %438 = vector.shape_cast %437 : vector<80x1xf32> to vector<80x1xf32>
    %439 = vector.broadcast %438 : vector<80x1xf32> to vector<80x16xf32>
    %440 = vector.broadcast %cst_107 : f32 to vector<80x16xf32>
    %441 = arith.select %435, %439, %440 : vector<80x16xi1>, vector<80x16xf32>
    %c1_i32_108 = arith.constant 1 : i32
    %442 = vector.broadcast %c1_i32_108 : i32 to vector<80x1xi32>
    %443 = arith.addi %430, %442 : vector<80x1xi32>
    %444 = vector.broadcast %443 : vector<80x1xi32> to vector<80x16xi32>
    %445 = arith.cmpi eq, %425, %444 : vector<80x16xi32>
    %cst_109 = arith.constant 0.000000e+00 : f32
    %446 = vector.shape_cast %432 : vector<80x1xf32> to vector<80x1xf32>
    %447 = vector.broadcast %446 : vector<80x1xf32> to vector<80x16xf32>
    %448 = vector.broadcast %cst_109 : f32 to vector<80x16xf32>
    %449 = arith.select %445, %447, %448 : vector<80x16xi1>, vector<80x16xf32>
    %450 = arith.addf %441, %449 : vector<80x16xf32>
    %451 = vector.broadcast %429 : vector<80x1xi32> to vector<80x16xi32>
    %452 = arith.cmpi eq, %427, %451 : vector<80x16xi32>
    %cst_110 = arith.constant 1.000000e+00 : f32
    %453 = vector.broadcast %cst_110 : f32 to vector<80x1xf32>
    %454 = arith.subf %453, %431 : vector<80x1xf32>
    %cst_111 = arith.constant 0.000000e+00 : f32
    %455 = vector.shape_cast %454 : vector<80x1xf32> to vector<80x1xf32>
    %456 = vector.broadcast %455 : vector<80x1xf32> to vector<80x16xf32>
    %457 = vector.broadcast %cst_111 : f32 to vector<80x16xf32>
    %458 = arith.select %452, %456, %457 : vector<80x16xi1>, vector<80x16xf32>
    %c1_i32_112 = arith.constant 1 : i32
    %459 = vector.broadcast %c1_i32_112 : i32 to vector<80x1xi32>
    %460 = arith.addi %429, %459 : vector<80x1xi32>
    %461 = vector.broadcast %460 : vector<80x1xi32> to vector<80x16xi32>
    %462 = arith.cmpi eq, %427, %461 : vector<80x16xi32>
    %cst_113 = arith.constant 0.000000e+00 : f32
    %463 = vector.shape_cast %431 : vector<80x1xf32> to vector<80x1xf32>
    %464 = vector.broadcast %463 : vector<80x1xf32> to vector<80x16xf32>
    %465 = vector.broadcast %cst_113 : f32 to vector<80x16xf32>
    %466 = arith.select %462, %464, %465 : vector<80x16xi1>, vector<80x16xf32>
    %467 = arith.addf %458, %466 : vector<80x16xf32>
    %468 = vector.broadcast %433 : vector<80x1xf32> to vector<80x16xf32>
    %469 = arith.mulf %468, %450 : vector<80x16xf32>
    %470 = arith.mulf %469, %467 : vector<80x16xf32>
    %471 = arith.addf %428, %470 : vector<80x16xf32>
    %472 = vector.extract_strided_slice %40 {offsets = [0, 6], sizes = [80, 1], strides = [1, 1]} : vector<80x32xi32> to vector<80x1xi32>
    %473 = vector.extract_strided_slice %40 {offsets = [0, 7], sizes = [80, 1], strides = [1, 1]} : vector<80x32xi32> to vector<80x1xi32>
    %474 = vector.extract_strided_slice %39 {offsets = [0, 6], sizes = [80, 1], strides = [1, 1]} : vector<80x32xf32> to vector<80x1xf32>
    %475 = vector.extract_strided_slice %39 {offsets = [0, 7], sizes = [80, 1], strides = [1, 1]} : vector<80x32xf32> to vector<80x1xf32>
    %476 = vector.extract_strided_slice %37 {offsets = [0, 3], sizes = [80, 1], strides = [1, 1]} : vector<80x16xf32> to vector<80x1xf32>
    %477 = vector.broadcast %473 : vector<80x1xi32> to vector<80x16xi32>
    %478 = arith.cmpi eq, %425, %477 : vector<80x16xi32>
    %cst_114 = arith.constant 1.000000e+00 : f32
    %479 = vector.broadcast %cst_114 : f32 to vector<80x1xf32>
    %480 = arith.subf %479, %475 : vector<80x1xf32>
    %cst_115 = arith.constant 0.000000e+00 : f32
    %481 = vector.shape_cast %480 : vector<80x1xf32> to vector<80x1xf32>
    %482 = vector.broadcast %481 : vector<80x1xf32> to vector<80x16xf32>
    %483 = vector.broadcast %cst_115 : f32 to vector<80x16xf32>
    %484 = arith.select %478, %482, %483 : vector<80x16xi1>, vector<80x16xf32>
    %c1_i32_116 = arith.constant 1 : i32
    %485 = vector.broadcast %c1_i32_116 : i32 to vector<80x1xi32>
    %486 = arith.addi %473, %485 : vector<80x1xi32>
    %487 = vector.broadcast %486 : vector<80x1xi32> to vector<80x16xi32>
    %488 = arith.cmpi eq, %425, %487 : vector<80x16xi32>
    %cst_117 = arith.constant 0.000000e+00 : f32
    %489 = vector.shape_cast %475 : vector<80x1xf32> to vector<80x1xf32>
    %490 = vector.broadcast %489 : vector<80x1xf32> to vector<80x16xf32>
    %491 = vector.broadcast %cst_117 : f32 to vector<80x16xf32>
    %492 = arith.select %488, %490, %491 : vector<80x16xi1>, vector<80x16xf32>
    %493 = arith.addf %484, %492 : vector<80x16xf32>
    %494 = vector.broadcast %472 : vector<80x1xi32> to vector<80x16xi32>
    %495 = arith.cmpi eq, %427, %494 : vector<80x16xi32>
    %cst_118 = arith.constant 1.000000e+00 : f32
    %496 = vector.broadcast %cst_118 : f32 to vector<80x1xf32>
    %497 = arith.subf %496, %474 : vector<80x1xf32>
    %cst_119 = arith.constant 0.000000e+00 : f32
    %498 = vector.shape_cast %497 : vector<80x1xf32> to vector<80x1xf32>
    %499 = vector.broadcast %498 : vector<80x1xf32> to vector<80x16xf32>
    %500 = vector.broadcast %cst_119 : f32 to vector<80x16xf32>
    %501 = arith.select %495, %499, %500 : vector<80x16xi1>, vector<80x16xf32>
    %c1_i32_120 = arith.constant 1 : i32
    %502 = vector.broadcast %c1_i32_120 : i32 to vector<80x1xi32>
    %503 = arith.addi %472, %502 : vector<80x1xi32>
    %504 = vector.broadcast %503 : vector<80x1xi32> to vector<80x16xi32>
    %505 = arith.cmpi eq, %427, %504 : vector<80x16xi32>
    %cst_121 = arith.constant 0.000000e+00 : f32
    %506 = vector.shape_cast %474 : vector<80x1xf32> to vector<80x1xf32>
    %507 = vector.broadcast %506 : vector<80x1xf32> to vector<80x16xf32>
    %508 = vector.broadcast %cst_121 : f32 to vector<80x16xf32>
    %509 = arith.select %505, %507, %508 : vector<80x16xi1>, vector<80x16xf32>
    %510 = arith.addf %501, %509 : vector<80x16xf32>
    %511 = vector.broadcast %476 : vector<80x1xf32> to vector<80x16xf32>
    %512 = arith.mulf %511, %493 : vector<80x16xf32>
    %513 = arith.mulf %512, %510 : vector<80x16xf32>
    %514 = arith.addf %471, %513 : vector<80x16xf32>
    %c0_122 = arith.constant 0 : index
    %c0_123 = arith.constant 0 : index
    %515 = vector.load %arg18[%c0_122, %c0_123] : memref<80x256xf32, #tpu.memory_space<vmem>>, vector<80x16xf32>
    tpu.vector_store %arg18[%c0_122, %c0_123], %514 {strides = array<i32>} : memref<80x256xf32, #tpu.memory_space<vmem>>, vector<80x16xf32>,
    %cst_124 = arith.constant 0.000000e+00 : f32
    %516 = vector.broadcast %cst_124 : f32 to vector<80x16xf32>
    %517 = vector.extract_strided_slice %40 {offsets = [0, 12], sizes = [80, 1], strides = [1, 1]} : vector<80x32xi32> to vector<80x1xi32>
    %518 = vector.extract_strided_slice %40 {offsets = [0, 13], sizes = [80, 1], strides = [1, 1]} : vector<80x32xi32> to vector<80x1xi32>
    %519 = vector.extract_strided_slice %39 {offsets = [0, 12], sizes = [80, 1], strides = [1, 1]} : vector<80x32xf32> to vector<80x1xf32>
    %520 = vector.extract_strided_slice %39 {offsets = [0, 13], sizes = [80, 1], strides = [1, 1]} : vector<80x32xf32> to vector<80x1xf32>
    %521 = vector.extract_strided_slice %37 {offsets = [0, 6], sizes = [80, 1], strides = [1, 1]} : vector<80x16xf32> to vector<80x1xf32>
    %522 = vector.broadcast %518 : vector<80x1xi32> to vector<80x16xi32>
    %523 = arith.cmpi eq, %425, %522 : vector<80x16xi32>
    %cst_125 = arith.constant 1.000000e+00 : f32
    %524 = vector.broadcast %cst_125 : f32 to vector<80x1xf32>
    %525 = arith.subf %524, %520 : vector<80x1xf32>
    %cst_126 = arith.constant 0.000000e+00 : f32
    %526 = vector.shape_cast %525 : vector<80x1xf32> to vector<80x1xf32>
    %527 = vector.broadcast %526 : vector<80x1xf32> to vector<80x16xf32>
    %528 = vector.broadcast %cst_126 : f32 to vector<80x16xf32>
    %529 = arith.select %523, %527, %528 : vector<80x16xi1>, vector<80x16xf32>
    %c1_i32_127 = arith.constant 1 : i32
    %530 = vector.broadcast %c1_i32_127 : i32 to vector<80x1xi32>
    %531 = arith.addi %518, %530 : vector<80x1xi32>
    %532 = vector.broadcast %531 : vector<80x1xi32> to vector<80x16xi32>
    %533 = arith.cmpi eq, %425, %532 : vector<80x16xi32>
    %cst_128 = arith.constant 0.000000e+00 : f32
    %534 = vector.shape_cast %520 : vector<80x1xf32> to vector<80x1xf32>
    %535 = vector.broadcast %534 : vector<80x1xf32> to vector<80x16xf32>
    %536 = vector.broadcast %cst_128 : f32 to vector<80x16xf32>
    %537 = arith.select %533, %535, %536 : vector<80x16xi1>, vector<80x16xf32>
    %538 = arith.addf %529, %537 : vector<80x16xf32>
    %539 = vector.broadcast %517 : vector<80x1xi32> to vector<80x16xi32>
    %540 = arith.cmpi eq, %427, %539 : vector<80x16xi32>
    %cst_129 = arith.constant 1.000000e+00 : f32
    %541 = vector.broadcast %cst_129 : f32 to vector<80x1xf32>
    %542 = arith.subf %541, %519 : vector<80x1xf32>
    %cst_130 = arith.constant 0.000000e+00 : f32
    %543 = vector.shape_cast %542 : vector<80x1xf32> to vector<80x1xf32>
    %544 = vector.broadcast %543 : vector<80x1xf32> to vector<80x16xf32>
    %545 = vector.broadcast %cst_130 : f32 to vector<80x16xf32>
    %546 = arith.select %540, %544, %545 : vector<80x16xi1>, vector<80x16xf32>
    %c1_i32_131 = arith.constant 1 : i32
    %547 = vector.broadcast %c1_i32_131 : i32 to vector<80x1xi32>
    %548 = arith.addi %517, %547 : vector<80x1xi32>
    %549 = vector.broadcast %548 : vector<80x1xi32> to vector<80x16xi32>
    %550 = arith.cmpi eq, %427, %549 : vector<80x16xi32>
    %cst_132 = arith.constant 0.000000e+00 : f32
    %551 = vector.shape_cast %519 : vector<80x1xf32> to vector<80x1xf32>
    %552 = vector.broadcast %551 : vector<80x1xf32> to vector<80x16xf32>
    %553 = vector.broadcast %cst_132 : f32 to vector<80x16xf32>
    %554 = arith.select %550, %552, %553 : vector<80x16xi1>, vector<80x16xf32>
    %555 = arith.addf %546, %554 : vector<80x16xf32>
    %556 = vector.broadcast %521 : vector<80x1xf32> to vector<80x16xf32>
    %557 = arith.mulf %556, %538 : vector<80x16xf32>
    %558 = arith.mulf %557, %555 : vector<80x16xf32>
    %559 = arith.addf %516, %558 : vector<80x16xf32>
    %560 = vector.extract_strided_slice %40 {offsets = [0, 14], sizes = [80, 1], strides = [1, 1]} : vector<80x32xi32> to vector<80x1xi32>
    %561 = vector.extract_strided_slice %40 {offsets = [0, 15], sizes = [80, 1], strides = [1, 1]} : vector<80x32xi32> to vector<80x1xi32>
    %562 = vector.extract_strided_slice %39 {offsets = [0, 14], sizes = [80, 1], strides = [1, 1]} : vector<80x32xf32> to vector<80x1xf32>
    %563 = vector.extract_strided_slice %39 {offsets = [0, 15], sizes = [80, 1], strides = [1, 1]} : vector<80x32xf32> to vector<80x1xf32>
    %564 = vector.extract_strided_slice %37 {offsets = [0, 7], sizes = [80, 1], strides = [1, 1]} : vector<80x16xf32> to vector<80x1xf32>
    %565 = vector.broadcast %561 : vector<80x1xi32> to vector<80x16xi32>
    %566 = arith.cmpi eq, %425, %565 : vector<80x16xi32>
    %cst_133 = arith.constant 1.000000e+00 : f32
    %567 = vector.broadcast %cst_133 : f32 to vector<80x1xf32>
    %568 = arith.subf %567, %563 : vector<80x1xf32>
    %cst_134 = arith.constant 0.000000e+00 : f32
    %569 = vector.shape_cast %568 : vector<80x1xf32> to vector<80x1xf32>
    %570 = vector.broadcast %569 : vector<80x1xf32> to vector<80x16xf32>
    %571 = vector.broadcast %cst_134 : f32 to vector<80x16xf32>
    %572 = arith.select %566, %570, %571 : vector<80x16xi1>, vector<80x16xf32>
    %c1_i32_135 = arith.constant 1 : i32
    %573 = vector.broadcast %c1_i32_135 : i32 to vector<80x1xi32>
    %574 = arith.addi %561, %573 : vector<80x1xi32>
    %575 = vector.broadcast %574 : vector<80x1xi32> to vector<80x16xi32>
    %576 = arith.cmpi eq, %425, %575 : vector<80x16xi32>
    %cst_136 = arith.constant 0.000000e+00 : f32
    %577 = vector.shape_cast %563 : vector<80x1xf32> to vector<80x1xf32>
    %578 = vector.broadcast %577 : vector<80x1xf32> to vector<80x16xf32>
    %579 = vector.broadcast %cst_136 : f32 to vector<80x16xf32>
    %580 = arith.select %576, %578, %579 : vector<80x16xi1>, vector<80x16xf32>
    %581 = arith.addf %572, %580 : vector<80x16xf32>
    %582 = vector.broadcast %560 : vector<80x1xi32> to vector<80x16xi32>
    %583 = arith.cmpi eq, %427, %582 : vector<80x16xi32>
    %cst_137 = arith.constant 1.000000e+00 : f32
    %584 = vector.broadcast %cst_137 : f32 to vector<80x1xf32>
    %585 = arith.subf %584, %562 : vector<80x1xf32>
    %cst_138 = arith.constant 0.000000e+00 : f32
    %586 = vector.shape_cast %585 : vector<80x1xf32> to vector<80x1xf32>
    %587 = vector.broadcast %586 : vector<80x1xf32> to vector<80x16xf32>
    %588 = vector.broadcast %cst_138 : f32 to vector<80x16xf32>
    %589 = arith.select %583, %587, %588 : vector<80x16xi1>, vector<80x16xf32>
    %c1_i32_139 = arith.constant 1 : i32
    %590 = vector.broadcast %c1_i32_139 : i32 to vector<80x1xi32>
    %591 = arith.addi %560, %590 : vector<80x1xi32>
    %592 = vector.broadcast %591 : vector<80x1xi32> to vector<80x16xi32>
    %593 = arith.cmpi eq, %427, %592 : vector<80x16xi32>
    %cst_140 = arith.constant 0.000000e+00 : f32
    %594 = vector.shape_cast %562 : vector<80x1xf32> to vector<80x1xf32>
    %595 = vector.broadcast %594 : vector<80x1xf32> to vector<80x16xf32>
    %596 = vector.broadcast %cst_140 : f32 to vector<80x16xf32>
    %597 = arith.select %593, %595, %596 : vector<80x16xi1>, vector<80x16xf32>
    %598 = arith.addf %589, %597 : vector<80x16xf32>
    %599 = vector.broadcast %564 : vector<80x1xf32> to vector<80x16xf32>
    %600 = arith.mulf %599, %581 : vector<80x16xf32>
    %601 = arith.mulf %600, %598 : vector<80x16xf32>
    %602 = arith.addf %559, %601 : vector<80x16xf32>
    %c0_141 = arith.constant 0 : index
    %c16 = arith.constant 16 : index
    %603 = vector.load %arg18[%c0_141, %c16] : memref<80x256xf32, #tpu.memory_space<vmem>>, vector<80x16xf32>
    tpu.vector_store %arg18[%c0_141, %c16], %602 {strides = array<i32>} : memref<80x256xf32, #tpu.memory_space<vmem>>, vector<80x16xf32>,
    %cst_142 = arith.constant 0.000000e+00 : f32
    %604 = vector.broadcast %cst_142 : f32 to vector<80x16xf32>
    %605 = vector.extract_strided_slice %40 {offsets = [0, 20], sizes = [80, 1], strides = [1, 1]} : vector<80x32xi32> to vector<80x1xi32>
    %606 = vector.extract_strided_slice %40 {offsets = [0, 21], sizes = [80, 1], strides = [1, 1]} : vector<80x32xi32> to vector<80x1xi32>
    %607 = vector.extract_strided_slice %39 {offsets = [0, 20], sizes = [80, 1], strides = [1, 1]} : vector<80x32xf32> to vector<80x1xf32>
    %608 = vector.extract_strided_slice %39 {offsets = [0, 21], sizes = [80, 1], strides = [1, 1]} : vector<80x32xf32> to vector<80x1xf32>
    %609 = vector.extract_strided_slice %37 {offsets = [0, 10], sizes = [80, 1], strides = [1, 1]} : vector<80x16xf32> to vector<80x1xf32>
    %610 = vector.broadcast %606 : vector<80x1xi32> to vector<80x16xi32>
    %611 = arith.cmpi eq, %425, %610 : vector<80x16xi32>
    %cst_143 = arith.constant 1.000000e+00 : f32
    %612 = vector.broadcast %cst_143 : f32 to vector<80x1xf32>
    %613 = arith.subf %612, %608 : vector<80x1xf32>
    %cst_144 = arith.constant 0.000000e+00 : f32
    %614 = vector.shape_cast %613 : vector<80x1xf32> to vector<80x1xf32>
    %615 = vector.broadcast %614 : vector<80x1xf32> to vector<80x16xf32>
    %616 = vector.broadcast %cst_144 : f32 to vector<80x16xf32>
    %617 = arith.select %611, %615, %616 : vector<80x16xi1>, vector<80x16xf32>
    %c1_i32_145 = arith.constant 1 : i32
    %618 = vector.broadcast %c1_i32_145 : i32 to vector<80x1xi32>
    %619 = arith.addi %606, %618 : vector<80x1xi32>
    %620 = vector.broadcast %619 : vector<80x1xi32> to vector<80x16xi32>
    %621 = arith.cmpi eq, %425, %620 : vector<80x16xi32>
    %cst_146 = arith.constant 0.000000e+00 : f32
    %622 = vector.shape_cast %608 : vector<80x1xf32> to vector<80x1xf32>
    %623 = vector.broadcast %622 : vector<80x1xf32> to vector<80x16xf32>
    %624 = vector.broadcast %cst_146 : f32 to vector<80x16xf32>
    %625 = arith.select %621, %623, %624 : vector<80x16xi1>, vector<80x16xf32>
    %626 = arith.addf %617, %625 : vector<80x16xf32>
    %627 = vector.broadcast %605 : vector<80x1xi32> to vector<80x16xi32>
    %628 = arith.cmpi eq, %427, %627 : vector<80x16xi32>
    %cst_147 = arith.constant 1.000000e+00 : f32
    %629 = vector.broadcast %cst_147 : f32 to vector<80x1xf32>
    %630 = arith.subf %629, %607 : vector<80x1xf32>
    %cst_148 = arith.constant 0.000000e+00 : f32
    %631 = vector.shape_cast %630 : vector<80x1xf32> to vector<80x1xf32>
    %632 = vector.broadcast %631 : vector<80x1xf32> to vector<80x16xf32>
    %633 = vector.broadcast %cst_148 : f32 to vector<80x16xf32>
    %634 = arith.select %628, %632, %633 : vector<80x16xi1>, vector<80x16xf32>
    %c1_i32_149 = arith.constant 1 : i32
    %635 = vector.broadcast %c1_i32_149 : i32 to vector<80x1xi32>
    %636 = arith.addi %605, %635 : vector<80x1xi32>
    %637 = vector.broadcast %636 : vector<80x1xi32> to vector<80x16xi32>
    %638 = arith.cmpi eq, %427, %637 : vector<80x16xi32>
    %cst_150 = arith.constant 0.000000e+00 : f32
    %639 = vector.shape_cast %607 : vector<80x1xf32> to vector<80x1xf32>
    %640 = vector.broadcast %639 : vector<80x1xf32> to vector<80x16xf32>
    %641 = vector.broadcast %cst_150 : f32 to vector<80x16xf32>
    %642 = arith.select %638, %640, %641 : vector<80x16xi1>, vector<80x16xf32>
    %643 = arith.addf %634, %642 : vector<80x16xf32>
    %644 = vector.broadcast %609 : vector<80x1xf32> to vector<80x16xf32>
    %645 = arith.mulf %644, %626 : vector<80x16xf32>
    %646 = arith.mulf %645, %643 : vector<80x16xf32>
    %647 = arith.addf %604, %646 : vector<80x16xf32>
    %648 = vector.extract_strided_slice %40 {offsets = [0, 22], sizes = [80, 1], strides = [1, 1]} : vector<80x32xi32> to vector<80x1xi32>
    %649 = vector.extract_strided_slice %40 {offsets = [0, 23], sizes = [80, 1], strides = [1, 1]} : vector<80x32xi32> to vector<80x1xi32>
    %650 = vector.extract_strided_slice %39 {offsets = [0, 22], sizes = [80, 1], strides = [1, 1]} : vector<80x32xf32> to vector<80x1xf32>
    %651 = vector.extract_strided_slice %39 {offsets = [0, 23], sizes = [80, 1], strides = [1, 1]} : vector<80x32xf32> to vector<80x1xf32>
    %652 = vector.extract_strided_slice %37 {offsets = [0, 11], sizes = [80, 1], strides = [1, 1]} : vector<80x16xf32> to vector<80x1xf32>
    %653 = vector.broadcast %649 : vector<80x1xi32> to vector<80x16xi32>
    %654 = arith.cmpi eq, %425, %653 : vector<80x16xi32>
    %cst_151 = arith.constant 1.000000e+00 : f32
    %655 = vector.broadcast %cst_151 : f32 to vector<80x1xf32>
    %656 = arith.subf %655, %651 : vector<80x1xf32>
    %cst_152 = arith.constant 0.000000e+00 : f32
    %657 = vector.shape_cast %656 : vector<80x1xf32> to vector<80x1xf32>
    %658 = vector.broadcast %657 : vector<80x1xf32> to vector<80x16xf32>
    %659 = vector.broadcast %cst_152 : f32 to vector<80x16xf32>
    %660 = arith.select %654, %658, %659 : vector<80x16xi1>, vector<80x16xf32>
    %c1_i32_153 = arith.constant 1 : i32
    %661 = vector.broadcast %c1_i32_153 : i32 to vector<80x1xi32>
    %662 = arith.addi %649, %661 : vector<80x1xi32>
    %663 = vector.broadcast %662 : vector<80x1xi32> to vector<80x16xi32>
    %664 = arith.cmpi eq, %425, %663 : vector<80x16xi32>
    %cst_154 = arith.constant 0.000000e+00 : f32
    %665 = vector.shape_cast %651 : vector<80x1xf32> to vector<80x1xf32>
    %666 = vector.broadcast %665 : vector<80x1xf32> to vector<80x16xf32>
    %667 = vector.broadcast %cst_154 : f32 to vector<80x16xf32>
    %668 = arith.select %664, %666, %667 : vector<80x16xi1>, vector<80x16xf32>
    %669 = arith.addf %660, %668 : vector<80x16xf32>
    %670 = vector.broadcast %648 : vector<80x1xi32> to vector<80x16xi32>
    %671 = arith.cmpi eq, %427, %670 : vector<80x16xi32>
    %cst_155 = arith.constant 1.000000e+00 : f32
    %672 = vector.broadcast %cst_155 : f32 to vector<80x1xf32>
    %673 = arith.subf %672, %650 : vector<80x1xf32>
    %cst_156 = arith.constant 0.000000e+00 : f32
    %674 = vector.shape_cast %673 : vector<80x1xf32> to vector<80x1xf32>
    %675 = vector.broadcast %674 : vector<80x1xf32> to vector<80x16xf32>
    %676 = vector.broadcast %cst_156 : f32 to vector<80x16xf32>
    %677 = arith.select %671, %675, %676 : vector<80x16xi1>, vector<80x16xf32>
    %c1_i32_157 = arith.constant 1 : i32
    %678 = vector.broadcast %c1_i32_157 : i32 to vector<80x1xi32>
    %679 = arith.addi %648, %678 : vector<80x1xi32>
    %680 = vector.broadcast %679 : vector<80x1xi32> to vector<80x16xi32>
    %681 = arith.cmpi eq, %427, %680 : vector<80x16xi32>
    %cst_158 = arith.constant 0.000000e+00 : f32
    %682 = vector.shape_cast %650 : vector<80x1xf32> to vector<80x1xf32>
    %683 = vector.broadcast %682 : vector<80x1xf32> to vector<80x16xf32>
    %684 = vector.broadcast %cst_158 : f32 to vector<80x16xf32>
    %685 = arith.select %681, %683, %684 : vector<80x16xi1>, vector<80x16xf32>
    %686 = arith.addf %677, %685 : vector<80x16xf32>
    %687 = vector.broadcast %652 : vector<80x1xf32> to vector<80x16xf32>
    %688 = arith.mulf %687, %669 : vector<80x16xf32>
    %689 = arith.mulf %688, %686 : vector<80x16xf32>
    %690 = arith.addf %647, %689 : vector<80x16xf32>
    %c0_159 = arith.constant 0 : index
    %c32 = arith.constant 32 : index
    %691 = vector.load %arg18[%c0_159, %c32] : memref<80x256xf32, #tpu.memory_space<vmem>>, vector<80x16xf32>
    tpu.vector_store %arg18[%c0_159, %c32], %690 {strides = array<i32>} : memref<80x256xf32, #tpu.memory_space<vmem>>, vector<80x16xf32>,
    %cst_160 = arith.constant 0.000000e+00 : f32
    %692 = vector.broadcast %cst_160 : f32 to vector<80x16xf32>
    %693 = vector.extract_strided_slice %40 {offsets = [0, 28], sizes = [80, 1], strides = [1, 1]} : vector<80x32xi32> to vector<80x1xi32>
    %694 = vector.extract_strided_slice %40 {offsets = [0, 29], sizes = [80, 1], strides = [1, 1]} : vector<80x32xi32> to vector<80x1xi32>
    %695 = vector.extract_strided_slice %39 {offsets = [0, 28], sizes = [80, 1], strides = [1, 1]} : vector<80x32xf32> to vector<80x1xf32>
    %696 = vector.extract_strided_slice %39 {offsets = [0, 29], sizes = [80, 1], strides = [1, 1]} : vector<80x32xf32> to vector<80x1xf32>
    %697 = vector.extract_strided_slice %37 {offsets = [0, 14], sizes = [80, 1], strides = [1, 1]} : vector<80x16xf32> to vector<80x1xf32>
    %698 = vector.broadcast %694 : vector<80x1xi32> to vector<80x16xi32>
    %699 = arith.cmpi eq, %425, %698 : vector<80x16xi32>
    %cst_161 = arith.constant 1.000000e+00 : f32
    %700 = vector.broadcast %cst_161 : f32 to vector<80x1xf32>
    %701 = arith.subf %700, %696 : vector<80x1xf32>
    %cst_162 = arith.constant 0.000000e+00 : f32
    %702 = vector.shape_cast %701 : vector<80x1xf32> to vector<80x1xf32>
    %703 = vector.broadcast %702 : vector<80x1xf32> to vector<80x16xf32>
    %704 = vector.broadcast %cst_162 : f32 to vector<80x16xf32>
    %705 = arith.select %699, %703, %704 : vector<80x16xi1>, vector<80x16xf32>
    %c1_i32_163 = arith.constant 1 : i32
    %706 = vector.broadcast %c1_i32_163 : i32 to vector<80x1xi32>
    %707 = arith.addi %694, %706 : vector<80x1xi32>
    %708 = vector.broadcast %707 : vector<80x1xi32> to vector<80x16xi32>
    %709 = arith.cmpi eq, %425, %708 : vector<80x16xi32>
    %cst_164 = arith.constant 0.000000e+00 : f32
    %710 = vector.shape_cast %696 : vector<80x1xf32> to vector<80x1xf32>
    %711 = vector.broadcast %710 : vector<80x1xf32> to vector<80x16xf32>
    %712 = vector.broadcast %cst_164 : f32 to vector<80x16xf32>
    %713 = arith.select %709, %711, %712 : vector<80x16xi1>, vector<80x16xf32>
    %714 = arith.addf %705, %713 : vector<80x16xf32>
    %715 = vector.broadcast %693 : vector<80x1xi32> to vector<80x16xi32>
    %716 = arith.cmpi eq, %427, %715 : vector<80x16xi32>
    %cst_165 = arith.constant 1.000000e+00 : f32
    %717 = vector.broadcast %cst_165 : f32 to vector<80x1xf32>
    %718 = arith.subf %717, %695 : vector<80x1xf32>
    %cst_166 = arith.constant 0.000000e+00 : f32
    %719 = vector.shape_cast %718 : vector<80x1xf32> to vector<80x1xf32>
    %720 = vector.broadcast %719 : vector<80x1xf32> to vector<80x16xf32>
    %721 = vector.broadcast %cst_166 : f32 to vector<80x16xf32>
    %722 = arith.select %716, %720, %721 : vector<80x16xi1>, vector<80x16xf32>
    %c1_i32_167 = arith.constant 1 : i32
    %723 = vector.broadcast %c1_i32_167 : i32 to vector<80x1xi32>
    %724 = arith.addi %693, %723 : vector<80x1xi32>
    %725 = vector.broadcast %724 : vector<80x1xi32> to vector<80x16xi32>
    %726 = arith.cmpi eq, %427, %725 : vector<80x16xi32>
    %cst_168 = arith.constant 0.000000e+00 : f32
    %727 = vector.shape_cast %695 : vector<80x1xf32> to vector<80x1xf32>
    %728 = vector.broadcast %727 : vector<80x1xf32> to vector<80x16xf32>
    %729 = vector.broadcast %cst_168 : f32 to vector<80x16xf32>
    %730 = arith.select %726, %728, %729 : vector<80x16xi1>, vector<80x16xf32>
    %731 = arith.addf %722, %730 : vector<80x16xf32>
    %732 = vector.broadcast %697 : vector<80x1xf32> to vector<80x16xf32>
    %733 = arith.mulf %732, %714 : vector<80x16xf32>
    %734 = arith.mulf %733, %731 : vector<80x16xf32>
    %735 = arith.addf %692, %734 : vector<80x16xf32>
    %736 = vector.extract_strided_slice %40 {offsets = [0, 30], sizes = [80, 1], strides = [1, 1]} : vector<80x32xi32> to vector<80x1xi32>
    %737 = vector.extract_strided_slice %40 {offsets = [0, 31], sizes = [80, 1], strides = [1, 1]} : vector<80x32xi32> to vector<80x1xi32>
    %738 = vector.extract_strided_slice %39 {offsets = [0, 30], sizes = [80, 1], strides = [1, 1]} : vector<80x32xf32> to vector<80x1xf32>
    %739 = vector.extract_strided_slice %39 {offsets = [0, 31], sizes = [80, 1], strides = [1, 1]} : vector<80x32xf32> to vector<80x1xf32>
    %740 = vector.extract_strided_slice %37 {offsets = [0, 15], sizes = [80, 1], strides = [1, 1]} : vector<80x16xf32> to vector<80x1xf32>
    %741 = vector.broadcast %737 : vector<80x1xi32> to vector<80x16xi32>
    %742 = arith.cmpi eq, %425, %741 : vector<80x16xi32>
    %cst_169 = arith.constant 1.000000e+00 : f32
    %743 = vector.broadcast %cst_169 : f32 to vector<80x1xf32>
    %744 = arith.subf %743, %739 : vector<80x1xf32>
    %cst_170 = arith.constant 0.000000e+00 : f32
    %745 = vector.shape_cast %744 : vector<80x1xf32> to vector<80x1xf32>
    %746 = vector.broadcast %745 : vector<80x1xf32> to vector<80x16xf32>
    %747 = vector.broadcast %cst_170 : f32 to vector<80x16xf32>
    %748 = arith.select %742, %746, %747 : vector<80x16xi1>, vector<80x16xf32>
    %c1_i32_171 = arith.constant 1 : i32
    %749 = vector.broadcast %c1_i32_171 : i32 to vector<80x1xi32>
    %750 = arith.addi %737, %749 : vector<80x1xi32>
    %751 = vector.broadcast %750 : vector<80x1xi32> to vector<80x16xi32>
    %752 = arith.cmpi eq, %425, %751 : vector<80x16xi32>
    %cst_172 = arith.constant 0.000000e+00 : f32
    %753 = vector.shape_cast %739 : vector<80x1xf32> to vector<80x1xf32>
    %754 = vector.broadcast %753 : vector<80x1xf32> to vector<80x16xf32>
    %755 = vector.broadcast %cst_172 : f32 to vector<80x16xf32>
    %756 = arith.select %752, %754, %755 : vector<80x16xi1>, vector<80x16xf32>
    %757 = arith.addf %748, %756 : vector<80x16xf32>
    %758 = vector.broadcast %736 : vector<80x1xi32> to vector<80x16xi32>
    %759 = arith.cmpi eq, %427, %758 : vector<80x16xi32>
    %cst_173 = arith.constant 1.000000e+00 : f32
    %760 = vector.broadcast %cst_173 : f32 to vector<80x1xf32>
    %761 = arith.subf %760, %738 : vector<80x1xf32>
    %cst_174 = arith.constant 0.000000e+00 : f32
    %762 = vector.shape_cast %761 : vector<80x1xf32> to vector<80x1xf32>
    %763 = vector.broadcast %762 : vector<80x1xf32> to vector<80x16xf32>
    %764 = vector.broadcast %cst_174 : f32 to vector<80x16xf32>
    %765 = arith.select %759, %763, %764 : vector<80x16xi1>, vector<80x16xf32>
    %c1_i32_175 = arith.constant 1 : i32
    %766 = vector.broadcast %c1_i32_175 : i32 to vector<80x1xi32>
    %767 = arith.addi %736, %766 : vector<80x1xi32>
    %768 = vector.broadcast %767 : vector<80x1xi32> to vector<80x16xi32>
    %769 = arith.cmpi eq, %427, %768 : vector<80x16xi32>
    %cst_176 = arith.constant 0.000000e+00 : f32
    %770 = vector.shape_cast %738 : vector<80x1xf32> to vector<80x1xf32>
    %771 = vector.broadcast %770 : vector<80x1xf32> to vector<80x16xf32>
    %772 = vector.broadcast %cst_176 : f32 to vector<80x16xf32>
    %773 = arith.select %769, %771, %772 : vector<80x16xi1>, vector<80x16xf32>
    %774 = arith.addf %765, %773 : vector<80x16xf32>
    %775 = vector.broadcast %740 : vector<80x1xf32> to vector<80x16xf32>
    %776 = arith.mulf %775, %757 : vector<80x16xf32>
    %777 = arith.mulf %776, %774 : vector<80x16xf32>
    %778 = arith.addf %735, %777 : vector<80x16xf32>
    %c0_177 = arith.constant 0 : index
    %c48 = arith.constant 48 : index
    %779 = vector.load %arg18[%c0_177, %c48] : memref<80x256xf32, #tpu.memory_space<vmem>>, vector<80x16xf32>
    tpu.vector_store %arg18[%c0_177, %c48], %778 {strides = array<i32>} : memref<80x256xf32, #tpu.memory_space<vmem>>, vector<80x16xf32>,
    %780 = vector.extract_strided_slice %16 {offsets = [64, 0], sizes = [16, 32], strides = [1, 1]} : vector<80x32xf32> to vector<16x32xf32>
    %781 = tpu.iota {dimensions = array<i32: 1>} : vector<16x32xi32>
    %c3_i32_178 = arith.constant 3 : i32
    %782 = vector.broadcast %c3_i32_178 : i32 to vector<16x32xi32>
    %783 = arith.shrsi %781, %782 : vector<16x32xi32>
    %c0_i32_179 = arith.constant 0 : i32
    %784 = vector.broadcast %c0_i32_179 : i32 to vector<16x32xi32>
    %785 = arith.cmpi eq, %783, %784 : vector<16x32xi32>
    %cst_180 = arith.constant 0.000000e+00 : f32
    %786 = vector.broadcast %cst_180 : f32 to vector<16x32xf32>
    %787 = arith.select %785, %780, %786 : vector<16x32xi1>, vector<16x32xf32>
    %c1_i32_181 = arith.constant 1 : i32
    %788 = vector.broadcast %c1_i32_181 : i32 to vector<16x32xi32>
    %789 = arith.cmpi eq, %783, %788 : vector<16x32xi32>
    %cst_182 = arith.constant 0.000000e+00 : f32
    %790 = vector.broadcast %cst_182 : f32 to vector<16x32xf32>
    %791 = arith.select %789, %780, %790 : vector<16x32xi1>, vector<16x32xf32>
    %c2_i32_183 = arith.constant 2 : i32
    %792 = vector.broadcast %c2_i32_183 : i32 to vector<16x32xi32>
    %793 = arith.cmpi eq, %783, %792 : vector<16x32xi32>
    %cst_184 = arith.constant 0.000000e+00 : f32
    %794 = vector.broadcast %cst_184 : f32 to vector<16x32xf32>
    %795 = arith.select %793, %780, %794 : vector<16x32xi1>, vector<16x32xf32>
    %c3_i32_185 = arith.constant 3 : i32
    %796 = vector.broadcast %c3_i32_185 : i32 to vector<16x32xi32>
    %797 = arith.cmpi eq, %783, %796 : vector<16x32xi32>
    %cst_186 = arith.constant 0.000000e+00 : f32
    %798 = vector.broadcast %cst_186 : f32 to vector<16x32xf32>
    %799 = arith.select %797, %780, %798 : vector<16x32xi1>, vector<16x32xf32>
    %800 = tpu.concatenate %787, %791, %795, %799 in 0 : vector<16x32xf32>, vector<16x32xf32>, vector<16x32xf32>, vector<16x32xf32> -> vector<64x32xf32>
    %c0_187 = arith.constant 0 : index
    %c0_188 = arith.constant 0 : index
    %801 = vector.load %arg18[%c0_187, %c0_188] : memref<80x256xf32, #tpu.memory_space<vmem>>, vector<80x64xf32>
    %cst_189 = arith.constant dense<0.000000e+00> : vector<80x32xf32>
    %802 = tpu.matmul %801, %800, %cst_189 {dimension_numbers = #tpu.dot_dimension_numbers<[1], [0], [0], [1], [0, 0, 1, 1], [], []>} : vector<80x64xf32>, vector<64x32xf32>, vector<80x32xf32> -> vector<80x32xf32>
    %803 = arith.addf %422, %802 : vector<80x32xf32>
    %c0_190 = arith.constant 0 : index
    %c0_191 = arith.constant 0 : index
    %804 = vector.load %arg7[%c0_190, %c0_191] : memref<32x32xf32, #tpu.memory_space<vmem>>, vector<32x32xf32>
    %cst_192 = arith.constant dense<0.000000e+00> : vector<80x32xf32>
    %805 = tpu.matmul %803, %804, %cst_192 {dimension_numbers = #tpu.dot_dimension_numbers<[1], [0], [0], [1], [0, 0, 1, 1], [], []>} : vector<80x32xf32>, vector<32x32xf32>, vector<80x32xf32> -> vector<80x32xf32>
    %c0_193 = arith.constant 0 : index
    %c0_194 = arith.constant 0 : index
    %806 = vector.load %arg8[%c0_193, %c0_194] : memref<1x32xf32, #tpu.memory_space<vmem>>, vector<1x32xf32>
    %807 = vector.broadcast %806 : vector<1x32xf32> to vector<80x32xf32>
    %808 = arith.addf %805, %807 : vector<80x32xf32>
    %809 = arith.addf %1, %808 : vector<80x32xf32>
    %c0_195 = arith.constant 0 : index
    %c0_196 = arith.constant 0 : index
    %810 = vector.load %arg9[%c0_195, %c0_196] : memref<1x32xf32, #tpu.memory_space<vmem>>, vector<1x32xf32>
    %c0_197 = arith.constant 0 : index
    %c0_198 = arith.constant 0 : index
    %811 = vector.load %arg10[%c0_197, %c0_198] : memref<1x32xf32, #tpu.memory_space<vmem>>, vector<1x32xf32>
    %cst_199 = arith.constant dense<0.000000e+00> : vector<80xf32>
    %812 = vector.multi_reduction <add>, %809, %cst_199 [1] : vector<80x32xf32> to vector<80xf32>
    %813 = vector.shape_cast %812 : vector<80xf32> to vector<80x1xf32>
    %cst_200 = arith.constant 3.200000e+01 : f32
    %814 = vector.broadcast %cst_200 : f32 to vector<80x1xf32>
    %815 = arith.divf %813, %814 : vector<80x1xf32>
    %816 = vector.broadcast %815 : vector<80x1xf32> to vector<80x32xf32>
    %817 = arith.subf %809, %816 : vector<80x32xf32>
    %818 = arith.mulf %817, %817 : vector<80x32xf32>
    %cst_201 = arith.constant dense<0.000000e+00> : vector<80xf32>
    %819 = vector.multi_reduction <add>, %818, %cst_201 [1] : vector<80x32xf32> to vector<80xf32>
    %820 = vector.shape_cast %819 : vector<80xf32> to vector<80x1xf32>
    %cst_202 = arith.constant 3.200000e+01 : f32
    %821 = vector.broadcast %cst_202 : f32 to vector<80x1xf32>
    %822 = arith.divf %820, %821 : vector<80x1xf32>
    %cst_203 = arith.constant 9.99999974E-6 : f32
    %823 = vector.broadcast %cst_203 : f32 to vector<80x1xf32>
    %824 = arith.addf %822, %823 : vector<80x1xf32>
    %825 = math.rsqrt %824 : vector<80x1xf32>
    %826 = vector.broadcast %825 : vector<80x1xf32> to vector<80x32xf32>
    %827 = arith.mulf %817, %826 : vector<80x32xf32>
    %828 = vector.broadcast %810 : vector<1x32xf32> to vector<80x32xf32>
    %829 = arith.mulf %827, %828 : vector<80x32xf32>
    %830 = vector.broadcast %811 : vector<1x32xf32> to vector<80x32xf32>
    %831 = arith.addf %829, %830 : vector<80x32xf32>
    %c0_204 = arith.constant 0 : index
    %c0_205 = arith.constant 0 : index
    %832 = vector.load %arg11[%c0_204, %c0_205] : memref<32x64xf32, #tpu.memory_space<vmem>>, vector<32x64xf32>
    %cst_206 = arith.constant dense<0.000000e+00> : vector<80x64xf32>
    %833 = tpu.matmul %831, %832, %cst_206 {dimension_numbers = #tpu.dot_dimension_numbers<[1], [0], [0], [1], [0, 0, 1, 1], [], []>} : vector<80x32xf32>, vector<32x64xf32>, vector<80x64xf32> -> vector<80x64xf32>
    %c0_207 = arith.constant 0 : index
    %c0_208 = arith.constant 0 : index
    %834 = vector.load %arg12[%c0_207, %c0_208] : memref<1x64xf32, #tpu.memory_space<vmem>>, vector<1x64xf32>
    %835 = vector.broadcast %834 : vector<1x64xf32> to vector<80x64xf32>
    %836 = arith.addf %833, %835 : vector<80x64xf32>
    %cst_209 = arith.constant 0.000000e+00 : f32
    %837 = vector.broadcast %cst_209 : f32 to vector<80x64xf32>
    %838 = arith.maximumf %836, %837 : vector<80x64xf32>
    %c0_210 = arith.constant 0 : index
    %c0_211 = arith.constant 0 : index
    %839 = vector.load %arg13[%c0_210, %c0_211] : memref<64x32xf32, #tpu.memory_space<vmem>>, vector<64x32xf32>
    %cst_212 = arith.constant dense<0.000000e+00> : vector<80x32xf32>
    %840 = tpu.matmul %838, %839, %cst_212 {dimension_numbers = #tpu.dot_dimension_numbers<[1], [0], [0], [1], [0, 0, 1, 1], [], []>} : vector<80x64xf32>, vector<64x32xf32>, vector<80x32xf32> -> vector<80x32xf32>
    %c0_213 = arith.constant 0 : index
    %c0_214 = arith.constant 0 : index
    %841 = vector.load %arg14[%c0_213, %c0_214] : memref<1x32xf32, #tpu.memory_space<vmem>>, vector<1x32xf32>
    %842 = vector.broadcast %841 : vector<1x32xf32> to vector<80x32xf32>
    %843 = arith.addf %840, %842 : vector<80x32xf32>
    %844 = arith.addf %831, %843 : vector<80x32xf32>
    %c0_215 = arith.constant 0 : index
    %c0_216 = arith.constant 0 : index
    %845 = vector.load %arg15[%c0_215, %c0_216] : memref<1x32xf32, #tpu.memory_space<vmem>>, vector<1x32xf32>
    %c0_217 = arith.constant 0 : index
    %c0_218 = arith.constant 0 : index
    %846 = vector.load %arg16[%c0_217, %c0_218] : memref<1x32xf32, #tpu.memory_space<vmem>>, vector<1x32xf32>
    %cst_219 = arith.constant dense<0.000000e+00> : vector<80xf32>
    %847 = vector.multi_reduction <add>, %844, %cst_219 [1] : vector<80x32xf32> to vector<80xf32>
    %848 = vector.shape_cast %847 : vector<80xf32> to vector<80x1xf32>
    %cst_220 = arith.constant 3.200000e+01 : f32
    %849 = vector.broadcast %cst_220 : f32 to vector<80x1xf32>
    %850 = arith.divf %848, %849 : vector<80x1xf32>
    %851 = vector.broadcast %850 : vector<80x1xf32> to vector<80x32xf32>
    %852 = arith.subf %844, %851 : vector<80x32xf32>
    %853 = arith.mulf %852, %852 : vector<80x32xf32>
    %cst_221 = arith.constant dense<0.000000e+00> : vector<80xf32>
    %854 = vector.multi_reduction <add>, %853, %cst_221 [1] : vector<80x32xf32> to vector<80xf32>
    %855 = vector.shape_cast %854 : vector<80xf32> to vector<80x1xf32>
    %cst_222 = arith.constant 3.200000e+01 : f32
    %856 = vector.broadcast %cst_222 : f32 to vector<80x1xf32>
    %857 = arith.divf %855, %856 : vector<80x1xf32>
    %cst_223 = arith.constant 9.99999974E-6 : f32
    %858 = vector.broadcast %cst_223 : f32 to vector<80x1xf32>
    %859 = arith.addf %857, %858 : vector<80x1xf32>
    %860 = math.rsqrt %859 : vector<80x1xf32>
    %861 = vector.broadcast %860 : vector<80x1xf32> to vector<80x32xf32>
    %862 = arith.mulf %852, %861 : vector<80x32xf32>
    %863 = vector.broadcast %845 : vector<1x32xf32> to vector<80x32xf32>
    %864 = arith.mulf %862, %863 : vector<80x32xf32>
    %865 = vector.broadcast %846 : vector<1x32xf32> to vector<80x32xf32>
    %866 = arith.addf %864, %865 : vector<80x32xf32>
    %c0_224 = arith.constant 0 : index
    %c0_225 = arith.constant 0 : index
    %c0_226 = arith.constant 0 : index
    %867 = vector.load %arg17[%c0_224, %c0_225, %c0_226] : memref<1x80x32xf32, #tpu.memory_space<vmem>>, vector<1x80x32xf32>
    %868 = vector.shape_cast %867 : vector<1x80x32xf32> to vector<80x32xf32>
    %869 = vector.shape_cast %866 : vector<80x32xf32> to vector<1x80x32xf32>
    tpu.vector_store %arg17[%c0_224, %c0_225, %c0_226], %869 {strides = array<i32>} : memref<1x80x32xf32, #tpu.memory_space<vmem>>, vector<1x80x32xf32>,
    return
  }
  func.func @transform_0(%arg0: i32) -> (i32, i32, i32) {
    %c0_i32 = arith.constant 0 : i32
    %c0_i32_0 = arith.constant 0 : i32
    %c0_i32_1 = arith.constant 0 : i32
    return %arg0, %c0_i32, %c0_i32_0 : i32, i32, i32
  }
  func.func @transform_1(%arg0: i32) -> (i32, i32, i32) {
    %c0_i32 = arith.constant 0 : i32
    %c0_i32_0 = arith.constant 0 : i32
    %c0_i32_1 = arith.constant 0 : i32
    return %arg0, %c0_i32, %c0_i32_0 : i32, i32, i32
  }
  func.func @transform_2(%arg0: i32) -> (i32, i32, i32) {
    %c0_i32 = arith.constant 0 : i32
    %c0_i32_0 = arith.constant 0 : i32
    %c0_i32_1 = arith.constant 0 : i32
    return %arg0, %c0_i32, %c0_i32_0 : i32, i32, i32
  }
  func.func @transform_3(%arg0: i32) -> (i32, i32, i32) {
    %c0_i32 = arith.constant 0 : i32
    %c0_i32_0 = arith.constant 0 : i32
    %c0_i32_1 = arith.constant 0 : i32
    return %arg0, %c0_i32, %c0_i32_0 : i32, i32, i32
  }
  func.func @transform_4(%arg0: i32) -> (i32, i32) {
    %c0_i32 = arith.constant 0 : i32
    %c0_i32_0 = arith.constant 0 : i32
    %c0_i32_1 = arith.constant 0 : i32
    return %c0_i32, %c0_i32_0 : i32, i32
  }
  func.func @transform_5(%arg0: i32) -> (i32, i32) {
    %c0_i32 = arith.constant 0 : i32
    %c0_i32_0 = arith.constant 0 : i32
    %c0_i32_1 = arith.constant 0 : i32
    return %c0_i32, %c0_i32_0 : i32, i32
  }
  func.func @transform_6(%arg0: i32) -> (i32, i32) {
    %c0_i32 = arith.constant 0 : i32
    %c0_i32_0 = arith.constant 0 : i32
    %c0_i32_1 = arith.constant 0 : i32
    return %c0_i32, %c0_i32_0 : i32, i32
  }
  func.func @transform_7(%arg0: i32) -> (i32, i32) {
    %c0_i32 = arith.constant 0 : i32
    %c0_i32_0 = arith.constant 0 : i32
    %c0_i32_1 = arith.constant 0 : i32
    return %c0_i32, %c0_i32_0 : i32, i32
  }
  func.func @transform_8(%arg0: i32) -> (i32, i32) {
    %c0_i32 = arith.constant 0 : i32
    %c0_i32_0 = arith.constant 0 : i32
    %c0_i32_1 = arith.constant 0 : i32
    return %c0_i32, %c0_i32_0 : i32, i32
  }
  func.func @transform_9(%arg0: i32) -> (i32, i32) {
    %c0_i32 = arith.constant 0 : i32
    %c0_i32_0 = arith.constant 0 : i32
    %c0_i32_1 = arith.constant 0 : i32
    return %c0_i32, %c0_i32_0 : i32, i32
  }
  func.func @transform_10(%arg0: i32) -> (i32, i32) {
    %c0_i32 = arith.constant 0 : i32
    %c0_i32_0 = arith.constant 0 : i32
    %c0_i32_1 = arith.constant 0 : i32
    return %c0_i32, %c0_i32_0 : i32, i32
  }
  func.func @transform_11(%arg0: i32) -> (i32, i32) {
    %c0_i32 = arith.constant 0 : i32
    %c0_i32_0 = arith.constant 0 : i32
    %c0_i32_1 = arith.constant 0 : i32
    return %c0_i32, %c0_i32_0 : i32, i32
  }
  func.func @transform_12(%arg0: i32) -> (i32, i32) {
    %c0_i32 = arith.constant 0 : i32
    %c0_i32_0 = arith.constant 0 : i32
    %c0_i32_1 = arith.constant 0 : i32
    return %c0_i32, %c0_i32_0 : i32, i32
  }
  func.func @transform_13(%arg0: i32) -> (i32, i32) {
    %c0_i32 = arith.constant 0 : i32
    %c0_i32_0 = arith.constant 0 : i32
    %c0_i32_1 = arith.constant 0 : i32
    return %c0_i32, %c0_i32_0 : i32, i32
  }
  func.func @transform_14(%arg0: i32) -> (i32, i32) {
    %c0_i32 = arith.constant 0 : i32
    %c0_i32_0 = arith.constant 0 : i32
    %c0_i32_1 = arith.constant 0 : i32
    return %c0_i32, %c0_i32_0 : i32, i32
  }
  func.func @transform_15(%arg0: i32) -> (i32, i32) {
    %c0_i32 = arith.constant 0 : i32
    %c0_i32_0 = arith.constant 0 : i32
    %c0_i32_1 = arith.constant 0 : i32
    return %c0_i32, %c0_i32_0 : i32, i32
  }
  func.func @transform_16(%arg0: i32) -> (i32, i32, i32) {
    %c0_i32 = arith.constant 0 : i32
    %c0_i32_0 = arith.constant 0 : i32
    %c0_i32_1 = arith.constant 0 : i32
    return %arg0, %c0_i32, %c0_i32_0 : i32, i32, i32
  }
}

</mosaic_0001>

<llo_original>
// kernel: deformable_encoder_layer_forward.1
$region0: #{deformable_encoder_layer_forward.1}
  #allocation0 [shape = 'u32[]', space=smem, size = 0x4, offset = 0x4, fixed_abs, tag = 'smem constant byte address 0x4 - core index']
  #allocation1 [shape = 'u32[72,128]{1,0:T(1,128)}', space=vmem, size = 0x9000, scoped, tag = 'internal scratch']
  #allocation2 [shape = 'f32[80,256]{1,0:T(8,128)}', space=vmem, size = 0x14000, scoped, tag = 'scratch operand']
  %s0 = inlined_call_operand.vmem [shape: f32[2,80,32], index: 0, kind: input, shape index: {}]
  %s1 = inlined_call_operand.vmem [shape: f32[2,80,32], index: 1, kind: input, shape index: {}]
  %s2 = inlined_call_operand.vmem [shape: f32[2,80,32], index: 2, kind: input, shape index: {}]
  %s3 = inlined_call_operand.vmem [shape: f32[2,80,1], index: 3, kind: input, shape index: {}]
  %s4 = inlined_call_operand.vmem [shape: f32[64,80], index: 4, kind: input, shape index: {}]
  %s5 = inlined_call_operand.vmem [shape: f32[1,80], index: 5, kind: input, shape index: {}]
  %s6 = inlined_call_operand.vmem [shape: f32[32,32], index: 6, kind: input, shape index: {}]
  %s7 = inlined_call_operand.vmem [shape: f32[1,32], index: 7, kind: input, shape index: {}]
  %s8 = inlined_call_operand.vmem [shape: f32[1,32], index: 8, kind: input, shape index: {}]
  %s9 = inlined_call_operand.vmem [shape: f32[1,32], index: 9, kind: input, shape index: {}]
  %s10 = inlined_call_operand.vmem [shape: f32[32,64], index: 10, kind: input, shape index: {}]
  %s11 = inlined_call_operand.vmem [shape: f32[1,64], index: 11, kind: input, shape index: {}]
  %s12 = inlined_call_operand.vmem [shape: f32[64,32], index: 12, kind: input, shape index: {}]
  %s13 = inlined_call_operand.vmem [shape: f32[1,32], index: 13, kind: input, shape index: {}]
  %s14 = inlined_call_operand.vmem [shape: f32[1,32], index: 14, kind: input, shape index: {}]
  %s15 = inlined_call_operand.vmem [shape: f32[1,32], index: 15, kind: input, shape index: {}]
  %s16 = inlined_call_operand.vmem [shape: f32[2,80,32], index: 16, kind: output, shape index: {}]
  %s17 = sld [smem:[#allocation0]]
  $region97: #{deformable_encoder_layer_forward.1} parent=0
    _
  %s19 = ssub.s32 1, %s17
  %s20 = scalar_select 0, %s19, %s17
  loop: start=0, step=1, limit=4
  $region2: #{deformable_encoder_layer_forward.1} parent=0 // loop_pre_header
    _
  $region3: #{deformable_encoder_layer_forward.1} parent=0 // loop_header
    %s22 = sphi 0, %s26
    %p23 = scmp.ge.s32.totalorder %s22, 4
    %s32 = sphi 0, %s34
    %s35 = sphi 0, %s32
    %s36 = sphi 0, %s35
    %s52 = sphi 0, %s36
    %s58 = sphi 0, %s60
    %s61 = sphi 0, %s58
    %s62 = sphi 0, %s61
    %s78 = sphi 0, %s62
    %s84 = sphi 0, %s86
    %s87 = sphi 0, %s84
    %s88 = sphi 0, %s87
    %s104 = sphi 0, %s88
    %s110 = sphi 0, %s112
    %s113 = sphi 0, %s110
    %s114 = sphi 0, %s113
    %s130 = sphi 0, %s114
    %s134 = sphi 0, %s134
    %s136 = sphi 0, %s134
    %s137 = sphi 0, %s136
    %s151 = sphi 0, %s137
    %s155 = sphi 0, %s155
    %s157 = sphi 0, %s155
    %s158 = sphi 0, %s157
    %s172 = sphi 0, %s158
    %s176 = sphi 0, %s176
    %s178 = sphi 0, %s176
    %s179 = sphi 0, %s178
    %s193 = sphi 0, %s179
    %s197 = sphi 0, %s197
    %s199 = sphi 0, %s197
    %s200 = sphi 0, %s199
    %s214 = sphi 0, %s200
    %s218 = sphi 0, %s218
    %s220 = sphi 0, %s218
    %s221 = sphi 0, %s220
    %s235 = sphi 0, %s221
    %s239 = sphi 0, %s239
    %s241 = sphi 0, %s239
    %s242 = sphi 0, %s241
    %s256 = sphi 0, %s242
    %s260 = sphi 0, %s260
    %s262 = sphi 0, %s260
    %s263 = sphi 0, %s262
    %s277 = sphi 0, %s263
    %s281 = sphi 0, %s281
    %s283 = sphi 0, %s281
    %s284 = sphi 0, %s283
    %s298 = sphi 0, %s284
    %s302 = sphi 0, %s302
    %s304 = sphi 0, %s302
    %s305 = sphi 0, %s304
    %s319 = sphi 0, %s305
    %s323 = sphi 0, %s323
    %s325 = sphi 0, %s323
    %s326 = sphi 0, %s325
    %s340 = sphi 0, %s326
    %s344 = sphi 0, %s344
    %s346 = sphi 0, %s344
    %s347 = sphi 0, %s346
    %s361 = sphi 0, %s347
    %s365 = sphi 0, %s365
    %s367 = sphi 0, %s365
    %s368 = sphi 0, %s367
    %s382 = sphi 0, %s368
    %s388 = sphi 0, %s390
    %s391 = sphi 0, %s388
    %s392 = sphi 0, %s391
    %s408 = sphi 0, %s392
  $region4: #{deformable_encoder_layer_forward.1} parent=0 // loop_header_branch
    %25 = sbr.rel (%p23) target = $region8
  $region5: #{deformable_encoder_layer_forward.1} parent=0 // loop_body
    %s27 = ssub.s32 %s22, 1
    %s28 = ssub.s32 %s22, 2
    %s29 = sadd.s32 %s22, 1
    %s30 = ssub.s32 %s22, %s29
    %p31 = scmp.eq.s32.totalorder %s30, 0
    %s33 = sadd.s32 %s32, 1
    %s34 = scalar_select %p31, %s32, %s33
    %p37 = pneg %p31
    %p38 = scmp.eq.s32.totalorder %s22, 1
    %p39 = por %p37, %p38
    %p40 = scmp.ne.s32.totalorder %s32, %s35
    %p41 = scmp.eq.s32.totalorder %s22, 0
    %p42 = por %p40, %p41
    %p43 = scmp.ne.s32.totalorder %s32, %s35
    %p44 = scmp.eq.s32.totalorder %s27, 1
    %p45 = por %p43, %p44
    %p46 = scmp.ne.s32.totalorder %s35, %s36
    %p47 = scmp.eq.s32.totalorder %s27, 0
    %p48 = por %p46, %p47
    %p49 = scmp.ne.s32.totalorder %s35, %s36
    %p50 = scmp.eq.s32.totalorder %s28, 1
    %p51 = por %p49, %p50
    %p53 = scmp.ne.s32.totalorder %s36, %s52
    %p54 = scmp.eq.s32.totalorder %s28, 0
    %p55 = por %p53, %p54
    %s56 = ssub.s32 %s22, %s29
    %p57 = scmp.eq.s32.totalorder %s56, 0
    %s59 = sadd.s32 %s58, 1
    %s60 = scalar_select %p57, %s58, %s59
    %p63 = pneg %p57
    %p64 = scmp.eq.s32.totalorder %s22, 1
    %p65 = por %p63, %p64
    %p66 = scmp.ne.s32.totalorder %s58, %s61
    %p67 = scmp.eq.s32.totalorder %s22, 0
    %p68 = por %p66, %p67
    %p69 = scmp.ne.s32.totalorder %s58, %s61
    %p70 = scmp.eq.s32.totalorder %s27, 1
    %p71 = por %p69, %p70
    %p72 = scmp.ne.s32.totalorder %s61, %s62
    %p73 = scmp.eq.s32.totalorder %s27, 0
    %p74 = por %p72, %p73
    %p75 = scmp.ne.s32.totalorder %s61, %s62
    %p76 = scmp.eq.s32.totalorder %s28, 1
    %p77 = por %p75, %p76
    %p79 = scmp.ne.s32.totalorder %s62, %s78
    %p80 = scmp.eq.s32.totalorder %s28, 0
    %p81 = por %p79, %p80
    %s82 = ssub.s32 %s22, %s29
    %p83 = scmp.eq.s32.totalorder %s82, 0
    %s85 = sadd.s32 %s84, 1
    %s86 = scalar_select %p83, %s84, %s85
    %p89 = pneg %p83
    %p90 = scmp.eq.s32.totalorder %s22, 1
    %p91 = por %p89, %p90
    %p92 = scmp.ne.s32.totalorder %s84, %s87
    %p93 = scmp.eq.s32.totalorder %s22, 0
    %p94 = por %p92, %p93
    %p95 = scmp.ne.s32.totalorder %s84, %s87
    %p96 = scmp.eq.s32.totalorder %s27, 1
    %p97 = por %p95, %p96
    %p98 = scmp.ne.s32.totalorder %s87, %s88
    %p99 = scmp.eq.s32.totalorder %s27, 0
    %p100 = por %p98, %p99
    %p101 = scmp.ne.s32.totalorder %s87, %s88
    %p102 = scmp.eq.s32.totalorder %s28, 1
    %p103 = por %p101, %p102
    %p105 = scmp.ne.s32.totalorder %s88, %s104
    %p106 = scmp.eq.s32.totalorder %s28, 0
    %p107 = por %p105, %p106
    %s108 = ssub.s32 %s22, %s29
    %p109 = scmp.eq.s32.totalorder %s108, 0
    %s111 = sadd.s32 %s110, 1
    %s112 = scalar_select %p109, %s110, %s111
    %p115 = pneg %p109
    %p116 = scmp.eq.s32.totalorder %s22, 1
    %p117 = por %p115, %p116
    %p118 = scmp.ne.s32.totalorder %s110, %s113
    %p119 = scmp.eq.s32.totalorder %s22, 0
    %p120 = por %p118, %p119
    %p121 = scmp.ne.s32.totalorder %s110, %s113
    %p122 = scmp.eq.s32.totalorder %s27, 1
    %p123 = por %p121, %p122
    %p124 = scmp.ne.s32.totalorder %s113, %s114
    %p125 = scmp.eq.s32.totalorder %s27, 0
    %p126 = por %p124, %p125
    %p127 = scmp.ne.s32.totalorder %s113, %s114
    %p128 = scmp.eq.s32.totalorder %s28, 1
    %p129 = por %p127, %p128
    %p131 = scmp.ne.s32.totalorder %s114, %s130
    %p132 = scmp.eq.s32.totalorder %s28, 0
    %p133 = por %p131, %p132
    %s135 = sadd.s32 %s134, 1
    %p138 = scmp.eq.s32.totalorder %s22, 1
    %p139 = scmp.ne.s32.totalorder %s134, %s136
    %p140 = scmp.eq.s32.totalorder %s22, 0
    %p141 = por %p139, %p140
    %p142 = scmp.ne.s32.totalorder %s134, %s136
    %p143 = scmp.eq.s32.totalorder %s27, 1
    %p144 = por %p142, %p143
    %p145 = scmp.ne.s32.totalorder %s136, %s137
    %p146 = scmp.eq.s32.totalorder %s27, 0
    %p147 = por %p145, %p146
    %p148 = scmp.ne.s32.totalorder %s136, %s137
    %p149 = scmp.eq.s32.totalorder %s28, 1
    %p150 = por %p148, %p149
    %p152 = scmp.ne.s32.totalorder %s137, %s151
    %p153 = scmp.eq.s32.totalorder %s28, 0
    %p154 = por %p152, %p153
    %s156 = sadd.s32 %s155, 1
    %p159 = scmp.eq.s32.totalorder %s22, 1
    %p160 = scmp.ne.s32.totalorder %s155, %s157
    %p161 = scmp.eq.s32.totalorder %s22, 0
    %p162 = por %p160, %p161
    %p163 = scmp.ne.s32.totalorder %s155, %s157
    %p164 = scmp.eq.s32.totalorder %s27, 1
    %p165 = por %p163, %p164
    %p166 = scmp.ne.s32.totalorder %s157, %s158
    %p167 = scmp.eq.s32.totalorder %s27, 0
    %p168 = por %p166, %p167
    %p169 = scmp.ne.s32.totalorder %s157, %s158
    %p170 = scmp.eq.s32.totalorder %s28, 1
    %p171 = por %p169, %p170
    %p173 = scmp.ne.s32.totalorder %s158, %s172
    %p174 = scmp.eq.s32.totalorder %s28, 0
    %p175 = por %p173, %p174
    %s177 = sadd.s32 %s176, 1
    %p180 = scmp.eq.s32.totalorder %s22, 1
    %p181 = scmp.ne.s32.totalorder %s176, %s178
    %p182 = scmp.eq.s32.totalorder %s22, 0
    %p183 = por %p181, %p182
    %p184 = scmp.ne.s32.totalorder %s176, %s178
    %p185 = scmp.eq.s32.totalorder %s27, 1
    %p186 = por %p184, %p185
    %p187 = scmp.ne.s32.totalorder %s178, %s179
    %p188 = scmp.eq.s32.totalorder %s27, 0
    %p189 = por %p187, %p188
    %p190 = scmp.ne.s32.totalorder %s178, %s179
    %p191 = scmp.eq.s32.totalorder %s28, 1
    %p192 = por %p190, %p191
    %p194 = scmp.ne.s32.totalorder %s179, %s193
    %p195 = scmp.eq.s32.totalorder %s28, 0
    %p196 = por %p194, %p195
    %s198 = sadd.s32 %s197, 1
    %p201 = scmp.eq.s32.totalorder %s22, 1
    %p202 = scmp.ne.s32.totalorder %s197, %s199
    %p203 = scmp.eq.s32.totalorder %s22, 0
    %p204 = por %p202, %p203
    %p205 = scmp.ne.s32.totalorder %s197, %s199
    %p206 = scmp.eq.s32.totalorder %s27, 1
    %p207 = por %p205, %p206
    %p208 = scmp.ne.s32.totalorder %s199, %s200
    %p209 = scmp.eq.s32.totalorder %s27, 0
    %p210 = por %p208, %p209
    %p211 = scmp.ne.s32.totalorder %s199, %s200
    %p212 = scmp.eq.s32.totalorder %s28, 1
    %p213 = por %p211, %p212
    %p215 = scmp.ne.s32.totalorder %s200, %s214
    %p216 = scmp.eq.s32.totalorder %s28, 0
    %p217 = por %p215, %p216
    %s219 = sadd.s32 %s218, 1
    %p222 = scmp.eq.s32.totalorder %s22, 1
    %p223 = scmp.ne.s32.totalorder %s218, %s220
    %p224 = scmp.eq.s32.totalorder %s22, 0
    %p225 = por %p223, %p224
    %p226 = scmp.ne.s32.totalorder %s218, %s220
    %p227 = scmp.eq.s32.totalorder %s27, 1
    %p228 = por %p226, %p227
    %p229 = scmp.ne.s32.totalorder %s220, %s221
    %p230 = scmp.eq.s32.totalorder %s27, 0
    %p231 = por %p229, %p230
    %p232 = scmp.ne.s32.totalorder %s220, %s221
    %p233 = scmp.eq.s32.totalorder %s28, 1
    %p234 = por %p232, %p233
    %p236 = scmp.ne.s32.totalorder %s221, %s235
    %p237 = scmp.eq.s32.totalorder %s28, 0
    %p238 = por %p236, %p237
    %s240 = sadd.s32 %s239, 1
    %p243 = scmp.eq.s32.totalorder %s22, 1
    %p244 = scmp.ne.s32.totalorder %s239, %s241
    %p245 = scmp.eq.s32.totalorder %s22, 0
    %p246 = por %p244, %p245
    %p247 = scmp.ne.s32.totalorder %s239, %s241
    %p248 = scmp.eq.s32.totalorder %s27, 1
    %p249 = por %p247, %p248
    %p250 = scmp.ne.s32.totalorder %s241, %s242
    %p251 = scmp.eq.s32.totalorder %s27, 0
    %p252 = por %p250, %p251
    %p253 = scmp.ne.s32.totalorder %s241, %s242
    %p254 = scmp.eq.s32.totalorder %s28, 1
    %p255 = por %p253, %p254
    %p257 = scmp.ne.s32.totalorder %s242, %s256
    %p258 = scmp.eq.s32.totalorder %s28, 0
    %p259 = por %p257, %p258
    %s261 = sadd.s32 %s260, 1
    %p264 = scmp.eq.s32.totalorder %s22, 1
    %p265 = scmp.ne.s32.totalorder %s260, %s262
    %p266 = scmp.eq.s32.totalorder %s22, 0
    %p267 = por %p265, %p266
    %p268 = scmp.ne.s32.totalorder %s260, %s262
    %p269 = scmp.eq.s32.totalorder %s27, 1
    %p270 = por %p268, %p269
    %p271 = scmp.ne.s32.totalorder %s262, %s263
    %p272 = scmp.eq.s32.totalorder %s27, 0
    %p273 = por %p271, %p272
    %p274 = scmp.ne.s32.totalorder %s262, %s263
    %p275 = scmp.eq.s32.totalorder %s28, 1
    %p276 = por %p274, %p275
    %p278 = scmp.ne.s32.totalorder %s263, %s277
    %p279 = scmp.eq.s32.totalorder %s28, 0
    %p280 = por %p278, %p279
    %s282 = sadd.s32 %s281, 1
    %p285 = scmp.eq.s32.totalorder %s22, 1
    %p286 = scmp.ne.s32.totalorder %s281, %s283
    %p287 = scmp.eq.s32.totalorder %s22, 0
    %p288 = por %p286, %p287
    %p289 = scmp.ne.s32.totalorder %s281, %s283
    %p290 = scmp.eq.s32.totalorder %s27, 1
    %p291 = por %p289, %p290
    %p292 = scmp.ne.s32.totalorder %s283, %s284
    %p293 = scmp.eq.s32.totalorder %s27, 0
    %p294 = por %p292, %p293
    %p295 = scmp.ne.s32.totalorder %s283, %s284
    %p296 = scmp.eq.s32.totalorder %s28, 1
    %p297 = por %p295, %p296
    %p299 = scmp.ne.s32.totalorder %s284, %s298
    %p300 = scmp.eq.s32.totalorder %s28, 0
    %p301 = por %p299, %p300
    %s303 = sadd.s32 %s302, 1
    %p306 = scmp.eq.s32.totalorder %s22, 1
    %p307 = scmp.ne.s32.totalorder %s302, %s304
    %p308 = scmp.eq.s32.totalorder %s22, 0
    %p309 = por %p307, %p308
    %p310 = scmp.ne.s32.totalorder %s302, %s304
    %p311 = scmp.eq.s32.totalorder %s27, 1
    %p312 = por %p310, %p311
    %p313 = scmp.ne.s32.totalorder %s304, %s305
    %p314 = scmp.eq.s32.totalorder %s27, 0
    %p315 = por %p313, %p314
    %p316 = scmp.ne.s32.totalorder %s304, %s305
    %p317 = scmp.eq.s32.totalorder %s28, 1
    %p318 = por %p316, %p317
    %p320 = scmp.ne.s32.totalorder %s305, %s319
    %p321 = scmp.eq.s32.totalorder %s28, 0
    %p322 = por %p320, %p321
    %s324 = sadd.s32 %s323, 1
    %p327 = scmp.eq.s32.totalorder %s22, 1
    %p328 = scmp.ne.s32.totalorder %s323, %s325
    %p329 = scmp.eq.s32.totalorder %s22, 0
    %p330 = por %p328, %p329
    %p331 = scmp.ne.s32.totalorder %s323, %s325
    %p332 = scmp.eq.s32.totalorder %s27, 1
    %p333 = por %p331, %p332
    %p334 = scmp.ne.s32.totalorder %s325, %s326
    %p335 = scmp.eq.s32.totalorder %s27, 0
    %p336 = por %p334, %p335
    %p337 = scmp.ne.s32.totalorder %s325, %s326
    %p338 = scmp.eq.s32.totalorder %s28, 1
    %p339 = por %p337, %p338
    %p341 = scmp.ne.s32.totalorder %s326, %s340
    %p342 = scmp.eq.s32.totalorder %s28, 0
    %p343 = por %p341, %p342
    %s345 = sadd.s32 %s344, 1
    %p348 = scmp.eq.s32.totalorder %s22, 1
    %p349 = scmp.ne.s32.totalorder %s344, %s346
    %p350 = scmp.eq.s32.totalorder %s22, 0
    %p351 = por %p349, %p350
    %p352 = scmp.ne.s32.totalorder %s344, %s346
    %p353 = scmp.eq.s32.totalorder %s27, 1
    %p354 = por %p352, %p353
    %p355 = scmp.ne.s32.totalorder %s346, %s347
    %p356 = scmp.eq.s32.totalorder %s27, 0
    %p357 = por %p355, %p356
    %p358 = scmp.ne.s32.totalorder %s346, %s347
    %p359 = scmp.eq.s32.totalorder %s28, 1
    %p360 = por %p358, %p359
    %p362 = scmp.ne.s32.totalorder %s347, %s361
    %p363 = scmp.eq.s32.totalorder %s28, 0
    %p364 = por %p362, %p363
    %s366 = sadd.s32 %s365, 1
    %p369 = scmp.eq.s32.totalorder %s22, 1
    %p370 = scmp.ne.s32.totalorder %s365, %s367
    %p371 = scmp.eq.s32.totalorder %s22, 0
    %p372 = por %p370, %p371
    %p373 = scmp.ne.s32.totalorder %s365, %s367
    %p374 = scmp.eq.s32.totalorder %s27, 1
    %p375 = por %p373, %p374
    %p376 = scmp.ne.s32.totalorder %s367, %s368
    %p377 = scmp.eq.s32.totalorder %s27, 0
    %p378 = por %p376, %p377
    %p379 = scmp.ne.s32.totalorder %s367, %s368
    %p380 = scmp.eq.s32.totalorder %s28, 1
    %p381 = por %p379, %p380
    %p383 = scmp.ne.s32.totalorder %s368, %s382
    %p384 = scmp.eq.s32.totalorder %s28, 0
    %p385 = por %p383, %p384
    %s386 = ssub.s32 %s22, %s29
    %p387 = scmp.eq.s32.totalorder %s386, 0
    %s389 = sadd.s32 %s388, 1
    %s390 = scalar_select %p387, %s388, %s389
    %p393 = pneg %p387
    %p394 = scmp.eq.s32.totalorder %s22, 1
    %p395 = por %p393, %p394
    %p396 = scmp.ne.s32.totalorder %s388, %s391
    %p397 = scmp.eq.s32.totalorder %s22, 0
    %p398 = por %p396, %p397
    %p399 = scmp.ne.s32.totalorder %s388, %s391
    %p400 = scmp.eq.s32.totalorder %s27, 1
    %p401 = por %p399, %p400
    %p402 = scmp.ne.s32.totalorder %s391, %s392
    %p403 = scmp.eq.s32.totalorder %s27, 0
    %p404 = por %p402, %p403
    %p405 = scmp.ne.s32.totalorder %s391, %s392
    %p406 = scmp.eq.s32.totalorder %s28, 1
    %p407 = por %p405, %p406
    %p409 = scmp.ne.s32.totalorder %s392, %s408
    %p410 = scmp.eq.s32.totalorder %s28, 0
    %p411 = por %p409, %p410
    %p412 = scmp.le.s32.totalorder 1, %s22
    %p413 = scmp.lt.s32.totalorder %s22, 3
    %p414 = pnand %p412, %p413
    %p415 = pneg %p414
    // Predicated region
    $region9: #{deformable_encoder_layer_forward.1} parent=5 // pred_check
      _
    $region10: #{deformable_encoder_layer_forward.1} parent=5 // pred_check_branch
      %417 = sbr.rel (%p414) target = $region12
    $region11: #{deformable_encoder_layer_forward.1} parent=5 // pred_region
      %s418 = ssub.s32 %s22, 1
      // Predicated region
      $region13: #{deformable_encoder_layer_forward.1} parent=11 // pred_check
        %p419 = pneg %p147
      $region14: #{deformable_encoder_layer_forward.1} parent=11 // pred_check_branch
        %421 = sbr.rel (%p419) target = $region16
      $region15: #{deformable_encoder_layer_forward.1} parent=11 // pred_region
        _
      $region16: #{deformable_encoder_layer_forward.1} parent=11 // pred_fallthru
        _
      // Predicated region
      $region17: #{deformable_encoder_layer_forward.1} parent=11 // pred_check
        %p422 = pneg %p168
      $region18: #{deformable_encoder_layer_forward.1} parent=11 // pred_check_branch
        %424 = sbr.rel (%p422) target = $region20
      $region19: #{deformable_encoder_layer_forward.1} parent=11 // pred_region
        _
      $region20: #{deformable_encoder_layer_forward.1} parent=11 // pred_fallthru
        _
      // Predicated region
      $region21: #{deformable_encoder_layer_forward.1} parent=11 // pred_check
        %p425 = pneg %p189
      $region22: #{deformable_encoder_layer_forward.1} parent=11 // pred_check_branch
        %427 = sbr.rel (%p425) target = $region24
      $region23: #{deformable_encoder_layer_forward.1} parent=11 // pred_region
        _
      $region24: #{deformable_encoder_layer_forward.1} parent=11 // pred_fallthru
        _
      // Predicated region
      $region25: #{deformable_encoder_layer_forward.1} parent=11 // pred_check
        %p428 = pneg %p210
      $region26: #{deformable_encoder_layer_forward.1} parent=11 // pred_check_branch
        %430 = sbr.rel (%p428) target = $region28
      $region27: #{deformable_encoder_layer_forward.1} parent=11 // pred_region
        _
      $region28: #{deformable_encoder_layer_forward.1} parent=11 // pred_fallthru
        _
      // Predicated region
      $region29: #{deformable_encoder_layer_forward.1} parent=11 // pred_check
        %p431 = pneg %p231
      $region30: #{deformable_encoder_layer_forward.1} parent=11 // pred_check_branch
        %433 = sbr.rel (%p431) target = $region32
      $region31: #{deformable_encoder_layer_forward.1} parent=11 // pred_region
        _
      $region32: #{deformable_encoder_layer_forward.1} parent=11 // pred_fallthru
        _
      // Predicated region
      $region33: #{deformable_encoder_layer_forward.1} parent=11 // pred_check
        %p434 = pneg %p252
      $region34: #{deformable_encoder_layer_forward.1} parent=11 // pred_check_branch
        %436 = sbr.rel (%p434) target = $region36
      $region35: #{deformable_encoder_layer_forward.1} parent=11 // pred_region
        _
      $region36: #{deformable_encoder_layer_forward.1} parent=11 // pred_fallthru
        _
      // Predicated region
      $region37: #{deformable_encoder_layer_forward.1} parent=11 // pred_check
        %p437 = pneg %p273
      $region38: #{deformable_encoder_layer_forward.1} parent=11 // pred_check_branch
        %439 = sbr.rel (%p437) target = $region40
      $region39: #{deformable_encoder_layer_forward.1} parent=11 // pred_region
        _
      $region40: #{deformable_encoder_layer_forward.1} parent=11 // pred_fallthru
        _
      // Predicated region
      $region41: #{deformable_encoder_layer_forward.1} parent=11 // pred_check
        %p440 = pneg %p294
      $region42: #{deformable_encoder_layer_forward.1} parent=11 // pred_check_branch
        %442 = sbr.rel (%p440) target = $region44
      $region43: #{deformable_encoder_layer_forward.1} parent=11 // pred_region
        _
      $region44: #{deformable_encoder_layer_forward.1} parent=11 // pred_fallthru
        _
      // Predicated region
      $region45: #{deformable_encoder_layer_forward.1} parent=11 // pred_check
        %p443 = pneg %p315
      $region46: #{deformable_encoder_layer_forward.1} parent=11 // pred_check_branch
        %445 = sbr.rel (%p443) target = $region48
      $region47: #{deformable_encoder_layer_forward.1} parent=11 // pred_region
        _
      $region48: #{deformable_encoder_layer_forward.1} parent=11 // pred_fallthru
        _
      // Predicated region
      $region49: #{deformable_encoder_layer_forward.1} parent=11 // pred_check
        %p446 = pneg %p336
      $region50: #{deformable_encoder_layer_forward.1} parent=11 // pred_check_branch
        %448 = sbr.rel (%p446) target = $region52
      $region51: #{deformable_encoder_layer_forward.1} parent=11 // pred_region
        _
      $region52: #{deformable_encoder_layer_forward.1} parent=11 // pred_fallthru
        _
      // Predicated region
      $region53: #{deformable_encoder_layer_forward.1} parent=11 // pred_check
        %p449 = pneg %p357
      $region54: #{deformable_encoder_layer_forward.1} parent=11 // pred_check_branch
        %451 = sbr.rel (%p449) target = $region56
      $region55: #{deformable_encoder_layer_forward.1} parent=11 // pred_region
        _
      $region56: #{deformable_encoder_layer_forward.1} parent=11 // pred_fallthru
        _
      // Predicated region
      $region57: #{deformable_encoder_layer_forward.1} parent=11 // pred_check
        %p452 = pneg %p378
      $region58: #{deformable_encoder_layer_forward.1} parent=11 // pred_check_branch
        %454 = sbr.rel (%p452) target = $region60
      $region59: #{deformable_encoder_layer_forward.1} parent=11 // pred_region
        _
      $region60: #{deformable_encoder_layer_forward.1} parent=11 // pred_fallthru
        _
    $region12: #{deformable_encoder_layer_forward.1} parent=5 // pred_fallthru
      _
    %p455 = scmp.lt.s32.totalorder %s22, 2
    // Predicated region
    $region61: #{deformable_encoder_layer_forward.1} parent=5 // pred_check
      %p456 = pneg %p455
    $region62: #{deformable_encoder_layer_forward.1} parent=5 // pred_check_branch
      %458 = sbr.rel (%p456) target = $region64
    $region63: #{deformable_encoder_layer_forward.1} parent=5 // pred_region
      // Predicated region
      $region65: #{deformable_encoder_layer_forward.1} parent=63 // pred_check
        %p459 = pneg %p42
      $region66: #{deformable_encoder_layer_forward.1} parent=63 // pred_check_branch
        %461 = sbr.rel (%p459) target = $region68
      $region67: #{deformable_encoder_layer_forward.1} parent=63 // pred_region
        %p462 = scmp.lt.s32.totalorder %s22, 1
        %s463 = scalar_select %p462, %s22, 1
        %s464 = smul.addr %s463, 10
        %s465 = smul.addr %s464, 8
        %s466 = scalar_lea.vmem %s0, %s465
      $region68: #{deformable_encoder_layer_forward.1} parent=63 // pred_fallthru
        _
      // Predicated region
      $region69: #{deformable_encoder_layer_forward.1} parent=63 // pred_check
        %p467 = pneg %p68
      $region70: #{deformable_encoder_layer_forward.1} parent=63 // pred_check_branch
        %469 = sbr.rel (%p467) target = $region72
      $region71: #{deformable_encoder_layer_forward.1} parent=63 // pred_region
        %p470 = scmp.lt.s32.totalorder %s22, 1
        %s471 = scalar_select %p470, %s22, 1
        %s472 = smul.addr %s471, 10
        %s473 = smul.addr %s472, 8
        %s474 = scalar_lea.vmem %s1, %s473
      $region72: #{deformable_encoder_layer_forward.1} parent=63 // pred_fallthru
        _
      // Predicated region
      $region73: #{deformable_encoder_layer_forward.1} parent=63 // pred_check
        %p475 = pneg %p94
      $region74: #{deformable_encoder_layer_forward.1} parent=63 // pred_check_branch
        %477 = sbr.rel (%p475) target = $region76
      $region75: #{deformable_encoder_layer_forward.1} parent=63 // pred_region
        %p478 = scmp.lt.s32.totalorder %s22, 1
        %s479 = scalar_select %p478, %s22, 1
        %s480 = smul.addr %s479, 10
        %s481 = smul.addr %s480, 8
        %s482 = scalar_lea.vmem %s2, %s481
      $region76: #{deformable_encoder_layer_forward.1} parent=63 // pred_fallthru
        _
      // Predicated region
      $region77: #{deformable_encoder_layer_forward.1} parent=63 // pred_check
        %p483 = pneg %p120
      $region78: #{deformable_encoder_layer_forward.1} parent=63 // pred_check_branch
        %485 = sbr.rel (%p483) target = $region80
      $region79: #{deformable_encoder_layer_forward.1} parent=63 // pred_region
        %p486 = scmp.lt.s32.totalorder %s22, 1
        %s487 = scalar_select %p486, %s22, 1
        %s488 = smul.addr %s487, 10
        %s489 = smul.addr %s488, 8
        %s490 = scalar_lea.vmem %s3, %s489
      $region80: #{deformable_encoder_layer_forward.1} parent=63 // pred_fallthru
        _
    $region64: #{deformable_encoder_layer_forward.1} parent=5 // pred_fallthru
      _
    %p491 = scmp.le.s32.totalorder 1, %s22
    %p492 = scmp.lt.s32.totalorder %s22, 3
    %p493 = pnand %p491, %p492
    %p494 = pneg %p493
    // Predicated region
    $region81: #{deformable_encoder_layer_forward.1} parent=5 // pred_check
      _
    $region82: #{deformable_encoder_layer_forward.1} parent=5 // pred_check_branch
      %496 = sbr.rel (%p493) target = $region84
    $region83: #{deformable_encoder_layer_forward.1} parent=5 // pred_region
      %s497 = ssub.s32 %s22, 1
      %p498 = scmp.lt.s32.totalorder %s27, 1
      %s499 = scalar_select %p498, %s27, 1
      %s500 = smul.addr %s499, 10
      %s501 = smul.addr %s500, 8
      %s502 = scalar_lea.vmem %s0, %s501
      %p503 = pneg %p48
      %p504 = pneg %p45
      %p505 = scmp.lt.s32.totalorder %s27, 1
      %s506 = scalar_select %p505, %s27, 1
      %s507 = smul.addr %s506, 10
      %s508 = smul.addr %s507, 8
      %s509 = scalar_lea.vmem %s1, %s508
      %p510 = pneg %p74
      %p511 = pneg %p71
      %p512 = scmp.lt.s32.totalorder %s27, 1
      %s513 = scalar_select %p512, %s27, 1
      %s514 = smul.addr %s513, 10
      %s515 = smul.addr %s514, 8
      %s516 = scalar_lea.vmem %s2, %s515
      %p517 = pneg %p100
      %p518 = pneg %p97
      %p519 = scmp.lt.s32.totalorder %s27, 1
      %s520 = scalar_select %p519, %s27, 1
      %s521 = smul.addr %s520, 10
      %s522 = smul.addr %s521, 8
      %s523 = scalar_lea.vmem %s3, %s522
      %p524 = pneg %p126
      %p525 = pneg %p123
      %p526 = pneg %p147
      %p527 = pneg %p144
      %p528 = pneg %p168
      %p529 = pneg %p165
      %p530 = pneg %p189
      %p531 = pneg %p186
      %p532 = pneg %p210
      %p533 = pneg %p207
      %p534 = pneg %p231
      %p535 = pneg %p228
      %p536 = pneg %p252
      %p537 = pneg %p249
      %p538 = pneg %p273
      %p539 = pneg %p270
      %p540 = pneg %p294
      %p541 = pneg %p291
      %p542 = pneg %p315
      %p543 = pneg %p312
      %p544 = pneg %p336
      %p545 = pneg %p333
      %p546 = pneg %p357
      %p547 = pneg %p354
      %p548 = pneg %p378
      %p549 = pneg %p375
      %p550 = pneg %p404
      %p551 = pneg %p401
      %p552 = scmp.lt.s32.totalorder %s27, 1
      %s553 = scalar_select %p552, %s27, 1
      %s554 = smul.addr %s553, 10
      %s555 = smul.addr %s554, 8
      %s556 = scalar_lea.vmem %s16, %s555
      %p557 = scmp.lt.s32.totalorder %s27, 1
      %s558 = scalar_select %p557, %s27, 1
      %s559 = smul.addr %s558, 10
      %s560 = smul.addr %s559, 8
      %s561 = scalar_lea.vmem %s0, %s560
      %p562 = scmp.lt.s32.totalorder %s27, 1
      %s563 = scalar_select %p562, %s27, 1
      %s564 = smul.addr %s563, 10
      %s565 = smul.addr %s564, 8
      %s566 = scalar_lea.vmem %s1, %s565
      %p567 = scmp.lt.s32.totalorder %s27, 1
      %s568 = scalar_select %p567, %s27, 1
      %s569 = smul.addr %s568, 10
      %s570 = smul.addr %s569, 8
      %s571 = scalar_lea.vmem %s2, %s570
      %p572 = scmp.lt.s32.totalorder %s27, 1
      %s573 = scalar_select %p572, %s27, 1
      %s574 = smul.addr %s573, 10
      %s575 = smul.addr %s574, 8
      %s576 = scalar_lea.vmem %s3, %s575
      %p577 = scmp.lt.s32.totalorder %s27, 1
      %s578 = scalar_select %p577, %s27, 1
      %s579 = smul.addr %s578, 10
      %s580 = smul.addr %s579, 8
      %s581 = scalar_lea.vmem %s16, %s580
      %v582 = vld [vmem:[%s561] sm:$0xff]
      %v583 = vld [vmem:[%s561 + $0x8] sm:$0xff]
      %v584 = vld [vmem:[%s561 + $0x10] sm:$0xff]
      %v585 = vld [vmem:[%s561 + $0x18] sm:$0xff]
      %v586 = vld [vmem:[%s561 + $0x20] sm:$0xff]
      %v587 = vld [vmem:[%s561 + $0x28] sm:$0xff]
      %v588 = vld [vmem:[%s561 + $0x30] sm:$0xff]
      %v589 = vld [vmem:[%s561 + $0x38] sm:$0xff]
      %v590 = vld [vmem:[%s561 + $0x40] sm:$0xff]
      %v591 = vld [vmem:[%s561 + $0x48] sm:$0xff]
      %v592 = vld [vmem:[%s566] sm:$0xff]
      %v593 = vld [vmem:[%s566 + $0x8] sm:$0xff]
      %v594 = vld [vmem:[%s566 + $0x10] sm:$0xff]
      %v595 = vld [vmem:[%s566 + $0x18] sm:$0xff]
      %v596 = vld [vmem:[%s566 + $0x20] sm:$0xff]
      %v597 = vld [vmem:[%s566 + $0x28] sm:$0xff]
      %v598 = vld [vmem:[%s566 + $0x30] sm:$0xff]
      %v599 = vld [vmem:[%s566 + $0x38] sm:$0xff]
      %v600 = vld [vmem:[%s566 + $0x40] sm:$0xff]
      %v601 = vld [vmem:[%s566 + $0x48] sm:$0xff]
      %612 = vrot.lane.b32.xlu0 %v592, 32
      %v613 = vpop.permute.xlu0 %612
      %614 = vrot.lane.b32.xlu0 %v593, 32
      %v615 = vpop.permute.xlu0 %614
      %616 = vrot.lane.b32.xlu0 %v594, 32
      %v617 = vpop.permute.xlu0 %616
      %618 = vrot.lane.b32.xlu0 %v595, 32
      %v619 = vpop.permute.xlu0 %618
      %620 = vrot.lane.b32.xlu0 %v596, 32
      %v621 = vpop.permute.xlu0 %620
      %622 = vrot.lane.b32.xlu0 %v597, 32
      %v623 = vpop.permute.xlu0 %622
      %624 = vrot.lane.b32.xlu0 %v598, 32
      %v625 = vpop.permute.xlu0 %624
      %626 = vrot.lane.b32.xlu0 %v599, 32
      %v627 = vpop.permute.xlu0 %626
      %628 = vrot.lane.b32.xlu0 %v600, 32
      %v629 = vpop.permute.xlu0 %628
      %630 = vrot.lane.b32.xlu0 %v601, 32
      %v631 = vpop.permute.xlu0 %630
      %vm642 = vcmask 261120
      %v643 = vsel %vm642, %v582, %v613
      %v644 = vsel %vm642, %v583, %v615
      %v645 = vsel %vm642, %v584, %v617
      %v646 = vsel %vm642, %v585, %v619
      %v647 = vsel %vm642, %v586, %v621
      %v648 = vsel %vm642, %v587, %v623
      %v649 = vsel %vm642, %v588, %v625
      %v650 = vsel %vm642, %v589, %v627
      %v651 = vsel %vm642, %v590, %v629
      %v652 = vsel %vm642, %v591, %v631
      %v653 = vld [vmem:[%s4] sm:$0xff]
      %v654 = vld [vmem:[%s4 + $0x8] sm:$0xff]
      %v655 = vld [vmem:[%s4 + $0x10] sm:$0xff]
      %v656 = vld [vmem:[%s4 + $0x18] sm:$0xff]
      %v657 = vld [vmem:[%s4 + $0x20] sm:$0xff]
      %v658 = vld [vmem:[%s4 + $0x28] sm:$0xff]
      %v659 = vld [vmem:[%s4 + $0x30] sm:$0xff]
      %v660 = vld [vmem:[%s4 + $0x38] sm:$0xff]
      %v661 = vld [vmem:[%s5] sm:$0x1]
      %v663 = vperm.slane %v661, 0
      %vm665 = vcmask 523264
      %v667 = vsel %vm665, %v643, 0
      %v670 = vsel %vm665, %v644, 0
      %v673 = vsel %vm665, %v645, 0
      %v676 = vsel %vm665, %v646, 0
      %v679 = vsel %vm665, %v647, 0
      %v682 = vsel %vm665, %v648, 0
      %v685 = vsel %vm665, %v649, 0
      %v688 = vsel %vm665, %v650, 0
      %v691 = vsel %vm665, %v651, 0
      %v694 = vsel %vm665, %v652, 0
      %696 = vmatpush.msra.mxu0 0.0
      %697 = vmatpush.msra.mxu0 0.0
      %698 = vmatpush.msra.mxu0 0.0
      %699 = vmatpush.msra.mxu0 0.0
      %700 = vmatpush.msra.mxu0 0.0
      %701 = vmatpush.msra.mxu0 0.0
      %702 = vmatpush.msra.mxu0 0.0
      %703 = vmatpush.msra.mxu0 0.0
      %704 = vmatpush.msra.mxu0 %v660
      %705 = vmatpush.msra.mxu0 %v659
      %706 = vmatpush.msra.mxu0 %v658
      %707 = vmatpush.msra.mxu0 %v657
      %708 = vmatpush.msra.mxu0 %v656
      %709 = vmatpush.msra.mxu0 %v655
      %710 = vmatpush.msra.mxu0 %v654
      %711 = vmatpush.msra.mxu0 %v653
      %712 = vmatmul.f32.gmra.mxu0 %v667
      %v713 = vpop.f32.mrf.mxu0
      %v714 = vadd.f32 %v663, %v713
      %715 = vmatmul.f32.gmra.mxu0 %v670
      %v716 = vpop.f32.mrf.mxu0
      %v717 = vadd.f32 %v663, %v716
      %718 = vmatmul.f32.gmra.mxu0 %v673
      %v719 = vpop.f32.mrf.mxu0
      %v720 = vadd.f32 %v663, %v719
      %721 = vmatmul.f32.gmra.mxu0 %v676
      %v722 = vpop.f32.mrf.mxu0
      %v723 = vadd.f32 %v663, %v722
      %724 = vmatmul.f32.gmra.mxu0 %v679
      %v725 = vpop.f32.mrf.mxu0
      %v726 = vadd.f32 %v663, %v725
      %727 = vmatmul.f32.gmra.mxu0 %v682
      %v728 = vpop.f32.mrf.mxu0
      %v729 = vadd.f32 %v663, %v728
      %730 = vmatmul.f32.gmra.mxu0 %v685
      %v731 = vpop.f32.mrf.mxu0
      %v732 = vadd.f32 %v663, %v731
      %733 = vmatmul.f32.gmra.mxu0 %v688
      %v734 = vpop.f32.mrf.mxu0
      %v735 = vadd.f32 %v663, %v734
      %736 = vmatmul.f32.gmra.mxu0 %v691
      %v737 = vpop.f32.mrf.mxu0
      %v738 = vadd.f32 %v663, %v737
      %739 = vmatmul.f32.gmra.mxu0 %v694
      %v740 = vpop.f32.mrf.mxu0
      %v741 = vadd.f32 %v663, %v740
      %742 = vdwg.mxu0
      %v743 = vld [vmem:[%s576] sm:$0xff]
      %v744 = vld [vmem:[%s576 + $0x8] sm:$0xff]
      %v745 = vld [vmem:[%s576 + $0x10] sm:$0xff]
      %v746 = vld [vmem:[%s576 + $0x18] sm:$0xff]
      %v747 = vld [vmem:[%s576 + $0x20] sm:$0xff]
      %v748 = vld [vmem:[%s576 + $0x28] sm:$0xff]
      %v749 = vld [vmem:[%s576 + $0x30] sm:$0xff]
      %v750 = vld [vmem:[%s576 + $0x38] sm:$0xff]
      %v751 = vld [vmem:[%s576 + $0x40] sm:$0xff]
      %v752 = vld [vmem:[%s576 + $0x48] sm:$0xff]
      %v753 = vsub.f32 1.0, %v743
      %v754 = vsub.f32 1.0, %v744
      %v755 = vsub.f32 1.0, %v745
      %v756 = vsub.f32 1.0, %v746
      %v757 = vsub.f32 1.0, %v747
      %v758 = vsub.f32 1.0, %v748
      %v759 = vsub.f32 1.0, %v749
      %v760 = vsub.f32 1.0, %v750
      %v761 = vsub.f32 1.0, %v751
      %v762 = vsub.f32 1.0, %v752
      %764 = vset.pattern.permute.xlu0 0
      %765 = vperm.xlu0 %764, %v753
      %v766 = vpop.permute.xlu0 %765
      %769 = vset.pattern.permute.xlu0 0
      %770 = vperm.xlu0 %769, %v754
      %v771 = vpop.permute.xlu0 %770
      %774 = vset.pattern.permute.xlu0 0
      %775 = vperm.xlu0 %774, %v755
      %v776 = vpop.permute.xlu0 %775
      %779 = vset.pattern.permute.xlu0 0
      %780 = vperm.xlu0 %779, %v756
      %v781 = vpop.permute.xlu0 %780
      %784 = vset.pattern.permute.xlu0 0
      %785 = vperm.xlu0 %784, %v757
      %v786 = vpop.permute.xlu0 %785
      %789 = vset.pattern.permute.xlu0 0
      %790 = vperm.xlu0 %789, %v758
      %v791 = vpop.permute.xlu0 %790
      %794 = vset.pattern.permute.xlu0 0
      %795 = vperm.xlu0 %794, %v759
      %v796 = vpop.permute.xlu0 %795
      %799 = vset.pattern.permute.xlu0 0
      %800 = vperm.xlu0 %799, %v760
      %v801 = vpop.permute.xlu0 %800
      %804 = vset.pattern.permute.xlu0 0
      %805 = vperm.xlu0 %804, %v761
      %v806 = vpop.permute.xlu0 %805
      %809 = vset.pattern.permute.xlu0 0
      %810 = vperm.xlu0 %809, %v762
      %v811 = vpop.permute.xlu0 %810
      %v813 = vmul.f32 %v714, %v766
      %v814 = vmul.f32 %v717, %v771
      %v815 = vmul.f32 %v720, %v776
      %v816 = vmul.f32 %v723, %v781
      %v817 = vmul.f32 %v726, %v786
      %v818 = vmul.f32 %v729, %v791
      %v819 = vmul.f32 %v732, %v796
      %v820 = vmul.f32 %v735, %v801
      %v821 = vmul.f32 %v738, %v806
      %v822 = vmul.f32 %v741, %v811
      %v823 = vld [vmem:[%s571] sm:$0xff]
      %v824 = vld [vmem:[%s571 + $0x8] sm:$0xff]
      %v825 = vld [vmem:[%s571 + $0x10] sm:$0xff]
      %v826 = vld [vmem:[%s571 + $0x18] sm:$0xff]
      %v827 = vld [vmem:[%s571 + $0x20] sm:$0xff]
      %v828 = vld [vmem:[%s571 + $0x28] sm:$0xff]
      %v829 = vld [vmem:[%s571 + $0x30] sm:$0xff]
      %v830 = vld [vmem:[%s571 + $0x38] sm:$0xff]
      %v831 = vld [vmem:[%s571 + $0x40] sm:$0xff]
      %v832 = vld [vmem:[%s571 + $0x48] sm:$0xff]
      %843 = vrot.lane.b32.xlu0 %v823, 32
      %v844 = vpop.permute.xlu0 %843
      %845 = vrot.lane.b32.xlu0 %v824, 32
      %v846 = vpop.permute.xlu0 %845
      %847 = vrot.lane.b32.xlu0 %v825, 32
      %v848 = vpop.permute.xlu0 %847
      %849 = vrot.lane.b32.xlu0 %v826, 32
      %v850 = vpop.permute.xlu0 %849
      %851 = vrot.lane.b32.xlu0 %v827, 32
      %v852 = vpop.permute.xlu0 %851
      %853 = vrot.lane.b32.xlu0 %v828, 32
      %v854 = vpop.permute.xlu0 %853
      %855 = vrot.lane.b32.xlu0 %v829, 32
      %v856 = vpop.permute.xlu0 %855
      %857 = vrot.lane.b32.xlu0 %v830, 32
      %v858 = vpop.permute.xlu0 %857
      %859 = vrot.lane.b32.xlu0 %v831, 32
      %v860 = vpop.permute.xlu0 %859
      %861 = vrot.lane.b32.xlu0 %v832, 32
      %v862 = vpop.permute.xlu0 %861
      %v873 = vadd.f32 %v714, %v844
      %v874 = vadd.f32 %v717, %v846
      %v875 = vadd.f32 %v720, %v848
      %v876 = vadd.f32 %v723, %v850
      %v877 = vadd.f32 %v726, %v852
      %v878 = vadd.f32 %v729, %v854
      %v879 = vadd.f32 %v732, %v856
      %v880 = vadd.f32 %v735, %v858
      %v881 = vadd.f32 %v738, %v860
      %v882 = vadd.f32 %v741, %v862
      %vm883 = vcmask 654848
      %v884 = vsel %vm883, %v714, -inf
      %885 = vmax.xlane.f32.xlu0 %v884
      %v886 = vpop.xlane.xlu0 %885
      %v887 = vsel %vm883, %v717, -inf
      %888 = vmax.xlane.f32.xlu0 %v887
      %v889 = vpop.xlane.xlu0 %888
      %v890 = vsel %vm883, %v720, -inf
      %891 = vmax.xlane.f32.xlu0 %v890
      %v892 = vpop.xlane.xlu0 %891
      %v893 = vsel %vm883, %v723, -inf
      %894 = vmax.xlane.f32.xlu0 %v893
      %v895 = vpop.xlane.xlu0 %894
      %v896 = vsel %vm883, %v726, -inf
      %897 = vmax.xlane.f32.xlu0 %v896
      %v898 = vpop.xlane.xlu0 %897
      %v899 = vsel %vm883, %v729, -inf
      %900 = vmax.xlane.f32.xlu0 %v899
      %v901 = vpop.xlane.xlu0 %900
      %v902 = vsel %vm883, %v732, -inf
      %903 = vmax.xlane.f32.xlu0 %v902
      %v904 = vpop.xlane.xlu0 %903
      %v905 = vsel %vm883, %v735, -inf
      %906 = vmax.xlane.f32.xlu0 %v905
      %v907 = vpop.xlane.xlu0 %906
      %v908 = vsel %vm883, %v738, -inf
      %909 = vmax.xlane.f32.xlu0 %v908
      %v910 = vpop.xlane.xlu0 %909
      %v911 = vsel %vm883, %v741, -inf
      %912 = vmax.xlane.f32.xlu0 %v911
      %v913 = vpop.xlane.xlu0 %912
      %v914 = vsub.f32 %v714, %v886
      %v915 = vsub.f32 %v717, %v889
      %v916 = vsub.f32 %v720, %v892
      %v917 = vsub.f32 %v723, %v895
      %v918 = vsub.f32 %v726, %v898
      %v919 = vsub.f32 %v729, %v901
      %v920 = vsub.f32 %v732, %v904
      %v921 = vsub.f32 %v735, %v907
      %v922 = vsub.f32 %v738, %v910
      %v923 = vsub.f32 %v741, %v913
      %v924 = vmul.f32 %v914, 1.442695
      %v925 = vpow.pop %v924
      %v926 = vmul.f32 %v915, 1.442695
      %v927 = vpow.pop %v926
      %v928 = vmul.f32 %v916, 1.442695
      %v929 = vpow.pop %v928
      %v930 = vmul.f32 %v917, 1.442695
      %v931 = vpow.pop %v930
      %v932 = vmul.f32 %v918, 1.442695
      %v933 = vpow.pop %v932
      %v934 = vmul.f32 %v919, 1.442695
      %v935 = vpow.pop %v934
      %v936 = vmul.f32 %v920, 1.442695
      %v937 = vpow.pop %v936
      %v938 = vmul.f32 %v921, 1.442695
      %v939 = vpow.pop %v938
      %v940 = vmul.f32 %v922, 1.442695
      %v941 = vpow.pop %v940
      %v942 = vmul.f32 %v923, 1.442695
      %v943 = vpow.pop %v942
      %v944 = vlaneseq
      %v945 = vshrl.u32 %v944, 7
      %v946 = vadd.s32 %v945, 8
      %v947 = vshra.s32 %v945, 2
      %v948 = vshra.s32 %v946, 2
      %v949 = vlaneseq
      %v950 = vand.u32 %v949, 127
      %v951 = vshra.s32 %v950, 2
      %vm952 = vcmp.eq.s32.totalorder %v947, %v951
      %vm953 = vcmp.eq.s32.totalorder %v948, %v951
      %v954 = vsel %vm952, 1, 0
      %v955 = vsel %vm953, 1, 0
      %v956 = vcvt.s32.f32 %v954
      %v957 = vcvt.s32.f32 %v955
      %968 = vrot.lane.b32.xlu0 %v925, 64
      %v969 = vpop.permute.xlu0 %968
      %970 = vrot.lane.b32.xlu0 %v927, 64
      %v971 = vpop.permute.xlu0 %970
      %972 = vrot.lane.b32.xlu0 %v929, 64
      %v973 = vpop.permute.xlu0 %972
      %974 = vrot.lane.b32.xlu0 %v931, 64
      %v975 = vpop.permute.xlu0 %974
      %976 = vrot.lane.b32.xlu0 %v933, 64
      %v977 = vpop.permute.xlu0 %976
      %978 = vrot.lane.b32.xlu0 %v935, 64
      %v979 = vpop.permute.xlu0 %978
      %980 = vrot.lane.b32.xlu0 %v937, 64
      %v981 = vpop.permute.xlu0 %980
      %982 = vrot.lane.b32.xlu0 %v939, 64
      %v983 = vpop.permute.xlu0 %982
      %984 = vrot.lane.b32.xlu0 %v941, 64
      %v985 = vpop.permute.xlu0 %984
      %986 = vrot.lane.b32.xlu0 %v943, 64
      %v987 = vpop.permute.xlu0 %986
      %vm988 = vcmask 130048
      %v989 = vsel %vm988, %v969, 0
      %v991 = vsel %vm988, %v971, 0
      %v993 = vsel %vm988, %v973, 0
      %v995 = vsel %vm988, %v975, 0
      %v997 = vsel %vm988, %v977, 0
      %v999 = vsel %vm988, %v979, 0
      %v1001 = vsel %vm988, %v981, 0
      %v1003 = vsel %vm988, %v983, 0
      %v1005 = vsel %vm988, %v985, 0
      %v1007 = vsel %vm988, %v987, 0
      %1009 = vmatpush.msra.mxu0 0.0
      %1010 = vmatpush.msra.mxu0 0.0
      %1011 = vmatpush.msra.mxu0 0.0
      %1012 = vmatpush.msra.mxu0 0.0
      %1013 = vmatpush.msra.mxu0 0.0
      %1014 = vmatpush.msra.mxu0 0.0
      %1015 = vmatpush.msra.mxu0 0.0
      %1016 = vmatpush.msra.mxu0 0.0
      %1017 = vmatpush.msra.mxu0 0.0
      %1018 = vmatpush.msra.mxu0 0.0
      %1019 = vmatpush.msra.mxu0 0.0
      %1020 = vmatpush.msra.mxu0 0.0
      %1021 = vmatpush.msra.mxu0 0.0
      %1022 = vmatpush.msra.mxu0 0.0
      %1023 = vmatpush.msra.mxu0 %v957
      %1024 = vmatpush.msra.mxu0 %v956
      %1025 = vmatmul.f32.gmra.mxu0 %v989
      %v1026 = vpop.f32.mrf.mxu0
      %v1027 = vadd.f32 0.0, %v1026
      %1028 = vmatmul.f32.gmra.mxu0 %v991
      %v1029 = vpop.f32.mrf.mxu0
      %v1030 = vadd.f32 0.0, %v1029
      %1031 = vmatmul.f32.gmra.mxu0 %v993
      %v1032 = vpop.f32.mrf.mxu0
      %v1033 = vadd.f32 0.0, %v1032
      %1034 = vmatmul.f32.gmra.mxu0 %v995
      %v1035 = vpop.f32.mrf.mxu0
      %v1036 = vadd.f32 0.0, %v1035
      %1037 = vmatmul.f32.gmra.mxu0 %v997
      %v1038 = vpop.f32.mrf.mxu0
      %v1039 = vadd.f32 0.0, %v1038
      %1040 = vmatmul.f32.gmra.mxu0 %v999
      %v1041 = vpop.f32.mrf.mxu0
      %v1042 = vadd.f32 0.0, %v1041
      %1043 = vmatmul.f32.gmra.mxu0 %v1001
      %v1044 = vpop.f32.mrf.mxu0
      %v1045 = vadd.f32 0.0, %v1044
      %1046 = vmatmul.f32.gmra.mxu0 %v1003
      %v1047 = vpop.f32.mrf.mxu0
      %v1048 = vadd.f32 0.0, %v1047
      %1049 = vmatmul.f32.gmra.mxu0 %v1005
      %v1050 = vpop.f32.mrf.mxu0
      %v1051 = vadd.f32 0.0, %v1050
      %1052 = vmatmul.f32.gmra.mxu0 %v1007
      %v1053 = vpop.f32.mrf.mxu0
      %v1054 = vadd.f32 0.0, %v1053
      %1055 = vdwg.mxu0
      %1066 = vrot.lane.b32.xlu0 %v1027, 64
      %v1067 = vpop.permute.xlu0 %1066
      %1068 = vrot.lane.b32.xlu0 %v1030, 64
      %v1069 = vpop.permute.xlu0 %1068
      %1070 = vrot.lane.b32.xlu0 %v1033, 64
      %v1071 = vpop.permute.xlu0 %1070
      %1072 = vrot.lane.b32.xlu0 %v1036, 64
      %v1073 = vpop.permute.xlu0 %1072
      %1074 = vrot.lane.b32.xlu0 %v1039, 64
      %v1075 = vpop.permute.xlu0 %1074
      %1076 = vrot.lane.b32.xlu0 %v1042, 64
      %v1077 = vpop.permute.xlu0 %1076
      %1078 = vrot.lane.b32.xlu0 %v1045, 64
      %v1079 = vpop.permute.xlu0 %1078
      %1080 = vrot.lane.b32.xlu0 %v1048, 64
      %v1081 = vpop.permute.xlu0 %1080
      %1082 = vrot.lane.b32.xlu0 %v1051, 64
      %v1083 = vpop.permute.xlu0 %1082
      %1084 = vrot.lane.b32.xlu0 %v1054, 64
      %v1085 = vpop.permute.xlu0 %1084
      %v1096 = vrcp.pop %v1067
      %v1097 = vmul.f32 %v1067, %v1096
      %v1098 = vsub.f32 1.0, %v1097
      %v1099 = vmul.f32 %v1096, %v1098
      %v1100 = vadd.f32 %v1096, %v1099
      %vm1101 = vweird.f32 %v1067
      %vm1102 = vweird.f32 %v1096
      %vm1103 = vmor %vm1101, %vm1102
      %v1104 = vsel %vm1103, %v1096, %v1100
      %v1105 = vand.u32 2147483647, %v1067
      %vm1106 = vcmp.eq.f32.partialorder %v1105, 8.507059e+37
      %v1107 = vand.u32 %v1067, 2147483648
      %v1108 = vor.u32 1.1754944e-38, %v1107
      %v1109 = vsel %vm1106, %v1108, %v1104
      %v1110 = vmul.f32 %v925, %v1109
      %v1111 = vrcp.pop %v1069
      %v1112 = vmul.f32 %v1069, %v1111
      %v1113 = vsub.f32 1.0, %v1112
      %v1114 = vmul.f32 %v1111, %v1113
      %v1115 = vadd.f32 %v1111, %v1114
      %vm1116 = vweird.f32 %v1069
      %vm1117 = vweird.f32 %v1111
      %vm1118 = vmor %vm1116, %vm1117
      %v1119 = vsel %vm1118, %v1111, %v1115
      %v1120 = vand.u32 2147483647, %v1069
      %vm1121 = vcmp.eq.f32.partialorder %v1120, 8.507059e+37
      %v1122 = vand.u32 %v1069, 2147483648
      %v1123 = vor.u32 1.1754944e-38, %v1122
      %v1124 = vsel %vm1121, %v1123, %v1119
      %v1125 = vmul.f32 %v927, %v1124
      %v1126 = vrcp.pop %v1071
      %v1127 = vmul.f32 %v1071, %v1126
      %v1128 = vsub.f32 1.0, %v1127
      %v1129 = vmul.f32 %v1126, %v1128
      %v1130 = vadd.f32 %v1126, %v1129
      %vm1131 = vweird.f32 %v1071
      %vm1132 = vweird.f32 %v1126
      %vm1133 = vmor %vm1131, %vm1132
      %v1134 = vsel %vm1133, %v1126, %v1130
      %v1135 = vand.u32 2147483647, %v1071
      %vm1136 = vcmp.eq.f32.partialorder %v1135, 8.507059e+37
      %v1137 = vand.u32 %v1071, 2147483648
      %v1138 = vor.u32 1.1754944e-38, %v1137
      %v1139 = vsel %vm1136, %v1138, %v1134
      %v1140 = vmul.f32 %v929, %v1139
      %v1141 = vrcp.pop %v1073
      %v1142 = vmul.f32 %v1073, %v1141
      %v1143 = vsub.f32 1.0, %v1142
      %v1144 = vmul.f32 %v1141, %v1143
      %v1145 = vadd.f32 %v1141, %v1144
      %vm1146 = vweird.f32 %v1073
      %vm1147 = vweird.f32 %v1141
      %vm1148 = vmor %vm1146, %vm1147
      %v1149 = vsel %vm1148, %v1141, %v1145
      %v1150 = vand.u32 2147483647, %v1073
      %vm1151 = vcmp.eq.f32.partialorder %v1150, 8.507059e+37
      %v1152 = vand.u32 %v1073, 2147483648
      %v1153 = vor.u32 1.1754944e-38, %v1152
      %v1154 = vsel %vm1151, %v1153, %v1149
      %v1155 = vmul.f32 %v931, %v1154
      %v1156 = vrcp.pop %v1075
      %v1157 = vmul.f32 %v1075, %v1156
      %v1158 = vsub.f32 1.0, %v1157
      %v1159 = vmul.f32 %v1156, %v1158
      %v1160 = vadd.f32 %v1156, %v1159
      %vm1161 = vweird.f32 %v1075
      %vm1162 = vweird.f32 %v1156
      %vm1163 = vmor %vm1161, %vm1162
      %v1164 = vsel %vm1163, %v1156, %v1160
      %v1165 = vand.u32 2147483647, %v1075
      %vm1166 = vcmp.eq.f32.partialorder %v1165, 8.507059e+37
      %v1167 = vand.u32 %v1075, 2147483648
      %v1168 = vor.u32 1.1754944e-38, %v1167
      %v1169 = vsel %vm1166, %v1168, %v1164
      %v1170 = vmul.f32 %v933, %v1169
      %v1171 = vrcp.pop %v1077
      %v1172 = vmul.f32 %v1077, %v1171
      %v1173 = vsub.f32 1.0, %v1172
      %v1174 = vmul.f32 %v1171, %v1173
      %v1175 = vadd.f32 %v1171, %v1174
      %vm1176 = vweird.f32 %v1077
      %vm1177 = vweird.f32 %v1171
      %vm1178 = vmor %vm1176, %vm1177
      %v1179 = vsel %vm1178, %v1171, %v1175
      %v1180 = vand.u32 2147483647, %v1077
      %vm1181 = vcmp.eq.f32.partialorder %v1180, 8.507059e+37
      %v1182 = vand.u32 %v1077, 2147483648
      %v1183 = vor.u32 1.1754944e-38, %v1182
      %v1184 = vsel %vm1181, %v1183, %v1179
      %v1185 = vmul.f32 %v935, %v1184
      %v1186 = vrcp.pop %v1079
      %v1187 = vmul.f32 %v1079, %v1186
      %v1188 = vsub.f32 1.0, %v1187
      %v1189 = vmul.f32 %v1186, %v1188
      %v1190 = vadd.f32 %v1186, %v1189
      %vm1191 = vweird.f32 %v1079
      %vm1192 = vweird.f32 %v1186
      %vm1193 = vmor %vm1191, %vm1192
      %v1194 = vsel %vm1193, %v1186, %v1190
      %v1195 = vand.u32 2147483647, %v1079
      %vm1196 = vcmp.eq.f32.partialorder %v1195, 8.507059e+37
      %v1197 = vand.u32 %v1079, 2147483648
      %v1198 = vor.u32 1.1754944e-38, %v1197
      %v1199 = vsel %vm1196, %v1198, %v1194
      %v1200 = vmul.f32 %v937, %v1199
      %v1201 = vrcp.pop %v1081
      %v1202 = vmul.f32 %v1081, %v1201
      %v1203 = vsub.f32 1.0, %v1202
      %v1204 = vmul.f32 %v1201, %v1203
      %v1205 = vadd.f32 %v1201, %v1204
      %vm1206 = vweird.f32 %v1081
      %vm1207 = vweird.f32 %v1201
      %vm1208 = vmor %vm1206, %vm1207
      %v1209 = vsel %vm1208, %v1201, %v1205
      %v1210 = vand.u32 2147483647, %v1081
      %vm1211 = vcmp.eq.f32.partialorder %v1210, 8.507059e+37
      %v1212 = vand.u32 %v1081, 2147483648
      %v1213 = vor.u32 1.1754944e-38, %v1212
      %v1214 = vsel %vm1211, %v1213, %v1209
      %v1215 = vmul.f32 %v939, %v1214
      %v1216 = vrcp.pop %v1083
      %v1217 = vmul.f32 %v1083, %v1216
      %v1218 = vsub.f32 1.0, %v1217
      %v1219 = vmul.f32 %v1216, %v1218
      %v1220 = vadd.f32 %v1216, %v1219
      %vm1221 = vweird.f32 %v1083
      %vm1222 = vweird.f32 %v1216
      %vm1223 = vmor %vm1221, %vm1222
      %v1224 = vsel %vm1223, %v1216, %v1220
      %v1225 = vand.u32 2147483647, %v1083
      %vm1226 = vcmp.eq.f32.partialorder %v1225, 8.507059e+37
      %v1227 = vand.u32 %v1083, 2147483648
      %v1228 = vor.u32 1.1754944e-38, %v1227
      %v1229 = vsel %vm1226, %v1228, %v1224
      %v1230 = vmul.f32 %v941, %v1229
      %v1231 = vrcp.pop %v1085
      %v1232 = vmul.f32 %v1085, %v1231
      %v1233 = vsub.f32 1.0, %v1232
      %v1234 = vmul.f32 %v1231, %v1233
      %v1235 = vadd.f32 %v1231, %v1234
      %vm1236 = vweird.f32 %v1085
      %vm1237 = vweird.f32 %v1231
      %vm1238 = vmor %vm1236, %vm1237
      %v1239 = vsel %vm1238, %v1231, %v1235
      %v1240 = vand.u32 2147483647, %v1085
      %vm1241 = vcmp.eq.f32.partialorder %v1240, 8.507059e+37
      %v1242 = vand.u32 %v1085, 2147483648
      %v1243 = vor.u32 1.1754944e-38, %v1242
      %v1244 = vsel %vm1241, %v1243, %v1239
      %v1245 = vmul.f32 %v943, %v1244
      %v1246 = vfloor.f32 %v873
      %v1247 = vfloor.f32 %v874
      %v1248 = vfloor.f32 %v875
      %v1249 = vfloor.f32 %v876
      %v1250 = vfloor.f32 %v877
      %v1251 = vfloor.f32 %v878
      %v1252 = vfloor.f32 %v879
      %v1253 = vfloor.f32 %v880
      %v1254 = vfloor.f32 %v881
      %v1255 = vfloor.f32 %v882
      %v1256 = vsub.f32 %v873, %v1246
      %v1257 = vsub.f32 %v874, %v1247
      %v1258 = vsub.f32 %v875, %v1248
      %v1259 = vsub.f32 %v876, %v1249
      %v1260 = vsub.f32 %v877, %v1250
      %v1261 = vsub.f32 %v878, %v1251
      %v1262 = vsub.f32 %v879, %v1252
      %v1263 = vsub.f32 %v880, %v1253
      %v1264 = vsub.f32 %v881, %v1254
      %v1265 = vsub.f32 %v882, %v1255
      %v1266 = vcvt.f32.s32.to.zero.pseudo %v1246
      %v1267 = vcvt.f32.s32.to.zero.pseudo %v1247
      %v1268 = vcvt.f32.s32.to.zero.pseudo %v1248
      %v1269 = vcvt.f32.s32.to.zero.pseudo %v1249
      %v1270 = vcvt.f32.s32.to.zero.pseudo %v1250
      %v1271 = vcvt.f32.s32.to.zero.pseudo %v1251
      %v1272 = vcvt.f32.s32.to.zero.pseudo %v1252
      %v1273 = vcvt.f32.s32.to.zero.pseudo %v1253
      %v1274 = vcvt.f32.s32.to.zero.pseudo %v1254
      %v1275 = vcvt.f32.s32.to.zero.pseudo %v1255
      %v1276 = vshra.s32 %v950, 3
      %v1277 = vand.u32 %v950, 7
      %1278 = vset.pattern.permute.xlu0 33
      %1279 = vperm.xlu0 %1278, %v1266
      %v1280 = vpop.permute.xlu0 %1279
      %1281 = vset.pattern.permute.xlu0 33
      %1282 = vperm.xlu0 %1281, %v1267
      %v1283 = vpop.permute.xlu0 %1282
      %1284 = vset.pattern.permute.xlu0 33
      %1285 = vperm.xlu0 %1284, %v1268
      %v1286 = vpop.permute.xlu0 %1285
      %1287 = vset.pattern.permute.xlu0 33
      %1288 = vperm.xlu0 %1287, %v1269
      %v1289 = vpop.permute.xlu0 %1288
      %1290 = vset.pattern.permute.xlu0 33
      %1291 = vperm.xlu0 %1290, %v1270
      %v1292 = vpop.permute.xlu0 %1291
      %1293 = vset.pattern.permute.xlu0 33
      %1294 = vperm.xlu0 %1293, %v1271
      %v1295 = vpop.permute.xlu0 %1294
      %1296 = vset.pattern.permute.xlu0 33
      %1297 = vperm.xlu0 %1296, %v1272
      %v1298 = vpop.permute.xlu0 %1297
      %1299 = vset.pattern.permute.xlu0 33
      %1300 = vperm.xlu0 %1299, %v1273
      %v1301 = vpop.permute.xlu0 %1300
      %1302 = vset.pattern.permute.xlu0 33
      %1303 = vperm.xlu0 %1302, %v1274
      %v1304 = vpop.permute.xlu0 %1303
      %1305 = vset.pattern.permute.xlu0 33
      %1306 = vperm.xlu0 %1305, %v1275
      %v1307 = vpop.permute.xlu0 %1306
      %vm1308 = vcmp.eq.s32.totalorder %v1276, %v1280
      %vm1309 = vcmp.eq.s32.totalorder %v1276, %v1283
      %vm1310 = vcmp.eq.s32.totalorder %v1276, %v1286
      %vm1311 = vcmp.eq.s32.totalorder %v1276, %v1289
      %vm1312 = vcmp.eq.s32.totalorder %v1276, %v1292
      %vm1313 = vcmp.eq.s32.totalorder %v1276, %v1295
      %vm1314 = vcmp.eq.s32.totalorder %v1276, %v1298
      %vm1315 = vcmp.eq.s32.totalorder %v1276, %v1301
      %vm1316 = vcmp.eq.s32.totalorder %v1276, %v1304
      %vm1317 = vcmp.eq.s32.totalorder %v1276, %v1307
      %v1318 = vsub.f32 1.0, %v1256
      %v1319 = vsub.f32 1.0, %v1257
      %v1320 = vsub.f32 1.0, %v1258
      %v1321 = vsub.f32 1.0, %v1259
      %v1322 = vsub.f32 1.0, %v1260
      %v1323 = vsub.f32 1.0, %v1261
      %v1324 = vsub.f32 1.0, %v1262
      %v1325 = vsub.f32 1.0, %v1263
      %v1326 = vsub.f32 1.0, %v1264
      %v1327 = vsub.f32 1.0, %v1265
      %1329 = vset.pattern.permute.xlu0 33
      %1330 = vperm.xlu0 %1329, %v1318
      %v1331 = vpop.permute.xlu0 %1330
      %1334 = vset.pattern.permute.xlu0 33
      %1335 = vperm.xlu0 %1334, %v1319
      %v1336 = vpop.permute.xlu0 %1335
      %1339 = vset.pattern.permute.xlu0 33
      %1340 = vperm.xlu0 %1339, %v1320
      %v1341 = vpop.permute.xlu0 %1340
      %1344 = vset.pattern.permute.xlu0 33
      %1345 = vperm.xlu0 %1344, %v1321
      %v1346 = vpop.permute.xlu0 %1345
      %1349 = vset.pattern.permute.xlu0 33
      %1350 = vperm.xlu0 %1349, %v1322
      %v1351 = vpop.permute.xlu0 %1350
      %1354 = vset.pattern.permute.xlu0 33
      %1355 = vperm.xlu0 %1354, %v1323
      %v1356 = vpop.permute.xlu0 %1355
      %1359 = vset.pattern.permute.xlu0 33
      %1360 = vperm.xlu0 %1359, %v1324
      %v1361 = vpop.permute.xlu0 %1360
      %1364 = vset.pattern.permute.xlu0 33
      %1365 = vperm.xlu0 %1364, %v1325
      %v1366 = vpop.permute.xlu0 %1365
      %1369 = vset.pattern.permute.xlu0 33
      %1370 = vperm.xlu0 %1369, %v1326
      %v1371 = vpop.permute.xlu0 %1370
      %1374 = vset.pattern.permute.xlu0 33
      %1375 = vperm.xlu0 %1374, %v1327
      %v1376 = vpop.permute.xlu0 %1375
      %v1378 = vsel %vm1308, %v1331, 0.0
      %v1379 = vsel %vm1309, %v1336, 0.0
      %v1380 = vsel %vm1310, %v1341, 0.0
      %v1381 = vsel %vm1311, %v1346, 0.0
      %v1382 = vsel %vm1312, %v1351, 0.0
      %v1383 = vsel %vm1313, %v1356, 0.0
      %v1384 = vsel %vm1314, %v1361, 0.0
      %v1385 = vsel %vm1315, %v1366, 0.0
      %v1386 = vsel %vm1316, %v1371, 0.0
      %v1387 = vsel %vm1317, %v1376, 0.0
      %v1388 = vadd.s32 %v1266, 1
      %v1389 = vadd.s32 %v1267, 1
      %v1390 = vadd.s32 %v1268, 1
      %v1391 = vadd.s32 %v1269, 1
      %v1392 = vadd.s32 %v1270, 1
      %v1393 = vadd.s32 %v1271, 1
      %v1394 = vadd.s32 %v1272, 1
      %v1395 = vadd.s32 %v1273, 1
      %v1396 = vadd.s32 %v1274, 1
      %v1397 = vadd.s32 %v1275, 1
      %1398 = vset.pattern.permute.xlu0 33
      %1399 = vperm.xlu0 %1398, %v1388
      %v1400 = vpop.permute.xlu0 %1399
      %1401 = vset.pattern.permute.xlu0 33
      %1402 = vperm.xlu0 %1401, %v1389
      %v1403 = vpop.permute.xlu0 %1402
      %1404 = vset.pattern.permute.xlu0 33
      %1405 = vperm.xlu0 %1404, %v1390
      %v1406 = vpop.permute.xlu0 %1405
      %1407 = vset.pattern.permute.xlu0 33
      %1408 = vperm.xlu0 %1407, %v1391
      %v1409 = vpop.permute.xlu0 %1408
      %1410 = vset.pattern.permute.xlu0 33
      %1411 = vperm.xlu0 %1410, %v1392
      %v1412 = vpop.permute.xlu0 %1411
      %1413 = vset.pattern.permute.xlu0 33
      %1414 = vperm.xlu0 %1413, %v1393
      %v1415 = vpop.permute.xlu0 %1414
      %1416 = vset.pattern.permute.xlu0 33
      %1417 = vperm.xlu0 %1416, %v1394
      %v1418 = vpop.permute.xlu0 %1417
      %1419 = vset.pattern.permute.xlu0 33
      %1420 = vperm.xlu0 %1419, %v1395
      %v1421 = vpop.permute.xlu0 %1420
      %1422 = vset.pattern.permute.xlu0 33
      %1423 = vperm.xlu0 %1422, %v1396
      %v1424 = vpop.permute.xlu0 %1423
      %1425 = vset.pattern.permute.xlu0 33
      %1426 = vperm.xlu0 %1425, %v1397
      %v1427 = vpop.permute.xlu0 %1426
      %vm1428 = vcmp.eq.s32.totalorder %v1276, %v1400
      %vm1429 = vcmp.eq.s32.totalorder %v1276, %v1403
      %vm1430 = vcmp.eq.s32.totalorder %v1276, %v1406
      %vm1431 = vcmp.eq.s32.totalorder %v1276, %v1409
      %vm1432 = vcmp.eq.s32.totalorder %v1276, %v1412
      %vm1433 = vcmp.eq.s32.totalorder %v1276, %v1415
      %vm1434 = vcmp.eq.s32.totalorder %v1276, %v1418
      %vm1435 = vcmp.eq.s32.totalorder %v1276, %v1421
      %vm1436 = vcmp.eq.s32.totalorder %v1276, %v1424
      %vm1437 = vcmp.eq.s32.totalorder %v1276, %v1427
      %1439 = vset.pattern.permute.xlu0 33
      %1440 = vperm.xlu0 %1439, %v1256
      %v1441 = vpop.permute.xlu0 %1440
      %1444 = vset.pattern.permute.xlu0 33
      %1445 = vperm.xlu0 %1444, %v1257
      %v1446 = vpop.permute.xlu0 %1445
      %1449 = vset.pattern.permute.xlu0 33
      %1450 = vperm.xlu0 %1449, %v1258
      %v1451 = vpop.permute.xlu0 %1450
      %1454 = vset.pattern.permute.xlu0 33
      %1455 = vperm.xlu0 %1454, %v1259
      %v1456 = vpop.permute.xlu0 %1455
      %1459 = vset.pattern.permute.xlu0 33
      %1460 = vperm.xlu0 %1459, %v1260
      %v1461 = vpop.permute.xlu0 %1460
      %1464 = vset.pattern.permute.xlu0 33
      %1465 = vperm.xlu0 %1464, %v1261
      %v1466 = vpop.permute.xlu0 %1465
      %1469 = vset.pattern.permute.xlu0 33
      %1470 = vperm.xlu0 %1469, %v1262
      %v1471 = vpop.permute.xlu0 %1470
      %1474 = vset.pattern.permute.xlu0 33
      %1475 = vperm.xlu0 %1474, %v1263
      %v1476 = vpop.permute.xlu0 %1475
      %1479 = vset.pattern.permute.xlu0 33
      %1480 = vperm.xlu0 %1479, %v1264
      %v1481 = vpop.permute.xlu0 %1480
      %1484 = vset.pattern.permute.xlu0 33
      %1485 = vperm.xlu0 %1484, %v1265
      %v1486 = vpop.permute.xlu0 %1485
      %v1488 = vsel %vm1428, %v1441, 0.0
      %v1489 = vsel %vm1429, %v1446, 0.0
      %v1490 = vsel %vm1430, %v1451, 0.0
      %v1491 = vsel %vm1431, %v1456, 0.0
      %v1492 = vsel %vm1432, %v1461, 0.0
      %v1493 = vsel %vm1433, %v1466, 0.0
      %v1494 = vsel %vm1434, %v1471, 0.0
      %v1495 = vsel %vm1435, %v1476, 0.0
      %v1496 = vsel %vm1436, %v1481, 0.0
      %v1497 = vsel %vm1437, %v1486, 0.0
      %v1498 = vadd.f32 %v1378, %v1488
      %v1499 = vadd.f32 %v1379, %v1489
      %v1500 = vadd.f32 %v1380, %v1490
      %v1501 = vadd.f32 %v1381, %v1491
      %v1502 = vadd.f32 %v1382, %v1492
      %v1503 = vadd.f32 %v1383, %v1493
      %v1504 = vadd.f32 %v1384, %v1494
      %v1505 = vadd.f32 %v1385, %v1495
      %v1506 = vadd.f32 %v1386, %v1496
      %v1507 = vadd.f32 %v1387, %v1497
      %1508 = vset.pattern.permute.xlu0 32
      %1509 = vperm.xlu0 %1508, %v1266
      %v1510 = vpop.permute.xlu0 %1509
      %1511 = vset.pattern.permute.xlu0 32
      %1512 = vperm.xlu0 %1511, %v1267
      %v1513 = vpop.permute.xlu0 %1512
      %1514 = vset.pattern.permute.xlu0 32
      %1515 = vperm.xlu0 %1514, %v1268
      %v1516 = vpop.permute.xlu0 %1515
      %1517 = vset.pattern.permute.xlu0 32
      %1518 = vperm.xlu0 %1517, %v1269
      %v1519 = vpop.permute.xlu0 %1518
      %1520 = vset.pattern.permute.xlu0 32
      %1521 = vperm.xlu0 %1520, %v1270
      %v1522 = vpop.permute.xlu0 %1521
      %1523 = vset.pattern.permute.xlu0 32
      %1524 = vperm.xlu0 %1523, %v1271
      %v1525 = vpop.permute.xlu0 %1524
      %1526 = vset.pattern.permute.xlu0 32
      %1527 = vperm.xlu0 %1526, %v1272
      %v1528 = vpop.permute.xlu0 %1527
      %1529 = vset.pattern.permute.xlu0 32
      %1530 = vperm.xlu0 %1529, %v1273
      %v1531 = vpop.permute.xlu0 %1530
      %1532 = vset.pattern.permute.xlu0 32
      %1533 = vperm.xlu0 %1532, %v1274
      %v1534 = vpop.permute.xlu0 %1533
      %1535 = vset.pattern.permute.xlu0 32
      %1536 = vperm.xlu0 %1535, %v1275
      %v1537 = vpop.permute.xlu0 %1536
      %vm1538 = vcmp.eq.s32.totalorder %v1277, %v1510
      %vm1539 = vcmp.eq.s32.totalorder %v1277, %v1513
      %vm1540 = vcmp.eq.s32.totalorder %v1277, %v1516
      %vm1541 = vcmp.eq.s32.totalorder %v1277, %v1519
      %vm1542 = vcmp.eq.s32.totalorder %v1277, %v1522
      %vm1543 = vcmp.eq.s32.totalorder %v1277, %v1525
      %vm1544 = vcmp.eq.s32.totalorder %v1277, %v1528
      %vm1545 = vcmp.eq.s32.totalorder %v1277, %v1531
      %vm1546 = vcmp.eq.s32.totalorder %v1277, %v1534
      %vm1547 = vcmp.eq.s32.totalorder %v1277, %v1537
      %1548 = vset.pattern.permute.xlu0 32
      %1549 = vperm.xlu0 %1548, %v1318
      %v1550 = vpop.permute.xlu0 %1549
      %1552 = vset.pattern.permute.xlu0 32
      %1553 = vperm.xlu0 %1552, %v1319
      %v1554 = vpop.permute.xlu0 %1553
      %1556 = vset.pattern.permute.xlu0 32
      %1557 = vperm.xlu0 %1556, %v1320
      %v1558 = vpop.permute.xlu0 %1557
      %1560 = vset.pattern.permute.xlu0 32
      %1561 = vperm.xlu0 %1560, %v1321
      %v1562 = vpop.permute.xlu0 %1561
      %1564 = vset.pattern.permute.xlu0 32
      %1565 = vperm.xlu0 %1564, %v1322
      %v1566 = vpop.permute.xlu0 %1565
      %1568 = vset.pattern.permute.xlu0 32
      %1569 = vperm.xlu0 %1568, %v1323
      %v1570 = vpop.permute.xlu0 %1569
      %1572 = vset.pattern.permute.xlu0 32
      %1573 = vperm.xlu0 %1572, %v1324
      %v1574 = vpop.permute.xlu0 %1573
      %1576 = vset.pattern.permute.xlu0 32
      %1577 = vperm.xlu0 %1576, %v1325
      %v1578 = vpop.permute.xlu0 %1577
      %1580 = vset.pattern.permute.xlu0 32
      %1581 = vperm.xlu0 %1580, %v1326
      %v1582 = vpop.permute.xlu0 %1581
      %1584 = vset.pattern.permute.xlu0 32
      %1585 = vperm.xlu0 %1584, %v1327
      %v1586 = vpop.permute.xlu0 %1585
      %v1588 = vsel %vm1538, %v1550, 0.0
      %v1589 = vsel %vm1539, %v1554, 0.0
      %v1590 = vsel %vm1540, %v1558, 0.0
      %v1591 = vsel %vm1541, %v1562, 0.0
      %v1592 = vsel %vm1542, %v1566, 0.0
      %v1593 = vsel %vm1543, %v1570, 0.0
      %v1594 = vsel %vm1544, %v1574, 0.0
      %v1595 = vsel %vm1545, %v1578, 0.0
      %v1596 = vsel %vm1546, %v1582, 0.0
      %v1597 = vsel %vm1547, %v1586, 0.0
      %1598 = vset.pattern.permute.xlu0 32
      %1599 = vperm.xlu0 %1598, %v1388
      %v1600 = vpop.permute.xlu0 %1599
      %1601 = vset.pattern.permute.xlu0 32
      %1602 = vperm.xlu0 %1601, %v1389
      %v1603 = vpop.permute.xlu0 %1602
      %1604 = vset.pattern.permute.xlu0 32
      %1605 = vperm.xlu0 %1604, %v1390
      %v1606 = vpop.permute.xlu0 %1605
      %1607 = vset.pattern.permute.xlu0 32
      %1608 = vperm.xlu0 %1607, %v1391
      %v1609 = vpop.permute.xlu0 %1608
      %1610 = vset.pattern.permute.xlu0 32
      %1611 = vperm.xlu0 %1610, %v1392
      %v1612 = vpop.permute.xlu0 %1611
      %1613 = vset.pattern.permute.xlu0 32
      %1614 = vperm.xlu0 %1613, %v1393
      %v1615 = vpop.permute.xlu0 %1614
      %1616 = vset.pattern.permute.xlu0 32
      %1617 = vperm.xlu0 %1616, %v1394
      %v1618 = vpop.permute.xlu0 %1617
      %1619 = vset.pattern.permute.xlu0 32
      %1620 = vperm.xlu0 %1619, %v1395
      %v1621 = vpop.permute.xlu0 %1620
      %1622 = vset.pattern.permute.xlu0 32
      %1623 = vperm.xlu0 %1622, %v1396
      %v1624 = vpop.permute.xlu0 %1623
      %1625 = vset.pattern.permute.xlu0 32
      %1626 = vperm.xlu0 %1625, %v1397
      %v1627 = vpop.permute.xlu0 %1626
      %vm1628 = vcmp.eq.s32.totalorder %v1277, %v1600
      %vm1629 = vcmp.eq.s32.totalorder %v1277, %v1603
      %vm1630 = vcmp.eq.s32.totalorder %v1277, %v1606
      %vm1631 = vcmp.eq.s32.totalorder %v1277, %v1609
      %vm1632 = vcmp.eq.s32.totalorder %v1277, %v1612
      %vm1633 = vcmp.eq.s32.totalorder %v1277, %v1615
      %vm1634 = vcmp.eq.s32.totalorder %v1277, %v1618
      %vm1635 = vcmp.eq.s32.totalorder %v1277, %v1621
      %vm1636 = vcmp.eq.s32.totalorder %v1277, %v1624
      %vm1637 = vcmp.eq.s32.totalorder %v1277, %v1627
      %1638 = vset.pattern.permute.xlu0 32
      %1639 = vperm.xlu0 %1638, %v1256
      %v1640 = vpop.permute.xlu0 %1639
      %1642 = vset.pattern.permute.xlu0 32
      %1643 = vperm.xlu0 %1642, %v1257
      %v1644 = vpop.permute.xlu0 %1643
      %1646 = vset.pattern.permute.xlu0 32
      %1647 = vperm.xlu0 %1646, %v1258
      %v1648 = vpop.permute.xlu0 %1647
      %1650 = vset.pattern.permute.xlu0 32
      %1651 = vperm.xlu0 %1650, %v1259
      %v1652 = vpop.permute.xlu0 %1651
      %1654 = vset.pattern.permute.xlu0 32
      %1655 = vperm.xlu0 %1654, %v1260
      %v1656 = vpop.permute.xlu0 %1655
      %1658 = vset.pattern.permute.xlu0 32
      %1659 = vperm.xlu0 %1658, %v1261
      %v1660 = vpop.permute.xlu0 %1659
      %1662 = vset.pattern.permute.xlu0 32
      %1663 = vperm.xlu0 %1662, %v1262
      %v1664 = vpop.permute.xlu0 %1663
      %1666 = vset.pattern.permute.xlu0 32
      %1667 = vperm.xlu0 %1666, %v1263
      %v1668 = vpop.permute.xlu0 %1667
      %1670 = vset.pattern.permute.xlu0 32
      %1671 = vperm.xlu0 %1670, %v1264
      %v1672 = vpop.permute.xlu0 %1671
      %1674 = vset.pattern.permute.xlu0 32
      %1675 = vperm.xlu0 %1674, %v1265
      %v1676 = vpop.permute.xlu0 %1675
      %v1678 = vsel %vm1628, %v1640, 0.0
      %v1679 = vsel %vm1629, %v1644, 0.0
      %v1680 = vsel %vm1630, %v1648, 0.0
      %v1681 = vsel %vm1631, %v1652, 0.0
      %v1682 = vsel %vm1632, %v1656, 0.0
      %v1683 = vsel %vm1633, %v1660, 0.0
      %v1684 = vsel %vm1634, %v1664, 0.0
      %v1685 = vsel %vm1635, %v1668, 0.0
      %v1686 = vsel %vm1636, %v1672, 0.0
      %v1687 = vsel %vm1637, %v1676, 0.0
      %v1688 = vadd.f32 %v1588, %v1678
      %v1689 = vadd.f32 %v1589, %v1679
      %v1690 = vadd.f32 %v1590, %v1680
      %v1691 = vadd.f32 %v1591, %v1681
      %v1692 = vadd.f32 %v1592, %v1682
      %v1693 = vadd.f32 %v1593, %v1683
      %v1694 = vadd.f32 %v1594, %v1684
      %v1695 = vadd.f32 %v1595, %v1685
      %v1696 = vadd.f32 %v1596, %v1686
      %v1697 = vadd.f32 %v1597, %v1687
      %1699 = vset.pattern.permute.xlu0 64
      %1700 = vperm.xlu0 %1699, %v1110
      %v1701 = vpop.permute.xlu0 %1700
      %1704 = vset.pattern.permute.xlu0 64
      %1705 = vperm.xlu0 %1704, %v1125
      %v1706 = vpop.permute.xlu0 %1705
      %1709 = vset.pattern.permute.xlu0 64
      %1710 = vperm.xlu0 %1709, %v1140
      %v1711 = vpop.permute.xlu0 %1710
      %1714 = vset.pattern.permute.xlu0 64
      %1715 = vperm.xlu0 %1714, %v1155
      %v1716 = vpop.permute.xlu0 %1715
      %1719 = vset.pattern.permute.xlu0 64
      %1720 = vperm.xlu0 %1719, %v1170
      %v1721 = vpop.permute.xlu0 %1720
      %1724 = vset.pattern.permute.xlu0 64
      %1725 = vperm.xlu0 %1724, %v1185
      %v1726 = vpop.permute.xlu0 %1725
      %1729 = vset.pattern.permute.xlu0 64
      %1730 = vperm.xlu0 %1729, %v1200
      %v1731 = vpop.permute.xlu0 %1730
      %1734 = vset.pattern.permute.xlu0 64
      %1735 = vperm.xlu0 %1734, %v1215
      %v1736 = vpop.permute.xlu0 %1735
      %1739 = vset.pattern.permute.xlu0 64
      %1740 = vperm.xlu0 %1739, %v1230
      %v1741 = vpop.permute.xlu0 %1740
      %1744 = vset.pattern.permute.xlu0 64
      %1745 = vperm.xlu0 %1744, %v1245
      %v1746 = vpop.permute.xlu0 %1745
      %v1748 = vmul.f32 %v1701, %v1498
      %v1749 = vmul.f32 %v1706, %v1499
      %v1750 = vmul.f32 %v1711, %v1500
      %v1751 = vmul.f32 %v1716, %v1501
      %v1752 = vmul.f32 %v1721, %v1502
      %v1753 = vmul.f32 %v1726, %v1503
      %v1754 = vmul.f32 %v1731, %v1504
      %v1755 = vmul.f32 %v1736, %v1505
      %v1756 = vmul.f32 %v1741, %v1506
      %v1757 = vmul.f32 %v1746, %v1507
      %v1758 = vmul.f32 %v1748, %v1688
      %v1759 = vmul.f32 %v1749, %v1689
      %v1760 = vmul.f32 %v1750, %v1690
      %v1761 = vmul.f32 %v1751, %v1691
      %v1762 = vmul.f32 %v1752, %v1692
      %v1763 = vmul.f32 %v1753, %v1693
      %v1764 = vmul.f32 %v1754, %v1694
      %v1765 = vmul.f32 %v1755, %v1695
      %v1766 = vmul.f32 %v1756, %v1696
      %v1767 = vmul.f32 %v1757, %v1697
      %v1768 = vadd.f32 %v1758, 0.0
      %v1769 = vadd.f32 %v1759, 0.0
      %v1770 = vadd.f32 %v1760, 0.0
      %v1771 = vadd.f32 %v1761, 0.0
      %v1772 = vadd.f32 %v1762, 0.0
      %v1773 = vadd.f32 %v1763, 0.0
      %v1774 = vadd.f32 %v1764, 0.0
      %v1775 = vadd.f32 %v1765, 0.0
      %v1776 = vadd.f32 %v1766, 0.0
      %v1777 = vadd.f32 %v1767, 0.0
      %1778 = vset.pattern.permute.xlu0 35
      %1779 = vperm.xlu0 %1778, %v1266
      %v1780 = vpop.permute.xlu0 %1779
      %1781 = vset.pattern.permute.xlu0 35
      %1782 = vperm.xlu0 %1781, %v1267
      %v1783 = vpop.permute.xlu0 %1782
      %1784 = vset.pattern.permute.xlu0 35
      %1785 = vperm.xlu0 %1784, %v1268
      %v1786 = vpop.permute.xlu0 %1785
      %1787 = vset.pattern.permute.xlu0 35
      %1788 = vperm.xlu0 %1787, %v1269
      %v1789 = vpop.permute.xlu0 %1788
      %1790 = vset.pattern.permute.xlu0 35
      %1791 = vperm.xlu0 %1790, %v1270
      %v1792 = vpop.permute.xlu0 %1791
      %1793 = vset.pattern.permute.xlu0 35
      %1794 = vperm.xlu0 %1793, %v1271
      %v1795 = vpop.permute.xlu0 %1794
      %1796 = vset.pattern.permute.xlu0 35
      %1797 = vperm.xlu0 %1796, %v1272
      %v1798 = vpop.permute.xlu0 %1797
      %1799 = vset.pattern.permute.xlu0 35
      %1800 = vperm.xlu0 %1799, %v1273
      %v1801 = vpop.permute.xlu0 %1800
      %1802 = vset.pattern.permute.xlu0 35
      %1803 = vperm.xlu0 %1802, %v1274
      %v1804 = vpop.permute.xlu0 %1803
      %1805 = vset.pattern.permute.xlu0 35
      %1806 = vperm.xlu0 %1805, %v1275
      %v1807 = vpop.permute.xlu0 %1806
      %vm1808 = vcmp.eq.s32.totalorder %v1276, %v1780
      %vm1809 = vcmp.eq.s32.totalorder %v1276, %v1783
      %vm1810 = vcmp.eq.s32.totalorder %v1276, %v1786
      %vm1811 = vcmp.eq.s32.totalorder %v1276, %v1789
      %vm1812 = vcmp.eq.s32.totalorder %v1276, %v1792
      %vm1813 = vcmp.eq.s32.totalorder %v1276, %v1795
      %vm1814 = vcmp.eq.s32.totalorder %v1276, %v1798
      %vm1815 = vcmp.eq.s32.totalorder %v1276, %v1801
      %vm1816 = vcmp.eq.s32.totalorder %v1276, %v1804
      %vm1817 = vcmp.eq.s32.totalorder %v1276, %v1807
      %1818 = vset.pattern.permute.xlu0 35
      %1819 = vperm.xlu0 %1818, %v1318
      %v1820 = vpop.permute.xlu0 %1819
      %1822 = vset.pattern.permute.xlu0 35
      %1823 = vperm.xlu0 %1822, %v1319
      %v1824 = vpop.permute.xlu0 %1823
      %1826 = vset.pattern.permute.xlu0 35
      %1827 = vperm.xlu0 %1826, %v1320
      %v1828 = vpop.permute.xlu0 %1827
      %1830 = vset.pattern.permute.xlu0 35
      %1831 = vperm.xlu0 %1830, %v1321
      %v1832 = vpop.permute.xlu0 %1831
      %1834 = vset.pattern.permute.xlu0 35
      %1835 = vperm.xlu0 %1834, %v1322
      %v1836 = vpop.permute.xlu0 %1835
      %1838 = vset.pattern.permute.xlu0 35
      %1839 = vperm.xlu0 %1838, %v1323
      %v1840 = vpop.permute.xlu0 %1839
      %1842 = vset.pattern.permute.xlu0 35
      %1843 = vperm.xlu0 %1842, %v1324
      %v1844 = vpop.permute.xlu0 %1843
      %1846 = vset.pattern.permute.xlu0 35
      %1847 = vperm.xlu0 %1846, %v1325
      %v1848 = vpop.permute.xlu0 %1847
      %1850 = vset.pattern.permute.xlu0 35
      %1851 = vperm.xlu0 %1850, %v1326
      %v1852 = vpop.permute.xlu0 %1851
      %1854 = vset.pattern.permute.xlu0 35
      %1855 = vperm.xlu0 %1854, %v1327
      %v1856 = vpop.permute.xlu0 %1855
      %v1858 = vsel %vm1808, %v1820, 0.0
      %v1859 = vsel %vm1809, %v1824, 0.0
      %v1860 = vsel %vm1810, %v1828, 0.0
      %v1861 = vsel %vm1811, %v1832, 0.0
      %v1862 = vsel %vm1812, %v1836, 0.0
      %v1863 = vsel %vm1813, %v1840, 0.0
      %v1864 = vsel %vm1814, %v1844, 0.0
      %v1865 = vsel %vm1815, %v1848, 0.0
      %v1866 = vsel %vm1816, %v1852, 0.0
      %v1867 = vsel %vm1817, %v1856, 0.0
      %1868 = vset.pattern.permute.xlu0 35
      %1869 = vperm.xlu0 %1868, %v1388
      %v1870 = vpop.permute.xlu0 %1869
      %1871 = vset.pattern.permute.xlu0 35
      %1872 = vperm.xlu0 %1871, %v1389
      %v1873 = vpop.permute.xlu0 %1872
      %1874 = vset.pattern.permute.xlu0 35
      %1875 = vperm.xlu0 %1874, %v1390
      %v1876 = vpop.permute.xlu0 %1875
      %1877 = vset.pattern.permute.xlu0 35
      %1878 = vperm.xlu0 %1877, %v1391
      %v1879 = vpop.permute.xlu0 %1878
      %1880 = vset.pattern.permute.xlu0 35
      %1881 = vperm.xlu0 %1880, %v1392
      %v1882 = vpop.permute.xlu0 %1881
      %1883 = vset.pattern.permute.xlu0 35
      %1884 = vperm.xlu0 %1883, %v1393
      %v1885 = vpop.permute.xlu0 %1884
      %1886 = vset.pattern.permute.xlu0 35
      %1887 = vperm.xlu0 %1886, %v1394
      %v1888 = vpop.permute.xlu0 %1887
      %1889 = vset.pattern.permute.xlu0 35
      %1890 = vperm.xlu0 %1889, %v1395
      %v1891 = vpop.permute.xlu0 %1890
      %1892 = vset.pattern.permute.xlu0 35
      %1893 = vperm.xlu0 %1892, %v1396
      %v1894 = vpop.permute.xlu0 %1893
      %1895 = vset.pattern.permute.xlu0 35
      %1896 = vperm.xlu0 %1895, %v1397
      %v1897 = vpop.permute.xlu0 %1896
      %vm1898 = vcmp.eq.s32.totalorder %v1276, %v1870
      %vm1899 = vcmp.eq.s32.totalorder %v1276, %v1873
      %vm1900 = vcmp.eq.s32.totalorder %v1276, %v1876
      %vm1901 = vcmp.eq.s32.totalorder %v1276, %v1879
      %vm1902 = vcmp.eq.s32.totalorder %v1276, %v1882
      %vm1903 = vcmp.eq.s32.totalorder %v1276, %v1885
      %vm1904 = vcmp.eq.s32.totalorder %v1276, %v1888
      %vm1905 = vcmp.eq.s32.totalorder %v1276, %v1891
      %vm1906 = vcmp.eq.s32.totalorder %v1276, %v1894
      %vm1907 = vcmp.eq.s32.totalorder %v1276, %v1897
      %1908 = vset.pattern.permute.xlu0 35
      %1909 = vperm.xlu0 %1908, %v1256
      %v1910 = vpop.permute.xlu0 %1909
      %1912 = vset.pattern.permute.xlu0 35
      %1913 = vperm.xlu0 %1912, %v1257
      %v1914 = vpop.permute.xlu0 %1913
      %1916 = vset.pattern.permute.xlu0 35
      %1917 = vperm.xlu0 %1916, %v1258
      %v1918 = vpop.permute.xlu0 %1917
      %1920 = vset.pattern.permute.xlu0 35
      %1921 = vperm.xlu0 %1920, %v1259
      %v1922 = vpop.permute.xlu0 %1921
      %1924 = vset.pattern.permute.xlu0 35
      %1925 = vperm.xlu0 %1924, %v1260
      %v1926 = vpop.permute.xlu0 %1925
      %1928 = vset.pattern.permute.xlu0 35
      %1929 = vperm.xlu0 %1928, %v1261
      %v1930 = vpop.permute.xlu0 %1929
      %1932 = vset.pattern.permute.xlu0 35
      %1933 = vperm.xlu0 %1932, %v1262
      %v1934 = vpop.permute.xlu0 %1933
      %1936 = vset.pattern.permute.xlu0 35
      %1937 = vperm.xlu0 %1936, %v1263
      %v1938 = vpop.permute.xlu0 %1937
      %1940 = vset.pattern.permute.xlu0 35
      %1941 = vperm.xlu0 %1940, %v1264
      %v1942 = vpop.permute.xlu0 %1941
      %1944 = vset.pattern.permute.xlu0 35
      %1945 = vperm.xlu0 %1944, %v1265
      %v1946 = vpop.permute.xlu0 %1945
      %v1948 = vsel %vm1898, %v1910, 0.0
      %v1949 = vsel %vm1899, %v1914, 0.0
      %v1950 = vsel %vm1900, %v1918, 0.0
      %v1951 = vsel %vm1901, %v1922, 0.0
      %v1952 = vsel %vm1902, %v1926, 0.0
      %v1953 = vsel %vm1903, %v1930, 0.0
      %v1954 = vsel %vm1904, %v1934, 0.0
      %v1955 = vsel %vm1905, %v1938, 0.0
      %v1956 = vsel %vm1906, %v1942, 0.0
      %v1957 = vsel %vm1907, %v1946, 0.0
      %v1958 = vadd.f32 %v1858, %v1948
      %v1959 = vadd.f32 %v1859, %v1949
      %v1960 = vadd.f32 %v1860, %v1950
      %v1961 = vadd.f32 %v1861, %v1951
      %v1962 = vadd.f32 %v1862, %v1952
      %v1963 = vadd.f32 %v1863, %v1953
      %v1964 = vadd.f32 %v1864, %v1954
      %v1965 = vadd.f32 %v1865, %v1955
      %v1966 = vadd.f32 %v1866, %v1956
      %v1967 = vadd.f32 %v1867, %v1957
      %1968 = vset.pattern.permute.xlu0 34
      %1969 = vperm.xlu0 %1968, %v1266
      %v1970 = vpop.permute.xlu0 %1969
      %1971 = vset.pattern.permute.xlu0 34
      %1972 = vperm.xlu0 %1971, %v1267
      %v1973 = vpop.permute.xlu0 %1972
      %1974 = vset.pattern.permute.xlu0 34
      %1975 = vperm.xlu0 %1974, %v1268
      %v1976 = vpop.permute.xlu0 %1975
      %1977 = vset.pattern.permute.xlu0 34
      %1978 = vperm.xlu0 %1977, %v1269
      %v1979 = vpop.permute.xlu0 %1978
      %1980 = vset.pattern.permute.xlu0 34
      %1981 = vperm.xlu0 %1980, %v1270
      %v1982 = vpop.permute.xlu0 %1981
      %1983 = vset.pattern.permute.xlu0 34
      %1984 = vperm.xlu0 %1983, %v1271
      %v1985 = vpop.permute.xlu0 %1984
      %1986 = vset.pattern.permute.xlu0 34
      %1987 = vperm.xlu0 %1986, %v1272
      %v1988 = vpop.permute.xlu0 %1987
      %1989 = vset.pattern.permute.xlu0 34
      %1990 = vperm.xlu0 %1989, %v1273
      %v1991 = vpop.permute.xlu0 %1990
      %1992 = vset.pattern.permute.xlu0 34
      %1993 = vperm.xlu0 %1992, %v1274
      %v1994 = vpop.permute.xlu0 %1993
      %1995 = vset.pattern.permute.xlu0 34
      %1996 = vperm.xlu0 %1995, %v1275
      %v1997 = vpop.permute.xlu0 %1996
      %vm1998 = vcmp.eq.s32.totalorder %v1277, %v1970
      %vm1999 = vcmp.eq.s32.totalorder %v1277, %v1973
      %vm2000 = vcmp.eq.s32.totalorder %v1277, %v1976
      %vm2001 = vcmp.eq.s32.totalorder %v1277, %v1979
      %vm2002 = vcmp.eq.s32.totalorder %v1277, %v1982
      %vm2003 = vcmp.eq.s32.totalorder %v1277, %v1985
      %vm2004 = vcmp.eq.s32.totalorder %v1277, %v1988
      %vm2005 = vcmp.eq.s32.totalorder %v1277, %v1991
      %vm2006 = vcmp.eq.s32.totalorder %v1277, %v1994
      %vm2007 = vcmp.eq.s32.totalorder %v1277, %v1997
      %2008 = vset.pattern.permute.xlu0 34
      %2009 = vperm.xlu0 %2008, %v1318
      %v2010 = vpop.permute.xlu0 %2009
      %2012 = vset.pattern.permute.xlu0 34
      %2013 = vperm.xlu0 %2012, %v1319
      %v2014 = vpop.permute.xlu0 %2013
      %2016 = vset.pattern.permute.xlu0 34
      %2017 = vperm.xlu0 %2016, %v1320
      %v2018 = vpop.permute.xlu0 %2017
      %2020 = vset.pattern.permute.xlu0 34
      %2021 = vperm.xlu0 %2020, %v1321
      %v2022 = vpop.permute.xlu0 %2021
      %2024 = vset.pattern.permute.xlu0 34
      %2025 = vperm.xlu0 %2024, %v1322
      %v2026 = vpop.permute.xlu0 %2025
      %2028 = vset.pattern.permute.xlu0 34
      %2029 = vperm.xlu0 %2028, %v1323
      %v2030 = vpop.permute.xlu0 %2029
      %2032 = vset.pattern.permute.xlu0 34
      %2033 = vperm.xlu0 %2032, %v1324
      %v2034 = vpop.permute.xlu0 %2033
      %2036 = vset.pattern.permute.xlu0 34
      %2037 = vperm.xlu0 %2036, %v1325
      %v2038 = vpop.permute.xlu0 %2037
      %2040 = vset.pattern.permute.xlu0 34
      %2041 = vperm.xlu0 %2040, %v1326
      %v2042 = vpop.permute.xlu0 %2041
      %2044 = vset.pattern.permute.xlu0 34
      %2045 = vperm.xlu0 %2044, %v1327
      %v2046 = vpop.permute.xlu0 %2045
      %v2048 = vsel %vm1998, %v2010, 0.0
      %v2049 = vsel %vm1999, %v2014, 0.0
      %v2050 = vsel %vm2000, %v2018, 0.0
      %v2051 = vsel %vm2001, %v2022, 0.0
      %v2052 = vsel %vm2002, %v2026, 0.0
      %v2053 = vsel %vm2003, %v2030, 0.0
      %v2054 = vsel %vm2004, %v2034, 0.0
      %v2055 = vsel %vm2005, %v2038, 0.0
      %v2056 = vsel %vm2006, %v2042, 0.0
      %v2057 = vsel %vm2007, %v2046, 0.0
      %2058 = vset.pattern.permute.xlu0 34
      %2059 = vperm.xlu0 %2058, %v1388
      %v2060 = vpop.permute.xlu0 %2059
      %2061 = vset.pattern.permute.xlu0 34
      %2062 = vperm.xlu0 %2061, %v1389
      %v2063 = vpop.permute.xlu0 %2062
      %2064 = vset.pattern.permute.xlu0 34
      %2065 = vperm.xlu0 %2064, %v1390
      %v2066 = vpop.permute.xlu0 %2065
      %2067 = vset.pattern.permute.xlu0 34
      %2068 = vperm.xlu0 %2067, %v1391
      %v2069 = vpop.permute.xlu0 %2068
      %2070 = vset.pattern.permute.xlu0 34
      %2071 = vperm.xlu0 %2070, %v1392
      %v2072 = vpop.permute.xlu0 %2071
      %2073 = vset.pattern.permute.xlu0 34
      %2074 = vperm.xlu0 %2073, %v1393
      %v2075 = vpop.permute.xlu0 %2074
      %2076 = vset.pattern.permute.xlu0 34
      %2077 = vperm.xlu0 %2076, %v1394
      %v2078 = vpop.permute.xlu0 %2077
      %2079 = vset.pattern.permute.xlu0 34
      %2080 = vperm.xlu0 %2079, %v1395
      %v2081 = vpop.permute.xlu0 %2080
      %2082 = vset.pattern.permute.xlu0 34
      %2083 = vperm.xlu0 %2082, %v1396
      %v2084 = vpop.permute.xlu0 %2083
      %2085 = vset.pattern.permute.xlu0 34
      %2086 = vperm.xlu0 %2085, %v1397
      %v2087 = vpop.permute.xlu0 %2086
      %vm2088 = vcmp.eq.s32.totalorder %v1277, %v2060
      %vm2089 = vcmp.eq.s32.totalorder %v1277, %v2063
      %vm2090 = vcmp.eq.s32.totalorder %v1277, %v2066
      %vm2091 = vcmp.eq.s32.totalorder %v1277, %v2069
      %vm2092 = vcmp.eq.s32.totalorder %v1277, %v2072
      %vm2093 = vcmp.eq.s32.totalorder %v1277, %v2075
      %vm2094 = vcmp.eq.s32.totalorder %v1277, %v2078
      %vm2095 = vcmp.eq.s32.totalorder %v1277, %v2081
      %vm2096 = vcmp.eq.s32.totalorder %v1277, %v2084
      %vm2097 = vcmp.eq.s32.totalorder %v1277, %v2087
      %2098 = vset.pattern.permute.xlu0 34
      %2099 = vperm.xlu0 %2098, %v1256
      %v2100 = vpop.permute.xlu0 %2099
      %2102 = vset.pattern.permute.xlu0 34
      %2103 = vperm.xlu0 %2102, %v1257
      %v2104 = vpop.permute.xlu0 %2103
      %2106 = vset.pattern.permute.xlu0 34
      %2107 = vperm.xlu0 %2106, %v1258
      %v2108 = vpop.permute.xlu0 %2107
      %2110 = vset.pattern.permute.xlu0 34
      %2111 = vperm.xlu0 %2110, %v1259
      %v2112 = vpop.permute.xlu0 %2111
      %2114 = vset.pattern.permute.xlu0 34
      %2115 = vperm.xlu0 %2114, %v1260
      %v2116 = vpop.permute.xlu0 %2115
      %2118 = vset.pattern.permute.xlu0 34
      %2119 = vperm.xlu0 %2118, %v1261
      %v2120 = vpop.permute.xlu0 %2119
      %2122 = vset.pattern.permute.xlu0 34
      %2123 = vperm.xlu0 %2122, %v1262
      %v2124 = vpop.permute.xlu0 %2123
      %2126 = vset.pattern.permute.xlu0 34
      %2127 = vperm.xlu0 %2126, %v1263
      %v2128 = vpop.permute.xlu0 %2127
      %2130 = vset.pattern.permute.xlu0 34
      %2131 = vperm.xlu0 %2130, %v1264
      %v2132 = vpop.permute.xlu0 %2131
      %2134 = vset.pattern.permute.xlu0 34
      %2135 = vperm.xlu0 %2134, %v1265
      %v2136 = vpop.permute.xlu0 %2135
      %v2138 = vsel %vm2088, %v2100, 0.0
      %v2139 = vsel %vm2089, %v2104, 0.0
      %v2140 = vsel %vm2090, %v2108, 0.0
      %v2141 = vsel %vm2091, %v2112, 0.0
      %v2142 = vsel %vm2092, %v2116, 0.0
      %v2143 = vsel %vm2093, %v2120, 0.0
      %v2144 = vsel %vm2094, %v2124, 0.0
      %v2145 = vsel %vm2095, %v2128, 0.0
      %v2146 = vsel %vm2096, %v2132, 0.0
      %v2147 = vsel %vm2097, %v2136, 0.0
      %v2148 = vadd.f32 %v2048, %v2138
      %v2149 = vadd.f32 %v2049, %v2139
      %v2150 = vadd.f32 %v2050, %v2140
      %v2151 = vadd.f32 %v2051, %v2141
      %v2152 = vadd.f32 %v2052, %v2142
      %v2153 = vadd.f32 %v2053, %v2143
      %v2154 = vadd.f32 %v2054, %v2144
      %v2155 = vadd.f32 %v2055, %v2145
      %v2156 = vadd.f32 %v2056, %v2146
      %v2157 = vadd.f32 %v2057, %v2147
      %2158 = vset.pattern.permute.xlu0 65
      %2159 = vperm.xlu0 %2158, %v1110
      %v2160 = vpop.permute.xlu0 %2159
      %2162 = vset.pattern.permute.xlu0 65
      %2163 = vperm.xlu0 %2162, %v1125
      %v2164 = vpop.permute.xlu0 %2163
      %2166 = vset.pattern.permute.xlu0 65
      %2167 = vperm.xlu0 %2166, %v1140
      %v2168 = vpop.permute.xlu0 %2167
      %2170 = vset.pattern.permute.xlu0 65
      %2171 = vperm.xlu0 %2170, %v1155
      %v2172 = vpop.permute.xlu0 %2171
      %2174 = vset.pattern.permute.xlu0 65
      %2175 = vperm.xlu0 %2174, %v1170
      %v2176 = vpop.permute.xlu0 %2175
      %2178 = vset.pattern.permute.xlu0 65
      %2179 = vperm.xlu0 %2178, %v1185
      %v2180 = vpop.permute.xlu0 %2179
      %2182 = vset.pattern.permute.xlu0 65
      %2183 = vperm.xlu0 %2182, %v1200
      %v2184 = vpop.permute.xlu0 %2183
      %2186 = vset.pattern.permute.xlu0 65
      %2187 = vperm.xlu0 %2186, %v1215
      %v2188 = vpop.permute.xlu0 %2187
      %2190 = vset.pattern.permute.xlu0 65
      %2191 = vperm.xlu0 %2190, %v1230
      %v2192 = vpop.permute.xlu0 %2191
      %2194 = vset.pattern.permute.xlu0 65
      %2195 = vperm.xlu0 %2194, %v1245
      %v2196 = vpop.permute.xlu0 %2195
      %v2198 = vmul.f32 %v2160, %v1958
      %v2199 = vmul.f32 %v2164, %v1959
      %v2200 = vmul.f32 %v2168, %v1960
      %v2201 = vmul.f32 %v2172, %v1961
      %v2202 = vmul.f32 %v2176, %v1962
      %v2203 = vmul.f32 %v2180, %v1963
      %v2204 = vmul.f32 %v2184, %v1964
      %v2205 = vmul.f32 %v2188, %v1965
      %v2206 = vmul.f32 %v2192, %v1966
      %v2207 = vmul.f32 %v2196, %v1967
      %v2208 = vmul.f32 %v2198, %v2148
      %v2209 = vmul.f32 %v2199, %v2149
      %v2210 = vmul.f32 %v2200, %v2150
      %v2211 = vmul.f32 %v2201, %v2151
      %v2212 = vmul.f32 %v2202, %v2152
      %v2213 = vmul.f32 %v2203, %v2153
      %v2214 = vmul.f32 %v2204, %v2154
      %v2215 = vmul.f32 %v2205, %v2155
      %v2216 = vmul.f32 %v2206, %v2156
      %v2217 = vmul.f32 %v2207, %v2157
      %v2218 = vadd.f32 %v1768, %v2208
      %v2219 = vadd.f32 %v1769, %v2209
      %v2220 = vadd.f32 %v1770, %v2210
      %v2221 = vadd.f32 %v1771, %v2211
      %v2222 = vadd.f32 %v1772, %v2212
      %v2223 = vadd.f32 %v1773, %v2213
      %v2224 = vadd.f32 %v1774, %v2214
      %v2225 = vadd.f32 %v1775, %v2215
      %v2226 = vadd.f32 %v1776, %v2216
      %v2227 = vadd.f32 %v1777, %v2217
      %2228 = vst.msk [vmem:[#allocation2] sm:$0xff] %vm665, %v2218
      %2229 = vst.msk [vmem:[#allocation2 + $0x10] sm:$0xff] %vm665, %v2219
      %2230 = vst.msk [vmem:[#allocation2 + $0x20] sm:$0xff] %vm665, %v2220
      %2231 = vst.msk [vmem:[#allocation2 + $0x30] sm:$0xff] %vm665, %v2221
      %2232 = vst.msk [vmem:[#allocation2 + $0x40] sm:$0xff] %vm665, %v2222
      %2233 = vst.msk [vmem:[#allocation2 + $0x50] sm:$0xff] %vm665, %v2223
      %2234 = vst.msk [vmem:[#allocation2 + $0x60] sm:$0xff] %vm665, %v2224
      %2235 = vst.msk [vmem:[#allocation2 + $0x70] sm:$0xff] %vm665, %v2225
      %2236 = vst.msk [vmem:[#allocation2 + $0x80] sm:$0xff] %vm665, %v2226
      %2237 = vst.msk [vmem:[#allocation2 + $0x90] sm:$0xff] %vm665, %v2227
      %2238 = vset.pattern.permute.xlu0 41
      %2239 = vperm.xlu0 %2238, %v1266
      %v2240 = vpop.permute.xlu0 %2239
      %2241 = vset.pattern.permute.xlu0 41
      %2242 = vperm.xlu0 %2241, %v1267
      %v2243 = vpop.permute.xlu0 %2242
      %2244 = vset.pattern.permute.xlu0 41
      %2245 = vperm.xlu0 %2244, %v1268
      %v2246 = vpop.permute.xlu0 %2245
      %2247 = vset.pattern.permute.xlu0 41
      %2248 = vperm.xlu0 %2247, %v1269
      %v2249 = vpop.permute.xlu0 %2248
      %2250 = vset.pattern.permute.xlu0 41
      %2251 = vperm.xlu0 %2250, %v1270
      %v2252 = vpop.permute.xlu0 %2251
      %2253 = vset.pattern.permute.xlu0 41
      %2254 = vperm.xlu0 %2253, %v1271
      %v2255 = vpop.permute.xlu0 %2254
      %2256 = vset.pattern.permute.xlu0 41
      %2257 = vperm.xlu0 %2256, %v1272
      %v2258 = vpop.permute.xlu0 %2257
      %2259 = vset.pattern.permute.xlu0 41
      %2260 = vperm.xlu0 %2259, %v1273
      %v2261 = vpop.permute.xlu0 %2260
      %2262 = vset.pattern.permute.xlu0 41
      %2263 = vperm.xlu0 %2262, %v1274
      %v2264 = vpop.permute.xlu0 %2263
      %2265 = vset.pattern.permute.xlu0 41
      %2266 = vperm.xlu0 %2265, %v1275
      %v2267 = vpop.permute.xlu0 %2266
      %vm2268 = vcmp.eq.s32.totalorder %v1276, %v2240
      %vm2269 = vcmp.eq.s32.totalorder %v1276, %v2243
      %vm2270 = vcmp.eq.s32.totalorder %v1276, %v2246
      %vm2271 = vcmp.eq.s32.totalorder %v1276, %v2249
      %vm2272 = vcmp.eq.s32.totalorder %v1276, %v2252
      %vm2273 = vcmp.eq.s32.totalorder %v1276, %v2255
      %vm2274 = vcmp.eq.s32.totalorder %v1276, %v2258
      %vm2275 = vcmp.eq.s32.totalorder %v1276, %v2261
      %vm2276 = vcmp.eq.s32.totalorder %v1276, %v2264
      %vm2277 = vcmp.eq.s32.totalorder %v1276, %v2267
      %2278 = vset.pattern.permute.xlu0 41
      %2279 = vperm.xlu0 %2278, %v1318
      %v2280 = vpop.permute.xlu0 %2279
      %2282 = vset.pattern.permute.xlu0 41
      %2283 = vperm.xlu0 %2282, %v1319
      %v2284 = vpop.permute.xlu0 %2283
      %2286 = vset.pattern.permute.xlu0 41
      %2287 = vperm.xlu0 %2286, %v1320
      %v2288 = vpop.permute.xlu0 %2287
      %2290 = vset.pattern.permute.xlu0 41
      %2291 = vperm.xlu0 %2290, %v1321
      %v2292 = vpop.permute.xlu0 %2291
      %2294 = vset.pattern.permute.xlu0 41
      %2295 = vperm.xlu0 %2294, %v1322
      %v2296 = vpop.permute.xlu0 %2295
      %2298 = vset.pattern.permute.xlu0 41
      %2299 = vperm.xlu0 %2298, %v1323
      %v2300 = vpop.permute.xlu0 %2299
      %2302 = vset.pattern.permute.xlu0 41
      %2303 = vperm.xlu0 %2302, %v1324
      %v2304 = vpop.permute.xlu0 %2303
      %2306 = vset.pattern.permute.xlu0 41
      %2307 = vperm.xlu0 %2306, %v1325
      %v2308 = vpop.permute.xlu0 %2307
      %2310 = vset.pattern.permute.xlu0 41
      %2311 = vperm.xlu0 %2310, %v1326
      %v2312 = vpop.permute.xlu0 %2311
      %2314 = vset.pattern.permute.xlu0 41
      %2315 = vperm.xlu0 %2314, %v1327
      %v2316 = vpop.permute.xlu0 %2315
      %v2318 = vsel %vm2268, %v2280, 0.0
      %v2319 = vsel %vm2269, %v2284, 0.0
      %v2320 = vsel %vm2270, %v2288, 0.0
      %v2321 = vsel %vm2271, %v2292, 0.0
      %v2322 = vsel %vm2272, %v2296, 0.0
      %v2323 = vsel %vm2273, %v2300, 0.0
      %v2324 = vsel %vm2274, %v2304, 0.0
      %v2325 = vsel %vm2275, %v2308, 0.0
      %v2326 = vsel %vm2276, %v2312, 0.0
      %v2327 = vsel %vm2277, %v2316, 0.0
      %2328 = vset.pattern.permute.xlu0 41
      %2329 = vperm.xlu0 %2328, %v1388
      %v2330 = vpop.permute.xlu0 %2329
      %2331 = vset.pattern.permute.xlu0 41
      %2332 = vperm.xlu0 %2331, %v1389
      %v2333 = vpop.permute.xlu0 %2332
      %2334 = vset.pattern.permute.xlu0 41
      %2335 = vperm.xlu0 %2334, %v1390
      %v2336 = vpop.permute.xlu0 %2335
      %2337 = vset.pattern.permute.xlu0 41
      %2338 = vperm.xlu0 %2337, %v1391
      %v2339 = vpop.permute.xlu0 %2338
      %2340 = vset.pattern.permute.xlu0 41
      %2341 = vperm.xlu0 %2340, %v1392
      %v2342 = vpop.permute.xlu0 %2341
      %2343 = vset.pattern.permute.xlu0 41
      %2344 = vperm.xlu0 %2343, %v1393
      %v2345 = vpop.permute.xlu0 %2344
      %2346 = vset.pattern.permute.xlu0 41
      %2347 = vperm.xlu0 %2346, %v1394
      %v2348 = vpop.permute.xlu0 %2347
      %2349 = vset.pattern.permute.xlu0 41
      %2350 = vperm.xlu0 %2349, %v1395
      %v2351 = vpop.permute.xlu0 %2350
      %2352 = vset.pattern.permute.xlu0 41
      %2353 = vperm.xlu0 %2352, %v1396
      %v2354 = vpop.permute.xlu0 %2353
      %2355 = vset.pattern.permute.xlu0 41
      %2356 = vperm.xlu0 %2355, %v1397
      %v2357 = vpop.permute.xlu0 %2356
      %vm2358 = vcmp.eq.s32.totalorder %v1276, %v2330
      %vm2359 = vcmp.eq.s32.totalorder %v1276, %v2333
      %vm2360 = vcmp.eq.s32.totalorder %v1276, %v2336
      %vm2361 = vcmp.eq.s32.totalorder %v1276, %v2339
      %vm2362 = vcmp.eq.s32.totalorder %v1276, %v2342
      %vm2363 = vcmp.eq.s32.totalorder %v1276, %v2345
      %vm2364 = vcmp.eq.s32.totalorder %v1276, %v2348
      %vm2365 = vcmp.eq.s32.totalorder %v1276, %v2351
      %vm2366 = vcmp.eq.s32.totalorder %v1276, %v2354
      %vm2367 = vcmp.eq.s32.totalorder %v1276, %v2357
      %2368 = vset.pattern.permute.xlu0 41
      %2369 = vperm.xlu0 %2368, %v1256
      %v2370 = vpop.permute.xlu0 %2369
      %2372 = vset.pattern.permute.xlu0 41
      %2373 = vperm.xlu0 %2372, %v1257
      %v2374 = vpop.permute.xlu0 %2373
      %2376 = vset.pattern.permute.xlu0 41
      %2377 = vperm.xlu0 %2376, %v1258
      %v2378 = vpop.permute.xlu0 %2377
      %2380 = vset.pattern.permute.xlu0 41
      %2381 = vperm.xlu0 %2380, %v1259
      %v2382 = vpop.permute.xlu0 %2381
      %2384 = vset.pattern.permute.xlu0 41
      %2385 = vperm.xlu0 %2384, %v1260
      %v2386 = vpop.permute.xlu0 %2385
      %2388 = vset.pattern.permute.xlu0 41
      %2389 = vperm.xlu0 %2388, %v1261
      %v2390 = vpop.permute.xlu0 %2389
      %2392 = vset.pattern.permute.xlu0 41
      %2393 = vperm.xlu0 %2392, %v1262
      %v2394 = vpop.permute.xlu0 %2393
      %2396 = vset.pattern.permute.xlu0 41
      %2397 = vperm.xlu0 %2396, %v1263
      %v2398 = vpop.permute.xlu0 %2397
      %2400 = vset.pattern.permute.xlu0 41
      %2401 = vperm.xlu0 %2400, %v1264
      %v2402 = vpop.permute.xlu0 %2401
      %2404 = vset.pattern.permute.xlu0 41
      %2405 = vperm.xlu0 %2404, %v1265
      %v2406 = vpop.permute.xlu0 %2405
      %v2408 = vsel %vm2358, %v2370, 0.0
      %v2409 = vsel %vm2359, %v2374, 0.0
      %v2410 = vsel %vm2360, %v2378, 0.0
      %v2411 = vsel %vm2361, %v2382, 0.0
      %v2412 = vsel %vm2362, %v2386, 0.0
      %v2413 = vsel %vm2363, %v2390, 0.0
      %v2414 = vsel %vm2364, %v2394, 0.0
      %v2415 = vsel %vm2365, %v2398, 0.0
      %v2416 = vsel %vm2366, %v2402, 0.0
      %v2417 = vsel %vm2367, %v2406, 0.0
      %v2418 = vadd.f32 %v2318, %v2408
      %v2419 = vadd.f32 %v2319, %v2409
      %v2420 = vadd.f32 %v2320, %v2410
      %v2421 = vadd.f32 %v2321, %v2411
      %v2422 = vadd.f32 %v2322, %v2412
      %v2423 = vadd.f32 %v2323, %v2413
      %v2424 = vadd.f32 %v2324, %v2414
      %v2425 = vadd.f32 %v2325, %v2415
      %v2426 = vadd.f32 %v2326, %v2416
      %v2427 = vadd.f32 %v2327, %v2417
      %2428 = vset.pattern.permute.xlu0 40
      %2429 = vperm.xlu0 %2428, %v1266
      %v2430 = vpop.permute.xlu0 %2429
      %2431 = vset.pattern.permute.xlu0 40
      %2432 = vperm.xlu0 %2431, %v1267
      %v2433 = vpop.permute.xlu0 %2432
      %2434 = vset.pattern.permute.xlu0 40
      %2435 = vperm.xlu0 %2434, %v1268
      %v2436 = vpop.permute.xlu0 %2435
      %2437 = vset.pattern.permute.xlu0 40
      %2438 = vperm.xlu0 %2437, %v1269
      %v2439 = vpop.permute.xlu0 %2438
      %2440 = vset.pattern.permute.xlu0 40
      %2441 = vperm.xlu0 %2440, %v1270
      %v2442 = vpop.permute.xlu0 %2441
      %2443 = vset.pattern.permute.xlu0 40
      %2444 = vperm.xlu0 %2443, %v1271
      %v2445 = vpop.permute.xlu0 %2444
      %2446 = vset.pattern.permute.xlu0 40
      %2447 = vperm.xlu0 %2446, %v1272
      %v2448 = vpop.permute.xlu0 %2447
      %2449 = vset.pattern.permute.xlu0 40
      %2450 = vperm.xlu0 %2449, %v1273
      %v2451 = vpop.permute.xlu0 %2450
      %2452 = vset.pattern.permute.xlu0 40
      %2453 = vperm.xlu0 %2452, %v1274
      %v2454 = vpop.permute.xlu0 %2453
      %2455 = vset.pattern.permute.xlu0 40
      %2456 = vperm.xlu0 %2455, %v1275
      %v2457 = vpop.permute.xlu0 %2456
      %vm2458 = vcmp.eq.s32.totalorder %v1277, %v2430
      %vm2459 = vcmp.eq.s32.totalorder %v1277, %v2433
      %vm2460 = vcmp.eq.s32.totalorder %v1277, %v2436
      %vm2461 = vcmp.eq.s32.totalorder %v1277, %v2439
      %vm2462 = vcmp.eq.s32.totalorder %v1277, %v2442
      %vm2463 = vcmp.eq.s32.totalorder %v1277, %v2445
      %vm2464 = vcmp.eq.s32.totalorder %v1277, %v2448
      %vm2465 = vcmp.eq.s32.totalorder %v1277, %v2451
      %vm2466 = vcmp.eq.s32.totalorder %v1277, %v2454
      %vm2467 = vcmp.eq.s32.totalorder %v1277, %v2457
      %2468 = vset.pattern.permute.xlu0 40
      %2469 = vperm.xlu0 %2468, %v1318
      %v2470 = vpop.permute.xlu0 %2469
      %2472 = vset.pattern.permute.xlu0 40
      %2473 = vperm.xlu0 %2472, %v1319
      %v2474 = vpop.permute.xlu0 %2473
      %2476 = vset.pattern.permute.xlu0 40
      %2477 = vperm.xlu0 %2476, %v1320
      %v2478 = vpop.permute.xlu0 %2477
      %2480 = vset.pattern.permute.xlu0 40
      %2481 = vperm.xlu0 %2480, %v1321
      %v2482 = vpop.permute.xlu0 %2481
      %2484 = vset.pattern.permute.xlu0 40
      %2485 = vperm.xlu0 %2484, %v1322
      %v2486 = vpop.permute.xlu0 %2485
      %2488 = vset.pattern.permute.xlu0 40
      %2489 = vperm.xlu0 %2488, %v1323
      %v2490 = vpop.permute.xlu0 %2489
      %2492 = vset.pattern.permute.xlu0 40
      %2493 = vperm.xlu0 %2492, %v1324
      %v2494 = vpop.permute.xlu0 %2493
      %2496 = vset.pattern.permute.xlu0 40
      %2497 = vperm.xlu0 %2496, %v1325
      %v2498 = vpop.permute.xlu0 %2497
      %2500 = vset.pattern.permute.xlu0 40
      %2501 = vperm.xlu0 %2500, %v1326
      %v2502 = vpop.permute.xlu0 %2501
      %2504 = vset.pattern.permute.xlu0 40
      %2505 = vperm.xlu0 %2504, %v1327
      %v2506 = vpop.permute.xlu0 %2505
      %v2508 = vsel %vm2458, %v2470, 0.0
      %v2509 = vsel %vm2459, %v2474, 0.0
      %v2510 = vsel %vm2460, %v2478, 0.0
      %v2511 = vsel %vm2461, %v2482, 0.0
      %v2512 = vsel %vm2462, %v2486, 0.0
      %v2513 = vsel %vm2463, %v2490, 0.0
      %v2514 = vsel %vm2464, %v2494, 0.0
      %v2515 = vsel %vm2465, %v2498, 0.0
      %v2516 = vsel %vm2466, %v2502, 0.0
      %v2517 = vsel %vm2467, %v2506, 0.0
      %2518 = vset.pattern.permute.xlu0 40
      %2519 = vperm.xlu0 %2518, %v1388
      %v2520 = vpop.permute.xlu0 %2519
      %2521 = vset.pattern.permute.xlu0 40
      %2522 = vperm.xlu0 %2521, %v1389
      %v2523 = vpop.permute.xlu0 %2522
      %2524 = vset.pattern.permute.xlu0 40
      %2525 = vperm.xlu0 %2524, %v1390
      %v2526 = vpop.permute.xlu0 %2525
      %2527 = vset.pattern.permute.xlu0 40
      %2528 = vperm.xlu0 %2527, %v1391
      %v2529 = vpop.permute.xlu0 %2528
      %2530 = vset.pattern.permute.xlu0 40
      %2531 = vperm.xlu0 %2530, %v1392
      %v2532 = vpop.permute.xlu0 %2531
      %2533 = vset.pattern.permute.xlu0 40
      %2534 = vperm.xlu0 %2533, %v1393
      %v2535 = vpop.permute.xlu0 %2534
      %2536 = vset.pattern.permute.xlu0 40
      %2537 = vperm.xlu0 %2536, %v1394
      %v2538 = vpop.permute.xlu0 %2537
      %2539 = vset.pattern.permute.xlu0 40
      %2540 = vperm.xlu0 %2539, %v1395
      %v2541 = vpop.permute.xlu0 %2540
      %2542 = vset.pattern.permute.xlu0 40
      %2543 = vperm.xlu0 %2542, %v1396
      %v2544 = vpop.permute.xlu0 %2543
      %2545 = vset.pattern.permute.xlu0 40
      %2546 = vperm.xlu0 %2545, %v1397
      %v2547 = vpop.permute.xlu0 %2546
      %vm2548 = vcmp.eq.s32.totalorder %v1277, %v2520
      %vm2549 = vcmp.eq.s32.totalorder %v1277, %v2523
      %vm2550 = vcmp.eq.s32.totalorder %v1277, %v2526
      %vm2551 = vcmp.eq.s32.totalorder %v1277, %v2529
      %vm2552 = vcmp.eq.s32.totalorder %v1277, %v2532
      %vm2553 = vcmp.eq.s32.totalorder %v1277, %v2535
      %vm2554 = vcmp.eq.s32.totalorder %v1277, %v2538
      %vm2555 = vcmp.eq.s32.totalorder %v1277, %v2541
      %vm2556 = vcmp.eq.s32.totalorder %v1277, %v2544
      %vm2557 = vcmp.eq.s32.totalorder %v1277, %v2547
      %2558 = vset.pattern.permute.xlu0 40
      %2559 = vperm.xlu0 %2558, %v1256
      %v2560 = vpop.permute.xlu0 %2559
      %2562 = vset.pattern.permute.xlu0 40
      %2563 = vperm.xlu0 %2562, %v1257
      %v2564 = vpop.permute.xlu0 %2563
      %2566 = vset.pattern.permute.xlu0 40
      %2567 = vperm.xlu0 %2566, %v1258
      %v2568 = vpop.permute.xlu0 %2567
      %2570 = vset.pattern.permute.xlu0 40
      %2571 = vperm.xlu0 %2570, %v1259
      %v2572 = vpop.permute.xlu0 %2571
      %2574 = vset.pattern.permute.xlu0 40
      %2575 = vperm.xlu0 %2574, %v1260
      %v2576 = vpop.permute.xlu0 %2575
      %2578 = vset.pattern.permute.xlu0 40
      %2579 = vperm.xlu0 %2578, %v1261
      %v2580 = vpop.permute.xlu0 %2579
      %2582 = vset.pattern.permute.xlu0 40
      %2583 = vperm.xlu0 %2582, %v1262
      %v2584 = vpop.permute.xlu0 %2583
      %2586 = vset.pattern.permute.xlu0 40
      %2587 = vperm.xlu0 %2586, %v1263
      %v2588 = vpop.permute.xlu0 %2587
      %2590 = vset.pattern.permute.xlu0 40
      %2591 = vperm.xlu0 %2590, %v1264
      %v2592 = vpop.permute.xlu0 %2591
      %2594 = vset.pattern.permute.xlu0 40
      %2595 = vperm.xlu0 %2594, %v1265
      %v2596 = vpop.permute.xlu0 %2595
      %v2598 = vsel %vm2548, %v2560, 0.0
      %v2599 = vsel %vm2549, %v2564, 0.0
      %v2600 = vsel %vm2550, %v2568, 0.0
      %v2601 = vsel %vm2551, %v2572, 0.0
      %v2602 = vsel %vm2552, %v2576, 0.0
      %v2603 = vsel %vm2553, %v2580, 0.0
      %v2604 = vsel %vm2554, %v2584, 0.0
      %v2605 = vsel %vm2555, %v2588, 0.0
      %v2606 = vsel %vm2556, %v2592, 0.0
      %v2607 = vsel %vm2557, %v2596, 0.0
      %v2608 = vadd.f32 %v2508, %v2598
      %v2609 = vadd.f32 %v2509, %v2599
      %v2610 = vadd.f32 %v2510, %v2600
      %v2611 = vadd.f32 %v2511, %v2601
      %v2612 = vadd.f32 %v2512, %v2602
      %v2613 = vadd.f32 %v2513, %v2603
      %v2614 = vadd.f32 %v2514, %v2604
      %v2615 = vadd.f32 %v2515, %v2605
      %v2616 = vadd.f32 %v2516, %v2606
      %v2617 = vadd.f32 %v2517, %v2607
      %2618 = vset.pattern.permute.xlu0 68
      %2619 = vperm.xlu0 %2618, %v1110
      %v2620 = vpop.permute.xlu0 %2619
      %2622 = vset.pattern.permute.xlu0 68
      %2623 = vperm.xlu0 %2622, %v1125
      %v2624 = vpop.permute.xlu0 %2623
      %2626 = vset.pattern.permute.xlu0 68
      %2627 = vperm.xlu0 %2626, %v1140
      %v2628 = vpop.permute.xlu0 %2627
      %2630 = vset.pattern.permute.xlu0 68
      %2631 = vperm.xlu0 %2630, %v1155
      %v2632 = vpop.permute.xlu0 %2631
      %2634 = vset.pattern.permute.xlu0 68
      %2635 = vperm.xlu0 %2634, %v1170
      %v2636 = vpop.permute.xlu0 %2635
      %2638 = vset.pattern.permute.xlu0 68
      %2639 = vperm.xlu0 %2638, %v1185
      %v2640 = vpop.permute.xlu0 %2639
      %2642 = vset.pattern.permute.xlu0 68
      %2643 = vperm.xlu0 %2642, %v1200
      %v2644 = vpop.permute.xlu0 %2643
      %2646 = vset.pattern.permute.xlu0 68
      %2647 = vperm.xlu0 %2646, %v1215
      %v2648 = vpop.permute.xlu0 %2647
      %2650 = vset.pattern.permute.xlu0 68
      %2651 = vperm.xlu0 %2650, %v1230
      %v2652 = vpop.permute.xlu0 %2651
      %2654 = vset.pattern.permute.xlu0 68
      %2655 = vperm.xlu0 %2654, %v1245
      %v2656 = vpop.permute.xlu0 %2655
      %v2658 = vmul.f32 %v2620, %v2418
      %v2659 = vmul.f32 %v2624, %v2419
      %v2660 = vmul.f32 %v2628, %v2420
      %v2661 = vmul.f32 %v2632, %v2421
      %v2662 = vmul.f32 %v2636, %v2422
      %v2663 = vmul.f32 %v2640, %v2423
      %v2664 = vmul.f32 %v2644, %v2424
      %v2665 = vmul.f32 %v2648, %v2425
      %v2666 = vmul.f32 %v2652, %v2426
      %v2667 = vmul.f32 %v2656, %v2427
      %v2668 = vmul.f32 %v2658, %v2608
      %v2669 = vmul.f32 %v2659, %v2609
      %v2670 = vmul.f32 %v2660, %v2610
      %v2671 = vmul.f32 %v2661, %v2611
      %v2672 = vmul.f32 %v2662, %v2612
      %v2673 = vmul.f32 %v2663, %v2613
      %v2674 = vmul.f32 %v2664, %v2614
      %v2675 = vmul.f32 %v2665, %v2615
      %v2676 = vmul.f32 %v2666, %v2616
      %v2677 = vmul.f32 %v2667, %v2617
      %v2678 = vadd.f32 %v2668, 0.0
      %v2679 = vadd.f32 %v2669, 0.0
      %v2680 = vadd.f32 %v2670, 0.0
      %v2681 = vadd.f32 %v2671, 0.0
      %v2682 = vadd.f32 %v2672, 0.0
      %v2683 = vadd.f32 %v2673, 0.0
      %v2684 = vadd.f32 %v2674, 0.0
      %v2685 = vadd.f32 %v2675, 0.0
      %v2686 = vadd.f32 %v2676, 0.0
      %v2687 = vadd.f32 %v2677, 0.0
      %2688 = vset.pattern.permute.xlu0 43
      %2689 = vperm.xlu0 %2688, %v1266
      %v2690 = vpop.permute.xlu0 %2689
      %2691 = vset.pattern.permute.xlu0 43
      %2692 = vperm.xlu0 %2691, %v1267
      %v2693 = vpop.permute.xlu0 %2692
      %2694 = vset.pattern.permute.xlu0 43
      %2695 = vperm.xlu0 %2694, %v1268
      %v2696 = vpop.permute.xlu0 %2695
      %2697 = vset.pattern.permute.xlu0 43
      %2698 = vperm.xlu0 %2697, %v1269
      %v2699 = vpop.permute.xlu0 %2698
      %2700 = vset.pattern.permute.xlu0 43
      %2701 = vperm.xlu0 %2700, %v1270
      %v2702 = vpop.permute.xlu0 %2701
      %2703 = vset.pattern.permute.xlu0 43
      %2704 = vperm.xlu0 %2703, %v1271
      %v2705 = vpop.permute.xlu0 %2704
      %2706 = vset.pattern.permute.xlu0 43
      %2707 = vperm.xlu0 %2706, %v1272
      %v2708 = vpop.permute.xlu0 %2707
      %2709 = vset.pattern.permute.xlu0 43
      %2710 = vperm.xlu0 %2709, %v1273
      %v2711 = vpop.permute.xlu0 %2710
      %2712 = vset.pattern.permute.xlu0 43
      %2713 = vperm.xlu0 %2712, %v1274
      %v2714 = vpop.permute.xlu0 %2713
      %2715 = vset.pattern.permute.xlu0 43
      %2716 = vperm.xlu0 %2715, %v1275
      %v2717 = vpop.permute.xlu0 %2716
      %vm2718 = vcmp.eq.s32.totalorder %v1276, %v2690
      %vm2719 = vcmp.eq.s32.totalorder %v1276, %v2693
      %vm2720 = vcmp.eq.s32.totalorder %v1276, %v2696
      %vm2721 = vcmp.eq.s32.totalorder %v1276, %v2699
      %vm2722 = vcmp.eq.s32.totalorder %v1276, %v2702
      %vm2723 = vcmp.eq.s32.totalorder %v1276, %v2705
      %vm2724 = vcmp.eq.s32.totalorder %v1276, %v2708
      %vm2725 = vcmp.eq.s32.totalorder %v1276, %v2711
      %vm2726 = vcmp.eq.s32.totalorder %v1276, %v2714
      %vm2727 = vcmp.eq.s32.totalorder %v1276, %v2717
      %2728 = vset.pattern.permute.xlu0 43
      %2729 = vperm.xlu0 %2728, %v1318
      %v2730 = vpop.permute.xlu0 %2729
      %2732 = vset.pattern.permute.xlu0 43
      %2733 = vperm.xlu0 %2732, %v1319
      %v2734 = vpop.permute.xlu0 %2733
      %2736 = vset.pattern.permute.xlu0 43
      %2737 = vperm.xlu0 %2736, %v1320
      %v2738 = vpop.permute.xlu0 %2737
      %2740 = vset.pattern.permute.xlu0 43
      %2741 = vperm.xlu0 %2740, %v1321
      %v2742 = vpop.permute.xlu0 %2741
      %2744 = vset.pattern.permute.xlu0 43
      %2745 = vperm.xlu0 %2744, %v1322
      %v2746 = vpop.permute.xlu0 %2745
      %2748 = vset.pattern.permute.xlu0 43
      %2749 = vperm.xlu0 %2748, %v1323
      %v2750 = vpop.permute.xlu0 %2749
      %2752 = vset.pattern.permute.xlu0 43
      %2753 = vperm.xlu0 %2752, %v1324
      %v2754 = vpop.permute.xlu0 %2753
      %2756 = vset.pattern.permute.xlu0 43
      %2757 = vperm.xlu0 %2756, %v1325
      %v2758 = vpop.permute.xlu0 %2757
      %2760 = vset.pattern.permute.xlu0 43
      %2761 = vperm.xlu0 %2760, %v1326
      %v2762 = vpop.permute.xlu0 %2761
      %2764 = vset.pattern.permute.xlu0 43
      %2765 = vperm.xlu0 %2764, %v1327
      %v2766 = vpop.permute.xlu0 %2765
      %v2768 = vsel %vm2718, %v2730, 0.0
      %v2769 = vsel %vm2719, %v2734, 0.0
      %v2770 = vsel %vm2720, %v2738, 0.0
      %v2771 = vsel %vm2721, %v2742, 0.0
      %v2772 = vsel %vm2722, %v2746, 0.0
      %v2773 = vsel %vm2723, %v2750, 0.0
      %v2774 = vsel %vm2724, %v2754, 0.0
      %v2775 = vsel %vm2725, %v2758, 0.0
      %v2776 = vsel %vm2726, %v2762, 0.0
      %v2777 = vsel %vm2727, %v2766, 0.0
      %2778 = vset.pattern.permute.xlu0 43
      %2779 = vperm.xlu0 %2778, %v1388
      %v2780 = vpop.permute.xlu0 %2779
      %2781 = vset.pattern.permute.xlu0 43
      %2782 = vperm.xlu0 %2781, %v1389
      %v2783 = vpop.permute.xlu0 %2782
      %2784 = vset.pattern.permute.xlu0 43
      %2785 = vperm.xlu0 %2784, %v1390
      %v2786 = vpop.permute.xlu0 %2785
      %2787 = vset.pattern.permute.xlu0 43
      %2788 = vperm.xlu0 %2787, %v1391
      %v2789 = vpop.permute.xlu0 %2788
      %2790 = vset.pattern.permute.xlu0 43
      %2791 = vperm.xlu0 %2790, %v1392
      %v2792 = vpop.permute.xlu0 %2791
      %2793 = vset.pattern.permute.xlu0 43
      %2794 = vperm.xlu0 %2793, %v1393
      %v2795 = vpop.permute.xlu0 %2794
      %2796 = vset.pattern.permute.xlu0 43
      %2797 = vperm.xlu0 %2796, %v1394
      %v2798 = vpop.permute.xlu0 %2797
      %2799 = vset.pattern.permute.xlu0 43
      %2800 = vperm.xlu0 %2799, %v1395
      %v2801 = vpop.permute.xlu0 %2800
      %2802 = vset.pattern.permute.xlu0 43
      %2803 = vperm.xlu0 %2802, %v1396
      %v2804 = vpop.permute.xlu0 %2803
      %2805 = vset.pattern.permute.xlu0 43
      %2806 = vperm.xlu0 %2805, %v1397
      %v2807 = vpop.permute.xlu0 %2806
      %vm2808 = vcmp.eq.s32.totalorder %v1276, %v2780
      %vm2809 = vcmp.eq.s32.totalorder %v1276, %v2783
      %vm2810 = vcmp.eq.s32.totalorder %v1276, %v2786
      %vm2811 = vcmp.eq.s32.totalorder %v1276, %v2789
      %vm2812 = vcmp.eq.s32.totalorder %v1276, %v2792
      %vm2813 = vcmp.eq.s32.totalorder %v1276, %v2795
      %vm2814 = vcmp.eq.s32.totalorder %v1276, %v2798
      %vm2815 = vcmp.eq.s32.totalorder %v1276, %v2801
      %vm2816 = vcmp.eq.s32.totalorder %v1276, %v2804
      %vm2817 = vcmp.eq.s32.totalorder %v1276, %v2807
      %2818 = vset.pattern.permute.xlu0 43
      %2819 = vperm.xlu0 %2818, %v1256
      %v2820 = vpop.permute.xlu0 %2819
      %2822 = vset.pattern.permute.xlu0 43
      %2823 = vperm.xlu0 %2822, %v1257
      %v2824 = vpop.permute.xlu0 %2823
      %2826 = vset.pattern.permute.xlu0 43
      %2827 = vperm.xlu0 %2826, %v1258
      %v2828 = vpop.permute.xlu0 %2827
      %2830 = vset.pattern.permute.xlu0 43
      %2831 = vperm.xlu0 %2830, %v1259
      %v2832 = vpop.permute.xlu0 %2831
      %2834 = vset.pattern.permute.xlu0 43
      %2835 = vperm.xlu0 %2834, %v1260
      %v2836 = vpop.permute.xlu0 %2835
      %2838 = vset.pattern.permute.xlu0 43
      %2839 = vperm.xlu0 %2838, %v1261
      %v2840 = vpop.permute.xlu0 %2839
      %2842 = vset.pattern.permute.xlu0 43
      %2843 = vperm.xlu0 %2842, %v1262
      %v2844 = vpop.permute.xlu0 %2843
      %2846 = vset.pattern.permute.xlu0 43
      %2847 = vperm.xlu0 %2846, %v1263
      %v2848 = vpop.permute.xlu0 %2847
      %2850 = vset.pattern.permute.xlu0 43
      %2851 = vperm.xlu0 %2850, %v1264
      %v2852 = vpop.permute.xlu0 %2851
      %2854 = vset.pattern.permute.xlu0 43
      %2855 = vperm.xlu0 %2854, %v1265
      %v2856 = vpop.permute.xlu0 %2855
      %v2858 = vsel %vm2808, %v2820, 0.0
      %v2859 = vsel %vm2809, %v2824, 0.0
      %v2860 = vsel %vm2810, %v2828, 0.0
      %v2861 = vsel %vm2811, %v2832, 0.0
      %v2862 = vsel %vm2812, %v2836, 0.0
      %v2863 = vsel %vm2813, %v2840, 0.0
      %v2864 = vsel %vm2814, %v2844, 0.0
      %v2865 = vsel %vm2815, %v2848, 0.0
      %v2866 = vsel %vm2816, %v2852, 0.0
      %v2867 = vsel %vm2817, %v2856, 0.0
      %v2868 = vadd.f32 %v2768, %v2858
      %v2869 = vadd.f32 %v2769, %v2859
      %v2870 = vadd.f32 %v2770, %v2860
      %v2871 = vadd.f32 %v2771, %v2861
      %v2872 = vadd.f32 %v2772, %v2862
      %v2873 = vadd.f32 %v2773, %v2863
      %v2874 = vadd.f32 %v2774, %v2864
      %v2875 = vadd.f32 %v2775, %v2865
      %v2876 = vadd.f32 %v2776, %v2866
      %v2877 = vadd.f32 %v2777, %v2867
      %2878 = vset.pattern.permute.xlu0 42
      %2879 = vperm.xlu0 %2878, %v1266
      %v2880 = vpop.permute.xlu0 %2879
      %2881 = vset.pattern.permute.xlu0 42
      %2882 = vperm.xlu0 %2881, %v1267
      %v2883 = vpop.permute.xlu0 %2882
      %2884 = vset.pattern.permute.xlu0 42
      %2885 = vperm.xlu0 %2884, %v1268
      %v2886 = vpop.permute.xlu0 %2885
      %2887 = vset.pattern.permute.xlu0 42
      %2888 = vperm.xlu0 %2887, %v1269
      %v2889 = vpop.permute.xlu0 %2888
      %2890 = vset.pattern.permute.xlu0 42
      %2891 = vperm.xlu0 %2890, %v1270
      %v2892 = vpop.permute.xlu0 %2891
      %2893 = vset.pattern.permute.xlu0 42
      %2894 = vperm.xlu0 %2893, %v1271
      %v2895 = vpop.permute.xlu0 %2894
      %2896 = vset.pattern.permute.xlu0 42
      %2897 = vperm.xlu0 %2896, %v1272
      %v2898 = vpop.permute.xlu0 %2897
      %2899 = vset.pattern.permute.xlu0 42
      %2900 = vperm.xlu0 %2899, %v1273
      %v2901 = vpop.permute.xlu0 %2900
      %2902 = vset.pattern.permute.xlu0 42
      %2903 = vperm.xlu0 %2902, %v1274
      %v2904 = vpop.permute.xlu0 %2903
      %2905 = vset.pattern.permute.xlu0 42
      %2906 = vperm.xlu0 %2905, %v1275
      %v2907 = vpop.permute.xlu0 %2906
      %vm2908 = vcmp.eq.s32.totalorder %v1277, %v2880
      %vm2909 = vcmp.eq.s32.totalorder %v1277, %v2883
      %vm2910 = vcmp.eq.s32.totalorder %v1277, %v2886
      %vm2911 = vcmp.eq.s32.totalorder %v1277, %v2889
      %vm2912 = vcmp.eq.s32.totalorder %v1277, %v2892
      %vm2913 = vcmp.eq.s32.totalorder %v1277, %v2895
      %vm2914 = vcmp.eq.s32.totalorder %v1277, %v2898
      %vm2915 = vcmp.eq.s32.totalorder %v1277, %v2901
      %vm2916 = vcmp.eq.s32.totalorder %v1277, %v2904
      %vm2917 = vcmp.eq.s32.totalorder %v1277, %v2907
      %2918 = vset.pattern.permute.xlu0 42
      %2919 = vperm.xlu0 %2918, %v1318
      %v2920 = vpop.permute.xlu0 %2919
      %2922 = vset.pattern.permute.xlu0 42
      %2923 = vperm.xlu0 %2922, %v1319
      %v2924 = vpop.permute.xlu0 %2923
      %2926 = vset.pattern.permute.xlu0 42
      %2927 = vperm.xlu0 %2926, %v1320
      %v2928 = vpop.permute.xlu0 %2927
      %2930 = vset.pattern.permute.xlu0 42
      %2931 = vperm.xlu0 %2930, %v1321
      %v2932 = vpop.permute.xlu0 %2931
      %2934 = vset.pattern.permute.xlu0 42
      %2935 = vperm.xlu0 %2934, %v1322
      %v2936 = vpop.permute.xlu0 %2935
      %2938 = vset.pattern.permute.xlu0 42
      %2939 = vperm.xlu0 %2938, %v1323
      %v2940 = vpop.permute.xlu0 %2939
      %2942 = vset.pattern.permute.xlu0 42
      %2943 = vperm.xlu0 %2942, %v1324
      %v2944 = vpop.permute.xlu0 %2943
      %2946 = vset.pattern.permute.xlu0 42
      %2947 = vperm.xlu0 %2946, %v1325
      %v2948 = vpop.permute.xlu0 %2947
      %2950 = vset.pattern.permute.xlu0 42
      %2951 = vperm.xlu0 %2950, %v1326
      %v2952 = vpop.permute.xlu0 %2951
      %2954 = vset.pattern.permute.xlu0 42
      %2955 = vperm.xlu0 %2954, %v1327
      %v2956 = vpop.permute.xlu0 %2955
      %v2958 = vsel %vm2908, %v2920, 0.0
      %v2959 = vsel %vm2909, %v2924, 0.0
      %v2960 = vsel %vm2910, %v2928, 0.0
      %v2961 = vsel %vm2911, %v2932, 0.0
      %v2962 = vsel %vm2912, %v2936, 0.0
      %v2963 = vsel %vm2913, %v2940, 0.0
      %v2964 = vsel %vm2914, %v2944, 0.0
      %v2965 = vsel %vm2915, %v2948, 0.0
      %v2966 = vsel %vm2916, %v2952, 0.0
      %v2967 = vsel %vm2917, %v2956, 0.0
      %2968 = vset.pattern.permute.xlu0 42
      %2969 = vperm.xlu0 %2968, %v1388
      %v2970 = vpop.permute.xlu0 %2969
      %2971 = vset.pattern.permute.xlu0 42
      %2972 = vperm.xlu0 %2971, %v1389
      %v2973 = vpop.permute.xlu0 %2972
      %2974 = vset.pattern.permute.xlu0 42
      %2975 = vperm.xlu0 %2974, %v1390
      %v2976 = vpop.permute.xlu0 %2975
      %2977 = vset.pattern.permute.xlu0 42
      %2978 = vperm.xlu0 %2977, %v1391
      %v2979 = vpop.permute.xlu0 %2978
      %2980 = vset.pattern.permute.xlu0 42
      %2981 = vperm.xlu0 %2980, %v1392
      %v2982 = vpop.permute.xlu0 %2981
      %2983 = vset.pattern.permute.xlu0 42
      %2984 = vperm.xlu0 %2983, %v1393
      %v2985 = vpop.permute.xlu0 %2984
      %2986 = vset.pattern.permute.xlu0 42
      %2987 = vperm.xlu0 %2986, %v1394
      %v2988 = vpop.permute.xlu0 %2987
      %2989 = vset.pattern.permute.xlu0 42
      %2990 = vperm.xlu0 %2989, %v1395
      %v2991 = vpop.permute.xlu0 %2990
      %2992 = vset.pattern.permute.xlu0 42
      %2993 = vperm.xlu0 %2992, %v1396
      %v2994 = vpop.permute.xlu0 %2993
      %2995 = vset.pattern.permute.xlu0 42
      %2996 = vperm.xlu0 %2995, %v1397
      %v2997 = vpop.permute.xlu0 %2996
      %vm2998 = vcmp.eq.s32.totalorder %v1277, %v2970
      %vm2999 = vcmp.eq.s32.totalorder %v1277, %v2973
      %vm3000 = vcmp.eq.s32.totalorder %v1277, %v2976
      %vm3001 = vcmp.eq.s32.totalorder %v1277, %v2979
      %vm3002 = vcmp.eq.s32.totalorder %v1277, %v2982
      %vm3003 = vcmp.eq.s32.totalorder %v1277, %v2985
      %vm3004 = vcmp.eq.s32.totalorder %v1277, %v2988
      %vm3005 = vcmp.eq.s32.totalorder %v1277, %v2991
      %vm3006 = vcmp.eq.s32.totalorder %v1277, %v2994
      %vm3007 = vcmp.eq.s32.totalorder %v1277, %v2997
      %3008 = vset.pattern.permute.xlu0 42
      %3009 = vperm.xlu0 %3008, %v1256
      %v3010 = vpop.permute.xlu0 %3009
      %3012 = vset.pattern.permute.xlu0 42
      %3013 = vperm.xlu0 %3012, %v1257
      %v3014 = vpop.permute.xlu0 %3013
      %3016 = vset.pattern.permute.xlu0 42
      %3017 = vperm.xlu0 %3016, %v1258
      %v3018 = vpop.permute.xlu0 %3017
      %3020 = vset.pattern.permute.xlu0 42
      %3021 = vperm.xlu0 %3020, %v1259
      %v3022 = vpop.permute.xlu0 %3021
      %3024 = vset.pattern.permute.xlu0 42
      %3025 = vperm.xlu0 %3024, %v1260
      %v3026 = vpop.permute.xlu0 %3025
      %3028 = vset.pattern.permute.xlu0 42
      %3029 = vperm.xlu0 %3028, %v1261
      %v3030 = vpop.permute.xlu0 %3029
      %3032 = vset.pattern.permute.xlu0 42
      %3033 = vperm.xlu0 %3032, %v1262
      %v3034 = vpop.permute.xlu0 %3033
      %3036 = vset.pattern.permute.xlu0 42
      %3037 = vperm.xlu0 %3036, %v1263
      %v3038 = vpop.permute.xlu0 %3037
      %3040 = vset.pattern.permute.xlu0 42
      %3041 = vperm.xlu0 %3040, %v1264
      %v3042 = vpop.permute.xlu0 %3041
      %3044 = vset.pattern.permute.xlu0 42
      %3045 = vperm.xlu0 %3044, %v1265
      %v3046 = vpop.permute.xlu0 %3045
      %v3048 = vsel %vm2998, %v3010, 0.0
      %v3049 = vsel %vm2999, %v3014, 0.0
      %v3050 = vsel %vm3000, %v3018, 0.0
      %v3051 = vsel %vm3001, %v3022, 0.0
      %v3052 = vsel %vm3002, %v3026, 0.0
      %v3053 = vsel %vm3003, %v3030, 0.0
      %v3054 = vsel %vm3004, %v3034, 0.0
      %v3055 = vsel %vm3005, %v3038, 0.0
      %v3056 = vsel %vm3006, %v3042, 0.0
      %v3057 = vsel %vm3007, %v3046, 0.0
      %v3058 = vadd.f32 %v2958, %v3048
      %v3059 = vadd.f32 %v2959, %v3049
      %v3060 = vadd.f32 %v2960, %v3050
      %v3061 = vadd.f32 %v2961, %v3051
      %v3062 = vadd.f32 %v2962, %v3052
      %v3063 = vadd.f32 %v2963, %v3053
      %v3064 = vadd.f32 %v2964, %v3054
      %v3065 = vadd.f32 %v2965, %v3055
      %v3066 = vadd.f32 %v2966, %v3056
      %v3067 = vadd.f32 %v2967, %v3057
      %3068 = vset.pattern.permute.xlu0 69
      %3069 = vperm.xlu0 %3068, %v1110
      %v3070 = vpop.permute.xlu0 %3069
      %3072 = vset.pattern.permute.xlu0 69
      %3073 = vperm.xlu0 %3072, %v1125
      %v3074 = vpop.permute.xlu0 %3073
      %3076 = vset.pattern.permute.xlu0 69
      %3077 = vperm.xlu0 %3076, %v1140
      %v3078 = vpop.permute.xlu0 %3077
      %3080 = vset.pattern.permute.xlu0 69
      %3081 = vperm.xlu0 %3080, %v1155
      %v3082 = vpop.permute.xlu0 %3081
      %3084 = vset.pattern.permute.xlu0 69
      %3085 = vperm.xlu0 %3084, %v1170
      %v3086 = vpop.permute.xlu0 %3085
      %3088 = vset.pattern.permute.xlu0 69
      %3089 = vperm.xlu0 %3088, %v1185
      %v3090 = vpop.permute.xlu0 %3089
      %3092 = vset.pattern.permute.xlu0 69
      %3093 = vperm.xlu0 %3092, %v1200
      %v3094 = vpop.permute.xlu0 %3093
      %3096 = vset.pattern.permute.xlu0 69
      %3097 = vperm.xlu0 %3096, %v1215
      %v3098 = vpop.permute.xlu0 %3097
      %3100 = vset.pattern.permute.xlu0 69
      %3101 = vperm.xlu0 %3100, %v1230
      %v3102 = vpop.permute.xlu0 %3101
      %3104 = vset.pattern.permute.xlu0 69
      %3105 = vperm.xlu0 %3104, %v1245
      %v3106 = vpop.permute.xlu0 %3105
      %v3108 = vmul.f32 %v3070, %v2868
      %v3109 = vmul.f32 %v3074, %v2869
      %v3110 = vmul.f32 %v3078, %v2870
      %v3111 = vmul.f32 %v3082, %v2871
      %v3112 = vmul.f32 %v3086, %v2872
      %v3113 = vmul.f32 %v3090, %v2873
      %v3114 = vmul.f32 %v3094, %v2874
      %v3115 = vmul.f32 %v3098, %v2875
      %v3116 = vmul.f32 %v3102, %v2876
      %v3117 = vmul.f32 %v3106, %v2877
      %v3118 = vmul.f32 %v3108, %v3058
      %v3119 = vmul.f32 %v3109, %v3059
      %v3120 = vmul.f32 %v3110, %v3060
      %v3121 = vmul.f32 %v3111, %v3061
      %v3122 = vmul.f32 %v3112, %v3062
      %v3123 = vmul.f32 %v3113, %v3063
      %v3124 = vmul.f32 %v3114, %v3064
      %v3125 = vmul.f32 %v3115, %v3065
      %v3126 = vmul.f32 %v3116, %v3066
      %v3127 = vmul.f32 %v3117, %v3067
      %v3128 = vadd.f32 %v2678, %v3118
      %v3129 = vadd.f32 %v2679, %v3119
      %v3130 = vadd.f32 %v2680, %v3120
      %v3131 = vadd.f32 %v2681, %v3121
      %v3132 = vadd.f32 %v2682, %v3122
      %v3133 = vadd.f32 %v2683, %v3123
      %v3134 = vadd.f32 %v2684, %v3124
      %v3135 = vadd.f32 %v2685, %v3125
      %v3136 = vadd.f32 %v2686, %v3126
      %v3137 = vadd.f32 %v2687, %v3127
      %3148 = vrot.lane.b32.xlu0 %v3128, 64
      %v3149 = vpop.permute.xlu0 %3148
      %3150 = vrot.lane.b32.xlu0 %v3129, 64
      %v3151 = vpop.permute.xlu0 %3150
      %3152 = vrot.lane.b32.xlu0 %v3130, 64
      %v3153 = vpop.permute.xlu0 %3152
      %3154 = vrot.lane.b32.xlu0 %v3131, 64
      %v3155 = vpop.permute.xlu0 %3154
      %3156 = vrot.lane.b32.xlu0 %v3132, 64
      %v3157 = vpop.permute.xlu0 %3156
      %3158 = vrot.lane.b32.xlu0 %v3133, 64
      %v3159 = vpop.permute.xlu0 %3158
      %3160 = vrot.lane.b32.xlu0 %v3134, 64
      %v3161 = vpop.permute.xlu0 %3160
      %3162 = vrot.lane.b32.xlu0 %v3135, 64
      %v3163 = vpop.permute.xlu0 %3162
      %3164 = vrot.lane.b32.xlu0 %v3136, 64
      %v3165 = vpop.permute.xlu0 %3164
      %3166 = vrot.lane.b32.xlu0 %v3137, 64
      %v3167 = vpop.permute.xlu0 %3166
      %vm3178 = vcmask 1048064
      %3179 = vst.msk [vmem:[#allocation2] sm:$0xff] %vm3178, %v3149
      %3180 = vst.msk [vmem:[#allocation2 + $0x10] sm:$0xff] %vm3178, %v3151
      %3181 = vst.msk [vmem:[#allocation2 + $0x20] sm:$0xff] %vm3178, %v3153
      %3182 = vst.msk [vmem:[#allocation2 + $0x30] sm:$0xff] %vm3178, %v3155
      %3183 = vst.msk [vmem:[#allocation2 + $0x40] sm:$0xff] %vm3178, %v3157
      %3184 = vst.msk [vmem:[#allocation2 + $0x50] sm:$0xff] %vm3178, %v3159
      %3185 = vst.msk [vmem:[#allocation2 + $0x60] sm:$0xff] %vm3178, %v3161
      %3186 = vst.msk [vmem:[#allocation2 + $0x70] sm:$0xff] %vm3178, %v3163
      %3187 = vst.msk [vmem:[#allocation2 + $0x80] sm:$0xff] %vm3178, %v3165
      %3188 = vst.msk [vmem:[#allocation2 + $0x90] sm:$0xff] %vm3178, %v3167
      %3189 = vset.pattern.permute.xlu0 49
      %3190 = vperm.xlu0 %3189, %v1266
      %v3191 = vpop.permute.xlu0 %3190
      %3192 = vset.pattern.permute.xlu0 49
      %3193 = vperm.xlu0 %3192, %v1267
      %v3194 = vpop.permute.xlu0 %3193
      %3195 = vset.pattern.permute.xlu0 49
      %3196 = vperm.xlu0 %3195, %v1268
      %v3197 = vpop.permute.xlu0 %3196
      %3198 = vset.pattern.permute.xlu0 49
      %3199 = vperm.xlu0 %3198, %v1269
      %v3200 = vpop.permute.xlu0 %3199
      %3201 = vset.pattern.permute.xlu0 49
      %3202 = vperm.xlu0 %3201, %v1270
      %v3203 = vpop.permute.xlu0 %3202
      %3204 = vset.pattern.permute.xlu0 49
      %3205 = vperm.xlu0 %3204, %v1271
      %v3206 = vpop.permute.xlu0 %3205
      %3207 = vset.pattern.permute.xlu0 49
      %3208 = vperm.xlu0 %3207, %v1272
      %v3209 = vpop.permute.xlu0 %3208
      %3210 = vset.pattern.permute.xlu0 49
      %3211 = vperm.xlu0 %3210, %v1273
      %v3212 = vpop.permute.xlu0 %3211
      %3213 = vset.pattern.permute.xlu0 49
      %3214 = vperm.xlu0 %3213, %v1274
      %v3215 = vpop.permute.xlu0 %3214
      %3216 = vset.pattern.permute.xlu0 49
      %3217 = vperm.xlu0 %3216, %v1275
      %v3218 = vpop.permute.xlu0 %3217
      %vm3219 = vcmp.eq.s32.totalorder %v1276, %v3191
      %vm3220 = vcmp.eq.s32.totalorder %v1276, %v3194
      %vm3221 = vcmp.eq.s32.totalorder %v1276, %v3197
      %vm3222 = vcmp.eq.s32.totalorder %v1276, %v3200
      %vm3223 = vcmp.eq.s32.totalorder %v1276, %v3203
      %vm3224 = vcmp.eq.s32.totalorder %v1276, %v3206
      %vm3225 = vcmp.eq.s32.totalorder %v1276, %v3209
      %vm3226 = vcmp.eq.s32.totalorder %v1276, %v3212
      %vm3227 = vcmp.eq.s32.totalorder %v1276, %v3215
      %vm3228 = vcmp.eq.s32.totalorder %v1276, %v3218
      %3229 = vset.pattern.permute.xlu0 49
      %3230 = vperm.xlu0 %3229, %v1318
      %v3231 = vpop.permute.xlu0 %3230
      %3233 = vset.pattern.permute.xlu0 49
      %3234 = vperm.xlu0 %3233, %v1319
      %v3235 = vpop.permute.xlu0 %3234
      %3237 = vset.pattern.permute.xlu0 49
      %3238 = vperm.xlu0 %3237, %v1320
      %v3239 = vpop.permute.xlu0 %3238
      %3241 = vset.pattern.permute.xlu0 49
      %3242 = vperm.xlu0 %3241, %v1321
      %v3243 = vpop.permute.xlu0 %3242
      %3245 = vset.pattern.permute.xlu0 49
      %3246 = vperm.xlu0 %3245, %v1322
      %v3247 = vpop.permute.xlu0 %3246
      %3249 = vset.pattern.permute.xlu0 49
      %3250 = vperm.xlu0 %3249, %v1323
      %v3251 = vpop.permute.xlu0 %3250
      %3253 = vset.pattern.permute.xlu0 49
      %3254 = vperm.xlu0 %3253, %v1324
      %v3255 = vpop.permute.xlu0 %3254
      %3257 = vset.pattern.permute.xlu0 49
      %3258 = vperm.xlu0 %3257, %v1325
      %v3259 = vpop.permute.xlu0 %3258
      %3261 = vset.pattern.permute.xlu0 49
      %3262 = vperm.xlu0 %3261, %v1326
      %v3263 = vpop.permute.xlu0 %3262
      %3265 = vset.pattern.permute.xlu0 49
      %3266 = vperm.xlu0 %3265, %v1327
      %v3267 = vpop.permute.xlu0 %3266
      %v3269 = vsel %vm3219, %v3231, 0.0
      %v3270 = vsel %vm3220, %v3235, 0.0
      %v3271 = vsel %vm3221, %v3239, 0.0
      %v3272 = vsel %vm3222, %v3243, 0.0
      %v3273 = vsel %vm3223, %v3247, 0.0
      %v3274 = vsel %vm3224, %v3251, 0.0
      %v3275 = vsel %vm3225, %v3255, 0.0
      %v3276 = vsel %vm3226, %v3259, 0.0
      %v3277 = vsel %vm3227, %v3263, 0.0
      %v3278 = vsel %vm3228, %v3267, 0.0
      %3279 = vset.pattern.permute.xlu0 49
      %3280 = vperm.xlu0 %3279, %v1388
      %v3281 = vpop.permute.xlu0 %3280
      %3282 = vset.pattern.permute.xlu0 49
      %3283 = vperm.xlu0 %3282, %v1389
      %v3284 = vpop.permute.xlu0 %3283
      %3285 = vset.pattern.permute.xlu0 49
      %3286 = vperm.xlu0 %3285, %v1390
      %v3287 = vpop.permute.xlu0 %3286
      %3288 = vset.pattern.permute.xlu0 49
      %3289 = vperm.xlu0 %3288, %v1391
      %v3290 = vpop.permute.xlu0 %3289
      %3291 = vset.pattern.permute.xlu0 49
      %3292 = vperm.xlu0 %3291, %v1392
      %v3293 = vpop.permute.xlu0 %3292
      %3294 = vset.pattern.permute.xlu0 49
      %3295 = vperm.xlu0 %3294, %v1393
      %v3296 = vpop.permute.xlu0 %3295
      %3297 = vset.pattern.permute.xlu0 49
      %3298 = vperm.xlu0 %3297, %v1394
      %v3299 = vpop.permute.xlu0 %3298
      %3300 = vset.pattern.permute.xlu0 49
      %3301 = vperm.xlu0 %3300, %v1395
      %v3302 = vpop.permute.xlu0 %3301
      %3303 = vset.pattern.permute.xlu0 49
      %3304 = vperm.xlu0 %3303, %v1396
      %v3305 = vpop.permute.xlu0 %3304
      %3306 = vset.pattern.permute.xlu0 49
      %3307 = vperm.xlu0 %3306, %v1397
      %v3308 = vpop.permute.xlu0 %3307
      %vm3309 = vcmp.eq.s32.totalorder %v1276, %v3281
      %vm3310 = vcmp.eq.s32.totalorder %v1276, %v3284
      %vm3311 = vcmp.eq.s32.totalorder %v1276, %v3287
      %vm3312 = vcmp.eq.s32.totalorder %v1276, %v3290
      %vm3313 = vcmp.eq.s32.totalorder %v1276, %v3293
      %vm3314 = vcmp.eq.s32.totalorder %v1276, %v3296
      %vm3315 = vcmp.eq.s32.totalorder %v1276, %v3299
      %vm3316 = vcmp.eq.s32.totalorder %v1276, %v3302
      %vm3317 = vcmp.eq.s32.totalorder %v1276, %v3305
      %vm3318 = vcmp.eq.s32.totalorder %v1276, %v3308
      %3319 = vset.pattern.permute.xlu0 49
      %3320 = vperm.xlu0 %3319, %v1256
      %v3321 = vpop.permute.xlu0 %3320
      %3323 = vset.pattern.permute.xlu0 49
      %3324 = vperm.xlu0 %3323, %v1257
      %v3325 = vpop.permute.xlu0 %3324
      %3327 = vset.pattern.permute.xlu0 49
      %3328 = vperm.xlu0 %3327, %v1258
      %v3329 = vpop.permute.xlu0 %3328
      %3331 = vset.pattern.permute.xlu0 49
      %3332 = vperm.xlu0 %3331, %v1259
      %v3333 = vpop.permute.xlu0 %3332
      %3335 = vset.pattern.permute.xlu0 49
      %3336 = vperm.xlu0 %3335, %v1260
      %v3337 = vpop.permute.xlu0 %3336
      %3339 = vset.pattern.permute.xlu0 49
      %3340 = vperm.xlu0 %3339, %v1261
      %v3341 = vpop.permute.xlu0 %3340
      %3343 = vset.pattern.permute.xlu0 49
      %3344 = vperm.xlu0 %3343, %v1262
      %v3345 = vpop.permute.xlu0 %3344
      %3347 = vset.pattern.permute.xlu0 49
      %3348 = vperm.xlu0 %3347, %v1263
      %v3349 = vpop.permute.xlu0 %3348
      %3351 = vset.pattern.permute.xlu0 49
      %3352 = vperm.xlu0 %3351, %v1264
      %v3353 = vpop.permute.xlu0 %3352
      %3355 = vset.pattern.permute.xlu0 49
      %3356 = vperm.xlu0 %3355, %v1265
      %v3357 = vpop.permute.xlu0 %3356
      %v3359 = vsel %vm3309, %v3321, 0.0
      %v3360 = vsel %vm3310, %v3325, 0.0
      %v3361 = vsel %vm3311, %v3329, 0.0
      %v3362 = vsel %vm3312, %v3333, 0.0
      %v3363 = vsel %vm3313, %v3337, 0.0
      %v3364 = vsel %vm3314, %v3341, 0.0
      %v3365 = vsel %vm3315, %v3345, 0.0
      %v3366 = vsel %vm3316, %v3349, 0.0
      %v3367 = vsel %vm3317, %v3353, 0.0
      %v3368 = vsel %vm3318, %v3357, 0.0
      %v3369 = vadd.f32 %v3269, %v3359
      %v3370 = vadd.f32 %v3270, %v3360
      %v3371 = vadd.f32 %v3271, %v3361
      %v3372 = vadd.f32 %v3272, %v3362
      %v3373 = vadd.f32 %v3273, %v3363
      %v3374 = vadd.f32 %v3274, %v3364
      %v3375 = vadd.f32 %v3275, %v3365
      %v3376 = vadd.f32 %v3276, %v3366
      %v3377 = vadd.f32 %v3277, %v3367
      %v3378 = vadd.f32 %v3278, %v3368
      %3379 = vset.pattern.permute.xlu0 48
      %3380 = vperm.xlu0 %3379, %v1266
      %v3381 = vpop.permute.xlu0 %3380
      %3382 = vset.pattern.permute.xlu0 48
      %3383 = vperm.xlu0 %3382, %v1267
      %v3384 = vpop.permute.xlu0 %3383
      %3385 = vset.pattern.permute.xlu0 48
      %3386 = vperm.xlu0 %3385, %v1268
      %v3387 = vpop.permute.xlu0 %3386
      %3388 = vset.pattern.permute.xlu0 48
      %3389 = vperm.xlu0 %3388, %v1269
      %v3390 = vpop.permute.xlu0 %3389
      %3391 = vset.pattern.permute.xlu0 48
      %3392 = vperm.xlu0 %3391, %v1270
      %v3393 = vpop.permute.xlu0 %3392
      %3394 = vset.pattern.permute.xlu0 48
      %3395 = vperm.xlu0 %3394, %v1271
      %v3396 = vpop.permute.xlu0 %3395
      %3397 = vset.pattern.permute.xlu0 48
      %3398 = vperm.xlu0 %3397, %v1272
      %v3399 = vpop.permute.xlu0 %3398
      %3400 = vset.pattern.permute.xlu0 48
      %3401 = vperm.xlu0 %3400, %v1273
      %v3402 = vpop.permute.xlu0 %3401
      %3403 = vset.pattern.permute.xlu0 48
      %3404 = vperm.xlu0 %3403, %v1274
      %v3405 = vpop.permute.xlu0 %3404
      %3406 = vset.pattern.permute.xlu0 48
      %3407 = vperm.xlu0 %3406, %v1275
      %v3408 = vpop.permute.xlu0 %3407
      %vm3409 = vcmp.eq.s32.totalorder %v1277, %v3381
      %vm3410 = vcmp.eq.s32.totalorder %v1277, %v3384
      %vm3411 = vcmp.eq.s32.totalorder %v1277, %v3387
      %vm3412 = vcmp.eq.s32.totalorder %v1277, %v3390
      %vm3413 = vcmp.eq.s32.totalorder %v1277, %v3393
      %vm3414 = vcmp.eq.s32.totalorder %v1277, %v3396
      %vm3415 = vcmp.eq.s32.totalorder %v1277, %v3399
      %vm3416 = vcmp.eq.s32.totalorder %v1277, %v3402
      %vm3417 = vcmp.eq.s32.totalorder %v1277, %v3405
      %vm3418 = vcmp.eq.s32.totalorder %v1277, %v3408
      %3419 = vset.pattern.permute.xlu0 48
      %3420 = vperm.xlu0 %3419, %v1318
      %v3421 = vpop.permute.xlu0 %3420
      %3423 = vset.pattern.permute.xlu0 48
      %3424 = vperm.xlu0 %3423, %v1319
      %v3425 = vpop.permute.xlu0 %3424
      %3427 = vset.pattern.permute.xlu0 48
      %3428 = vperm.xlu0 %3427, %v1320
      %v3429 = vpop.permute.xlu0 %3428
      %3431 = vset.pattern.permute.xlu0 48
      %3432 = vperm.xlu0 %3431, %v1321
      %v3433 = vpop.permute.xlu0 %3432
      %3435 = vset.pattern.permute.xlu0 48
      %3436 = vperm.xlu0 %3435, %v1322
      %v3437 = vpop.permute.xlu0 %3436
      %3439 = vset.pattern.permute.xlu0 48
      %3440 = vperm.xlu0 %3439, %v1323
      %v3441 = vpop.permute.xlu0 %3440
      %3443 = vset.pattern.permute.xlu0 48
      %3444 = vperm.xlu0 %3443, %v1324
      %v3445 = vpop.permute.xlu0 %3444
      %3447 = vset.pattern.permute.xlu0 48
      %3448 = vperm.xlu0 %3447, %v1325
      %v3449 = vpop.permute.xlu0 %3448
      %3451 = vset.pattern.permute.xlu0 48
      %3452 = vperm.xlu0 %3451, %v1326
      %v3453 = vpop.permute.xlu0 %3452
      %3455 = vset.pattern.permute.xlu0 48
      %3456 = vperm.xlu0 %3455, %v1327
      %v3457 = vpop.permute.xlu0 %3456
      %v3459 = vsel %vm3409, %v3421, 0.0
      %v3460 = vsel %vm3410, %v3425, 0.0
      %v3461 = vsel %vm3411, %v3429, 0.0
      %v3462 = vsel %vm3412, %v3433, 0.0
      %v3463 = vsel %vm3413, %v3437, 0.0
      %v3464 = vsel %vm3414, %v3441, 0.0
      %v3465 = vsel %vm3415, %v3445, 0.0
      %v3466 = vsel %vm3416, %v3449, 0.0
      %v3467 = vsel %vm3417, %v3453, 0.0
      %v3468 = vsel %vm3418, %v3457, 0.0
      %3469 = vset.pattern.permute.xlu0 48
      %3470 = vperm.xlu0 %3469, %v1388
      %v3471 = vpop.permute.xlu0 %3470
      %3472 = vset.pattern.permute.xlu0 48
      %3473 = vperm.xlu0 %3472, %v1389
      %v3474 = vpop.permute.xlu0 %3473
      %3475 = vset.pattern.permute.xlu0 48
      %3476 = vperm.xlu0 %3475, %v1390
      %v3477 = vpop.permute.xlu0 %3476
      %3478 = vset.pattern.permute.xlu0 48
      %3479 = vperm.xlu0 %3478, %v1391
      %v3480 = vpop.permute.xlu0 %3479
      %3481 = vset.pattern.permute.xlu0 48
      %3482 = vperm.xlu0 %3481, %v1392
      %v3483 = vpop.permute.xlu0 %3482
      %3484 = vset.pattern.permute.xlu0 48
      %3485 = vperm.xlu0 %3484, %v1393
      %v3486 = vpop.permute.xlu0 %3485
      %3487 = vset.pattern.permute.xlu0 48
      %3488 = vperm.xlu0 %3487, %v1394
      %v3489 = vpop.permute.xlu0 %3488
      %3490 = vset.pattern.permute.xlu0 48
      %3491 = vperm.xlu0 %3490, %v1395
      %v3492 = vpop.permute.xlu0 %3491
      %3493 = vset.pattern.permute.xlu0 48
      %3494 = vperm.xlu0 %3493, %v1396
      %v3495 = vpop.permute.xlu0 %3494
      %3496 = vset.pattern.permute.xlu0 48
      %3497 = vperm.xlu0 %3496, %v1397
      %v3498 = vpop.permute.xlu0 %3497
      %vm3499 = vcmp.eq.s32.totalorder %v1277, %v3471
      %vm3500 = vcmp.eq.s32.totalorder %v1277, %v3474
      %vm3501 = vcmp.eq.s32.totalorder %v1277, %v3477
      %vm3502 = vcmp.eq.s32.totalorder %v1277, %v3480
      %vm3503 = vcmp.eq.s32.totalorder %v1277, %v3483
      %vm3504 = vcmp.eq.s32.totalorder %v1277, %v3486
      %vm3505 = vcmp.eq.s32.totalorder %v1277, %v3489
      %vm3506 = vcmp.eq.s32.totalorder %v1277, %v3492
      %vm3507 = vcmp.eq.s32.totalorder %v1277, %v3495
      %vm3508 = vcmp.eq.s32.totalorder %v1277, %v3498
      %3509 = vset.pattern.permute.xlu0 48
      %3510 = vperm.xlu0 %3509, %v1256
      %v3511 = vpop.permute.xlu0 %3510
      %3513 = vset.pattern.permute.xlu0 48
      %3514 = vperm.xlu0 %3513, %v1257
      %v3515 = vpop.permute.xlu0 %3514
      %3517 = vset.pattern.permute.xlu0 48
      %3518 = vperm.xlu0 %3517, %v1258
      %v3519 = vpop.permute.xlu0 %3518
      %3521 = vset.pattern.permute.xlu0 48
      %3522 = vperm.xlu0 %3521, %v1259
      %v3523 = vpop.permute.xlu0 %3522
      %3525 = vset.pattern.permute.xlu0 48
      %3526 = vperm.xlu0 %3525, %v1260
      %v3527 = vpop.permute.xlu0 %3526
      %3529 = vset.pattern.permute.xlu0 48
      %3530 = vperm.xlu0 %3529, %v1261
      %v3531 = vpop.permute.xlu0 %3530
      %3533 = vset.pattern.permute.xlu0 48
      %3534 = vperm.xlu0 %3533, %v1262
      %v3535 = vpop.permute.xlu0 %3534
      %3537 = vset.pattern.permute.xlu0 48
      %3538 = vperm.xlu0 %3537, %v1263
      %v3539 = vpop.permute.xlu0 %3538
      %3541 = vset.pattern.permute.xlu0 48
      %3542 = vperm.xlu0 %3541, %v1264
      %v3543 = vpop.permute.xlu0 %3542
      %3545 = vset.pattern.permute.xlu0 48
      %3546 = vperm.xlu0 %3545, %v1265
      %v3547 = vpop.permute.xlu0 %3546
      %v3549 = vsel %vm3499, %v3511, 0.0
      %v3550 = vsel %vm3500, %v3515, 0.0
      %v3551 = vsel %vm3501, %v3519, 0.0
      %v3552 = vsel %vm3502, %v3523, 0.0
      %v3553 = vsel %vm3503, %v3527, 0.0
      %v3554 = vsel %vm3504, %v3531, 0.0
      %v3555 = vsel %vm3505, %v3535, 0.0
      %v3556 = vsel %vm3506, %v3539, 0.0
      %v3557 = vsel %vm3507, %v3543, 0.0
      %v3558 = vsel %vm3508, %v3547, 0.0
      %v3559 = vadd.f32 %v3459, %v3549
      %v3560 = vadd.f32 %v3460, %v3550
      %v3561 = vadd.f32 %v3461, %v3551
      %v3562 = vadd.f32 %v3462, %v3552
      %v3563 = vadd.f32 %v3463, %v3553
      %v3564 = vadd.f32 %v3464, %v3554
      %v3565 = vadd.f32 %v3465, %v3555
      %v3566 = vadd.f32 %v3466, %v3556
      %v3567 = vadd.f32 %v3467, %v3557
      %v3568 = vadd.f32 %v3468, %v3558
      %3569 = vset.pattern.permute.xlu0 72
      %3570 = vperm.xlu0 %3569, %v1110
      %v3571 = vpop.permute.xlu0 %3570
      %3573 = vset.pattern.permute.xlu0 72
      %3574 = vperm.xlu0 %3573, %v1125
      %v3575 = vpop.permute.xlu0 %3574
      %3577 = vset.pattern.permute.xlu0 72
      %3578 = vperm.xlu0 %3577, %v1140
      %v3579 = vpop.permute.xlu0 %3578
      %3581 = vset.pattern.permute.xlu0 72
      %3582 = vperm.xlu0 %3581, %v1155
      %v3583 = vpop.permute.xlu0 %3582
      %3585 = vset.pattern.permute.xlu0 72
      %3586 = vperm.xlu0 %3585, %v1170
      %v3587 = vpop.permute.xlu0 %3586
      %3589 = vset.pattern.permute.xlu0 72
      %3590 = vperm.xlu0 %3589, %v1185
      %v3591 = vpop.permute.xlu0 %3590
      %3593 = vset.pattern.permute.xlu0 72
      %3594 = vperm.xlu0 %3593, %v1200
      %v3595 = vpop.permute.xlu0 %3594
      %3597 = vset.pattern.permute.xlu0 72
      %3598 = vperm.xlu0 %3597, %v1215
      %v3599 = vpop.permute.xlu0 %3598
      %3601 = vset.pattern.permute.xlu0 72
      %3602 = vperm.xlu0 %3601, %v1230
      %v3603 = vpop.permute.xlu0 %3602
      %3605 = vset.pattern.permute.xlu0 72
      %3606 = vperm.xlu0 %3605, %v1245
      %v3607 = vpop.permute.xlu0 %3606
      %v3609 = vmul.f32 %v3571, %v3369
      %v3610 = vmul.f32 %v3575, %v3370
      %v3611 = vmul.f32 %v3579, %v3371
      %v3612 = vmul.f32 %v3583, %v3372
      %v3613 = vmul.f32 %v3587, %v3373
      %v3614 = vmul.f32 %v3591, %v3374
      %v3615 = vmul.f32 %v3595, %v3375
      %v3616 = vmul.f32 %v3599, %v3376
      %v3617 = vmul.f32 %v3603, %v3377
      %v3618 = vmul.f32 %v3607, %v3378
      %v3619 = vmul.f32 %v3609, %v3559
      %v3620 = vmul.f32 %v3610, %v3560
      %v3621 = vmul.f32 %v3611, %v3561
      %v3622 = vmul.f32 %v3612, %v3562
      %v3623 = vmul.f32 %v3613, %v3563
      %v3624 = vmul.f32 %v3614, %v3564
      %v3625 = vmul.f32 %v3615, %v3565
      %v3626 = vmul.f32 %v3616, %v3566
      %v3627 = vmul.f32 %v3617, %v3567
      %v3628 = vmul.f32 %v3618, %v3568
      %v3629 = vadd.f32 %v3619, 0.0
      %v3630 = vadd.f32 %v3620, 0.0
      %v3631 = vadd.f32 %v3621, 0.0
      %v3632 = vadd.f32 %v3622, 0.0
      %v3633 = vadd.f32 %v3623, 0.0
      %v3634 = vadd.f32 %v3624, 0.0
      %v3635 = vadd.f32 %v3625, 0.0
      %v3636 = vadd.f32 %v3626, 0.0
      %v3637 = vadd.f32 %v3627, 0.0
      %v3638 = vadd.f32 %v3628, 0.0
      %3639 = vset.pattern.permute.xlu0 51
      %3640 = vperm.xlu0 %3639, %v1266
      %v3641 = vpop.permute.xlu0 %3640
      %3642 = vset.pattern.permute.xlu0 51
      %3643 = vperm.xlu0 %3642, %v1267
      %v3644 = vpop.permute.xlu0 %3643
      %3645 = vset.pattern.permute.xlu0 51
      %3646 = vperm.xlu0 %3645, %v1268
      %v3647 = vpop.permute.xlu0 %3646
      %3648 = vset.pattern.permute.xlu0 51
      %3649 = vperm.xlu0 %3648, %v1269
      %v3650 = vpop.permute.xlu0 %3649
      %3651 = vset.pattern.permute.xlu0 51
      %3652 = vperm.xlu0 %3651, %v1270
      %v3653 = vpop.permute.xlu0 %3652
      %3654 = vset.pattern.permute.xlu0 51
      %3655 = vperm.xlu0 %3654, %v1271
      %v3656 = vpop.permute.xlu0 %3655
      %3657 = vset.pattern.permute.xlu0 51
      %3658 = vperm.xlu0 %3657, %v1272
      %v3659 = vpop.permute.xlu0 %3658
      %3660 = vset.pattern.permute.xlu0 51
      %3661 = vperm.xlu0 %3660, %v1273
      %v3662 = vpop.permute.xlu0 %3661
      %3663 = vset.pattern.permute.xlu0 51
      %3664 = vperm.xlu0 %3663, %v1274
      %v3665 = vpop.permute.xlu0 %3664
      %3666 = vset.pattern.permute.xlu0 51
      %3667 = vperm.xlu0 %3666, %v1275
      %v3668 = vpop.permute.xlu0 %3667
      %vm3669 = vcmp.eq.s32.totalorder %v1276, %v3641
      %vm3670 = vcmp.eq.s32.totalorder %v1276, %v3644
      %vm3671 = vcmp.eq.s32.totalorder %v1276, %v3647
      %vm3672 = vcmp.eq.s32.totalorder %v1276, %v3650
      %vm3673 = vcmp.eq.s32.totalorder %v1276, %v3653
      %vm3674 = vcmp.eq.s32.totalorder %v1276, %v3656
      %vm3675 = vcmp.eq.s32.totalorder %v1276, %v3659
      %vm3676 = vcmp.eq.s32.totalorder %v1276, %v3662
      %vm3677 = vcmp.eq.s32.totalorder %v1276, %v3665
      %vm3678 = vcmp.eq.s32.totalorder %v1276, %v3668
      %3679 = vset.pattern.permute.xlu0 51
      %3680 = vperm.xlu0 %3679, %v1318
      %v3681 = vpop.permute.xlu0 %3680
      %3683 = vset.pattern.permute.xlu0 51
      %3684 = vperm.xlu0 %3683, %v1319
      %v3685 = vpop.permute.xlu0 %3684
      %3687 = vset.pattern.permute.xlu0 51
      %3688 = vperm.xlu0 %3687, %v1320
      %v3689 = vpop.permute.xlu0 %3688
      %3691 = vset.pattern.permute.xlu0 51
      %3692 = vperm.xlu0 %3691, %v1321
      %v3693 = vpop.permute.xlu0 %3692
      %3695 = vset.pattern.permute.xlu0 51
      %3696 = vperm.xlu0 %3695, %v1322
      %v3697 = vpop.permute.xlu0 %3696
      %3699 = vset.pattern.permute.xlu0 51
      %3700 = vperm.xlu0 %3699, %v1323
      %v3701 = vpop.permute.xlu0 %3700
      %3703 = vset.pattern.permute.xlu0 51
      %3704 = vperm.xlu0 %3703, %v1324
      %v3705 = vpop.permute.xlu0 %3704
      %3707 = vset.pattern.permute.xlu0 51
      %3708 = vperm.xlu0 %3707, %v1325
      %v3709 = vpop.permute.xlu0 %3708
      %3711 = vset.pattern.permute.xlu0 51
      %3712 = vperm.xlu0 %3711, %v1326
      %v3713 = vpop.permute.xlu0 %3712
      %3715 = vset.pattern.permute.xlu0 51
      %3716 = vperm.xlu0 %3715, %v1327
      %v3717 = vpop.permute.xlu0 %3716
      %v3719 = vsel %vm3669, %v3681, 0.0
      %v3720 = vsel %vm3670, %v3685, 0.0
      %v3721 = vsel %vm3671, %v3689, 0.0
      %v3722 = vsel %vm3672, %v3693, 0.0
      %v3723 = vsel %vm3673, %v3697, 0.0
      %v3724 = vsel %vm3674, %v3701, 0.0
      %v3725 = vsel %vm3675, %v3705, 0.0
      %v3726 = vsel %vm3676, %v3709, 0.0
      %v3727 = vsel %vm3677, %v3713, 0.0
      %v3728 = vsel %vm3678, %v3717, 0.0
      %3729 = vset.pattern.permute.xlu0 51
      %3730 = vperm.xlu0 %3729, %v1388
      %v3731 = vpop.permute.xlu0 %3730
      %3732 = vset.pattern.permute.xlu0 51
      %3733 = vperm.xlu0 %3732, %v1389
      %v3734 = vpop.permute.xlu0 %3733
      %3735 = vset.pattern.permute.xlu0 51
      %3736 = vperm.xlu0 %3735, %v1390
      %v3737 = vpop.permute.xlu0 %3736
      %3738 = vset.pattern.permute.xlu0 51
      %3739 = vperm.xlu0 %3738, %v1391
      %v3740 = vpop.permute.xlu0 %3739
      %3741 = vset.pattern.permute.xlu0 51
      %3742 = vperm.xlu0 %3741, %v1392
      %v3743 = vpop.permute.xlu0 %3742
      %3744 = vset.pattern.permute.xlu0 51
      %3745 = vperm.xlu0 %3744, %v1393
      %v3746 = vpop.permute.xlu0 %3745
      %3747 = vset.pattern.permute.xlu0 51
      %3748 = vperm.xlu0 %3747, %v1394
      %v3749 = vpop.permute.xlu0 %3748
      %3750 = vset.pattern.permute.xlu0 51
      %3751 = vperm.xlu0 %3750, %v1395
      %v3752 = vpop.permute.xlu0 %3751
      %3753 = vset.pattern.permute.xlu0 51
      %3754 = vperm.xlu0 %3753, %v1396
      %v3755 = vpop.permute.xlu0 %3754
      %3756 = vset.pattern.permute.xlu0 51
      %3757 = vperm.xlu0 %3756, %v1397
      %v3758 = vpop.permute.xlu0 %3757
      %vm3759 = vcmp.eq.s32.totalorder %v1276, %v3731
      %vm3760 = vcmp.eq.s32.totalorder %v1276, %v3734
      %vm3761 = vcmp.eq.s32.totalorder %v1276, %v3737
      %vm3762 = vcmp.eq.s32.totalorder %v1276, %v3740
      %vm3763 = vcmp.eq.s32.totalorder %v1276, %v3743
      %vm3764 = vcmp.eq.s32.totalorder %v1276, %v3746
      %vm3765 = vcmp.eq.s32.totalorder %v1276, %v3749
      %vm3766 = vcmp.eq.s32.totalorder %v1276, %v3752
      %vm3767 = vcmp.eq.s32.totalorder %v1276, %v3755
      %vm3768 = vcmp.eq.s32.totalorder %v1276, %v3758
      %3769 = vset.pattern.permute.xlu0 51
      %3770 = vperm.xlu0 %3769, %v1256
      %v3771 = vpop.permute.xlu0 %3770
      %3773 = vset.pattern.permute.xlu0 51
      %3774 = vperm.xlu0 %3773, %v1257
      %v3775 = vpop.permute.xlu0 %3774
      %3777 = vset.pattern.permute.xlu0 51
      %3778 = vperm.xlu0 %3777, %v1258
      %v3779 = vpop.permute.xlu0 %3778
      %3781 = vset.pattern.permute.xlu0 51
      %3782 = vperm.xlu0 %3781, %v1259
      %v3783 = vpop.permute.xlu0 %3782
      %3785 = vset.pattern.permute.xlu0 51
      %3786 = vperm.xlu0 %3785, %v1260
      %v3787 = vpop.permute.xlu0 %3786
      %3789 = vset.pattern.permute.xlu0 51
      %3790 = vperm.xlu0 %3789, %v1261
      %v3791 = vpop.permute.xlu0 %3790
      %3793 = vset.pattern.permute.xlu0 51
      %3794 = vperm.xlu0 %3793, %v1262
      %v3795 = vpop.permute.xlu0 %3794
      %3797 = vset.pattern.permute.xlu0 51
      %3798 = vperm.xlu0 %3797, %v1263
      %v3799 = vpop.permute.xlu0 %3798
      %3801 = vset.pattern.permute.xlu0 51
      %3802 = vperm.xlu0 %3801, %v1264
      %v3803 = vpop.permute.xlu0 %3802
      %3805 = vset.pattern.permute.xlu0 51
      %3806 = vperm.xlu0 %3805, %v1265
      %v3807 = vpop.permute.xlu0 %3806
      %v3809 = vsel %vm3759, %v3771, 0.0
      %v3810 = vsel %vm3760, %v3775, 0.0
      %v3811 = vsel %vm3761, %v3779, 0.0
      %v3812 = vsel %vm3762, %v3783, 0.0
      %v3813 = vsel %vm3763, %v3787, 0.0
      %v3814 = vsel %vm3764, %v3791, 0.0
      %v3815 = vsel %vm3765, %v3795, 0.0
      %v3816 = vsel %vm3766, %v3799, 0.0
      %v3817 = vsel %vm3767, %v3803, 0.0
      %v3818 = vsel %vm3768, %v3807, 0.0
      %v3819 = vadd.f32 %v3719, %v3809
      %v3820 = vadd.f32 %v3720, %v3810
      %v3821 = vadd.f32 %v3721, %v3811
      %v3822 = vadd.f32 %v3722, %v3812
      %v3823 = vadd.f32 %v3723, %v3813
      %v3824 = vadd.f32 %v3724, %v3814
      %v3825 = vadd.f32 %v3725, %v3815
      %v3826 = vadd.f32 %v3726, %v3816
      %v3827 = vadd.f32 %v3727, %v3817
      %v3828 = vadd.f32 %v3728, %v3818
      %3829 = vset.pattern.permute.xlu0 50
      %3830 = vperm.xlu0 %3829, %v1266
      %v3831 = vpop.permute.xlu0 %3830
      %3832 = vset.pattern.permute.xlu0 50
      %3833 = vperm.xlu0 %3832, %v1267
      %v3834 = vpop.permute.xlu0 %3833
      %3835 = vset.pattern.permute.xlu0 50
      %3836 = vperm.xlu0 %3835, %v1268
      %v3837 = vpop.permute.xlu0 %3836
      %3838 = vset.pattern.permute.xlu0 50
      %3839 = vperm.xlu0 %3838, %v1269
      %v3840 = vpop.permute.xlu0 %3839
      %3841 = vset.pattern.permute.xlu0 50
      %3842 = vperm.xlu0 %3841, %v1270
      %v3843 = vpop.permute.xlu0 %3842
      %3844 = vset.pattern.permute.xlu0 50
      %3845 = vperm.xlu0 %3844, %v1271
      %v3846 = vpop.permute.xlu0 %3845
      %3847 = vset.pattern.permute.xlu0 50
      %3848 = vperm.xlu0 %3847, %v1272
      %v3849 = vpop.permute.xlu0 %3848
      %3850 = vset.pattern.permute.xlu0 50
      %3851 = vperm.xlu0 %3850, %v1273
      %v3852 = vpop.permute.xlu0 %3851
      %3853 = vset.pattern.permute.xlu0 50
      %3854 = vperm.xlu0 %3853, %v1274
      %v3855 = vpop.permute.xlu0 %3854
      %3856 = vset.pattern.permute.xlu0 50
      %3857 = vperm.xlu0 %3856, %v1275
      %v3858 = vpop.permute.xlu0 %3857
      %vm3859 = vcmp.eq.s32.totalorder %v1277, %v3831
      %vm3860 = vcmp.eq.s32.totalorder %v1277, %v3834
      %vm3861 = vcmp.eq.s32.totalorder %v1277, %v3837
      %vm3862 = vcmp.eq.s32.totalorder %v1277, %v3840
      %vm3863 = vcmp.eq.s32.totalorder %v1277, %v3843
      %vm3864 = vcmp.eq.s32.totalorder %v1277, %v3846
      %vm3865 = vcmp.eq.s32.totalorder %v1277, %v3849
      %vm3866 = vcmp.eq.s32.totalorder %v1277, %v3852
      %vm3867 = vcmp.eq.s32.totalorder %v1277, %v3855
      %vm3868 = vcmp.eq.s32.totalorder %v1277, %v3858
      %3869 = vset.pattern.permute.xlu0 50
      %3870 = vperm.xlu0 %3869, %v1318
      %v3871 = vpop.permute.xlu0 %3870
      %3873 = vset.pattern.permute.xlu0 50
      %3874 = vperm.xlu0 %3873, %v1319
      %v3875 = vpop.permute.xlu0 %3874
      %3877 = vset.pattern.permute.xlu0 50
      %3878 = vperm.xlu0 %3877, %v1320
      %v3879 = vpop.permute.xlu0 %3878
      %3881 = vset.pattern.permute.xlu0 50
      %3882 = vperm.xlu0 %3881, %v1321
      %v3883 = vpop.permute.xlu0 %3882
      %3885 = vset.pattern.permute.xlu0 50
      %3886 = vperm.xlu0 %3885, %v1322
      %v3887 = vpop.permute.xlu0 %3886
      %3889 = vset.pattern.permute.xlu0 50
      %3890 = vperm.xlu0 %3889, %v1323
      %v3891 = vpop.permute.xlu0 %3890
      %3893 = vset.pattern.permute.xlu0 50
      %3894 = vperm.xlu0 %3893, %v1324
      %v3895 = vpop.permute.xlu0 %3894
      %3897 = vset.pattern.permute.xlu0 50
      %3898 = vperm.xlu0 %3897, %v1325
      %v3899 = vpop.permute.xlu0 %3898
      %3901 = vset.pattern.permute.xlu0 50
      %3902 = vperm.xlu0 %3901, %v1326
      %v3903 = vpop.permute.xlu0 %3902
      %3905 = vset.pattern.permute.xlu0 50
      %3906 = vperm.xlu0 %3905, %v1327
      %v3907 = vpop.permute.xlu0 %3906
      %v3909 = vsel %vm3859, %v3871, 0.0
      %v3910 = vsel %vm3860, %v3875, 0.0
      %v3911 = vsel %vm3861, %v3879, 0.0
      %v3912 = vsel %vm3862, %v3883, 0.0
      %v3913 = vsel %vm3863, %v3887, 0.0
      %v3914 = vsel %vm3864, %v3891, 0.0
      %v3915 = vsel %vm3865, %v3895, 0.0
      %v3916 = vsel %vm3866, %v3899, 0.0
      %v3917 = vsel %vm3867, %v3903, 0.0
      %v3918 = vsel %vm3868, %v3907, 0.0
      %3919 = vset.pattern.permute.xlu0 50
      %3920 = vperm.xlu0 %3919, %v1388
      %v3921 = vpop.permute.xlu0 %3920
      %3922 = vset.pattern.permute.xlu0 50
      %3923 = vperm.xlu0 %3922, %v1389
      %v3924 = vpop.permute.xlu0 %3923
      %3925 = vset.pattern.permute.xlu0 50
      %3926 = vperm.xlu0 %3925, %v1390
      %v3927 = vpop.permute.xlu0 %3926
      %3928 = vset.pattern.permute.xlu0 50
      %3929 = vperm.xlu0 %3928, %v1391
      %v3930 = vpop.permute.xlu0 %3929
      %3931 = vset.pattern.permute.xlu0 50
      %3932 = vperm.xlu0 %3931, %v1392
      %v3933 = vpop.permute.xlu0 %3932
      %3934 = vset.pattern.permute.xlu0 50
      %3935 = vperm.xlu0 %3934, %v1393
      %v3936 = vpop.permute.xlu0 %3935
      %3937 = vset.pattern.permute.xlu0 50
      %3938 = vperm.xlu0 %3937, %v1394
      %v3939 = vpop.permute.xlu0 %3938
      %3940 = vset.pattern.permute.xlu0 50
      %3941 = vperm.xlu0 %3940, %v1395
      %v3942 = vpop.permute.xlu0 %3941
      %3943 = vset.pattern.permute.xlu0 50
      %3944 = vperm.xlu0 %3943, %v1396
      %v3945 = vpop.permute.xlu0 %3944
      %3946 = vset.pattern.permute.xlu0 50
      %3947 = vperm.xlu0 %3946, %v1397
      %v3948 = vpop.permute.xlu0 %3947
      %vm3949 = vcmp.eq.s32.totalorder %v1277, %v3921
      %vm3950 = vcmp.eq.s32.totalorder %v1277, %v3924
      %vm3951 = vcmp.eq.s32.totalorder %v1277, %v3927
      %vm3952 = vcmp.eq.s32.totalorder %v1277, %v3930
      %vm3953 = vcmp.eq.s32.totalorder %v1277, %v3933
      %vm3954 = vcmp.eq.s32.totalorder %v1277, %v3936
      %vm3955 = vcmp.eq.s32.totalorder %v1277, %v3939
      %vm3956 = vcmp.eq.s32.totalorder %v1277, %v3942
      %vm3957 = vcmp.eq.s32.totalorder %v1277, %v3945
      %vm3958 = vcmp.eq.s32.totalorder %v1277, %v3948
      %3959 = vset.pattern.permute.xlu0 50
      %3960 = vperm.xlu0 %3959, %v1256
      %v3961 = vpop.permute.xlu0 %3960
      %3963 = vset.pattern.permute.xlu0 50
      %3964 = vperm.xlu0 %3963, %v1257
      %v3965 = vpop.permute.xlu0 %3964
      %3967 = vset.pattern.permute.xlu0 50
      %3968 = vperm.xlu0 %3967, %v1258
      %v3969 = vpop.permute.xlu0 %3968
      %3971 = vset.pattern.permute.xlu0 50
      %3972 = vperm.xlu0 %3971, %v1259
      %v3973 = vpop.permute.xlu0 %3972
      %3975 = vset.pattern.permute.xlu0 50
      %3976 = vperm.xlu0 %3975, %v1260
      %v3977 = vpop.permute.xlu0 %3976
      %3979 = vset.pattern.permute.xlu0 50
      %3980 = vperm.xlu0 %3979, %v1261
      %v3981 = vpop.permute.xlu0 %3980
      %3983 = vset.pattern.permute.xlu0 50
      %3984 = vperm.xlu0 %3983, %v1262
      %v3985 = vpop.permute.xlu0 %3984
      %3987 = vset.pattern.permute.xlu0 50
      %3988 = vperm.xlu0 %3987, %v1263
      %v3989 = vpop.permute.xlu0 %3988
      %3991 = vset.pattern.permute.xlu0 50
      %3992 = vperm.xlu0 %3991, %v1264
      %v3993 = vpop.permute.xlu0 %3992
      %3995 = vset.pattern.permute.xlu0 50
      %3996 = vperm.xlu0 %3995, %v1265
      %v3997 = vpop.permute.xlu0 %3996
      %v3999 = vsel %vm3949, %v3961, 0.0
      %v4000 = vsel %vm3950, %v3965, 0.0
      %v4001 = vsel %vm3951, %v3969, 0.0
      %v4002 = vsel %vm3952, %v3973, 0.0
      %v4003 = vsel %vm3953, %v3977, 0.0
      %v4004 = vsel %vm3954, %v3981, 0.0
      %v4005 = vsel %vm3955, %v3985, 0.0
      %v4006 = vsel %vm3956, %v3989, 0.0
      %v4007 = vsel %vm3957, %v3993, 0.0
      %v4008 = vsel %vm3958, %v3997, 0.0
      %v4009 = vadd.f32 %v3909, %v3999
      %v4010 = vadd.f32 %v3910, %v4000
      %v4011 = vadd.f32 %v3911, %v4001
      %v4012 = vadd.f32 %v3912, %v4002
      %v4013 = vadd.f32 %v3913, %v4003
      %v4014 = vadd.f32 %v3914, %v4004
      %v4015 = vadd.f32 %v3915, %v4005
      %v4016 = vadd.f32 %v3916, %v4006
      %v4017 = vadd.f32 %v3917, %v4007
      %v4018 = vadd.f32 %v3918, %v4008
      %4019 = vset.pattern.permute.xlu0 73
      %4020 = vperm.xlu0 %4019, %v1110
      %v4021 = vpop.permute.xlu0 %4020
      %4023 = vset.pattern.permute.xlu0 73
      %4024 = vperm.xlu0 %4023, %v1125
      %v4025 = vpop.permute.xlu0 %4024
      %4027 = vset.pattern.permute.xlu0 73
      %4028 = vperm.xlu0 %4027, %v1140
      %v4029 = vpop.permute.xlu0 %4028
      %4031 = vset.pattern.permute.xlu0 73
      %4032 = vperm.xlu0 %4031, %v1155
      %v4033 = vpop.permute.xlu0 %4032
      %4035 = vset.pattern.permute.xlu0 73
      %4036 = vperm.xlu0 %4035, %v1170
      %v4037 = vpop.permute.xlu0 %4036
      %4039 = vset.pattern.permute.xlu0 73
      %4040 = vperm.xlu0 %4039, %v1185
      %v4041 = vpop.permute.xlu0 %4040
      %4043 = vset.pattern.permute.xlu0 73
      %4044 = vperm.xlu0 %4043, %v1200
      %v4045 = vpop.permute.xlu0 %4044
      %4047 = vset.pattern.permute.xlu0 73
      %4048 = vperm.xlu0 %4047, %v1215
      %v4049 = vpop.permute.xlu0 %4048
      %4051 = vset.pattern.permute.xlu0 73
      %4052 = vperm.xlu0 %4051, %v1230
      %v4053 = vpop.permute.xlu0 %4052
      %4055 = vset.pattern.permute.xlu0 73
      %4056 = vperm.xlu0 %4055, %v1245
      %v4057 = vpop.permute.xlu0 %4056
      %v4059 = vmul.f32 %v4021, %v3819
      %v4060 = vmul.f32 %v4025, %v3820
      %v4061 = vmul.f32 %v4029, %v3821
      %v4062 = vmul.f32 %v4033, %v3822
      %v4063 = vmul.f32 %v4037, %v3823
      %v4064 = vmul.f32 %v4041, %v3824
      %v4065 = vmul.f32 %v4045, %v3825
      %v4066 = vmul.f32 %v4049, %v3826
      %v4067 = vmul.f32 %v4053, %v3827
      %v4068 = vmul.f32 %v4057, %v3828
      %v4069 = vmul.f32 %v4059, %v4009
      %v4070 = vmul.f32 %v4060, %v4010
      %v4071 = vmul.f32 %v4061, %v4011
      %v4072 = vmul.f32 %v4062, %v4012
      %v4073 = vmul.f32 %v4063, %v4013
      %v4074 = vmul.f32 %v4064, %v4014
      %v4075 = vmul.f32 %v4065, %v4015
      %v4076 = vmul.f32 %v4066, %v4016
      %v4077 = vmul.f32 %v4067, %v4017
      %v4078 = vmul.f32 %v4068, %v4018
      %v4079 = vadd.f32 %v3629, %v4069
      %v4080 = vadd.f32 %v3630, %v4070
      %v4081 = vadd.f32 %v3631, %v4071
      %v4082 = vadd.f32 %v3632, %v4072
      %v4083 = vadd.f32 %v3633, %v4073
      %v4084 = vadd.f32 %v3634, %v4074
      %v4085 = vadd.f32 %v3635, %v4075
      %v4086 = vadd.f32 %v3636, %v4076
      %v4087 = vadd.f32 %v3637, %v4077
      %v4088 = vadd.f32 %v3638, %v4078
      %4089 = vst.msk [vmem:[#allocation2 + $0x8] sm:$0xff] %vm665, %v4079
      %4090 = vst.msk [vmem:[#allocation2 + $0x18] sm:$0xff] %vm665, %v4080
      %4091 = vst.msk [vmem:[#allocation2 + $0x28] sm:$0xff] %vm665, %v4081
      %4092 = vst.msk [vmem:[#allocation2 + $0x38] sm:$0xff] %vm665, %v4082
      %4093 = vst.msk [vmem:[#allocation2 + $0x48] sm:$0xff] %vm665, %v4083
      %4094 = vst.msk [vmem:[#allocation2 + $0x58] sm:$0xff] %vm665, %v4084
      %4095 = vst.msk [vmem:[#allocation2 + $0x68] sm:$0xff] %vm665, %v4085
      %4096 = vst.msk [vmem:[#allocation2 + $0x78] sm:$0xff] %vm665, %v4086
      %4097 = vst.msk [vmem:[#allocation2 + $0x88] sm:$0xff] %vm665, %v4087
      %4098 = vst.msk [vmem:[#allocation2 + $0x98] sm:$0xff] %vm665, %v4088
      %4099 = vset.pattern.permute.xlu0 57
      %4100 = vperm.xlu0 %4099, %v1266
      %v4101 = vpop.permute.xlu0 %4100
      %4102 = vset.pattern.permute.xlu0 57
      %4103 = vperm.xlu0 %4102, %v1267
      %v4104 = vpop.permute.xlu0 %4103
      %4105 = vset.pattern.permute.xlu0 57
      %4106 = vperm.xlu0 %4105, %v1268
      %v4107 = vpop.permute.xlu0 %4106
      %4108 = vset.pattern.permute.xlu0 57
      %4109 = vperm.xlu0 %4108, %v1269
      %v4110 = vpop.permute.xlu0 %4109
      %4111 = vset.pattern.permute.xlu0 57
      %4112 = vperm.xlu0 %4111, %v1270
      %v4113 = vpop.permute.xlu0 %4112
      %4114 = vset.pattern.permute.xlu0 57
      %4115 = vperm.xlu0 %4114, %v1271
      %v4116 = vpop.permute.xlu0 %4115
      %4117 = vset.pattern.permute.xlu0 57
      %4118 = vperm.xlu0 %4117, %v1272
      %v4119 = vpop.permute.xlu0 %4118
      %4120 = vset.pattern.permute.xlu0 57
      %4121 = vperm.xlu0 %4120, %v1273
      %v4122 = vpop.permute.xlu0 %4121
      %4123 = vset.pattern.permute.xlu0 57
      %4124 = vperm.xlu0 %4123, %v1274
      %v4125 = vpop.permute.xlu0 %4124
      %4126 = vset.pattern.permute.xlu0 57
      %4127 = vperm.xlu0 %4126, %v1275
      %v4128 = vpop.permute.xlu0 %4127
      %vm4129 = vcmp.eq.s32.totalorder %v1276, %v4101
      %vm4130 = vcmp.eq.s32.totalorder %v1276, %v4104
      %vm4131 = vcmp.eq.s32.totalorder %v1276, %v4107
      %vm4132 = vcmp.eq.s32.totalorder %v1276, %v4110
      %vm4133 = vcmp.eq.s32.totalorder %v1276, %v4113
      %vm4134 = vcmp.eq.s32.totalorder %v1276, %v4116
      %vm4135 = vcmp.eq.s32.totalorder %v1276, %v4119
      %vm4136 = vcmp.eq.s32.totalorder %v1276, %v4122
      %vm4137 = vcmp.eq.s32.totalorder %v1276, %v4125
      %vm4138 = vcmp.eq.s32.totalorder %v1276, %v4128
      %4139 = vset.pattern.permute.xlu0 57
      %4140 = vperm.xlu0 %4139, %v1318
      %v4141 = vpop.permute.xlu0 %4140
      %4143 = vset.pattern.permute.xlu0 57
      %4144 = vperm.xlu0 %4143, %v1319
      %v4145 = vpop.permute.xlu0 %4144
      %4147 = vset.pattern.permute.xlu0 57
      %4148 = vperm.xlu0 %4147, %v1320
      %v4149 = vpop.permute.xlu0 %4148
      %4151 = vset.pattern.permute.xlu0 57
      %4152 = vperm.xlu0 %4151, %v1321
      %v4153 = vpop.permute.xlu0 %4152
      %4155 = vset.pattern.permute.xlu0 57
      %4156 = vperm.xlu0 %4155, %v1322
      %v4157 = vpop.permute.xlu0 %4156
      %4159 = vset.pattern.permute.xlu0 57
      %4160 = vperm.xlu0 %4159, %v1323
      %v4161 = vpop.permute.xlu0 %4160
      %4163 = vset.pattern.permute.xlu0 57
      %4164 = vperm.xlu0 %4163, %v1324
      %v4165 = vpop.permute.xlu0 %4164
      %4167 = vset.pattern.permute.xlu0 57
      %4168 = vperm.xlu0 %4167, %v1325
      %v4169 = vpop.permute.xlu0 %4168
      %4171 = vset.pattern.permute.xlu0 57
      %4172 = vperm.xlu0 %4171, %v1326
      %v4173 = vpop.permute.xlu0 %4172
      %4175 = vset.pattern.permute.xlu0 57
      %4176 = vperm.xlu0 %4175, %v1327
      %v4177 = vpop.permute.xlu0 %4176
      %v4179 = vsel %vm4129, %v4141, 0.0
      %v4180 = vsel %vm4130, %v4145, 0.0
      %v4181 = vsel %vm4131, %v4149, 0.0
      %v4182 = vsel %vm4132, %v4153, 0.0
      %v4183 = vsel %vm4133, %v4157, 0.0
      %v4184 = vsel %vm4134, %v4161, 0.0
      %v4185 = vsel %vm4135, %v4165, 0.0
      %v4186 = vsel %vm4136, %v4169, 0.0
      %v4187 = vsel %vm4137, %v4173, 0.0
      %v4188 = vsel %vm4138, %v4177, 0.0
      %4189 = vset.pattern.permute.xlu0 57
      %4190 = vperm.xlu0 %4189, %v1388
      %v4191 = vpop.permute.xlu0 %4190
      %4192 = vset.pattern.permute.xlu0 57
      %4193 = vperm.xlu0 %4192, %v1389
      %v4194 = vpop.permute.xlu0 %4193
      %4195 = vset.pattern.permute.xlu0 57
      %4196 = vperm.xlu0 %4195, %v1390
      %v4197 = vpop.permute.xlu0 %4196
      %4198 = vset.pattern.permute.xlu0 57
      %4199 = vperm.xlu0 %4198, %v1391
      %v4200 = vpop.permute.xlu0 %4199
      %4201 = vset.pattern.permute.xlu0 57
      %4202 = vperm.xlu0 %4201, %v1392
      %v4203 = vpop.permute.xlu0 %4202
      %4204 = vset.pattern.permute.xlu0 57
      %4205 = vperm.xlu0 %4204, %v1393
      %v4206 = vpop.permute.xlu0 %4205
      %4207 = vset.pattern.permute.xlu0 57
      %4208 = vperm.xlu0 %4207, %v1394
      %v4209 = vpop.permute.xlu0 %4208
      %4210 = vset.pattern.permute.xlu0 57
      %4211 = vperm.xlu0 %4210, %v1395
      %v4212 = vpop.permute.xlu0 %4211
      %4213 = vset.pattern.permute.xlu0 57
      %4214 = vperm.xlu0 %4213, %v1396
      %v4215 = vpop.permute.xlu0 %4214
      %4216 = vset.pattern.permute.xlu0 57
      %4217 = vperm.xlu0 %4216, %v1397
      %v4218 = vpop.permute.xlu0 %4217
      %vm4219 = vcmp.eq.s32.totalorder %v1276, %v4191
      %vm4220 = vcmp.eq.s32.totalorder %v1276, %v4194
      %vm4221 = vcmp.eq.s32.totalorder %v1276, %v4197
      %vm4222 = vcmp.eq.s32.totalorder %v1276, %v4200
      %vm4223 = vcmp.eq.s32.totalorder %v1276, %v4203
      %vm4224 = vcmp.eq.s32.totalorder %v1276, %v4206
      %vm4225 = vcmp.eq.s32.totalorder %v1276, %v4209
      %vm4226 = vcmp.eq.s32.totalorder %v1276, %v4212
      %vm4227 = vcmp.eq.s32.totalorder %v1276, %v4215
      %vm4228 = vcmp.eq.s32.totalorder %v1276, %v4218
      %4229 = vset.pattern.permute.xlu0 57
      %4230 = vperm.xlu0 %4229, %v1256
      %v4231 = vpop.permute.xlu0 %4230
      %4233 = vset.pattern.permute.xlu0 57
      %4234 = vperm.xlu0 %4233, %v1257
      %v4235 = vpop.permute.xlu0 %4234
      %4237 = vset.pattern.permute.xlu0 57
      %4238 = vperm.xlu0 %4237, %v1258
      %v4239 = vpop.permute.xlu0 %4238
      %4241 = vset.pattern.permute.xlu0 57
      %4242 = vperm.xlu0 %4241, %v1259
      %v4243 = vpop.permute.xlu0 %4242
      %4245 = vset.pattern.permute.xlu0 57
      %4246 = vperm.xlu0 %4245, %v1260
      %v4247 = vpop.permute.xlu0 %4246
      %4249 = vset.pattern.permute.xlu0 57
      %4250 = vperm.xlu0 %4249, %v1261
      %v4251 = vpop.permute.xlu0 %4250
      %4253 = vset.pattern.permute.xlu0 57
      %4254 = vperm.xlu0 %4253, %v1262
      %v4255 = vpop.permute.xlu0 %4254
      %4257 = vset.pattern.permute.xlu0 57
      %4258 = vperm.xlu0 %4257, %v1263
      %v4259 = vpop.permute.xlu0 %4258
      %4261 = vset.pattern.permute.xlu0 57
      %4262 = vperm.xlu0 %4261, %v1264
      %v4263 = vpop.permute.xlu0 %4262
      %4265 = vset.pattern.permute.xlu0 57
      %4266 = vperm.xlu0 %4265, %v1265
      %v4267 = vpop.permute.xlu0 %4266
      %v4269 = vsel %vm4219, %v4231, 0.0
      %v4270 = vsel %vm4220, %v4235, 0.0
      %v4271 = vsel %vm4221, %v4239, 0.0
      %v4272 = vsel %vm4222, %v4243, 0.0
      %v4273 = vsel %vm4223, %v4247, 0.0
      %v4274 = vsel %vm4224, %v4251, 0.0
      %v4275 = vsel %vm4225, %v4255, 0.0
      %v4276 = vsel %vm4226, %v4259, 0.0
      %v4277 = vsel %vm4227, %v4263, 0.0
      %v4278 = vsel %vm4228, %v4267, 0.0
      %v4279 = vadd.f32 %v4179, %v4269
      %v4280 = vadd.f32 %v4180, %v4270
      %v4281 = vadd.f32 %v4181, %v4271
      %v4282 = vadd.f32 %v4182, %v4272
      %v4283 = vadd.f32 %v4183, %v4273
      %v4284 = vadd.f32 %v4184, %v4274
      %v4285 = vadd.f32 %v4185, %v4275
      %v4286 = vadd.f32 %v4186, %v4276
      %v4287 = vadd.f32 %v4187, %v4277
      %v4288 = vadd.f32 %v4188, %v4278
      %4289 = vset.pattern.permute.xlu0 56
      %4290 = vperm.xlu0 %4289, %v1266
      %v4291 = vpop.permute.xlu0 %4290
      %4292 = vset.pattern.permute.xlu0 56
      %4293 = vperm.xlu0 %4292, %v1267
      %v4294 = vpop.permute.xlu0 %4293
      %4295 = vset.pattern.permute.xlu0 56
      %4296 = vperm.xlu0 %4295, %v1268
      %v4297 = vpop.permute.xlu0 %4296
      %4298 = vset.pattern.permute.xlu0 56
      %4299 = vperm.xlu0 %4298, %v1269
      %v4300 = vpop.permute.xlu0 %4299
      %4301 = vset.pattern.permute.xlu0 56
      %4302 = vperm.xlu0 %4301, %v1270
      %v4303 = vpop.permute.xlu0 %4302
      %4304 = vset.pattern.permute.xlu0 56
      %4305 = vperm.xlu0 %4304, %v1271
      %v4306 = vpop.permute.xlu0 %4305
      %4307 = vset.pattern.permute.xlu0 56
      %4308 = vperm.xlu0 %4307, %v1272
      %v4309 = vpop.permute.xlu0 %4308
      %4310 = vset.pattern.permute.xlu0 56
      %4311 = vperm.xlu0 %4310, %v1273
      %v4312 = vpop.permute.xlu0 %4311
      %4313 = vset.pattern.permute.xlu0 56
      %4314 = vperm.xlu0 %4313, %v1274
      %v4315 = vpop.permute.xlu0 %4314
      %4316 = vset.pattern.permute.xlu0 56
      %4317 = vperm.xlu0 %4316, %v1275
      %v4318 = vpop.permute.xlu0 %4317
      %vm4319 = vcmp.eq.s32.totalorder %v1277, %v4291
      %vm4320 = vcmp.eq.s32.totalorder %v1277, %v4294
      %vm4321 = vcmp.eq.s32.totalorder %v1277, %v4297
      %vm4322 = vcmp.eq.s32.totalorder %v1277, %v4300
      %vm4323 = vcmp.eq.s32.totalorder %v1277, %v4303
      %vm4324 = vcmp.eq.s32.totalorder %v1277, %v4306
      %vm4325 = vcmp.eq.s32.totalorder %v1277, %v4309
      %vm4326 = vcmp.eq.s32.totalorder %v1277, %v4312
      %vm4327 = vcmp.eq.s32.totalorder %v1277, %v4315
      %vm4328 = vcmp.eq.s32.totalorder %v1277, %v4318
      %4329 = vset.pattern.permute.xlu0 56
      %4330 = vperm.xlu0 %4329, %v1318
      %v4331 = vpop.permute.xlu0 %4330
      %4333 = vset.pattern.permute.xlu0 56
      %4334 = vperm.xlu0 %4333, %v1319
      %v4335 = vpop.permute.xlu0 %4334
      %4337 = vset.pattern.permute.xlu0 56
      %4338 = vperm.xlu0 %4337, %v1320
      %v4339 = vpop.permute.xlu0 %4338
      %4341 = vset.pattern.permute.xlu0 56
      %4342 = vperm.xlu0 %4341, %v1321
      %v4343 = vpop.permute.xlu0 %4342
      %4345 = vset.pattern.permute.xlu0 56
      %4346 = vperm.xlu0 %4345, %v1322
      %v4347 = vpop.permute.xlu0 %4346
      %4349 = vset.pattern.permute.xlu0 56
      %4350 = vperm.xlu0 %4349, %v1323
      %v4351 = vpop.permute.xlu0 %4350
      %4353 = vset.pattern.permute.xlu0 56
      %4354 = vperm.xlu0 %4353, %v1324
      %v4355 = vpop.permute.xlu0 %4354
      %4357 = vset.pattern.permute.xlu0 56
      %4358 = vperm.xlu0 %4357, %v1325
      %v4359 = vpop.permute.xlu0 %4358
      %4361 = vset.pattern.permute.xlu0 56
      %4362 = vperm.xlu0 %4361, %v1326
      %v4363 = vpop.permute.xlu0 %4362
      %4365 = vset.pattern.permute.xlu0 56
      %4366 = vperm.xlu0 %4365, %v1327
      %v4367 = vpop.permute.xlu0 %4366
      %v4369 = vsel %vm4319, %v4331, 0.0
      %v4370 = vsel %vm4320, %v4335, 0.0
      %v4371 = vsel %vm4321, %v4339, 0.0
      %v4372 = vsel %vm4322, %v4343, 0.0
      %v4373 = vsel %vm4323, %v4347, 0.0
      %v4374 = vsel %vm4324, %v4351, 0.0
      %v4375 = vsel %vm4325, %v4355, 0.0
      %v4376 = vsel %vm4326, %v4359, 0.0
      %v4377 = vsel %vm4327, %v4363, 0.0
      %v4378 = vsel %vm4328, %v4367, 0.0
      %4379 = vset.pattern.permute.xlu0 56
      %4380 = vperm.xlu0 %4379, %v1388
      %v4381 = vpop.permute.xlu0 %4380
      %4382 = vset.pattern.permute.xlu0 56
      %4383 = vperm.xlu0 %4382, %v1389
      %v4384 = vpop.permute.xlu0 %4383
      %4385 = vset.pattern.permute.xlu0 56
      %4386 = vperm.xlu0 %4385, %v1390
      %v4387 = vpop.permute.xlu0 %4386
      %4388 = vset.pattern.permute.xlu0 56
      %4389 = vperm.xlu0 %4388, %v1391
      %v4390 = vpop.permute.xlu0 %4389
      %4391 = vset.pattern.permute.xlu0 56
      %4392 = vperm.xlu0 %4391, %v1392
      %v4393 = vpop.permute.xlu0 %4392
      %4394 = vset.pattern.permute.xlu0 56
      %4395 = vperm.xlu0 %4394, %v1393
      %v4396 = vpop.permute.xlu0 %4395
      %4397 = vset.pattern.permute.xlu0 56
      %4398 = vperm.xlu0 %4397, %v1394
      %v4399 = vpop.permute.xlu0 %4398
      %4400 = vset.pattern.permute.xlu0 56
      %4401 = vperm.xlu0 %4400, %v1395
      %v4402 = vpop.permute.xlu0 %4401
      %4403 = vset.pattern.permute.xlu0 56
      %4404 = vperm.xlu0 %4403, %v1396
      %v4405 = vpop.permute.xlu0 %4404
      %4406 = vset.pattern.permute.xlu0 56
      %4407 = vperm.xlu0 %4406, %v1397
      %v4408 = vpop.permute.xlu0 %4407
      %vm4409 = vcmp.eq.s32.totalorder %v1277, %v4381
      %vm4410 = vcmp.eq.s32.totalorder %v1277, %v4384
      %vm4411 = vcmp.eq.s32.totalorder %v1277, %v4387
      %vm4412 = vcmp.eq.s32.totalorder %v1277, %v4390
      %vm4413 = vcmp.eq.s32.totalorder %v1277, %v4393
      %vm4414 = vcmp.eq.s32.totalorder %v1277, %v4396
      %vm4415 = vcmp.eq.s32.totalorder %v1277, %v4399
      %vm4416 = vcmp.eq.s32.totalorder %v1277, %v4402
      %vm4417 = vcmp.eq.s32.totalorder %v1277, %v4405
      %vm4418 = vcmp.eq.s32.totalorder %v1277, %v4408
      %4419 = vset.pattern.permute.xlu0 56
      %4420 = vperm.xlu0 %4419, %v1256
      %v4421 = vpop.permute.xlu0 %4420
      %4423 = vset.pattern.permute.xlu0 56
      %4424 = vperm.xlu0 %4423, %v1257
      %v4425 = vpop.permute.xlu0 %4424
      %4427 = vset.pattern.permute.xlu0 56
      %4428 = vperm.xlu0 %4427, %v1258
      %v4429 = vpop.permute.xlu0 %4428
      %4431 = vset.pattern.permute.xlu0 56
      %4432 = vperm.xlu0 %4431, %v1259
      %v4433 = vpop.permute.xlu0 %4432
      %4435 = vset.pattern.permute.xlu0 56
      %4436 = vperm.xlu0 %4435, %v1260
      %v4437 = vpop.permute.xlu0 %4436
      %4439 = vset.pattern.permute.xlu0 56
      %4440 = vperm.xlu0 %4439, %v1261
      %v4441 = vpop.permute.xlu0 %4440
      %4443 = vset.pattern.permute.xlu0 56
      %4444 = vperm.xlu0 %4443, %v1262
      %v4445 = vpop.permute.xlu0 %4444
      %4447 = vset.pattern.permute.xlu0 56
      %4448 = vperm.xlu0 %4447, %v1263
      %v4449 = vpop.permute.xlu0 %4448
      %4451 = vset.pattern.permute.xlu0 56
      %4452 = vperm.xlu0 %4451, %v1264
      %v4453 = vpop.permute.xlu0 %4452
      %4455 = vset.pattern.permute.xlu0 56
      %4456 = vperm.xlu0 %4455, %v1265
      %v4457 = vpop.permute.xlu0 %4456
      %v4459 = vsel %vm4409, %v4421, 0.0
      %v4460 = vsel %vm4410, %v4425, 0.0
      %v4461 = vsel %vm4411, %v4429, 0.0
      %v4462 = vsel %vm4412, %v4433, 0.0
      %v4463 = vsel %vm4413, %v4437, 0.0
      %v4464 = vsel %vm4414, %v4441, 0.0
      %v4465 = vsel %vm4415, %v4445, 0.0
      %v4466 = vsel %vm4416, %v4449, 0.0
      %v4467 = vsel %vm4417, %v4453, 0.0
      %v4468 = vsel %vm4418, %v4457, 0.0
      %v4469 = vadd.f32 %v4369, %v4459
      %v4470 = vadd.f32 %v4370, %v4460
      %v4471 = vadd.f32 %v4371, %v4461
      %v4472 = vadd.f32 %v4372, %v4462
      %v4473 = vadd.f32 %v4373, %v4463
      %v4474 = vadd.f32 %v4374, %v4464
      %v4475 = vadd.f32 %v4375, %v4465
      %v4476 = vadd.f32 %v4376, %v4466
      %v4477 = vadd.f32 %v4377, %v4467
      %v4478 = vadd.f32 %v4378, %v4468
      %4479 = vset.pattern.permute.xlu0 76
      %4480 = vperm.xlu0 %4479, %v1110
      %v4481 = vpop.permute.xlu0 %4480
      %4483 = vset.pattern.permute.xlu0 76
      %4484 = vperm.xlu0 %4483, %v1125
      %v4485 = vpop.permute.xlu0 %4484
      %4487 = vset.pattern.permute.xlu0 76
      %4488 = vperm.xlu0 %4487, %v1140
      %v4489 = vpop.permute.xlu0 %4488
      %4491 = vset.pattern.permute.xlu0 76
      %4492 = vperm.xlu0 %4491, %v1155
      %v4493 = vpop.permute.xlu0 %4492
      %4495 = vset.pattern.permute.xlu0 76
      %4496 = vperm.xlu0 %4495, %v1170
      %v4497 = vpop.permute.xlu0 %4496
      %4499 = vset.pattern.permute.xlu0 76
      %4500 = vperm.xlu0 %4499, %v1185
      %v4501 = vpop.permute.xlu0 %4500
      %4503 = vset.pattern.permute.xlu0 76
      %4504 = vperm.xlu0 %4503, %v1200
      %v4505 = vpop.permute.xlu0 %4504
      %4507 = vset.pattern.permute.xlu0 76
      %4508 = vperm.xlu0 %4507, %v1215
      %v4509 = vpop.permute.xlu0 %4508
      %4511 = vset.pattern.permute.xlu0 76
      %4512 = vperm.xlu0 %4511, %v1230
      %v4513 = vpop.permute.xlu0 %4512
      %4515 = vset.pattern.permute.xlu0 76
      %4516 = vperm.xlu0 %4515, %v1245
      %v4517 = vpop.permute.xlu0 %4516
      %v4519 = vmul.f32 %v4481, %v4279
      %v4520 = vmul.f32 %v4485, %v4280
      %v4521 = vmul.f32 %v4489, %v4281
      %v4522 = vmul.f32 %v4493, %v4282
      %v4523 = vmul.f32 %v4497, %v4283
      %v4524 = vmul.f32 %v4501, %v4284
      %v4525 = vmul.f32 %v4505, %v4285
      %v4526 = vmul.f32 %v4509, %v4286
      %v4527 = vmul.f32 %v4513, %v4287
      %v4528 = vmul.f32 %v4517, %v4288
      %v4529 = vmul.f32 %v4519, %v4469
      %v4530 = vmul.f32 %v4520, %v4470
      %v4531 = vmul.f32 %v4521, %v4471
      %v4532 = vmul.f32 %v4522, %v4472
      %v4533 = vmul.f32 %v4523, %v4473
      %v4534 = vmul.f32 %v4524, %v4474
      %v4535 = vmul.f32 %v4525, %v4475
      %v4536 = vmul.f32 %v4526, %v4476
      %v4537 = vmul.f32 %v4527, %v4477
      %v4538 = vmul.f32 %v4528, %v4478
      %v4539 = vadd.f32 %v4529, 0.0
      %v4540 = vadd.f32 %v4530, 0.0
      %v4541 = vadd.f32 %v4531, 0.0
      %v4542 = vadd.f32 %v4532, 0.0
      %v4543 = vadd.f32 %v4533, 0.0
      %v4544 = vadd.f32 %v4534, 0.0
      %v4545 = vadd.f32 %v4535, 0.0
      %v4546 = vadd.f32 %v4536, 0.0
      %v4547 = vadd.f32 %v4537, 0.0
      %v4548 = vadd.f32 %v4538, 0.0
      %4549 = vset.pattern.permute.xlu0 59
      %4550 = vperm.xlu0 %4549, %v1266
      %v4551 = vpop.permute.xlu0 %4550
      %4552 = vset.pattern.permute.xlu0 59
      %4553 = vperm.xlu0 %4552, %v1267
      %v4554 = vpop.permute.xlu0 %4553
      %4555 = vset.pattern.permute.xlu0 59
      %4556 = vperm.xlu0 %4555, %v1268
      %v4557 = vpop.permute.xlu0 %4556
      %4558 = vset.pattern.permute.xlu0 59
      %4559 = vperm.xlu0 %4558, %v1269
      %v4560 = vpop.permute.xlu0 %4559
      %4561 = vset.pattern.permute.xlu0 59
      %4562 = vperm.xlu0 %4561, %v1270
      %v4563 = vpop.permute.xlu0 %4562
      %4564 = vset.pattern.permute.xlu0 59
      %4565 = vperm.xlu0 %4564, %v1271
      %v4566 = vpop.permute.xlu0 %4565
      %4567 = vset.pattern.permute.xlu0 59
      %4568 = vperm.xlu0 %4567, %v1272
      %v4569 = vpop.permute.xlu0 %4568
      %4570 = vset.pattern.permute.xlu0 59
      %4571 = vperm.xlu0 %4570, %v1273
      %v4572 = vpop.permute.xlu0 %4571
      %4573 = vset.pattern.permute.xlu0 59
      %4574 = vperm.xlu0 %4573, %v1274
      %v4575 = vpop.permute.xlu0 %4574
      %4576 = vset.pattern.permute.xlu0 59
      %4577 = vperm.xlu0 %4576, %v1275
      %v4578 = vpop.permute.xlu0 %4577
      %vm4579 = vcmp.eq.s32.totalorder %v1276, %v4551
      %vm4580 = vcmp.eq.s32.totalorder %v1276, %v4554
      %vm4581 = vcmp.eq.s32.totalorder %v1276, %v4557
      %vm4582 = vcmp.eq.s32.totalorder %v1276, %v4560
      %vm4583 = vcmp.eq.s32.totalorder %v1276, %v4563
      %vm4584 = vcmp.eq.s32.totalorder %v1276, %v4566
      %vm4585 = vcmp.eq.s32.totalorder %v1276, %v4569
      %vm4586 = vcmp.eq.s32.totalorder %v1276, %v4572
      %vm4587 = vcmp.eq.s32.totalorder %v1276, %v4575
      %vm4588 = vcmp.eq.s32.totalorder %v1276, %v4578
      %4589 = vset.pattern.permute.xlu0 59
      %4590 = vperm.xlu0 %4589, %v1318
      %v4591 = vpop.permute.xlu0 %4590
      %4593 = vset.pattern.permute.xlu0 59
      %4594 = vperm.xlu0 %4593, %v1319
      %v4595 = vpop.permute.xlu0 %4594
      %4597 = vset.pattern.permute.xlu0 59
      %4598 = vperm.xlu0 %4597, %v1320
      %v4599 = vpop.permute.xlu0 %4598
      %4601 = vset.pattern.permute.xlu0 59
      %4602 = vperm.xlu0 %4601, %v1321
      %v4603 = vpop.permute.xlu0 %4602
      %4605 = vset.pattern.permute.xlu0 59
      %4606 = vperm.xlu0 %4605, %v1322
      %v4607 = vpop.permute.xlu0 %4606
      %4609 = vset.pattern.permute.xlu0 59
      %4610 = vperm.xlu0 %4609, %v1323
      %v4611 = vpop.permute.xlu0 %4610
      %4613 = vset.pattern.permute.xlu0 59
      %4614 = vperm.xlu0 %4613, %v1324
      %v4615 = vpop.permute.xlu0 %4614
      %4617 = vset.pattern.permute.xlu0 59
      %4618 = vperm.xlu0 %4617, %v1325
      %v4619 = vpop.permute.xlu0 %4618
      %4621 = vset.pattern.permute.xlu0 59
      %4622 = vperm.xlu0 %4621, %v1326
      %v4623 = vpop.permute.xlu0 %4622
      %4625 = vset.pattern.permute.xlu0 59
      %4626 = vperm.xlu0 %4625, %v1327
      %v4627 = vpop.permute.xlu0 %4626
      %v4629 = vsel %vm4579, %v4591, 0.0
      %v4630 = vsel %vm4580, %v4595, 0.0
      %v4631 = vsel %vm4581, %v4599, 0.0
      %v4632 = vsel %vm4582, %v4603, 0.0
      %v4633 = vsel %vm4583, %v4607, 0.0
      %v4634 = vsel %vm4584, %v4611, 0.0
      %v4635 = vsel %vm4585, %v4615, 0.0
      %v4636 = vsel %vm4586, %v4619, 0.0
      %v4637 = vsel %vm4587, %v4623, 0.0
      %v4638 = vsel %vm4588, %v4627, 0.0
      %4639 = vset.pattern.permute.xlu0 59
      %4640 = vperm.xlu0 %4639, %v1388
      %v4641 = vpop.permute.xlu0 %4640
      %4642 = vset.pattern.permute.xlu0 59
      %4643 = vperm.xlu0 %4642, %v1389
      %v4644 = vpop.permute.xlu0 %4643
      %4645 = vset.pattern.permute.xlu0 59
      %4646 = vperm.xlu0 %4645, %v1390
      %v4647 = vpop.permute.xlu0 %4646
      %4648 = vset.pattern.permute.xlu0 59
      %4649 = vperm.xlu0 %4648, %v1391
      %v4650 = vpop.permute.xlu0 %4649
      %4651 = vset.pattern.permute.xlu0 59
      %4652 = vperm.xlu0 %4651, %v1392
      %v4653 = vpop.permute.xlu0 %4652
      %4654 = vset.pattern.permute.xlu0 59
      %4655 = vperm.xlu0 %4654, %v1393
      %v4656 = vpop.permute.xlu0 %4655
      %4657 = vset.pattern.permute.xlu0 59
      %4658 = vperm.xlu0 %4657, %v1394
      %v4659 = vpop.permute.xlu0 %4658
      %4660 = vset.pattern.permute.xlu0 59
      %4661 = vperm.xlu0 %4660, %v1395
      %v4662 = vpop.permute.xlu0 %4661
      %4663 = vset.pattern.permute.xlu0 59
      %4664 = vperm.xlu0 %4663, %v1396
      %v4665 = vpop.permute.xlu0 %4664
      %4666 = vset.pattern.permute.xlu0 59
      %4667 = vperm.xlu0 %4666, %v1397
      %v4668 = vpop.permute.xlu0 %4667
      %vm4669 = vcmp.eq.s32.totalorder %v1276, %v4641
      %vm4670 = vcmp.eq.s32.totalorder %v1276, %v4644
      %vm4671 = vcmp.eq.s32.totalorder %v1276, %v4647
      %vm4672 = vcmp.eq.s32.totalorder %v1276, %v4650
      %vm4673 = vcmp.eq.s32.totalorder %v1276, %v4653
      %vm4674 = vcmp.eq.s32.totalorder %v1276, %v4656
      %vm4675 = vcmp.eq.s32.totalorder %v1276, %v4659
      %vm4676 = vcmp.eq.s32.totalorder %v1276, %v4662
      %vm4677 = vcmp.eq.s32.totalorder %v1276, %v4665
      %vm4678 = vcmp.eq.s32.totalorder %v1276, %v4668
      %4679 = vset.pattern.permute.xlu0 59
      %4680 = vperm.xlu0 %4679, %v1256
      %v4681 = vpop.permute.xlu0 %4680
      %4683 = vset.pattern.permute.xlu0 59
      %4684 = vperm.xlu0 %4683, %v1257
      %v4685 = vpop.permute.xlu0 %4684
      %4687 = vset.pattern.permute.xlu0 59
      %4688 = vperm.xlu0 %4687, %v1258
      %v4689 = vpop.permute.xlu0 %4688
      %4691 = vset.pattern.permute.xlu0 59
      %4692 = vperm.xlu0 %4691, %v1259
      %v4693 = vpop.permute.xlu0 %4692
      %4695 = vset.pattern.permute.xlu0 59
      %4696 = vperm.xlu0 %4695, %v1260
      %v4697 = vpop.permute.xlu0 %4696
      %4699 = vset.pattern.permute.xlu0 59
      %4700 = vperm.xlu0 %4699, %v1261
      %v4701 = vpop.permute.xlu0 %4700
      %4703 = vset.pattern.permute.xlu0 59
      %4704 = vperm.xlu0 %4703, %v1262
      %v4705 = vpop.permute.xlu0 %4704
      %4707 = vset.pattern.permute.xlu0 59
      %4708 = vperm.xlu0 %4707, %v1263
      %v4709 = vpop.permute.xlu0 %4708
      %4711 = vset.pattern.permute.xlu0 59
      %4712 = vperm.xlu0 %4711, %v1264
      %v4713 = vpop.permute.xlu0 %4712
      %4715 = vset.pattern.permute.xlu0 59
      %4716 = vperm.xlu0 %4715, %v1265
      %v4717 = vpop.permute.xlu0 %4716
      %v4719 = vsel %vm4669, %v4681, 0.0
      %v4720 = vsel %vm4670, %v4685, 0.0
      %v4721 = vsel %vm4671, %v4689, 0.0
      %v4722 = vsel %vm4672, %v4693, 0.0
      %v4723 = vsel %vm4673, %v4697, 0.0
      %v4724 = vsel %vm4674, %v4701, 0.0
      %v4725 = vsel %vm4675, %v4705, 0.0
      %v4726 = vsel %vm4676, %v4709, 0.0
      %v4727 = vsel %vm4677, %v4713, 0.0
      %v4728 = vsel %vm4678, %v4717, 0.0
      %v4729 = vadd.f32 %v4629, %v4719
      %v4730 = vadd.f32 %v4630, %v4720
      %v4731 = vadd.f32 %v4631, %v4721
      %v4732 = vadd.f32 %v4632, %v4722
      %v4733 = vadd.f32 %v4633, %v4723
      %v4734 = vadd.f32 %v4634, %v4724
      %v4735 = vadd.f32 %v4635, %v4725
      %v4736 = vadd.f32 %v4636, %v4726
      %v4737 = vadd.f32 %v4637, %v4727
      %v4738 = vadd.f32 %v4638, %v4728
      %4739 = vset.pattern.permute.xlu0 58
      %4740 = vperm.xlu0 %4739, %v1266
      %v4741 = vpop.permute.xlu0 %4740
      %4742 = vset.pattern.permute.xlu0 58
      %4743 = vperm.xlu0 %4742, %v1267
      %v4744 = vpop.permute.xlu0 %4743
      %4745 = vset.pattern.permute.xlu0 58
      %4746 = vperm.xlu0 %4745, %v1268
      %v4747 = vpop.permute.xlu0 %4746
      %4748 = vset.pattern.permute.xlu0 58
      %4749 = vperm.xlu0 %4748, %v1269
      %v4750 = vpop.permute.xlu0 %4749
      %4751 = vset.pattern.permute.xlu0 58
      %4752 = vperm.xlu0 %4751, %v1270
      %v4753 = vpop.permute.xlu0 %4752
      %4754 = vset.pattern.permute.xlu0 58
      %4755 = vperm.xlu0 %4754, %v1271
      %v4756 = vpop.permute.xlu0 %4755
      %4757 = vset.pattern.permute.xlu0 58
      %4758 = vperm.xlu0 %4757, %v1272
      %v4759 = vpop.permute.xlu0 %4758
      %4760 = vset.pattern.permute.xlu0 58
      %4761 = vperm.xlu0 %4760, %v1273
      %v4762 = vpop.permute.xlu0 %4761
      %4763 = vset.pattern.permute.xlu0 58
      %4764 = vperm.xlu0 %4763, %v1274
      %v4765 = vpop.permute.xlu0 %4764
      %4766 = vset.pattern.permute.xlu0 58
      %4767 = vperm.xlu0 %4766, %v1275
      %v4768 = vpop.permute.xlu0 %4767
      %vm4769 = vcmp.eq.s32.totalorder %v1277, %v4741
      %vm4770 = vcmp.eq.s32.totalorder %v1277, %v4744
      %vm4771 = vcmp.eq.s32.totalorder %v1277, %v4747
      %vm4772 = vcmp.eq.s32.totalorder %v1277, %v4750
      %vm4773 = vcmp.eq.s32.totalorder %v1277, %v4753
      %vm4774 = vcmp.eq.s32.totalorder %v1277, %v4756
      %vm4775 = vcmp.eq.s32.totalorder %v1277, %v4759
      %vm4776 = vcmp.eq.s32.totalorder %v1277, %v4762
      %vm4777 = vcmp.eq.s32.totalorder %v1277, %v4765
      %vm4778 = vcmp.eq.s32.totalorder %v1277, %v4768
      %4779 = vset.pattern.permute.xlu0 58
      %4780 = vperm.xlu0 %4779, %v1318
      %v4781 = vpop.permute.xlu0 %4780
      %4783 = vset.pattern.permute.xlu0 58
      %4784 = vperm.xlu0 %4783, %v1319
      %v4785 = vpop.permute.xlu0 %4784
      %4787 = vset.pattern.permute.xlu0 58
      %4788 = vperm.xlu0 %4787, %v1320
      %v4789 = vpop.permute.xlu0 %4788
      %4791 = vset.pattern.permute.xlu0 58
      %4792 = vperm.xlu0 %4791, %v1321
      %v4793 = vpop.permute.xlu0 %4792
      %4795 = vset.pattern.permute.xlu0 58
      %4796 = vperm.xlu0 %4795, %v1322
      %v4797 = vpop.permute.xlu0 %4796
      %4799 = vset.pattern.permute.xlu0 58
      %4800 = vperm.xlu0 %4799, %v1323
      %v4801 = vpop.permute.xlu0 %4800
      %4803 = vset.pattern.permute.xlu0 58
      %4804 = vperm.xlu0 %4803, %v1324
      %v4805 = vpop.permute.xlu0 %4804
      %4807 = vset.pattern.permute.xlu0 58
      %4808 = vperm.xlu0 %4807, %v1325
      %v4809 = vpop.permute.xlu0 %4808
      %4811 = vset.pattern.permute.xlu0 58
      %4812 = vperm.xlu0 %4811, %v1326
      %v4813 = vpop.permute.xlu0 %4812
      %4815 = vset.pattern.permute.xlu0 58
      %4816 = vperm.xlu0 %4815, %v1327
      %v4817 = vpop.permute.xlu0 %4816
      %v4819 = vsel %vm4769, %v4781, 0.0
      %v4820 = vsel %vm4770, %v4785, 0.0
      %v4821 = vsel %vm4771, %v4789, 0.0
      %v4822 = vsel %vm4772, %v4793, 0.0
      %v4823 = vsel %vm4773, %v4797, 0.0
      %v4824 = vsel %vm4774, %v4801, 0.0
      %v4825 = vsel %vm4775, %v4805, 0.0
      %v4826 = vsel %vm4776, %v4809, 0.0
      %v4827 = vsel %vm4777, %v4813, 0.0
      %v4828 = vsel %vm4778, %v4817, 0.0
      %4829 = vset.pattern.permute.xlu0 58
      %4830 = vperm.xlu0 %4829, %v1388
      %v4831 = vpop.permute.xlu0 %4830
      %4832 = vset.pattern.permute.xlu0 58
      %4833 = vperm.xlu0 %4832, %v1389
      %v4834 = vpop.permute.xlu0 %4833
      %4835 = vset.pattern.permute.xlu0 58
      %4836 = vperm.xlu0 %4835, %v1390
      %v4837 = vpop.permute.xlu0 %4836
      %4838 = vset.pattern.permute.xlu0 58
      %4839 = vperm.xlu0 %4838, %v1391
      %v4840 = vpop.permute.xlu0 %4839
      %4841 = vset.pattern.permute.xlu0 58
      %4842 = vperm.xlu0 %4841, %v1392
      %v4843 = vpop.permute.xlu0 %4842
      %4844 = vset.pattern.permute.xlu0 58
      %4845 = vperm.xlu0 %4844, %v1393
      %v4846 = vpop.permute.xlu0 %4845
      %4847 = vset.pattern.permute.xlu0 58
      %4848 = vperm.xlu0 %4847, %v1394
      %v4849 = vpop.permute.xlu0 %4848
      %4850 = vset.pattern.permute.xlu0 58
      %4851 = vperm.xlu0 %4850, %v1395
      %v4852 = vpop.permute.xlu0 %4851
      %4853 = vset.pattern.permute.xlu0 58
      %4854 = vperm.xlu0 %4853, %v1396
      %v4855 = vpop.permute.xlu0 %4854
      %4856 = vset.pattern.permute.xlu0 58
      %4857 = vperm.xlu0 %4856, %v1397
      %v4858 = vpop.permute.xlu0 %4857
      %vm4859 = vcmp.eq.s32.totalorder %v1277, %v4831
      %vm4860 = vcmp.eq.s32.totalorder %v1277, %v4834
      %vm4861 = vcmp.eq.s32.totalorder %v1277, %v4837
      %vm4862 = vcmp.eq.s32.totalorder %v1277, %v4840
      %vm4863 = vcmp.eq.s32.totalorder %v1277, %v4843
      %vm4864 = vcmp.eq.s32.totalorder %v1277, %v4846
      %vm4865 = vcmp.eq.s32.totalorder %v1277, %v4849
      %vm4866 = vcmp.eq.s32.totalorder %v1277, %v4852
      %vm4867 = vcmp.eq.s32.totalorder %v1277, %v4855
      %vm4868 = vcmp.eq.s32.totalorder %v1277, %v4858
      %4869 = vset.pattern.permute.xlu0 58
      %4870 = vperm.xlu0 %4869, %v1256
      %v4871 = vpop.permute.xlu0 %4870
      %4873 = vset.pattern.permute.xlu0 58
      %4874 = vperm.xlu0 %4873, %v1257
      %v4875 = vpop.permute.xlu0 %4874
      %4877 = vset.pattern.permute.xlu0 58
      %4878 = vperm.xlu0 %4877, %v1258
      %v4879 = vpop.permute.xlu0 %4878
      %4881 = vset.pattern.permute.xlu0 58
      %4882 = vperm.xlu0 %4881, %v1259
      %v4883 = vpop.permute.xlu0 %4882
      %4885 = vset.pattern.permute.xlu0 58
      %4886 = vperm.xlu0 %4885, %v1260
      %v4887 = vpop.permute.xlu0 %4886
      %4889 = vset.pattern.permute.xlu0 58
      %4890 = vperm.xlu0 %4889, %v1261
      %v4891 = vpop.permute.xlu0 %4890
      %4893 = vset.pattern.permute.xlu0 58
      %4894 = vperm.xlu0 %4893, %v1262
      %v4895 = vpop.permute.xlu0 %4894
      %4897 = vset.pattern.permute.xlu0 58
      %4898 = vperm.xlu0 %4897, %v1263
      %v4899 = vpop.permute.xlu0 %4898
      %4901 = vset.pattern.permute.xlu0 58
      %4902 = vperm.xlu0 %4901, %v1264
      %v4903 = vpop.permute.xlu0 %4902
      %4905 = vset.pattern.permute.xlu0 58
      %4906 = vperm.xlu0 %4905, %v1265
      %v4907 = vpop.permute.xlu0 %4906
      %v4909 = vsel %vm4859, %v4871, 0.0
      %v4910 = vsel %vm4860, %v4875, 0.0
      %v4911 = vsel %vm4861, %v4879, 0.0
      %v4912 = vsel %vm4862, %v4883, 0.0
      %v4913 = vsel %vm4863, %v4887, 0.0
      %v4914 = vsel %vm4864, %v4891, 0.0
      %v4915 = vsel %vm4865, %v4895, 0.0
      %v4916 = vsel %vm4866, %v4899, 0.0
      %v4917 = vsel %vm4867, %v4903, 0.0
      %v4918 = vsel %vm4868, %v4907, 0.0
      %v4919 = vadd.f32 %v4819, %v4909
      %v4920 = vadd.f32 %v4820, %v4910
      %v4921 = vadd.f32 %v4821, %v4911
      %v4922 = vadd.f32 %v4822, %v4912
      %v4923 = vadd.f32 %v4823, %v4913
      %v4924 = vadd.f32 %v4824, %v4914
      %v4925 = vadd.f32 %v4825, %v4915
      %v4926 = vadd.f32 %v4826, %v4916
      %v4927 = vadd.f32 %v4827, %v4917
      %v4928 = vadd.f32 %v4828, %v4918
      %4929 = vset.pattern.permute.xlu0 77
      %4930 = vperm.xlu0 %4929, %v1110
      %v4931 = vpop.permute.xlu0 %4930
      %4933 = vset.pattern.permute.xlu0 77
      %4934 = vperm.xlu0 %4933, %v1125
      %v4935 = vpop.permute.xlu0 %4934
      %4937 = vset.pattern.permute.xlu0 77
      %4938 = vperm.xlu0 %4937, %v1140
      %v4939 = vpop.permute.xlu0 %4938
      %4941 = vset.pattern.permute.xlu0 77
      %4942 = vperm.xlu0 %4941, %v1155
      %v4943 = vpop.permute.xlu0 %4942
      %4945 = vset.pattern.permute.xlu0 77
      %4946 = vperm.xlu0 %4945, %v1170
      %v4947 = vpop.permute.xlu0 %4946
      %4949 = vset.pattern.permute.xlu0 77
      %4950 = vperm.xlu0 %4949, %v1185
      %v4951 = vpop.permute.xlu0 %4950
      %4953 = vset.pattern.permute.xlu0 77
      %4954 = vperm.xlu0 %4953, %v1200
      %v4955 = vpop.permute.xlu0 %4954
      %4957 = vset.pattern.permute.xlu0 77
      %4958 = vperm.xlu0 %4957, %v1215
      %v4959 = vpop.permute.xlu0 %4958
      %4961 = vset.pattern.permute.xlu0 77
      %4962 = vperm.xlu0 %4961, %v1230
      %v4963 = vpop.permute.xlu0 %4962
      %4965 = vset.pattern.permute.xlu0 77
      %4966 = vperm.xlu0 %4965, %v1245
      %v4967 = vpop.permute.xlu0 %4966
      %v4969 = vmul.f32 %v4931, %v4729
      %v4970 = vmul.f32 %v4935, %v4730
      %v4971 = vmul.f32 %v4939, %v4731
      %v4972 = vmul.f32 %v4943, %v4732
      %v4973 = vmul.f32 %v4947, %v4733
      %v4974 = vmul.f32 %v4951, %v4734
      %v4975 = vmul.f32 %v4955, %v4735
      %v4976 = vmul.f32 %v4959, %v4736
      %v4977 = vmul.f32 %v4963, %v4737
      %v4978 = vmul.f32 %v4967, %v4738
      %v4979 = vmul.f32 %v4969, %v4919
      %v4980 = vmul.f32 %v4970, %v4920
      %v4981 = vmul.f32 %v4971, %v4921
      %v4982 = vmul.f32 %v4972, %v4922
      %v4983 = vmul.f32 %v4973, %v4923
      %v4984 = vmul.f32 %v4974, %v4924
      %v4985 = vmul.f32 %v4975, %v4925
      %v4986 = vmul.f32 %v4976, %v4926
      %v4987 = vmul.f32 %v4977, %v4927
      %v4988 = vmul.f32 %v4978, %v4928
      %v4989 = vadd.f32 %v4539, %v4979
      %v4990 = vadd.f32 %v4540, %v4980
      %v4991 = vadd.f32 %v4541, %v4981
      %v4992 = vadd.f32 %v4542, %v4982
      %v4993 = vadd.f32 %v4543, %v4983
      %v4994 = vadd.f32 %v4544, %v4984
      %v4995 = vadd.f32 %v4545, %v4985
      %v4996 = vadd.f32 %v4546, %v4986
      %v4997 = vadd.f32 %v4547, %v4987
      %v4998 = vadd.f32 %v4548, %v4988
      %5009 = vrot.lane.b32.xlu0 %v4989, 64
      %v5010 = vpop.permute.xlu0 %5009
      %5011 = vrot.lane.b32.xlu0 %v4990, 64
      %v5012 = vpop.permute.xlu0 %5011
      %5013 = vrot.lane.b32.xlu0 %v4991, 64
      %v5014 = vpop.permute.xlu0 %5013
      %5015 = vrot.lane.b32.xlu0 %v4992, 64
      %v5016 = vpop.permute.xlu0 %5015
      %5017 = vrot.lane.b32.xlu0 %v4993, 64
      %v5018 = vpop.permute.xlu0 %5017
      %5019 = vrot.lane.b32.xlu0 %v4994, 64
      %v5020 = vpop.permute.xlu0 %5019
      %5021 = vrot.lane.b32.xlu0 %v4995, 64
      %v5022 = vpop.permute.xlu0 %5021
      %5023 = vrot.lane.b32.xlu0 %v4996, 64
      %v5024 = vpop.permute.xlu0 %5023
      %5025 = vrot.lane.b32.xlu0 %v4997, 64
      %v5026 = vpop.permute.xlu0 %5025
      %5027 = vrot.lane.b32.xlu0 %v4998, 64
      %v5028 = vpop.permute.xlu0 %5027
      %5039 = vst.msk [vmem:[#allocation2 + $0x8] sm:$0xff] %vm3178, %v5010
      %5040 = vst.msk [vmem:[#allocation2 + $0x18] sm:$0xff] %vm3178, %v5012
      %5041 = vst.msk [vmem:[#allocation2 + $0x28] sm:$0xff] %vm3178, %v5014
      %5042 = vst.msk [vmem:[#allocation2 + $0x38] sm:$0xff] %vm3178, %v5016
      %5043 = vst.msk [vmem:[#allocation2 + $0x48] sm:$0xff] %vm3178, %v5018
      %5044 = vst.msk [vmem:[#allocation2 + $0x58] sm:$0xff] %vm3178, %v5020
      %5045 = vst.msk [vmem:[#allocation2 + $0x68] sm:$0xff] %vm3178, %v5022
      %5046 = vst.msk [vmem:[#allocation2 + $0x78] sm:$0xff] %vm3178, %v5024
      %5047 = vst.msk [vmem:[#allocation2 + $0x88] sm:$0xff] %vm3178, %v5026
      %5048 = vst.msk [vmem:[#allocation2 + $0x98] sm:$0xff] %vm3178, %v5028
      %vm5049 = vcmp.eq.s32.totalorder %v1276, 0
      %v5050 = vsel %vm5049, %v813, 0.0
      %v5051 = vsel %vm5049, %v814, 0.0
      %v5052 = vsel %vm5049, %v815, 0.0
      %v5053 = vsel %vm5049, %v816, 0.0
      %v5054 = vsel %vm5049, %v817, 0.0
      %v5055 = vsel %vm5049, %v818, 0.0
      %v5056 = vsel %vm5049, %v819, 0.0
      %v5057 = vsel %vm5049, %v820, 0.0
      %vm5058 = vcmp.eq.s32.totalorder %v1276, 1
      %v5059 = vsel %vm5058, %v813, 0.0
      %v5060 = vsel %vm5058, %v814, 0.0
      %v5061 = vsel %vm5058, %v815, 0.0
      %v5062 = vsel %vm5058, %v816, 0.0
      %v5063 = vsel %vm5058, %v817, 0.0
      %v5064 = vsel %vm5058, %v818, 0.0
      %v5065 = vsel %vm5058, %v819, 0.0
      %v5066 = vsel %vm5058, %v820, 0.0
      %vm5067 = vcmp.eq.s32.totalorder %v1276, 2
      %v5068 = vsel %vm5067, %v813, 0.0
      %v5069 = vsel %vm5067, %v814, 0.0
      %v5070 = vsel %vm5067, %v815, 0.0
      %v5071 = vsel %vm5067, %v816, 0.0
      %v5072 = vsel %vm5067, %v817, 0.0
      %v5073 = vsel %vm5067, %v818, 0.0
      %v5074 = vsel %vm5067, %v819, 0.0
      %v5075 = vsel %vm5067, %v820, 0.0
      %vm5076 = vcmp.eq.s32.totalorder %v1276, 3
      %v5077 = vsel %vm5076, %v813, 0.0
      %v5078 = vsel %vm5076, %v814, 0.0
      %v5079 = vsel %vm5076, %v815, 0.0
      %v5080 = vsel %vm5076, %v816, 0.0
      %v5081 = vsel %vm5076, %v817, 0.0
      %v5082 = vsel %vm5076, %v818, 0.0
      %v5083 = vsel %vm5076, %v819, 0.0
      %v5084 = vsel %vm5076, %v820, 0.0
      %v5085 = vld [vmem:[#allocation2] sm:$0xff]
      %v5086 = vld [vmem:[#allocation2 + $0x8] sm:$0xff]
      %v5087 = vld [vmem:[#allocation2 + $0x10] sm:$0xff]
      %v5088 = vld [vmem:[#allocation2 + $0x18] sm:$0xff]
      %v5089 = vld [vmem:[#allocation2 + $0x20] sm:$0xff]
      %v5090 = vld [vmem:[#allocation2 + $0x28] sm:$0xff]
      %v5091 = vld [vmem:[#allocation2 + $0x30] sm:$0xff]
      %v5092 = vld [vmem:[#allocation2 + $0x38] sm:$0xff]
      %v5093 = vld [vmem:[#allocation2 + $0x40] sm:$0xff]
      %v5094 = vld [vmem:[#allocation2 + $0x48] sm:$0xff]
      %v5095 = vld [vmem:[#allocation2 + $0x50] sm:$0xff]
      %v5096 = vld [vmem:[#allocation2 + $0x58] sm:$0xff]
      %v5097 = vld [vmem:[#allocation2 + $0x60] sm:$0xff]
      %v5098 = vld [vmem:[#allocation2 + $0x68] sm:$0xff]
      %v5099 = vld [vmem:[#allocation2 + $0x70] sm:$0xff]
      %v5100 = vld [vmem:[#allocation2 + $0x78] sm:$0xff]
      %v5101 = vld [vmem:[#allocation2 + $0x80] sm:$0xff]
      %v5102 = vld [vmem:[#allocation2 + $0x88] sm:$0xff]
      %v5103 = vld [vmem:[#allocation2 + $0x90] sm:$0xff]
      %v5104 = vld [vmem:[#allocation2 + $0x98] sm:$0xff]
      %v5105 = vand.u32 %v950, 3
      %5106 = vset.pattern.permute.xlu0 37
      %5107 = vperm.xlu0 %5106, %v1266
      %v5108 = vpop.permute.xlu0 %5107
      %5109 = vset.pattern.permute.xlu0 37
      %5110 = vperm.xlu0 %5109, %v1267
      %v5111 = vpop.permute.xlu0 %5110
      %5112 = vset.pattern.permute.xlu0 37
      %5113 = vperm.xlu0 %5112, %v1268
      %v5114 = vpop.permute.xlu0 %5113
      %5115 = vset.pattern.permute.xlu0 37
      %5116 = vperm.xlu0 %5115, %v1269
      %v5117 = vpop.permute.xlu0 %5116
      %5118 = vset.pattern.permute.xlu0 37
      %5119 = vperm.xlu0 %5118, %v1270
      %v5120 = vpop.permute.xlu0 %5119
      %5121 = vset.pattern.permute.xlu0 37
      %5122 = vperm.xlu0 %5121, %v1271
      %v5123 = vpop.permute.xlu0 %5122
      %5124 = vset.pattern.permute.xlu0 37
      %5125 = vperm.xlu0 %5124, %v1272
      %v5126 = vpop.permute.xlu0 %5125
      %5127 = vset.pattern.permute.xlu0 37
      %5128 = vperm.xlu0 %5127, %v1273
      %v5129 = vpop.permute.xlu0 %5128
      %5130 = vset.pattern.permute.xlu0 37
      %5131 = vperm.xlu0 %5130, %v1274
      %v5132 = vpop.permute.xlu0 %5131
      %5133 = vset.pattern.permute.xlu0 37
      %5134 = vperm.xlu0 %5133, %v1275
      %v5135 = vpop.permute.xlu0 %5134
      %vm5136 = vcmp.eq.s32.totalorder %v951, %v5108
      %vm5137 = vcmp.eq.s32.totalorder %v951, %v5111
      %vm5138 = vcmp.eq.s32.totalorder %v951, %v5114
      %vm5139 = vcmp.eq.s32.totalorder %v951, %v5117
      %vm5140 = vcmp.eq.s32.totalorder %v951, %v5120
      %vm5141 = vcmp.eq.s32.totalorder %v951, %v5123
      %vm5142 = vcmp.eq.s32.totalorder %v951, %v5126
      %vm5143 = vcmp.eq.s32.totalorder %v951, %v5129
      %vm5144 = vcmp.eq.s32.totalorder %v951, %v5132
      %vm5145 = vcmp.eq.s32.totalorder %v951, %v5135
      %5146 = vset.pattern.permute.xlu0 37
      %5147 = vperm.xlu0 %5146, %v1318
      %v5148 = vpop.permute.xlu0 %5147
      %5150 = vset.pattern.permute.xlu0 37
      %5151 = vperm.xlu0 %5150, %v1319
      %v5152 = vpop.permute.xlu0 %5151
      %5154 = vset.pattern.permute.xlu0 37
      %5155 = vperm.xlu0 %5154, %v1320
      %v5156 = vpop.permute.xlu0 %5155
      %5158 = vset.pattern.permute.xlu0 37
      %5159 = vperm.xlu0 %5158, %v1321
      %v5160 = vpop.permute.xlu0 %5159
      %5162 = vset.pattern.permute.xlu0 37
      %5163 = vperm.xlu0 %5162, %v1322
      %v5164 = vpop.permute.xlu0 %5163
      %5166 = vset.pattern.permute.xlu0 37
      %5167 = vperm.xlu0 %5166, %v1323
      %v5168 = vpop.permute.xlu0 %5167
      %5170 = vset.pattern.permute.xlu0 37
      %5171 = vperm.xlu0 %5170, %v1324
      %v5172 = vpop.permute.xlu0 %5171
      %5174 = vset.pattern.permute.xlu0 37
      %5175 = vperm.xlu0 %5174, %v1325
      %v5176 = vpop.permute.xlu0 %5175
      %5178 = vset.pattern.permute.xlu0 37
      %5179 = vperm.xlu0 %5178, %v1326
      %v5180 = vpop.permute.xlu0 %5179
      %5182 = vset.pattern.permute.xlu0 37
      %5183 = vperm.xlu0 %5182, %v1327
      %v5184 = vpop.permute.xlu0 %5183
      %v5186 = vsel %vm5136, %v5148, 0.0
      %v5187 = vsel %vm5137, %v5152, 0.0
      %v5188 = vsel %vm5138, %v5156, 0.0
      %v5189 = vsel %vm5139, %v5160, 0.0
      %v5190 = vsel %vm5140, %v5164, 0.0
      %v5191 = vsel %vm5141, %v5168, 0.0
      %v5192 = vsel %vm5142, %v5172, 0.0
      %v5193 = vsel %vm5143, %v5176, 0.0
      %v5194 = vsel %vm5144, %v5180, 0.0
      %v5195 = vsel %vm5145, %v5184, 0.0
      %5196 = vset.pattern.permute.xlu0 37
      %5197 = vperm.xlu0 %5196, %v1388
      %v5198 = vpop.permute.xlu0 %5197
      %5199 = vset.pattern.permute.xlu0 37
      %5200 = vperm.xlu0 %5199, %v1389
      %v5201 = vpop.permute.xlu0 %5200
      %5202 = vset.pattern.permute.xlu0 37
      %5203 = vperm.xlu0 %5202, %v1390
      %v5204 = vpop.permute.xlu0 %5203
      %5205 = vset.pattern.permute.xlu0 37
      %5206 = vperm.xlu0 %5205, %v1391
      %v5207 = vpop.permute.xlu0 %5206
      %5208 = vset.pattern.permute.xlu0 37
      %5209 = vperm.xlu0 %5208, %v1392
      %v5210 = vpop.permute.xlu0 %5209
      %5211 = vset.pattern.permute.xlu0 37
      %5212 = vperm.xlu0 %5211, %v1393
      %v5213 = vpop.permute.xlu0 %5212
      %5214 = vset.pattern.permute.xlu0 37
      %5215 = vperm.xlu0 %5214, %v1394
      %v5216 = vpop.permute.xlu0 %5215
      %5217 = vset.pattern.permute.xlu0 37
      %5218 = vperm.xlu0 %5217, %v1395
      %v5219 = vpop.permute.xlu0 %5218
      %5220 = vset.pattern.permute.xlu0 37
      %5221 = vperm.xlu0 %5220, %v1396
      %v5222 = vpop.permute.xlu0 %5221
      %5223 = vset.pattern.permute.xlu0 37
      %5224 = vperm.xlu0 %5223, %v1397
      %v5225 = vpop.permute.xlu0 %5224
      %vm5226 = vcmp.eq.s32.totalorder %v951, %v5198
      %vm5227 = vcmp.eq.s32.totalorder %v951, %v5201
      %vm5228 = vcmp.eq.s32.totalorder %v951, %v5204
      %vm5229 = vcmp.eq.s32.totalorder %v951, %v5207
      %vm5230 = vcmp.eq.s32.totalorder %v951, %v5210
      %vm5231 = vcmp.eq.s32.totalorder %v951, %v5213
      %vm5232 = vcmp.eq.s32.totalorder %v951, %v5216
      %vm5233 = vcmp.eq.s32.totalorder %v951, %v5219
      %vm5234 = vcmp.eq.s32.totalorder %v951, %v5222
      %vm5235 = vcmp.eq.s32.totalorder %v951, %v5225
      %5236 = vset.pattern.permute.xlu0 37
      %5237 = vperm.xlu0 %5236, %v1256
      %v5238 = vpop.permute.xlu0 %5237
      %5240 = vset.pattern.permute.xlu0 37
      %5241 = vperm.xlu0 %5240, %v1257
      %v5242 = vpop.permute.xlu0 %5241
      %5244 = vset.pattern.permute.xlu0 37
      %5245 = vperm.xlu0 %5244, %v1258
      %v5246 = vpop.permute.xlu0 %5245
      %5248 = vset.pattern.permute.xlu0 37
      %5249 = vperm.xlu0 %5248, %v1259
      %v5250 = vpop.permute.xlu0 %5249
      %5252 = vset.pattern.permute.xlu0 37
      %5253 = vperm.xlu0 %5252, %v1260
      %v5254 = vpop.permute.xlu0 %5253
      %5256 = vset.pattern.permute.xlu0 37
      %5257 = vperm.xlu0 %5256, %v1261
      %v5258 = vpop.permute.xlu0 %5257
      %5260 = vset.pattern.permute.xlu0 37
      %5261 = vperm.xlu0 %5260, %v1262
      %v5262 = vpop.permute.xlu0 %5261
      %5264 = vset.pattern.permute.xlu0 37
      %5265 = vperm.xlu0 %5264, %v1263
      %v5266 = vpop.permute.xlu0 %5265
      %5268 = vset.pattern.permute.xlu0 37
      %5269 = vperm.xlu0 %5268, %v1264
      %v5270 = vpop.permute.xlu0 %5269
      %5272 = vset.pattern.permute.xlu0 37
      %5273 = vperm.xlu0 %5272, %v1265
      %v5274 = vpop.permute.xlu0 %5273
      %v5276 = vsel %vm5226, %v5238, 0.0
      %v5277 = vsel %vm5227, %v5242, 0.0
      %v5278 = vsel %vm5228, %v5246, 0.0
      %v5279 = vsel %vm5229, %v5250, 0.0
      %v5280 = vsel %vm5230, %v5254, 0.0
      %v5281 = vsel %vm5231, %v5258, 0.0
      %v5282 = vsel %vm5232, %v5262, 0.0
      %v5283 = vsel %vm5233, %v5266, 0.0
      %v5284 = vsel %vm5234, %v5270, 0.0
      %v5285 = vsel %vm5235, %v5274, 0.0
      %v5286 = vadd.f32 %v5186, %v5276
      %v5287 = vadd.f32 %v5187, %v5277
      %v5288 = vadd.f32 %v5188, %v5278
      %v5289 = vadd.f32 %v5189, %v5279
      %v5290 = vadd.f32 %v5190, %v5280
      %v5291 = vadd.f32 %v5191, %v5281
      %v5292 = vadd.f32 %v5192, %v5282
      %v5293 = vadd.f32 %v5193, %v5283
      %v5294 = vadd.f32 %v5194, %v5284
      %v5295 = vadd.f32 %v5195, %v5285
      %5296 = vset.pattern.permute.xlu0 36
      %5297 = vperm.xlu0 %5296, %v1266
      %v5298 = vpop.permute.xlu0 %5297
      %5299 = vset.pattern.permute.xlu0 36
      %5300 = vperm.xlu0 %5299, %v1267
      %v5301 = vpop.permute.xlu0 %5300
      %5302 = vset.pattern.permute.xlu0 36
      %5303 = vperm.xlu0 %5302, %v1268
      %v5304 = vpop.permute.xlu0 %5303
      %5305 = vset.pattern.permute.xlu0 36
      %5306 = vperm.xlu0 %5305, %v1269
      %v5307 = vpop.permute.xlu0 %5306
      %5308 = vset.pattern.permute.xlu0 36
      %5309 = vperm.xlu0 %5308, %v1270
      %v5310 = vpop.permute.xlu0 %5309
      %5311 = vset.pattern.permute.xlu0 36
      %5312 = vperm.xlu0 %5311, %v1271
      %v5313 = vpop.permute.xlu0 %5312
      %5314 = vset.pattern.permute.xlu0 36
      %5315 = vperm.xlu0 %5314, %v1272
      %v5316 = vpop.permute.xlu0 %5315
      %5317 = vset.pattern.permute.xlu0 36
      %5318 = vperm.xlu0 %5317, %v1273
      %v5319 = vpop.permute.xlu0 %5318
      %5320 = vset.pattern.permute.xlu0 36
      %5321 = vperm.xlu0 %5320, %v1274
      %v5322 = vpop.permute.xlu0 %5321
      %5323 = vset.pattern.permute.xlu0 36
      %5324 = vperm.xlu0 %5323, %v1275
      %v5325 = vpop.permute.xlu0 %5324
      %vm5326 = vcmp.eq.s32.totalorder %v5105, %v5298
      %vm5327 = vcmp.eq.s32.totalorder %v5105, %v5301
      %vm5328 = vcmp.eq.s32.totalorder %v5105, %v5304
      %vm5329 = vcmp.eq.s32.totalorder %v5105, %v5307
      %vm5330 = vcmp.eq.s32.totalorder %v5105, %v5310
      %vm5331 = vcmp.eq.s32.totalorder %v5105, %v5313
      %vm5332 = vcmp.eq.s32.totalorder %v5105, %v5316
      %vm5333 = vcmp.eq.s32.totalorder %v5105, %v5319
      %vm5334 = vcmp.eq.s32.totalorder %v5105, %v5322
      %vm5335 = vcmp.eq.s32.totalorder %v5105, %v5325
      %5336 = vset.pattern.permute.xlu0 36
      %5337 = vperm.xlu0 %5336, %v1318
      %v5338 = vpop.permute.xlu0 %5337
      %5340 = vset.pattern.permute.xlu0 36
      %5341 = vperm.xlu0 %5340, %v1319
      %v5342 = vpop.permute.xlu0 %5341
      %5344 = vset.pattern.permute.xlu0 36
      %5345 = vperm.xlu0 %5344, %v1320
      %v5346 = vpop.permute.xlu0 %5345
      %5348 = vset.pattern.permute.xlu0 36
      %5349 = vperm.xlu0 %5348, %v1321
      %v5350 = vpop.permute.xlu0 %5349
      %5352 = vset.pattern.permute.xlu0 36
      %5353 = vperm.xlu0 %5352, %v1322
      %v5354 = vpop.permute.xlu0 %5353
      %5356 = vset.pattern.permute.xlu0 36
      %5357 = vperm.xlu0 %5356, %v1323
      %v5358 = vpop.permute.xlu0 %5357
      %5360 = vset.pattern.permute.xlu0 36
      %5361 = vperm.xlu0 %5360, %v1324
      %v5362 = vpop.permute.xlu0 %5361
      %5364 = vset.pattern.permute.xlu0 36
      %5365 = vperm.xlu0 %5364, %v1325
      %v5366 = vpop.permute.xlu0 %5365
      %5368 = vset.pattern.permute.xlu0 36
      %5369 = vperm.xlu0 %5368, %v1326
      %v5370 = vpop.permute.xlu0 %5369
      %5372 = vset.pattern.permute.xlu0 36
      %5373 = vperm.xlu0 %5372, %v1327
      %v5374 = vpop.permute.xlu0 %5373
      %v5376 = vsel %vm5326, %v5338, 0.0
      %v5377 = vsel %vm5327, %v5342, 0.0
      %v5378 = vsel %vm5328, %v5346, 0.0
      %v5379 = vsel %vm5329, %v5350, 0.0
      %v5380 = vsel %vm5330, %v5354, 0.0
      %v5381 = vsel %vm5331, %v5358, 0.0
      %v5382 = vsel %vm5332, %v5362, 0.0
      %v5383 = vsel %vm5333, %v5366, 0.0
      %v5384 = vsel %vm5334, %v5370, 0.0
      %v5385 = vsel %vm5335, %v5374, 0.0
      %5386 = vset.pattern.permute.xlu0 36
      %5387 = vperm.xlu0 %5386, %v1388
      %v5388 = vpop.permute.xlu0 %5387
      %5389 = vset.pattern.permute.xlu0 36
      %5390 = vperm.xlu0 %5389, %v1389
      %v5391 = vpop.permute.xlu0 %5390
      %5392 = vset.pattern.permute.xlu0 36
      %5393 = vperm.xlu0 %5392, %v1390
      %v5394 = vpop.permute.xlu0 %5393
      %5395 = vset.pattern.permute.xlu0 36
      %5396 = vperm.xlu0 %5395, %v1391
      %v5397 = vpop.permute.xlu0 %5396
      %5398 = vset.pattern.permute.xlu0 36
      %5399 = vperm.xlu0 %5398, %v1392
      %v5400 = vpop.permute.xlu0 %5399
      %5401 = vset.pattern.permute.xlu0 36
      %5402 = vperm.xlu0 %5401, %v1393
      %v5403 = vpop.permute.xlu0 %5402
      %5404 = vset.pattern.permute.xlu0 36
      %5405 = vperm.xlu0 %5404, %v1394
      %v5406 = vpop.permute.xlu0 %5405
      %5407 = vset.pattern.permute.xlu0 36
      %5408 = vperm.xlu0 %5407, %v1395
      %v5409 = vpop.permute.xlu0 %5408
      %5410 = vset.pattern.permute.xlu0 36
      %5411 = vperm.xlu0 %5410, %v1396
      %v5412 = vpop.permute.xlu0 %5411
      %5413 = vset.pattern.permute.xlu0 36
      %5414 = vperm.xlu0 %5413, %v1397
      %v5415 = vpop.permute.xlu0 %5414
      %vm5416 = vcmp.eq.s32.totalorder %v5105, %v5388
      %vm5417 = vcmp.eq.s32.totalorder %v5105, %v5391
      %vm5418 = vcmp.eq.s32.totalorder %v5105, %v5394
      %vm5419 = vcmp.eq.s32.totalorder %v5105, %v5397
      %vm5420 = vcmp.eq.s32.totalorder %v5105, %v5400
      %vm5421 = vcmp.eq.s32.totalorder %v5105, %v5403
      %vm5422 = vcmp.eq.s32.totalorder %v5105, %v5406
      %vm5423 = vcmp.eq.s32.totalorder %v5105, %v5409
      %vm5424 = vcmp.eq.s32.totalorder %v5105, %v5412
      %vm5425 = vcmp.eq.s32.totalorder %v5105, %v5415
      %5426 = vset.pattern.permute.xlu0 36
      %5427 = vperm.xlu0 %5426, %v1256
      %v5428 = vpop.permute.xlu0 %5427
      %5430 = vset.pattern.permute.xlu0 36
      %5431 = vperm.xlu0 %5430, %v1257
      %v5432 = vpop.permute.xlu0 %5431
      %5434 = vset.pattern.permute.xlu0 36
      %5435 = vperm.xlu0 %5434, %v1258
      %v5436 = vpop.permute.xlu0 %5435
      %5438 = vset.pattern.permute.xlu0 36
      %5439 = vperm.xlu0 %5438, %v1259
      %v5440 = vpop.permute.xlu0 %5439
      %5442 = vset.pattern.permute.xlu0 36
      %5443 = vperm.xlu0 %5442, %v1260
      %v5444 = vpop.permute.xlu0 %5443
      %5446 = vset.pattern.permute.xlu0 36
      %5447 = vperm.xlu0 %5446, %v1261
      %v5448 = vpop.permute.xlu0 %5447
      %5450 = vset.pattern.permute.xlu0 36
      %5451 = vperm.xlu0 %5450, %v1262
      %v5452 = vpop.permute.xlu0 %5451
      %5454 = vset.pattern.permute.xlu0 36
      %5455 = vperm.xlu0 %5454, %v1263
      %v5456 = vpop.permute.xlu0 %5455
      %5458 = vset.pattern.permute.xlu0 36
      %5459 = vperm.xlu0 %5458, %v1264
      %v5460 = vpop.permute.xlu0 %5459
      %5462 = vset.pattern.permute.xlu0 36
      %5463 = vperm.xlu0 %5462, %v1265
      %v5464 = vpop.permute.xlu0 %5463
      %v5466 = vsel %vm5416, %v5428, 0.0
      %v5467 = vsel %vm5417, %v5432, 0.0
      %v5468 = vsel %vm5418, %v5436, 0.0
      %v5469 = vsel %vm5419, %v5440, 0.0
      %v5470 = vsel %vm5420, %v5444, 0.0
      %v5471 = vsel %vm5421, %v5448, 0.0
      %v5472 = vsel %vm5422, %v5452, 0.0
      %v5473 = vsel %vm5423, %v5456, 0.0
      %v5474 = vsel %vm5424, %v5460, 0.0
      %v5475 = vsel %vm5425, %v5464, 0.0
      %v5476 = vadd.f32 %v5376, %v5466
      %v5477 = vadd.f32 %v5377, %v5467
      %v5478 = vadd.f32 %v5378, %v5468
      %v5479 = vadd.f32 %v5379, %v5469
      %v5480 = vadd.f32 %v5380, %v5470
      %v5481 = vadd.f32 %v5381, %v5471
      %v5482 = vadd.f32 %v5382, %v5472
      %v5483 = vadd.f32 %v5383, %v5473
      %v5484 = vadd.f32 %v5384, %v5474
      %v5485 = vadd.f32 %v5385, %v5475
      %5486 = vset.pattern.permute.xlu0 66
      %5487 = vperm.xlu0 %5486, %v1110
      %v5488 = vpop.permute.xlu0 %5487
      %5490 = vset.pattern.permute.xlu0 66
      %5491 = vperm.xlu0 %5490, %v1125
      %v5492 = vpop.permute.xlu0 %5491
      %5494 = vset.pattern.permute.xlu0 66
      %5495 = vperm.xlu0 %5494, %v1140
      %v5496 = vpop.permute.xlu0 %5495
      %5498 = vset.pattern.permute.xlu0 66
      %5499 = vperm.xlu0 %5498, %v1155
      %v5500 = vpop.permute.xlu0 %5499
      %5502 = vset.pattern.permute.xlu0 66
      %5503 = vperm.xlu0 %5502, %v1170
      %v5504 = vpop.permute.xlu0 %5503
      %5506 = vset.pattern.permute.xlu0 66
      %5507 = vperm.xlu0 %5506, %v1185
      %v5508 = vpop.permute.xlu0 %5507
      %5510 = vset.pattern.permute.xlu0 66
      %5511 = vperm.xlu0 %5510, %v1200
      %v5512 = vpop.permute.xlu0 %5511
      %5514 = vset.pattern.permute.xlu0 66
      %5515 = vperm.xlu0 %5514, %v1215
      %v5516 = vpop.permute.xlu0 %5515
      %5518 = vset.pattern.permute.xlu0 66
      %5519 = vperm.xlu0 %5518, %v1230
      %v5520 = vpop.permute.xlu0 %5519
      %5522 = vset.pattern.permute.xlu0 66
      %5523 = vperm.xlu0 %5522, %v1245
      %v5524 = vpop.permute.xlu0 %5523
      %v5526 = vmul.f32 %v5488, %v5286
      %v5527 = vmul.f32 %v5492, %v5287
      %v5528 = vmul.f32 %v5496, %v5288
      %v5529 = vmul.f32 %v5500, %v5289
      %v5530 = vmul.f32 %v5504, %v5290
      %v5531 = vmul.f32 %v5508, %v5291
      %v5532 = vmul.f32 %v5512, %v5292
      %v5533 = vmul.f32 %v5516, %v5293
      %v5534 = vmul.f32 %v5520, %v5294
      %v5535 = vmul.f32 %v5524, %v5295
      %v5536 = vmul.f32 %v5526, %v5476
      %v5537 = vmul.f32 %v5527, %v5477
      %v5538 = vmul.f32 %v5528, %v5478
      %v5539 = vmul.f32 %v5529, %v5479
      %v5540 = vmul.f32 %v5530, %v5480
      %v5541 = vmul.f32 %v5531, %v5481
      %v5542 = vmul.f32 %v5532, %v5482
      %v5543 = vmul.f32 %v5533, %v5483
      %v5544 = vmul.f32 %v5534, %v5484
      %v5545 = vmul.f32 %v5535, %v5485
      %v5546 = vadd.f32 %v5536, 0.0
      %v5547 = vadd.f32 %v5537, 0.0
      %v5548 = vadd.f32 %v5538, 0.0
      %v5549 = vadd.f32 %v5539, 0.0
      %v5550 = vadd.f32 %v5540, 0.0
      %v5551 = vadd.f32 %v5541, 0.0
      %v5552 = vadd.f32 %v5542, 0.0
      %v5553 = vadd.f32 %v5543, 0.0
      %v5554 = vadd.f32 %v5544, 0.0
      %v5555 = vadd.f32 %v5545, 0.0
      %5556 = vset.pattern.permute.xlu0 39
      %5557 = vperm.xlu0 %5556, %v1266
      %v5558 = vpop.permute.xlu0 %5557
      %5559 = vset.pattern.permute.xlu0 39
      %5560 = vperm.xlu0 %5559, %v1267
      %v5561 = vpop.permute.xlu0 %5560
      %5562 = vset.pattern.permute.xlu0 39
      %5563 = vperm.xlu0 %5562, %v1268
      %v5564 = vpop.permute.xlu0 %5563
      %5565 = vset.pattern.permute.xlu0 39
      %5566 = vperm.xlu0 %5565, %v1269
      %v5567 = vpop.permute.xlu0 %5566
      %5568 = vset.pattern.permute.xlu0 39
      %5569 = vperm.xlu0 %5568, %v1270
      %v5570 = vpop.permute.xlu0 %5569
      %5571 = vset.pattern.permute.xlu0 39
      %5572 = vperm.xlu0 %5571, %v1271
      %v5573 = vpop.permute.xlu0 %5572
      %5574 = vset.pattern.permute.xlu0 39
      %5575 = vperm.xlu0 %5574, %v1272
      %v5576 = vpop.permute.xlu0 %5575
      %5577 = vset.pattern.permute.xlu0 39
      %5578 = vperm.xlu0 %5577, %v1273
      %v5579 = vpop.permute.xlu0 %5578
      %5580 = vset.pattern.permute.xlu0 39
      %5581 = vperm.xlu0 %5580, %v1274
      %v5582 = vpop.permute.xlu0 %5581
      %5583 = vset.pattern.permute.xlu0 39
      %5584 = vperm.xlu0 %5583, %v1275
      %v5585 = vpop.permute.xlu0 %5584
      %vm5586 = vcmp.eq.s32.totalorder %v951, %v5558
      %vm5587 = vcmp.eq.s32.totalorder %v951, %v5561
      %vm5588 = vcmp.eq.s32.totalorder %v951, %v5564
      %vm5589 = vcmp.eq.s32.totalorder %v951, %v5567
      %vm5590 = vcmp.eq.s32.totalorder %v951, %v5570
      %vm5591 = vcmp.eq.s32.totalorder %v951, %v5573
      %vm5592 = vcmp.eq.s32.totalorder %v951, %v5576
      %vm5593 = vcmp.eq.s32.totalorder %v951, %v5579
      %vm5594 = vcmp.eq.s32.totalorder %v951, %v5582
      %vm5595 = vcmp.eq.s32.totalorder %v951, %v5585
      %5596 = vset.pattern.permute.xlu0 39
      %5597 = vperm.xlu0 %5596, %v1318
      %v5598 = vpop.permute.xlu0 %5597
      %5600 = vset.pattern.permute.xlu0 39
      %5601 = vperm.xlu0 %5600, %v1319
      %v5602 = vpop.permute.xlu0 %5601
      %5604 = vset.pattern.permute.xlu0 39
      %5605 = vperm.xlu0 %5604, %v1320
      %v5606 = vpop.permute.xlu0 %5605
      %5608 = vset.pattern.permute.xlu0 39
      %5609 = vperm.xlu0 %5608, %v1321
      %v5610 = vpop.permute.xlu0 %5609
      %5612 = vset.pattern.permute.xlu0 39
      %5613 = vperm.xlu0 %5612, %v1322
      %v5614 = vpop.permute.xlu0 %5613
      %5616 = vset.pattern.permute.xlu0 39
      %5617 = vperm.xlu0 %5616, %v1323
      %v5618 = vpop.permute.xlu0 %5617
      %5620 = vset.pattern.permute.xlu0 39
      %5621 = vperm.xlu0 %5620, %v1324
      %v5622 = vpop.permute.xlu0 %5621
      %5624 = vset.pattern.permute.xlu0 39
      %5625 = vperm.xlu0 %5624, %v1325
      %v5626 = vpop.permute.xlu0 %5625
      %5628 = vset.pattern.permute.xlu0 39
      %5629 = vperm.xlu0 %5628, %v1326
      %v5630 = vpop.permute.xlu0 %5629
      %5632 = vset.pattern.permute.xlu0 39
      %5633 = vperm.xlu0 %5632, %v1327
      %v5634 = vpop.permute.xlu0 %5633
      %v5636 = vsel %vm5586, %v5598, 0.0
      %v5637 = vsel %vm5587, %v5602, 0.0
      %v5638 = vsel %vm5588, %v5606, 0.0
      %v5639 = vsel %vm5589, %v5610, 0.0
      %v5640 = vsel %vm5590, %v5614, 0.0
      %v5641 = vsel %vm5591, %v5618, 0.0
      %v5642 = vsel %vm5592, %v5622, 0.0
      %v5643 = vsel %vm5593, %v5626, 0.0
      %v5644 = vsel %vm5594, %v5630, 0.0
      %v5645 = vsel %vm5595, %v5634, 0.0
      %5646 = vset.pattern.permute.xlu0 39
      %5647 = vperm.xlu0 %5646, %v1388
      %v5648 = vpop.permute.xlu0 %5647
      %5649 = vset.pattern.permute.xlu0 39
      %5650 = vperm.xlu0 %5649, %v1389
      %v5651 = vpop.permute.xlu0 %5650
      %5652 = vset.pattern.permute.xlu0 39
      %5653 = vperm.xlu0 %5652, %v1390
      %v5654 = vpop.permute.xlu0 %5653
      %5655 = vset.pattern.permute.xlu0 39
      %5656 = vperm.xlu0 %5655, %v1391
      %v5657 = vpop.permute.xlu0 %5656
      %5658 = vset.pattern.permute.xlu0 39
      %5659 = vperm.xlu0 %5658, %v1392
      %v5660 = vpop.permute.xlu0 %5659
      %5661 = vset.pattern.permute.xlu0 39
      %5662 = vperm.xlu0 %5661, %v1393
      %v5663 = vpop.permute.xlu0 %5662
      %5664 = vset.pattern.permute.xlu0 39
      %5665 = vperm.xlu0 %5664, %v1394
      %v5666 = vpop.permute.xlu0 %5665
      %5667 = vset.pattern.permute.xlu0 39
      %5668 = vperm.xlu0 %5667, %v1395
      %v5669 = vpop.permute.xlu0 %5668
      %5670 = vset.pattern.permute.xlu0 39
      %5671 = vperm.xlu0 %5670, %v1396
      %v5672 = vpop.permute.xlu0 %5671
      %5673 = vset.pattern.permute.xlu0 39
      %5674 = vperm.xlu0 %5673, %v1397
      %v5675 = vpop.permute.xlu0 %5674
      %vm5676 = vcmp.eq.s32.totalorder %v951, %v5648
      %vm5677 = vcmp.eq.s32.totalorder %v951, %v5651
      %vm5678 = vcmp.eq.s32.totalorder %v951, %v5654
      %vm5679 = vcmp.eq.s32.totalorder %v951, %v5657
      %vm5680 = vcmp.eq.s32.totalorder %v951, %v5660
      %vm5681 = vcmp.eq.s32.totalorder %v951, %v5663
      %vm5682 = vcmp.eq.s32.totalorder %v951, %v5666
      %vm5683 = vcmp.eq.s32.totalorder %v951, %v5669
      %vm5684 = vcmp.eq.s32.totalorder %v951, %v5672
      %vm5685 = vcmp.eq.s32.totalorder %v951, %v5675
      %5686 = vset.pattern.permute.xlu0 39
      %5687 = vperm.xlu0 %5686, %v1256
      %v5688 = vpop.permute.xlu0 %5687
      %5690 = vset.pattern.permute.xlu0 39
      %5691 = vperm.xlu0 %5690, %v1257
      %v5692 = vpop.permute.xlu0 %5691
      %5694 = vset.pattern.permute.xlu0 39
      %5695 = vperm.xlu0 %5694, %v1258
      %v5696 = vpop.permute.xlu0 %5695
      %5698 = vset.pattern.permute.xlu0 39
      %5699 = vperm.xlu0 %5698, %v1259
      %v5700 = vpop.permute.xlu0 %5699
      %5702 = vset.pattern.permute.xlu0 39
      %5703 = vperm.xlu0 %5702, %v1260
      %v5704 = vpop.permute.xlu0 %5703
      %5706 = vset.pattern.permute.xlu0 39
      %5707 = vperm.xlu0 %5706, %v1261
      %v5708 = vpop.permute.xlu0 %5707
      %5710 = vset.pattern.permute.xlu0 39
      %5711 = vperm.xlu0 %5710, %v1262
      %v5712 = vpop.permute.xlu0 %5711
      %5714 = vset.pattern.permute.xlu0 39
      %5715 = vperm.xlu0 %5714, %v1263
      %v5716 = vpop.permute.xlu0 %5715
      %5718 = vset.pattern.permute.xlu0 39
      %5719 = vperm.xlu0 %5718, %v1264
      %v5720 = vpop.permute.xlu0 %5719
      %5722 = vset.pattern.permute.xlu0 39
      %5723 = vperm.xlu0 %5722, %v1265
      %v5724 = vpop.permute.xlu0 %5723
      %v5726 = vsel %vm5676, %v5688, 0.0
      %v5727 = vsel %vm5677, %v5692, 0.0
      %v5728 = vsel %vm5678, %v5696, 0.0
      %v5729 = vsel %vm5679, %v5700, 0.0
      %v5730 = vsel %vm5680, %v5704, 0.0
      %v5731 = vsel %vm5681, %v5708, 0.0
      %v5732 = vsel %vm5682, %v5712, 0.0
      %v5733 = vsel %vm5683, %v5716, 0.0
      %v5734 = vsel %vm5684, %v5720, 0.0
      %v5735 = vsel %vm5685, %v5724, 0.0
      %v5736 = vadd.f32 %v5636, %v5726
      %v5737 = vadd.f32 %v5637, %v5727
      %v5738 = vadd.f32 %v5638, %v5728
      %v5739 = vadd.f32 %v5639, %v5729
      %v5740 = vadd.f32 %v5640, %v5730
      %v5741 = vadd.f32 %v5641, %v5731
      %v5742 = vadd.f32 %v5642, %v5732
      %v5743 = vadd.f32 %v5643, %v5733
      %v5744 = vadd.f32 %v5644, %v5734
      %v5745 = vadd.f32 %v5645, %v5735
      %5746 = vset.pattern.permute.xlu0 38
      %5747 = vperm.xlu0 %5746, %v1266
      %v5748 = vpop.permute.xlu0 %5747
      %5749 = vset.pattern.permute.xlu0 38
      %5750 = vperm.xlu0 %5749, %v1267
      %v5751 = vpop.permute.xlu0 %5750
      %5752 = vset.pattern.permute.xlu0 38
      %5753 = vperm.xlu0 %5752, %v1268
      %v5754 = vpop.permute.xlu0 %5753
      %5755 = vset.pattern.permute.xlu0 38
      %5756 = vperm.xlu0 %5755, %v1269
      %v5757 = vpop.permute.xlu0 %5756
      %5758 = vset.pattern.permute.xlu0 38
      %5759 = vperm.xlu0 %5758, %v1270
      %v5760 = vpop.permute.xlu0 %5759
      %5761 = vset.pattern.permute.xlu0 38
      %5762 = vperm.xlu0 %5761, %v1271
      %v5763 = vpop.permute.xlu0 %5762
      %5764 = vset.pattern.permute.xlu0 38
      %5765 = vperm.xlu0 %5764, %v1272
      %v5766 = vpop.permute.xlu0 %5765
      %5767 = vset.pattern.permute.xlu0 38
      %5768 = vperm.xlu0 %5767, %v1273
      %v5769 = vpop.permute.xlu0 %5768
      %5770 = vset.pattern.permute.xlu0 38
      %5771 = vperm.xlu0 %5770, %v1274
      %v5772 = vpop.permute.xlu0 %5771
      %5773 = vset.pattern.permute.xlu0 38
      %5774 = vperm.xlu0 %5773, %v1275
      %v5775 = vpop.permute.xlu0 %5774
      %vm5776 = vcmp.eq.s32.totalorder %v5105, %v5748
      %vm5777 = vcmp.eq.s32.totalorder %v5105, %v5751
      %vm5778 = vcmp.eq.s32.totalorder %v5105, %v5754
      %vm5779 = vcmp.eq.s32.totalorder %v5105, %v5757
      %vm5780 = vcmp.eq.s32.totalorder %v5105, %v5760
      %vm5781 = vcmp.eq.s32.totalorder %v5105, %v5763
      %vm5782 = vcmp.eq.s32.totalorder %v5105, %v5766
      %vm5783 = vcmp.eq.s32.totalorder %v5105, %v5769
      %vm5784 = vcmp.eq.s32.totalorder %v5105, %v5772
      %vm5785 = vcmp.eq.s32.totalorder %v5105, %v5775
      %5786 = vset.pattern.permute.xlu0 38
      %5787 = vperm.xlu0 %5786, %v1318
      %v5788 = vpop.permute.xlu0 %5787
      %5790 = vset.pattern.permute.xlu0 38
      %5791 = vperm.xlu0 %5790, %v1319
      %v5792 = vpop.permute.xlu0 %5791
      %5794 = vset.pattern.permute.xlu0 38
      %5795 = vperm.xlu0 %5794, %v1320
      %v5796 = vpop.permute.xlu0 %5795
      %5798 = vset.pattern.permute.xlu0 38
      %5799 = vperm.xlu0 %5798, %v1321
      %v5800 = vpop.permute.xlu0 %5799
      %5802 = vset.pattern.permute.xlu0 38
      %5803 = vperm.xlu0 %5802, %v1322
      %v5804 = vpop.permute.xlu0 %5803
      %5806 = vset.pattern.permute.xlu0 38
      %5807 = vperm.xlu0 %5806, %v1323
      %v5808 = vpop.permute.xlu0 %5807
      %5810 = vset.pattern.permute.xlu0 38
      %5811 = vperm.xlu0 %5810, %v1324
      %v5812 = vpop.permute.xlu0 %5811
      %5814 = vset.pattern.permute.xlu0 38
      %5815 = vperm.xlu0 %5814, %v1325
      %v5816 = vpop.permute.xlu0 %5815
      %5818 = vset.pattern.permute.xlu0 38
      %5819 = vperm.xlu0 %5818, %v1326
      %v5820 = vpop.permute.xlu0 %5819
      %5822 = vset.pattern.permute.xlu0 38
      %5823 = vperm.xlu0 %5822, %v1327
      %v5824 = vpop.permute.xlu0 %5823
      %v5826 = vsel %vm5776, %v5788, 0.0
      %v5827 = vsel %vm5777, %v5792, 0.0
      %v5828 = vsel %vm5778, %v5796, 0.0
      %v5829 = vsel %vm5779, %v5800, 0.0
      %v5830 = vsel %vm5780, %v5804, 0.0
      %v5831 = vsel %vm5781, %v5808, 0.0
      %v5832 = vsel %vm5782, %v5812, 0.0
      %v5833 = vsel %vm5783, %v5816, 0.0
      %v5834 = vsel %vm5784, %v5820, 0.0
      %v5835 = vsel %vm5785, %v5824, 0.0
      %5836 = vset.pattern.permute.xlu0 38
      %5837 = vperm.xlu0 %5836, %v1388
      %v5838 = vpop.permute.xlu0 %5837
      %5839 = vset.pattern.permute.xlu0 38
      %5840 = vperm.xlu0 %5839, %v1389
      %v5841 = vpop.permute.xlu0 %5840
      %5842 = vset.pattern.permute.xlu0 38
      %5843 = vperm.xlu0 %5842, %v1390
      %v5844 = vpop.permute.xlu0 %5843
      %5845 = vset.pattern.permute.xlu0 38
      %5846 = vperm.xlu0 %5845, %v1391
      %v5847 = vpop.permute.xlu0 %5846
      %5848 = vset.pattern.permute.xlu0 38
      %5849 = vperm.xlu0 %5848, %v1392
      %v5850 = vpop.permute.xlu0 %5849
      %5851 = vset.pattern.permute.xlu0 38
      %5852 = vperm.xlu0 %5851, %v1393
      %v5853 = vpop.permute.xlu0 %5852
      %5854 = vset.pattern.permute.xlu0 38
      %5855 = vperm.xlu0 %5854, %v1394
      %v5856 = vpop.permute.xlu0 %5855
      %5857 = vset.pattern.permute.xlu0 38
      %5858 = vperm.xlu0 %5857, %v1395
      %v5859 = vpop.permute.xlu0 %5858
      %5860 = vset.pattern.permute.xlu0 38
      %5861 = vperm.xlu0 %5860, %v1396
      %v5862 = vpop.permute.xlu0 %5861
      %5863 = vset.pattern.permute.xlu0 38
      %5864 = vperm.xlu0 %5863, %v1397
      %v5865 = vpop.permute.xlu0 %5864
      %vm5866 = vcmp.eq.s32.totalorder %v5105, %v5838
      %vm5867 = vcmp.eq.s32.totalorder %v5105, %v5841
      %vm5868 = vcmp.eq.s32.totalorder %v5105, %v5844
      %vm5869 = vcmp.eq.s32.totalorder %v5105, %v5847
      %vm5870 = vcmp.eq.s32.totalorder %v5105, %v5850
      %vm5871 = vcmp.eq.s32.totalorder %v5105, %v5853
      %vm5872 = vcmp.eq.s32.totalorder %v5105, %v5856
      %vm5873 = vcmp.eq.s32.totalorder %v5105, %v5859
      %vm5874 = vcmp.eq.s32.totalorder %v5105, %v5862
      %vm5875 = vcmp.eq.s32.totalorder %v5105, %v5865
      %5876 = vset.pattern.permute.xlu0 38
      %5877 = vperm.xlu0 %5876, %v1256
      %v5878 = vpop.permute.xlu0 %5877
      %5880 = vset.pattern.permute.xlu0 38
      %5881 = vperm.xlu0 %5880, %v1257
      %v5882 = vpop.permute.xlu0 %5881
      %5884 = vset.pattern.permute.xlu0 38
      %5885 = vperm.xlu0 %5884, %v1258
      %v5886 = vpop.permute.xlu0 %5885
      %5888 = vset.pattern.permute.xlu0 38
      %5889 = vperm.xlu0 %5888, %v1259
      %v5890 = vpop.permute.xlu0 %5889
      %5892 = vset.pattern.permute.xlu0 38
      %5893 = vperm.xlu0 %5892, %v1260
      %v5894 = vpop.permute.xlu0 %5893
      %5896 = vset.pattern.permute.xlu0 38
      %5897 = vperm.xlu0 %5896, %v1261
      %v5898 = vpop.permute.xlu0 %5897
      %5900 = vset.pattern.permute.xlu0 38
      %5901 = vperm.xlu0 %5900, %v1262
      %v5902 = vpop.permute.xlu0 %5901
      %5904 = vset.pattern.permute.xlu0 38
      %5905 = vperm.xlu0 %5904, %v1263
      %v5906 = vpop.permute.xlu0 %5905
      %5908 = vset.pattern.permute.xlu0 38
      %5909 = vperm.xlu0 %5908, %v1264
      %v5910 = vpop.permute.xlu0 %5909
      %5912 = vset.pattern.permute.xlu0 38
      %5913 = vperm.xlu0 %5912, %v1265
      %v5914 = vpop.permute.xlu0 %5913
      %v5916 = vsel %vm5866, %v5878, 0.0
      %v5917 = vsel %vm5867, %v5882, 0.0
      %v5918 = vsel %vm5868, %v5886, 0.0
      %v5919 = vsel %vm5869, %v5890, 0.0
      %v5920 = vsel %vm5870, %v5894, 0.0
      %v5921 = vsel %vm5871, %v5898, 0.0
      %v5922 = vsel %vm5872, %v5902, 0.0
      %v5923 = vsel %vm5873, %v5906, 0.0
      %v5924 = vsel %vm5874, %v5910, 0.0
      %v5925 = vsel %vm5875, %v5914, 0.0
      %v5926 = vadd.f32 %v5826, %v5916
      %v5927 = vadd.f32 %v5827, %v5917
      %v5928 = vadd.f32 %v5828, %v5918
      %v5929 = vadd.f32 %v5829, %v5919
      %v5930 = vadd.f32 %v5830, %v5920
      %v5931 = vadd.f32 %v5831, %v5921
      %v5932 = vadd.f32 %v5832, %v5922
      %v5933 = vadd.f32 %v5833, %v5923
      %v5934 = vadd.f32 %v5834, %v5924
      %v5935 = vadd.f32 %v5835, %v5925
      %5936 = vset.pattern.permute.xlu0 67
      %5937 = vperm.xlu0 %5936, %v1110
      %v5938 = vpop.permute.xlu0 %5937
      %5940 = vset.pattern.permute.xlu0 67
      %5941 = vperm.xlu0 %5940, %v1125
      %v5942 = vpop.permute.xlu0 %5941
      %5944 = vset.pattern.permute.xlu0 67
      %5945 = vperm.xlu0 %5944, %v1140
      %v5946 = vpop.permute.xlu0 %5945
      %5948 = vset.pattern.permute.xlu0 67
      %5949 = vperm.xlu0 %5948, %v1155
      %v5950 = vpop.permute.xlu0 %5949
      %5952 = vset.pattern.permute.xlu0 67
      %5953 = vperm.xlu0 %5952, %v1170
      %v5954 = vpop.permute.xlu0 %5953
      %5956 = vset.pattern.permute.xlu0 67
      %5957 = vperm.xlu0 %5956, %v1185
      %v5958 = vpop.permute.xlu0 %5957
      %5960 = vset.pattern.permute.xlu0 67
      %5961 = vperm.xlu0 %5960, %v1200
      %v5962 = vpop.permute.xlu0 %5961
      %5964 = vset.pattern.permute.xlu0 67
      %5965 = vperm.xlu0 %5964, %v1215
      %v5966 = vpop.permute.xlu0 %5965
      %5968 = vset.pattern.permute.xlu0 67
      %5969 = vperm.xlu0 %5968, %v1230
      %v5970 = vpop.permute.xlu0 %5969
      %5972 = vset.pattern.permute.xlu0 67
      %5973 = vperm.xlu0 %5972, %v1245
      %v5974 = vpop.permute.xlu0 %5973
      %v5976 = vmul.f32 %v5938, %v5736
      %v5977 = vmul.f32 %v5942, %v5737
      %v5978 = vmul.f32 %v5946, %v5738
      %v5979 = vmul.f32 %v5950, %v5739
      %v5980 = vmul.f32 %v5954, %v5740
      %v5981 = vmul.f32 %v5958, %v5741
      %v5982 = vmul.f32 %v5962, %v5742
      %v5983 = vmul.f32 %v5966, %v5743
      %v5984 = vmul.f32 %v5970, %v5744
      %v5985 = vmul.f32 %v5974, %v5745
      %v5986 = vmul.f32 %v5976, %v5926
      %v5987 = vmul.f32 %v5977, %v5927
      %v5988 = vmul.f32 %v5978, %v5928
      %v5989 = vmul.f32 %v5979, %v5929
      %v5990 = vmul.f32 %v5980, %v5930
      %v5991 = vmul.f32 %v5981, %v5931
      %v5992 = vmul.f32 %v5982, %v5932
      %v5993 = vmul.f32 %v5983, %v5933
      %v5994 = vmul.f32 %v5984, %v5934
      %v5995 = vmul.f32 %v5985, %v5935
      %v5996 = vadd.f32 %v5546, %v5986
      %v5997 = vadd.f32 %v5547, %v5987
      %v5998 = vadd.f32 %v5548, %v5988
      %v5999 = vadd.f32 %v5549, %v5989
      %v6000 = vadd.f32 %v5550, %v5990
      %v6001 = vadd.f32 %v5551, %v5991
      %v6002 = vadd.f32 %v5552, %v5992
      %v6003 = vadd.f32 %v5553, %v5993
      %v6004 = vadd.f32 %v5554, %v5994
      %v6005 = vadd.f32 %v5555, %v5995
      %6006 = vst.msk [vmem:[#allocation2] sm:$0xff] %vm988, %v5996
      %6007 = vst.msk [vmem:[#allocation2 + $0x10] sm:$0xff] %vm988, %v5997
      %6008 = vst.msk [vmem:[#allocation2 + $0x20] sm:$0xff] %vm988, %v5998
      %6009 = vst.msk [vmem:[#allocation2 + $0x30] sm:$0xff] %vm988, %v5999
      %6010 = vst.msk [vmem:[#allocation2 + $0x40] sm:$0xff] %vm988, %v6000
      %6011 = vst.msk [vmem:[#allocation2 + $0x50] sm:$0xff] %vm988, %v6001
      %6012 = vst.msk [vmem:[#allocation2 + $0x60] sm:$0xff] %vm988, %v6002
      %6013 = vst.msk [vmem:[#allocation2 + $0x70] sm:$0xff] %vm988, %v6003
      %6014 = vst.msk [vmem:[#allocation2 + $0x80] sm:$0xff] %vm988, %v6004
      %6015 = vst.msk [vmem:[#allocation2 + $0x90] sm:$0xff] %vm988, %v6005
      %6016 = vset.pattern.permute.xlu0 45
      %6017 = vperm.xlu0 %6016, %v1266
      %v6018 = vpop.permute.xlu0 %6017
      %6019 = vset.pattern.permute.xlu0 45
      %6020 = vperm.xlu0 %6019, %v1267
      %v6021 = vpop.permute.xlu0 %6020
      %6022 = vset.pattern.permute.xlu0 45
      %6023 = vperm.xlu0 %6022, %v1268
      %v6024 = vpop.permute.xlu0 %6023
      %6025 = vset.pattern.permute.xlu0 45
      %6026 = vperm.xlu0 %6025, %v1269
      %v6027 = vpop.permute.xlu0 %6026
      %6028 = vset.pattern.permute.xlu0 45
      %6029 = vperm.xlu0 %6028, %v1270
      %v6030 = vpop.permute.xlu0 %6029
      %6031 = vset.pattern.permute.xlu0 45
      %6032 = vperm.xlu0 %6031, %v1271
      %v6033 = vpop.permute.xlu0 %6032
      %6034 = vset.pattern.permute.xlu0 45
      %6035 = vperm.xlu0 %6034, %v1272
      %v6036 = vpop.permute.xlu0 %6035
      %6037 = vset.pattern.permute.xlu0 45
      %6038 = vperm.xlu0 %6037, %v1273
      %v6039 = vpop.permute.xlu0 %6038
      %6040 = vset.pattern.permute.xlu0 45
      %6041 = vperm.xlu0 %6040, %v1274
      %v6042 = vpop.permute.xlu0 %6041
      %6043 = vset.pattern.permute.xlu0 45
      %6044 = vperm.xlu0 %6043, %v1275
      %v6045 = vpop.permute.xlu0 %6044
      %vm6046 = vcmp.eq.s32.totalorder %v951, %v6018
      %vm6047 = vcmp.eq.s32.totalorder %v951, %v6021
      %vm6048 = vcmp.eq.s32.totalorder %v951, %v6024
      %vm6049 = vcmp.eq.s32.totalorder %v951, %v6027
      %vm6050 = vcmp.eq.s32.totalorder %v951, %v6030
      %vm6051 = vcmp.eq.s32.totalorder %v951, %v6033
      %vm6052 = vcmp.eq.s32.totalorder %v951, %v6036
      %vm6053 = vcmp.eq.s32.totalorder %v951, %v6039
      %vm6054 = vcmp.eq.s32.totalorder %v951, %v6042
      %vm6055 = vcmp.eq.s32.totalorder %v951, %v6045
      %6056 = vset.pattern.permute.xlu0 45
      %6057 = vperm.xlu0 %6056, %v1318
      %v6058 = vpop.permute.xlu0 %6057
      %6060 = vset.pattern.permute.xlu0 45
      %6061 = vperm.xlu0 %6060, %v1319
      %v6062 = vpop.permute.xlu0 %6061
      %6064 = vset.pattern.permute.xlu0 45
      %6065 = vperm.xlu0 %6064, %v1320
      %v6066 = vpop.permute.xlu0 %6065
      %6068 = vset.pattern.permute.xlu0 45
      %6069 = vperm.xlu0 %6068, %v1321
      %v6070 = vpop.permute.xlu0 %6069
      %6072 = vset.pattern.permute.xlu0 45
      %6073 = vperm.xlu0 %6072, %v1322
      %v6074 = vpop.permute.xlu0 %6073
      %6076 = vset.pattern.permute.xlu0 45
      %6077 = vperm.xlu0 %6076, %v1323
      %v6078 = vpop.permute.xlu0 %6077
      %6080 = vset.pattern.permute.xlu0 45
      %6081 = vperm.xlu0 %6080, %v1324
      %v6082 = vpop.permute.xlu0 %6081
      %6084 = vset.pattern.permute.xlu0 45
      %6085 = vperm.xlu0 %6084, %v1325
      %v6086 = vpop.permute.xlu0 %6085
      %6088 = vset.pattern.permute.xlu0 45
      %6089 = vperm.xlu0 %6088, %v1326
      %v6090 = vpop.permute.xlu0 %6089
      %6092 = vset.pattern.permute.xlu0 45
      %6093 = vperm.xlu0 %6092, %v1327
      %v6094 = vpop.permute.xlu0 %6093
      %v6096 = vsel %vm6046, %v6058, 0.0
      %v6097 = vsel %vm6047, %v6062, 0.0
      %v6098 = vsel %vm6048, %v6066, 0.0
      %v6099 = vsel %vm6049, %v6070, 0.0
      %v6100 = vsel %vm6050, %v6074, 0.0
      %v6101 = vsel %vm6051, %v6078, 0.0
      %v6102 = vsel %vm6052, %v6082, 0.0
      %v6103 = vsel %vm6053, %v6086, 0.0
      %v6104 = vsel %vm6054, %v6090, 0.0
      %v6105 = vsel %vm6055, %v6094, 0.0
      %6106 = vset.pattern.permute.xlu0 45
      %6107 = vperm.xlu0 %6106, %v1388
      %v6108 = vpop.permute.xlu0 %6107
      %6109 = vset.pattern.permute.xlu0 45
      %6110 = vperm.xlu0 %6109, %v1389
      %v6111 = vpop.permute.xlu0 %6110
      %6112 = vset.pattern.permute.xlu0 45
      %6113 = vperm.xlu0 %6112, %v1390
      %v6114 = vpop.permute.xlu0 %6113
      %6115 = vset.pattern.permute.xlu0 45
      %6116 = vperm.xlu0 %6115, %v1391
      %v6117 = vpop.permute.xlu0 %6116
      %6118 = vset.pattern.permute.xlu0 45
      %6119 = vperm.xlu0 %6118, %v1392
      %v6120 = vpop.permute.xlu0 %6119
      %6121 = vset.pattern.permute.xlu0 45
      %6122 = vperm.xlu0 %6121, %v1393
      %v6123 = vpop.permute.xlu0 %6122
      %6124 = vset.pattern.permute.xlu0 45
      %6125 = vperm.xlu0 %6124, %v1394
      %v6126 = vpop.permute.xlu0 %6125
      %6127 = vset.pattern.permute.xlu0 45
      %6128 = vperm.xlu0 %6127, %v1395
      %v6129 = vpop.permute.xlu0 %6128
      %6130 = vset.pattern.permute.xlu0 45
      %6131 = vperm.xlu0 %6130, %v1396
      %v6132 = vpop.permute.xlu0 %6131
      %6133 = vset.pattern.permute.xlu0 45
      %6134 = vperm.xlu0 %6133, %v1397
      %v6135 = vpop.permute.xlu0 %6134
      %vm6136 = vcmp.eq.s32.totalorder %v951, %v6108
      %vm6137 = vcmp.eq.s32.totalorder %v951, %v6111
      %vm6138 = vcmp.eq.s32.totalorder %v951, %v6114
      %vm6139 = vcmp.eq.s32.totalorder %v951, %v6117
      %vm6140 = vcmp.eq.s32.totalorder %v951, %v6120
      %vm6141 = vcmp.eq.s32.totalorder %v951, %v6123
      %vm6142 = vcmp.eq.s32.totalorder %v951, %v6126
      %vm6143 = vcmp.eq.s32.totalorder %v951, %v6129
      %vm6144 = vcmp.eq.s32.totalorder %v951, %v6132
      %vm6145 = vcmp.eq.s32.totalorder %v951, %v6135
      %6146 = vset.pattern.permute.xlu0 45
      %6147 = vperm.xlu0 %6146, %v1256
      %v6148 = vpop.permute.xlu0 %6147
      %6150 = vset.pattern.permute.xlu0 45
      %6151 = vperm.xlu0 %6150, %v1257
      %v6152 = vpop.permute.xlu0 %6151
      %6154 = vset.pattern.permute.xlu0 45
      %6155 = vperm.xlu0 %6154, %v1258
      %v6156 = vpop.permute.xlu0 %6155
      %6158 = vset.pattern.permute.xlu0 45
      %6159 = vperm.xlu0 %6158, %v1259
      %v6160 = vpop.permute.xlu0 %6159
      %6162 = vset.pattern.permute.xlu0 45
      %6163 = vperm.xlu0 %6162, %v1260
      %v6164 = vpop.permute.xlu0 %6163
      %6166 = vset.pattern.permute.xlu0 45
      %6167 = vperm.xlu0 %6166, %v1261
      %v6168 = vpop.permute.xlu0 %6167
      %6170 = vset.pattern.permute.xlu0 45
      %6171 = vperm.xlu0 %6170, %v1262
      %v6172 = vpop.permute.xlu0 %6171
      %6174 = vset.pattern.permute.xlu0 45
      %6175 = vperm.xlu0 %6174, %v1263
      %v6176 = vpop.permute.xlu0 %6175
      %6178 = vset.pattern.permute.xlu0 45
      %6179 = vperm.xlu0 %6178, %v1264
      %v6180 = vpop.permute.xlu0 %6179
      %6182 = vset.pattern.permute.xlu0 45
      %6183 = vperm.xlu0 %6182, %v1265
      %v6184 = vpop.permute.xlu0 %6183
      %v6186 = vsel %vm6136, %v6148, 0.0
      %v6187 = vsel %vm6137, %v6152, 0.0
      %v6188 = vsel %vm6138, %v6156, 0.0
      %v6189 = vsel %vm6139, %v6160, 0.0
      %v6190 = vsel %vm6140, %v6164, 0.0
      %v6191 = vsel %vm6141, %v6168, 0.0
      %v6192 = vsel %vm6142, %v6172, 0.0
      %v6193 = vsel %vm6143, %v6176, 0.0
      %v6194 = vsel %vm6144, %v6180, 0.0
      %v6195 = vsel %vm6145, %v6184, 0.0
      %v6196 = vadd.f32 %v6096, %v6186
      %v6197 = vadd.f32 %v6097, %v6187
      %v6198 = vadd.f32 %v6098, %v6188
      %v6199 = vadd.f32 %v6099, %v6189
      %v6200 = vadd.f32 %v6100, %v6190
      %v6201 = vadd.f32 %v6101, %v6191
      %v6202 = vadd.f32 %v6102, %v6192
      %v6203 = vadd.f32 %v6103, %v6193
      %v6204 = vadd.f32 %v6104, %v6194
      %v6205 = vadd.f32 %v6105, %v6195
      %6206 = vset.pattern.permute.xlu0 44
      %6207 = vperm.xlu0 %6206, %v1266
      %v6208 = vpop.permute.xlu0 %6207
      %6209 = vset.pattern.permute.xlu0 44
      %6210 = vperm.xlu0 %6209, %v1267
      %v6211 = vpop.permute.xlu0 %6210
      %6212 = vset.pattern.permute.xlu0 44
      %6213 = vperm.xlu0 %6212, %v1268
      %v6214 = vpop.permute.xlu0 %6213
      %6215 = vset.pattern.permute.xlu0 44
      %6216 = vperm.xlu0 %6215, %v1269
      %v6217 = vpop.permute.xlu0 %6216
      %6218 = vset.pattern.permute.xlu0 44
      %6219 = vperm.xlu0 %6218, %v1270
      %v6220 = vpop.permute.xlu0 %6219
      %6221 = vset.pattern.permute.xlu0 44
      %6222 = vperm.xlu0 %6221, %v1271
      %v6223 = vpop.permute.xlu0 %6222
      %6224 = vset.pattern.permute.xlu0 44
      %6225 = vperm.xlu0 %6224, %v1272
      %v6226 = vpop.permute.xlu0 %6225
      %6227 = vset.pattern.permute.xlu0 44
      %6228 = vperm.xlu0 %6227, %v1273
      %v6229 = vpop.permute.xlu0 %6228
      %6230 = vset.pattern.permute.xlu0 44
      %6231 = vperm.xlu0 %6230, %v1274
      %v6232 = vpop.permute.xlu0 %6231
      %6233 = vset.pattern.permute.xlu0 44
      %6234 = vperm.xlu0 %6233, %v1275
      %v6235 = vpop.permute.xlu0 %6234
      %vm6236 = vcmp.eq.s32.totalorder %v5105, %v6208
      %vm6237 = vcmp.eq.s32.totalorder %v5105, %v6211
      %vm6238 = vcmp.eq.s32.totalorder %v5105, %v6214
      %vm6239 = vcmp.eq.s32.totalorder %v5105, %v6217
      %vm6240 = vcmp.eq.s32.totalorder %v5105, %v6220
      %vm6241 = vcmp.eq.s32.totalorder %v5105, %v6223
      %vm6242 = vcmp.eq.s32.totalorder %v5105, %v6226
      %vm6243 = vcmp.eq.s32.totalorder %v5105, %v6229
      %vm6244 = vcmp.eq.s32.totalorder %v5105, %v6232
      %vm6245 = vcmp.eq.s32.totalorder %v5105, %v6235
      %6246 = vset.pattern.permute.xlu0 44
      %6247 = vperm.xlu0 %6246, %v1318
      %v6248 = vpop.permute.xlu0 %6247
      %6250 = vset.pattern.permute.xlu0 44
      %6251 = vperm.xlu0 %6250, %v1319
      %v6252 = vpop.permute.xlu0 %6251
      %6254 = vset.pattern.permute.xlu0 44
      %6255 = vperm.xlu0 %6254, %v1320
      %v6256 = vpop.permute.xlu0 %6255
      %6258 = vset.pattern.permute.xlu0 44
      %6259 = vperm.xlu0 %6258, %v1321
      %v6260 = vpop.permute.xlu0 %6259
      %6262 = vset.pattern.permute.xlu0 44
      %6263 = vperm.xlu0 %6262, %v1322
      %v6264 = vpop.permute.xlu0 %6263
      %6266 = vset.pattern.permute.xlu0 44
      %6267 = vperm.xlu0 %6266, %v1323
      %v6268 = vpop.permute.xlu0 %6267
      %6270 = vset.pattern.permute.xlu0 44
      %6271 = vperm.xlu0 %6270, %v1324
      %v6272 = vpop.permute.xlu0 %6271
      %6274 = vset.pattern.permute.xlu0 44
      %6275 = vperm.xlu0 %6274, %v1325
      %v6276 = vpop.permute.xlu0 %6275
      %6278 = vset.pattern.permute.xlu0 44
      %6279 = vperm.xlu0 %6278, %v1326
      %v6280 = vpop.permute.xlu0 %6279
      %6282 = vset.pattern.permute.xlu0 44
      %6283 = vperm.xlu0 %6282, %v1327
      %v6284 = vpop.permute.xlu0 %6283
      %v6286 = vsel %vm6236, %v6248, 0.0
      %v6287 = vsel %vm6237, %v6252, 0.0
      %v6288 = vsel %vm6238, %v6256, 0.0
      %v6289 = vsel %vm6239, %v6260, 0.0
      %v6290 = vsel %vm6240, %v6264, 0.0
      %v6291 = vsel %vm6241, %v6268, 0.0
      %v6292 = vsel %vm6242, %v6272, 0.0
      %v6293 = vsel %vm6243, %v6276, 0.0
      %v6294 = vsel %vm6244, %v6280, 0.0
      %v6295 = vsel %vm6245, %v6284, 0.0
      %6296 = vset.pattern.permute.xlu0 44
      %6297 = vperm.xlu0 %6296, %v1388
      %v6298 = vpop.permute.xlu0 %6297
      %6299 = vset.pattern.permute.xlu0 44
      %6300 = vperm.xlu0 %6299, %v1389
      %v6301 = vpop.permute.xlu0 %6300
      %6302 = vset.pattern.permute.xlu0 44
      %6303 = vperm.xlu0 %6302, %v1390
      %v6304 = vpop.permute.xlu0 %6303
      %6305 = vset.pattern.permute.xlu0 44
      %6306 = vperm.xlu0 %6305, %v1391
      %v6307 = vpop.permute.xlu0 %6306
      %6308 = vset.pattern.permute.xlu0 44
      %6309 = vperm.xlu0 %6308, %v1392
      %v6310 = vpop.permute.xlu0 %6309
      %6311 = vset.pattern.permute.xlu0 44
      %6312 = vperm.xlu0 %6311, %v1393
      %v6313 = vpop.permute.xlu0 %6312
      %6314 = vset.pattern.permute.xlu0 44
      %6315 = vperm.xlu0 %6314, %v1394
      %v6316 = vpop.permute.xlu0 %6315
      %6317 = vset.pattern.permute.xlu0 44
      %6318 = vperm.xlu0 %6317, %v1395
      %v6319 = vpop.permute.xlu0 %6318
      %6320 = vset.pattern.permute.xlu0 44
      %6321 = vperm.xlu0 %6320, %v1396
      %v6322 = vpop.permute.xlu0 %6321
      %6323 = vset.pattern.permute.xlu0 44
      %6324 = vperm.xlu0 %6323, %v1397
      %v6325 = vpop.permute.xlu0 %6324
      %vm6326 = vcmp.eq.s32.totalorder %v5105, %v6298
      %vm6327 = vcmp.eq.s32.totalorder %v5105, %v6301
      %vm6328 = vcmp.eq.s32.totalorder %v5105, %v6304
      %vm6329 = vcmp.eq.s32.totalorder %v5105, %v6307
      %vm6330 = vcmp.eq.s32.totalorder %v5105, %v6310
      %vm6331 = vcmp.eq.s32.totalorder %v5105, %v6313
      %vm6332 = vcmp.eq.s32.totalorder %v5105, %v6316
      %vm6333 = vcmp.eq.s32.totalorder %v5105, %v6319
      %vm6334 = vcmp.eq.s32.totalorder %v5105, %v6322
      %vm6335 = vcmp.eq.s32.totalorder %v5105, %v6325
      %6336 = vset.pattern.permute.xlu0 44
      %6337 = vperm.xlu0 %6336, %v1256
      %v6338 = vpop.permute.xlu0 %6337
      %6340 = vset.pattern.permute.xlu0 44
      %6341 = vperm.xlu0 %6340, %v1257
      %v6342 = vpop.permute.xlu0 %6341
      %6344 = vset.pattern.permute.xlu0 44
      %6345 = vperm.xlu0 %6344, %v1258
      %v6346 = vpop.permute.xlu0 %6345
      %6348 = vset.pattern.permute.xlu0 44
      %6349 = vperm.xlu0 %6348, %v1259
      %v6350 = vpop.permute.xlu0 %6349
      %6352 = vset.pattern.permute.xlu0 44
      %6353 = vperm.xlu0 %6352, %v1260
      %v6354 = vpop.permute.xlu0 %6353
      %6356 = vset.pattern.permute.xlu0 44
      %6357 = vperm.xlu0 %6356, %v1261
      %v6358 = vpop.permute.xlu0 %6357
      %6360 = vset.pattern.permute.xlu0 44
      %6361 = vperm.xlu0 %6360, %v1262
      %v6362 = vpop.permute.xlu0 %6361
      %6364 = vset.pattern.permute.xlu0 44
      %6365 = vperm.xlu0 %6364, %v1263
      %v6366 = vpop.permute.xlu0 %6365
      %6368 = vset.pattern.permute.xlu0 44
      %6369 = vperm.xlu0 %6368, %v1264
      %v6370 = vpop.permute.xlu0 %6369
      %6372 = vset.pattern.permute.xlu0 44
      %6373 = vperm.xlu0 %6372, %v1265
      %v6374 = vpop.permute.xlu0 %6373
      %v6376 = vsel %vm6326, %v6338, 0.0
      %v6377 = vsel %vm6327, %v6342, 0.0
      %v6378 = vsel %vm6328, %v6346, 0.0
      %v6379 = vsel %vm6329, %v6350, 0.0
      %v6380 = vsel %vm6330, %v6354, 0.0
      %v6381 = vsel %vm6331, %v6358, 0.0
      %v6382 = vsel %vm6332, %v6362, 0.0
      %v6383 = vsel %vm6333, %v6366, 0.0
      %v6384 = vsel %vm6334, %v6370, 0.0
      %v6385 = vsel %vm6335, %v6374, 0.0
      %v6386 = vadd.f32 %v6286, %v6376
      %v6387 = vadd.f32 %v6287, %v6377
      %v6388 = vadd.f32 %v6288, %v6378
      %v6389 = vadd.f32 %v6289, %v6379
      %v6390 = vadd.f32 %v6290, %v6380
      %v6391 = vadd.f32 %v6291, %v6381
      %v6392 = vadd.f32 %v6292, %v6382
      %v6393 = vadd.f32 %v6293, %v6383
      %v6394 = vadd.f32 %v6294, %v6384
      %v6395 = vadd.f32 %v6295, %v6385
      %6396 = vset.pattern.permute.xlu0 70
      %6397 = vperm.xlu0 %6396, %v1110
      %v6398 = vpop.permute.xlu0 %6397
      %6400 = vset.pattern.permute.xlu0 70
      %6401 = vperm.xlu0 %6400, %v1125
      %v6402 = vpop.permute.xlu0 %6401
      %6404 = vset.pattern.permute.xlu0 70
      %6405 = vperm.xlu0 %6404, %v1140
      %v6406 = vpop.permute.xlu0 %6405
      %6408 = vset.pattern.permute.xlu0 70
      %6409 = vperm.xlu0 %6408, %v1155
      %v6410 = vpop.permute.xlu0 %6409
      %6412 = vset.pattern.permute.xlu0 70
      %6413 = vperm.xlu0 %6412, %v1170
      %v6414 = vpop.permute.xlu0 %6413
      %6416 = vset.pattern.permute.xlu0 70
      %6417 = vperm.xlu0 %6416, %v1185
      %v6418 = vpop.permute.xlu0 %6417
      %6420 = vset.pattern.permute.xlu0 70
      %6421 = vperm.xlu0 %6420, %v1200
      %v6422 = vpop.permute.xlu0 %6421
      %6424 = vset.pattern.permute.xlu0 70
      %6425 = vperm.xlu0 %6424, %v1215
      %v6426 = vpop.permute.xlu0 %6425
      %6428 = vset.pattern.permute.xlu0 70
      %6429 = vperm.xlu0 %6428, %v1230
      %v6430 = vpop.permute.xlu0 %6429
      %6432 = vset.pattern.permute.xlu0 70
      %6433 = vperm.xlu0 %6432, %v1245
      %v6434 = vpop.permute.xlu0 %6433
      %v6436 = vmul.f32 %v6398, %v6196
      %v6437 = vmul.f32 %v6402, %v6197
      %v6438 = vmul.f32 %v6406, %v6198
      %v6439 = vmul.f32 %v6410, %v6199
      %v6440 = vmul.f32 %v6414, %v6200
      %v6441 = vmul.f32 %v6418, %v6201
      %v6442 = vmul.f32 %v6422, %v6202
      %v6443 = vmul.f32 %v6426, %v6203
      %v6444 = vmul.f32 %v6430, %v6204
      %v6445 = vmul.f32 %v6434, %v6205
      %v6446 = vmul.f32 %v6436, %v6386
      %v6447 = vmul.f32 %v6437, %v6387
      %v6448 = vmul.f32 %v6438, %v6388
      %v6449 = vmul.f32 %v6439, %v6389
      %v6450 = vmul.f32 %v6440, %v6390
      %v6451 = vmul.f32 %v6441, %v6391
      %v6452 = vmul.f32 %v6442, %v6392
      %v6453 = vmul.f32 %v6443, %v6393
      %v6454 = vmul.f32 %v6444, %v6394
      %v6455 = vmul.f32 %v6445, %v6395
      %v6456 = vadd.f32 %v6446, 0.0
      %v6457 = vadd.f32 %v6447, 0.0
      %v6458 = vadd.f32 %v6448, 0.0
      %v6459 = vadd.f32 %v6449, 0.0
      %v6460 = vadd.f32 %v6450, 0.0
      %v6461 = vadd.f32 %v6451, 0.0
      %v6462 = vadd.f32 %v6452, 0.0
      %v6463 = vadd.f32 %v6453, 0.0
      %v6464 = vadd.f32 %v6454, 0.0
      %v6465 = vadd.f32 %v6455, 0.0
      %6466 = vset.pattern.permute.xlu0 47
      %6467 = vperm.xlu0 %6466, %v1266
      %v6468 = vpop.permute.xlu0 %6467
      %6469 = vset.pattern.permute.xlu0 47
      %6470 = vperm.xlu0 %6469, %v1267
      %v6471 = vpop.permute.xlu0 %6470
      %6472 = vset.pattern.permute.xlu0 47
      %6473 = vperm.xlu0 %6472, %v1268
      %v6474 = vpop.permute.xlu0 %6473
      %6475 = vset.pattern.permute.xlu0 47
      %6476 = vperm.xlu0 %6475, %v1269
      %v6477 = vpop.permute.xlu0 %6476
      %6478 = vset.pattern.permute.xlu0 47
      %6479 = vperm.xlu0 %6478, %v1270
      %v6480 = vpop.permute.xlu0 %6479
      %6481 = vset.pattern.permute.xlu0 47
      %6482 = vperm.xlu0 %6481, %v1271
      %v6483 = vpop.permute.xlu0 %6482
      %6484 = vset.pattern.permute.xlu0 47
      %6485 = vperm.xlu0 %6484, %v1272
      %v6486 = vpop.permute.xlu0 %6485
      %6487 = vset.pattern.permute.xlu0 47
      %6488 = vperm.xlu0 %6487, %v1273
      %v6489 = vpop.permute.xlu0 %6488
      %6490 = vset.pattern.permute.xlu0 47
      %6491 = vperm.xlu0 %6490, %v1274
      %v6492 = vpop.permute.xlu0 %6491
      %6493 = vset.pattern.permute.xlu0 47
      %6494 = vperm.xlu0 %6493, %v1275
      %v6495 = vpop.permute.xlu0 %6494
      %vm6496 = vcmp.eq.s32.totalorder %v951, %v6468
      %vm6497 = vcmp.eq.s32.totalorder %v951, %v6471
      %vm6498 = vcmp.eq.s32.totalorder %v951, %v6474
      %vm6499 = vcmp.eq.s32.totalorder %v951, %v6477
      %vm6500 = vcmp.eq.s32.totalorder %v951, %v6480
      %vm6501 = vcmp.eq.s32.totalorder %v951, %v6483
      %vm6502 = vcmp.eq.s32.totalorder %v951, %v6486
      %vm6503 = vcmp.eq.s32.totalorder %v951, %v6489
      %vm6504 = vcmp.eq.s32.totalorder %v951, %v6492
      %vm6505 = vcmp.eq.s32.totalorder %v951, %v6495
      %6506 = vset.pattern.permute.xlu0 47
      %6507 = vperm.xlu0 %6506, %v1318
      %v6508 = vpop.permute.xlu0 %6507
      %6510 = vset.pattern.permute.xlu0 47
      %6511 = vperm.xlu0 %6510, %v1319
      %v6512 = vpop.permute.xlu0 %6511
      %6514 = vset.pattern.permute.xlu0 47
      %6515 = vperm.xlu0 %6514, %v1320
      %v6516 = vpop.permute.xlu0 %6515
      %6518 = vset.pattern.permute.xlu0 47
      %6519 = vperm.xlu0 %6518, %v1321
      %v6520 = vpop.permute.xlu0 %6519
      %6522 = vset.pattern.permute.xlu0 47
      %6523 = vperm.xlu0 %6522, %v1322
      %v6524 = vpop.permute.xlu0 %6523
      %6526 = vset.pattern.permute.xlu0 47
      %6527 = vperm.xlu0 %6526, %v1323
      %v6528 = vpop.permute.xlu0 %6527
      %6530 = vset.pattern.permute.xlu0 47
      %6531 = vperm.xlu0 %6530, %v1324
      %v6532 = vpop.permute.xlu0 %6531
      %6534 = vset.pattern.permute.xlu0 47
      %6535 = vperm.xlu0 %6534, %v1325
      %v6536 = vpop.permute.xlu0 %6535
      %6538 = vset.pattern.permute.xlu0 47
      %6539 = vperm.xlu0 %6538, %v1326
      %v6540 = vpop.permute.xlu0 %6539
      %6542 = vset.pattern.permute.xlu0 47
      %6543 = vperm.xlu0 %6542, %v1327
      %v6544 = vpop.permute.xlu0 %6543
      %v6546 = vsel %vm6496, %v6508, 0.0
      %v6547 = vsel %vm6497, %v6512, 0.0
      %v6548 = vsel %vm6498, %v6516, 0.0
      %v6549 = vsel %vm6499, %v6520, 0.0
      %v6550 = vsel %vm6500, %v6524, 0.0
      %v6551 = vsel %vm6501, %v6528, 0.0
      %v6552 = vsel %vm6502, %v6532, 0.0
      %v6553 = vsel %vm6503, %v6536, 0.0
      %v6554 = vsel %vm6504, %v6540, 0.0
      %v6555 = vsel %vm6505, %v6544, 0.0
      %6556 = vset.pattern.permute.xlu0 47
      %6557 = vperm.xlu0 %6556, %v1388
      %v6558 = vpop.permute.xlu0 %6557
      %6559 = vset.pattern.permute.xlu0 47
      %6560 = vperm.xlu0 %6559, %v1389
      %v6561 = vpop.permute.xlu0 %6560
      %6562 = vset.pattern.permute.xlu0 47
      %6563 = vperm.xlu0 %6562, %v1390
      %v6564 = vpop.permute.xlu0 %6563
      %6565 = vset.pattern.permute.xlu0 47
      %6566 = vperm.xlu0 %6565, %v1391
      %v6567 = vpop.permute.xlu0 %6566
      %6568 = vset.pattern.permute.xlu0 47
      %6569 = vperm.xlu0 %6568, %v1392
      %v6570 = vpop.permute.xlu0 %6569
      %6571 = vset.pattern.permute.xlu0 47
      %6572 = vperm.xlu0 %6571, %v1393
      %v6573 = vpop.permute.xlu0 %6572
      %6574 = vset.pattern.permute.xlu0 47
      %6575 = vperm.xlu0 %6574, %v1394
      %v6576 = vpop.permute.xlu0 %6575
      %6577 = vset.pattern.permute.xlu0 47
      %6578 = vperm.xlu0 %6577, %v1395
      %v6579 = vpop.permute.xlu0 %6578
      %6580 = vset.pattern.permute.xlu0 47
      %6581 = vperm.xlu0 %6580, %v1396
      %v6582 = vpop.permute.xlu0 %6581
      %6583 = vset.pattern.permute.xlu0 47
      %6584 = vperm.xlu0 %6583, %v1397
      %v6585 = vpop.permute.xlu0 %6584
      %vm6586 = vcmp.eq.s32.totalorder %v951, %v6558
      %vm6587 = vcmp.eq.s32.totalorder %v951, %v6561
      %vm6588 = vcmp.eq.s32.totalorder %v951, %v6564
      %vm6589 = vcmp.eq.s32.totalorder %v951, %v6567
      %vm6590 = vcmp.eq.s32.totalorder %v951, %v6570
      %vm6591 = vcmp.eq.s32.totalorder %v951, %v6573
      %vm6592 = vcmp.eq.s32.totalorder %v951, %v6576
      %vm6593 = vcmp.eq.s32.totalorder %v951, %v6579
      %vm6594 = vcmp.eq.s32.totalorder %v951, %v6582
      %vm6595 = vcmp.eq.s32.totalorder %v951, %v6585
      %6596 = vset.pattern.permute.xlu0 47
      %6597 = vperm.xlu0 %6596, %v1256
      %v6598 = vpop.permute.xlu0 %6597
      %6600 = vset.pattern.permute.xlu0 47
      %6601 = vperm.xlu0 %6600, %v1257
      %v6602 = vpop.permute.xlu0 %6601
      %6604 = vset.pattern.permute.xlu0 47
      %6605 = vperm.xlu0 %6604, %v1258
      %v6606 = vpop.permute.xlu0 %6605
      %6608 = vset.pattern.permute.xlu0 47
      %6609 = vperm.xlu0 %6608, %v1259
      %v6610 = vpop.permute.xlu0 %6609
      %6612 = vset.pattern.permute.xlu0 47
      %6613 = vperm.xlu0 %6612, %v1260
      %v6614 = vpop.permute.xlu0 %6613
      %6616 = vset.pattern.permute.xlu0 47
      %6617 = vperm.xlu0 %6616, %v1261
      %v6618 = vpop.permute.xlu0 %6617
      %6620 = vset.pattern.permute.xlu0 47
      %6621 = vperm.xlu0 %6620, %v1262
      %v6622 = vpop.permute.xlu0 %6621
      %6624 = vset.pattern.permute.xlu0 47
      %6625 = vperm.xlu0 %6624, %v1263
      %v6626 = vpop.permute.xlu0 %6625
      %6628 = vset.pattern.permute.xlu0 47
      %6629 = vperm.xlu0 %6628, %v1264
      %v6630 = vpop.permute.xlu0 %6629
      %6632 = vset.pattern.permute.xlu0 47
      %6633 = vperm.xlu0 %6632, %v1265
      %v6634 = vpop.permute.xlu0 %6633
      %v6636 = vsel %vm6586, %v6598, 0.0
      %v6637 = vsel %vm6587, %v6602, 0.0
      %v6638 = vsel %vm6588, %v6606, 0.0
      %v6639 = vsel %vm6589, %v6610, 0.0
      %v6640 = vsel %vm6590, %v6614, 0.0
      %v6641 = vsel %vm6591, %v6618, 0.0
      %v6642 = vsel %vm6592, %v6622, 0.0
      %v6643 = vsel %vm6593, %v6626, 0.0
      %v6644 = vsel %vm6594, %v6630, 0.0
      %v6645 = vsel %vm6595, %v6634, 0.0
      %v6646 = vadd.f32 %v6546, %v6636
      %v6647 = vadd.f32 %v6547, %v6637
      %v6648 = vadd.f32 %v6548, %v6638
      %v6649 = vadd.f32 %v6549, %v6639
      %v6650 = vadd.f32 %v6550, %v6640
      %v6651 = vadd.f32 %v6551, %v6641
      %v6652 = vadd.f32 %v6552, %v6642
      %v6653 = vadd.f32 %v6553, %v6643
      %v6654 = vadd.f32 %v6554, %v6644
      %v6655 = vadd.f32 %v6555, %v6645
      %6656 = vset.pattern.permute.xlu0 46
      %6657 = vperm.xlu0 %6656, %v1266
      %v6658 = vpop.permute.xlu0 %6657
      %6659 = vset.pattern.permute.xlu0 46
      %6660 = vperm.xlu0 %6659, %v1267
      %v6661 = vpop.permute.xlu0 %6660
      %6662 = vset.pattern.permute.xlu0 46
      %6663 = vperm.xlu0 %6662, %v1268
      %v6664 = vpop.permute.xlu0 %6663
      %6665 = vset.pattern.permute.xlu0 46
      %6666 = vperm.xlu0 %6665, %v1269
      %v6667 = vpop.permute.xlu0 %6666
      %6668 = vset.pattern.permute.xlu0 46
      %6669 = vperm.xlu0 %6668, %v1270
      %v6670 = vpop.permute.xlu0 %6669
      %6671 = vset.pattern.permute.xlu0 46
      %6672 = vperm.xlu0 %6671, %v1271
      %v6673 = vpop.permute.xlu0 %6672
      %6674 = vset.pattern.permute.xlu0 46
      %6675 = vperm.xlu0 %6674, %v1272
      %v6676 = vpop.permute.xlu0 %6675
      %6677 = vset.pattern.permute.xlu0 46
      %6678 = vperm.xlu0 %6677, %v1273
      %v6679 = vpop.permute.xlu0 %6678
      %6680 = vset.pattern.permute.xlu0 46
      %6681 = vperm.xlu0 %6680, %v1274
      %v6682 = vpop.permute.xlu0 %6681
      %6683 = vset.pattern.permute.xlu0 46
      %6684 = vperm.xlu0 %6683, %v1275
      %v6685 = vpop.permute.xlu0 %6684
      %vm6686 = vcmp.eq.s32.totalorder %v5105, %v6658
      %vm6687 = vcmp.eq.s32.totalorder %v5105, %v6661
      %vm6688 = vcmp.eq.s32.totalorder %v5105, %v6664
      %vm6689 = vcmp.eq.s32.totalorder %v5105, %v6667
      %vm6690 = vcmp.eq.s32.totalorder %v5105, %v6670
      %vm6691 = vcmp.eq.s32.totalorder %v5105, %v6673
      %vm6692 = vcmp.eq.s32.totalorder %v5105, %v6676
      %vm6693 = vcmp.eq.s32.totalorder %v5105, %v6679
      %vm6694 = vcmp.eq.s32.totalorder %v5105, %v6682
      %vm6695 = vcmp.eq.s32.totalorder %v5105, %v6685
      %6696 = vset.pattern.permute.xlu0 46
      %6697 = vperm.xlu0 %6696, %v1318
      %v6698 = vpop.permute.xlu0 %6697
      %6700 = vset.pattern.permute.xlu0 46
      %6701 = vperm.xlu0 %6700, %v1319
      %v6702 = vpop.permute.xlu0 %6701
      %6704 = vset.pattern.permute.xlu0 46
      %6705 = vperm.xlu0 %6704, %v1320
      %v6706 = vpop.permute.xlu0 %6705
      %6708 = vset.pattern.permute.xlu0 46
      %6709 = vperm.xlu0 %6708, %v1321
      %v6710 = vpop.permute.xlu0 %6709
      %6712 = vset.pattern.permute.xlu0 46
      %6713 = vperm.xlu0 %6712, %v1322
      %v6714 = vpop.permute.xlu0 %6713
      %6716 = vset.pattern.permute.xlu0 46
      %6717 = vperm.xlu0 %6716, %v1323
      %v6718 = vpop.permute.xlu0 %6717
      %6720 = vset.pattern.permute.xlu0 46
      %6721 = vperm.xlu0 %6720, %v1324
      %v6722 = vpop.permute.xlu0 %6721
      %6724 = vset.pattern.permute.xlu0 46
      %6725 = vperm.xlu0 %6724, %v1325
      %v6726 = vpop.permute.xlu0 %6725
      %6728 = vset.pattern.permute.xlu0 46
      %6729 = vperm.xlu0 %6728, %v1326
      %v6730 = vpop.permute.xlu0 %6729
      %6732 = vset.pattern.permute.xlu0 46
      %6733 = vperm.xlu0 %6732, %v1327
      %v6734 = vpop.permute.xlu0 %6733
      %v6736 = vsel %vm6686, %v6698, 0.0
      %v6737 = vsel %vm6687, %v6702, 0.0
      %v6738 = vsel %vm6688, %v6706, 0.0
      %v6739 = vsel %vm6689, %v6710, 0.0
      %v6740 = vsel %vm6690, %v6714, 0.0
      %v6741 = vsel %vm6691, %v6718, 0.0
      %v6742 = vsel %vm6692, %v6722, 0.0
      %v6743 = vsel %vm6693, %v6726, 0.0
      %v6744 = vsel %vm6694, %v6730, 0.0
      %v6745 = vsel %vm6695, %v6734, 0.0
      %6746 = vset.pattern.permute.xlu0 46
      %6747 = vperm.xlu0 %6746, %v1388
      %v6748 = vpop.permute.xlu0 %6747
      %6749 = vset.pattern.permute.xlu0 46
      %6750 = vperm.xlu0 %6749, %v1389
      %v6751 = vpop.permute.xlu0 %6750
      %6752 = vset.pattern.permute.xlu0 46
      %6753 = vperm.xlu0 %6752, %v1390
      %v6754 = vpop.permute.xlu0 %6753
      %6755 = vset.pattern.permute.xlu0 46
      %6756 = vperm.xlu0 %6755, %v1391
      %v6757 = vpop.permute.xlu0 %6756
      %6758 = vset.pattern.permute.xlu0 46
      %6759 = vperm.xlu0 %6758, %v1392
      %v6760 = vpop.permute.xlu0 %6759
      %6761 = vset.pattern.permute.xlu0 46
      %6762 = vperm.xlu0 %6761, %v1393
      %v6763 = vpop.permute.xlu0 %6762
      %6764 = vset.pattern.permute.xlu0 46
      %6765 = vperm.xlu0 %6764, %v1394
      %v6766 = vpop.permute.xlu0 %6765
      %6767 = vset.pattern.permute.xlu0 46
      %6768 = vperm.xlu0 %6767, %v1395
      %v6769 = vpop.permute.xlu0 %6768
      %6770 = vset.pattern.permute.xlu0 46
      %6771 = vperm.xlu0 %6770, %v1396
      %v6772 = vpop.permute.xlu0 %6771
      %6773 = vset.pattern.permute.xlu0 46
      %6774 = vperm.xlu0 %6773, %v1397
      %v6775 = vpop.permute.xlu0 %6774
      %vm6776 = vcmp.eq.s32.totalorder %v5105, %v6748
      %vm6777 = vcmp.eq.s32.totalorder %v5105, %v6751
      %vm6778 = vcmp.eq.s32.totalorder %v5105, %v6754
      %vm6779 = vcmp.eq.s32.totalorder %v5105, %v6757
      %vm6780 = vcmp.eq.s32.totalorder %v5105, %v6760
      %vm6781 = vcmp.eq.s32.totalorder %v5105, %v6763
      %vm6782 = vcmp.eq.s32.totalorder %v5105, %v6766
      %vm6783 = vcmp.eq.s32.totalorder %v5105, %v6769
      %vm6784 = vcmp.eq.s32.totalorder %v5105, %v6772
      %vm6785 = vcmp.eq.s32.totalorder %v5105, %v6775
      %6786 = vset.pattern.permute.xlu0 46
      %6787 = vperm.xlu0 %6786, %v1256
      %v6788 = vpop.permute.xlu0 %6787
      %6790 = vset.pattern.permute.xlu0 46
      %6791 = vperm.xlu0 %6790, %v1257
      %v6792 = vpop.permute.xlu0 %6791
      %6794 = vset.pattern.permute.xlu0 46
      %6795 = vperm.xlu0 %6794, %v1258
      %v6796 = vpop.permute.xlu0 %6795
      %6798 = vset.pattern.permute.xlu0 46
      %6799 = vperm.xlu0 %6798, %v1259
      %v6800 = vpop.permute.xlu0 %6799
      %6802 = vset.pattern.permute.xlu0 46
      %6803 = vperm.xlu0 %6802, %v1260
      %v6804 = vpop.permute.xlu0 %6803
      %6806 = vset.pattern.permute.xlu0 46
      %6807 = vperm.xlu0 %6806, %v1261
      %v6808 = vpop.permute.xlu0 %6807
      %6810 = vset.pattern.permute.xlu0 46
      %6811 = vperm.xlu0 %6810, %v1262
      %v6812 = vpop.permute.xlu0 %6811
      %6814 = vset.pattern.permute.xlu0 46
      %6815 = vperm.xlu0 %6814, %v1263
      %v6816 = vpop.permute.xlu0 %6815
      %6818 = vset.pattern.permute.xlu0 46
      %6819 = vperm.xlu0 %6818, %v1264
      %v6820 = vpop.permute.xlu0 %6819
      %6822 = vset.pattern.permute.xlu0 46
      %6823 = vperm.xlu0 %6822, %v1265
      %v6824 = vpop.permute.xlu0 %6823
      %v6826 = vsel %vm6776, %v6788, 0.0
      %v6827 = vsel %vm6777, %v6792, 0.0
      %v6828 = vsel %vm6778, %v6796, 0.0
      %v6829 = vsel %vm6779, %v6800, 0.0
      %v6830 = vsel %vm6780, %v6804, 0.0
      %v6831 = vsel %vm6781, %v6808, 0.0
      %v6832 = vsel %vm6782, %v6812, 0.0
      %v6833 = vsel %vm6783, %v6816, 0.0
      %v6834 = vsel %vm6784, %v6820, 0.0
      %v6835 = vsel %vm6785, %v6824, 0.0
      %v6836 = vadd.f32 %v6736, %v6826
      %v6837 = vadd.f32 %v6737, %v6827
      %v6838 = vadd.f32 %v6738, %v6828
      %v6839 = vadd.f32 %v6739, %v6829
      %v6840 = vadd.f32 %v6740, %v6830
      %v6841 = vadd.f32 %v6741, %v6831
      %v6842 = vadd.f32 %v6742, %v6832
      %v6843 = vadd.f32 %v6743, %v6833
      %v6844 = vadd.f32 %v6744, %v6834
      %v6845 = vadd.f32 %v6745, %v6835
      %6846 = vset.pattern.permute.xlu0 71
      %6847 = vperm.xlu0 %6846, %v1110
      %v6848 = vpop.permute.xlu0 %6847
      %6850 = vset.pattern.permute.xlu0 71
      %6851 = vperm.xlu0 %6850, %v1125
      %v6852 = vpop.permute.xlu0 %6851
      %6854 = vset.pattern.permute.xlu0 71
      %6855 = vperm.xlu0 %6854, %v1140
      %v6856 = vpop.permute.xlu0 %6855
      %6858 = vset.pattern.permute.xlu0 71
      %6859 = vperm.xlu0 %6858, %v1155
      %v6860 = vpop.permute.xlu0 %6859
      %6862 = vset.pattern.permute.xlu0 71
      %6863 = vperm.xlu0 %6862, %v1170
      %v6864 = vpop.permute.xlu0 %6863
      %6866 = vset.pattern.permute.xlu0 71
      %6867 = vperm.xlu0 %6866, %v1185
      %v6868 = vpop.permute.xlu0 %6867
      %6870 = vset.pattern.permute.xlu0 71
      %6871 = vperm.xlu0 %6870, %v1200
      %v6872 = vpop.permute.xlu0 %6871
      %6874 = vset.pattern.permute.xlu0 71
      %6875 = vperm.xlu0 %6874, %v1215
      %v6876 = vpop.permute.xlu0 %6875
      %6878 = vset.pattern.permute.xlu0 71
      %6879 = vperm.xlu0 %6878, %v1230
      %v6880 = vpop.permute.xlu0 %6879
      %6882 = vset.pattern.permute.xlu0 71
      %6883 = vperm.xlu0 %6882, %v1245
      %v6884 = vpop.permute.xlu0 %6883
      %v6886 = vmul.f32 %v6848, %v6646
      %v6887 = vmul.f32 %v6852, %v6647
      %v6888 = vmul.f32 %v6856, %v6648
      %v6889 = vmul.f32 %v6860, %v6649
      %v6890 = vmul.f32 %v6864, %v6650
      %v6891 = vmul.f32 %v6868, %v6651
      %v6892 = vmul.f32 %v6872, %v6652
      %v6893 = vmul.f32 %v6876, %v6653
      %v6894 = vmul.f32 %v6880, %v6654
      %v6895 = vmul.f32 %v6884, %v6655
      %v6896 = vmul.f32 %v6886, %v6836
      %v6897 = vmul.f32 %v6887, %v6837
      %v6898 = vmul.f32 %v6888, %v6838
      %v6899 = vmul.f32 %v6889, %v6839
      %v6900 = vmul.f32 %v6890, %v6840
      %v6901 = vmul.f32 %v6891, %v6841
      %v6902 = vmul.f32 %v6892, %v6842
      %v6903 = vmul.f32 %v6893, %v6843
      %v6904 = vmul.f32 %v6894, %v6844
      %v6905 = vmul.f32 %v6895, %v6845
      %v6906 = vadd.f32 %v6456, %v6896
      %v6907 = vadd.f32 %v6457, %v6897
      %v6908 = vadd.f32 %v6458, %v6898
      %v6909 = vadd.f32 %v6459, %v6899
      %v6910 = vadd.f32 %v6460, %v6900
      %v6911 = vadd.f32 %v6461, %v6901
      %v6912 = vadd.f32 %v6462, %v6902
      %v6913 = vadd.f32 %v6463, %v6903
      %v6914 = vadd.f32 %v6464, %v6904
      %v6915 = vadd.f32 %v6465, %v6905
      %6926 = vrot.lane.b32.xlu0 %v6906, 16
      %v6927 = vpop.permute.xlu0 %6926
      %6928 = vrot.lane.b32.xlu0 %v6907, 16
      %v6929 = vpop.permute.xlu0 %6928
      %6930 = vrot.lane.b32.xlu0 %v6908, 16
      %v6931 = vpop.permute.xlu0 %6930
      %6932 = vrot.lane.b32.xlu0 %v6909, 16
      %v6933 = vpop.permute.xlu0 %6932
      %6934 = vrot.lane.b32.xlu0 %v6910, 16
      %v6935 = vpop.permute.xlu0 %6934
      %6936 = vrot.lane.b32.xlu0 %v6911, 16
      %v6937 = vpop.permute.xlu0 %6936
      %6938 = vrot.lane.b32.xlu0 %v6912, 16
      %v6939 = vpop.permute.xlu0 %6938
      %6940 = vrot.lane.b32.xlu0 %v6913, 16
      %v6941 = vpop.permute.xlu0 %6940
      %6942 = vrot.lane.b32.xlu0 %v6914, 16
      %v6943 = vpop.permute.xlu0 %6942
      %6944 = vrot.lane.b32.xlu0 %v6915, 16
      %v6945 = vpop.permute.xlu0 %6944
      %vm6956 = vcmask 261248
      %6957 = vst.msk [vmem:[#allocation2] sm:$0xff] %vm6956, %v6927
      %6958 = vst.msk [vmem:[#allocation2 + $0x10] sm:$0xff] %vm6956, %v6929
      %6959 = vst.msk [vmem:[#allocation2 + $0x20] sm:$0xff] %vm6956, %v6931
      %6960 = vst.msk [vmem:[#allocation2 + $0x30] sm:$0xff] %vm6956, %v6933
      %6961 = vst.msk [vmem:[#allocation2 + $0x40] sm:$0xff] %vm6956, %v6935
      %6962 = vst.msk [vmem:[#allocation2 + $0x50] sm:$0xff] %vm6956, %v6937
      %6963 = vst.msk [vmem:[#allocation2 + $0x60] sm:$0xff] %vm6956, %v6939
      %6964 = vst.msk [vmem:[#allocation2 + $0x70] sm:$0xff] %vm6956, %v6941
      %6965 = vst.msk [vmem:[#allocation2 + $0x80] sm:$0xff] %vm6956, %v6943
      %6966 = vst.msk [vmem:[#allocation2 + $0x90] sm:$0xff] %vm6956, %v6945
      %6967 = vset.pattern.permute.xlu0 53
      %6968 = vperm.xlu0 %6967, %v1266
      %v6969 = vpop.permute.xlu0 %6968
      %6970 = vset.pattern.permute.xlu0 53
      %6971 = vperm.xlu0 %6970, %v1267
      %v6972 = vpop.permute.xlu0 %6971
      %6973 = vset.pattern.permute.xlu0 53
      %6974 = vperm.xlu0 %6973, %v1268
      %v6975 = vpop.permute.xlu0 %6974
      %6976 = vset.pattern.permute.xlu0 53
      %6977 = vperm.xlu0 %6976, %v1269
      %v6978 = vpop.permute.xlu0 %6977
      %6979 = vset.pattern.permute.xlu0 53
      %6980 = vperm.xlu0 %6979, %v1270
      %v6981 = vpop.permute.xlu0 %6980
      %6982 = vset.pattern.permute.xlu0 53
      %6983 = vperm.xlu0 %6982, %v1271
      %v6984 = vpop.permute.xlu0 %6983
      %6985 = vset.pattern.permute.xlu0 53
      %6986 = vperm.xlu0 %6985, %v1272
      %v6987 = vpop.permute.xlu0 %6986
      %6988 = vset.pattern.permute.xlu0 53
      %6989 = vperm.xlu0 %6988, %v1273
      %v6990 = vpop.permute.xlu0 %6989
      %6991 = vset.pattern.permute.xlu0 53
      %6992 = vperm.xlu0 %6991, %v1274
      %v6993 = vpop.permute.xlu0 %6992
      %6994 = vset.pattern.permute.xlu0 53
      %6995 = vperm.xlu0 %6994, %v1275
      %v6996 = vpop.permute.xlu0 %6995
      %vm6997 = vcmp.eq.s32.totalorder %v951, %v6969
      %vm6998 = vcmp.eq.s32.totalorder %v951, %v6972
      %vm6999 = vcmp.eq.s32.totalorder %v951, %v6975
      %vm7000 = vcmp.eq.s32.totalorder %v951, %v6978
      %vm7001 = vcmp.eq.s32.totalorder %v951, %v6981
      %vm7002 = vcmp.eq.s32.totalorder %v951, %v6984
      %vm7003 = vcmp.eq.s32.totalorder %v951, %v6987
      %vm7004 = vcmp.eq.s32.totalorder %v951, %v6990
      %vm7005 = vcmp.eq.s32.totalorder %v951, %v6993
      %vm7006 = vcmp.eq.s32.totalorder %v951, %v6996
      %7007 = vset.pattern.permute.xlu0 53
      %7008 = vperm.xlu0 %7007, %v1318
      %v7009 = vpop.permute.xlu0 %7008
      %7011 = vset.pattern.permute.xlu0 53
      %7012 = vperm.xlu0 %7011, %v1319
      %v7013 = vpop.permute.xlu0 %7012
      %7015 = vset.pattern.permute.xlu0 53
      %7016 = vperm.xlu0 %7015, %v1320
      %v7017 = vpop.permute.xlu0 %7016
      %7019 = vset.pattern.permute.xlu0 53
      %7020 = vperm.xlu0 %7019, %v1321
      %v7021 = vpop.permute.xlu0 %7020
      %7023 = vset.pattern.permute.xlu0 53
      %7024 = vperm.xlu0 %7023, %v1322
      %v7025 = vpop.permute.xlu0 %7024
      %7027 = vset.pattern.permute.xlu0 53
      %7028 = vperm.xlu0 %7027, %v1323
      %v7029 = vpop.permute.xlu0 %7028
      %7031 = vset.pattern.permute.xlu0 53
      %7032 = vperm.xlu0 %7031, %v1324
      %v7033 = vpop.permute.xlu0 %7032
      %7035 = vset.pattern.permute.xlu0 53
      %7036 = vperm.xlu0 %7035, %v1325
      %v7037 = vpop.permute.xlu0 %7036
      %7039 = vset.pattern.permute.xlu0 53
      %7040 = vperm.xlu0 %7039, %v1326
      %v7041 = vpop.permute.xlu0 %7040
      %7043 = vset.pattern.permute.xlu0 53
      %7044 = vperm.xlu0 %7043, %v1327
      %v7045 = vpop.permute.xlu0 %7044
      %v7047 = vsel %vm6997, %v7009, 0.0
      %v7048 = vsel %vm6998, %v7013, 0.0
      %v7049 = vsel %vm6999, %v7017, 0.0
      %v7050 = vsel %vm7000, %v7021, 0.0
      %v7051 = vsel %vm7001, %v7025, 0.0
      %v7052 = vsel %vm7002, %v7029, 0.0
      %v7053 = vsel %vm7003, %v7033, 0.0
      %v7054 = vsel %vm7004, %v7037, 0.0
      %v7055 = vsel %vm7005, %v7041, 0.0
      %v7056 = vsel %vm7006, %v7045, 0.0
      %7057 = vset.pattern.permute.xlu0 53
      %7058 = vperm.xlu0 %7057, %v1388
      %v7059 = vpop.permute.xlu0 %7058
      %7060 = vset.pattern.permute.xlu0 53
      %7061 = vperm.xlu0 %7060, %v1389
      %v7062 = vpop.permute.xlu0 %7061
      %7063 = vset.pattern.permute.xlu0 53
      %7064 = vperm.xlu0 %7063, %v1390
      %v7065 = vpop.permute.xlu0 %7064
      %7066 = vset.pattern.permute.xlu0 53
      %7067 = vperm.xlu0 %7066, %v1391
      %v7068 = vpop.permute.xlu0 %7067
      %7069 = vset.pattern.permute.xlu0 53
      %7070 = vperm.xlu0 %7069, %v1392
      %v7071 = vpop.permute.xlu0 %7070
      %7072 = vset.pattern.permute.xlu0 53
      %7073 = vperm.xlu0 %7072, %v1393
      %v7074 = vpop.permute.xlu0 %7073
      %7075 = vset.pattern.permute.xlu0 53
      %7076 = vperm.xlu0 %7075, %v1394
      %v7077 = vpop.permute.xlu0 %7076
      %7078 = vset.pattern.permute.xlu0 53
      %7079 = vperm.xlu0 %7078, %v1395
      %v7080 = vpop.permute.xlu0 %7079
      %7081 = vset.pattern.permute.xlu0 53
      %7082 = vperm.xlu0 %7081, %v1396
      %v7083 = vpop.permute.xlu0 %7082
      %7084 = vset.pattern.permute.xlu0 53
      %7085 = vperm.xlu0 %7084, %v1397
      %v7086 = vpop.permute.xlu0 %7085
      %vm7087 = vcmp.eq.s32.totalorder %v951, %v7059
      %vm7088 = vcmp.eq.s32.totalorder %v951, %v7062
      %vm7089 = vcmp.eq.s32.totalorder %v951, %v7065
      %vm7090 = vcmp.eq.s32.totalorder %v951, %v7068
      %vm7091 = vcmp.eq.s32.totalorder %v951, %v7071
      %vm7092 = vcmp.eq.s32.totalorder %v951, %v7074
      %vm7093 = vcmp.eq.s32.totalorder %v951, %v7077
      %vm7094 = vcmp.eq.s32.totalorder %v951, %v7080
      %vm7095 = vcmp.eq.s32.totalorder %v951, %v7083
      %vm7096 = vcmp.eq.s32.totalorder %v951, %v7086
      %7097 = vset.pattern.permute.xlu0 53
      %7098 = vperm.xlu0 %7097, %v1256
      %v7099 = vpop.permute.xlu0 %7098
      %7101 = vset.pattern.permute.xlu0 53
      %7102 = vperm.xlu0 %7101, %v1257
      %v7103 = vpop.permute.xlu0 %7102
      %7105 = vset.pattern.permute.xlu0 53
      %7106 = vperm.xlu0 %7105, %v1258
      %v7107 = vpop.permute.xlu0 %7106
      %7109 = vset.pattern.permute.xlu0 53
      %7110 = vperm.xlu0 %7109, %v1259
      %v7111 = vpop.permute.xlu0 %7110
      %7113 = vset.pattern.permute.xlu0 53
      %7114 = vperm.xlu0 %7113, %v1260
      %v7115 = vpop.permute.xlu0 %7114
      %7117 = vset.pattern.permute.xlu0 53
      %7118 = vperm.xlu0 %7117, %v1261
      %v7119 = vpop.permute.xlu0 %7118
      %7121 = vset.pattern.permute.xlu0 53
      %7122 = vperm.xlu0 %7121, %v1262
      %v7123 = vpop.permute.xlu0 %7122
      %7125 = vset.pattern.permute.xlu0 53
      %7126 = vperm.xlu0 %7125, %v1263
      %v7127 = vpop.permute.xlu0 %7126
      %7129 = vset.pattern.permute.xlu0 53
      %7130 = vperm.xlu0 %7129, %v1264
      %v7131 = vpop.permute.xlu0 %7130
      %7133 = vset.pattern.permute.xlu0 53
      %7134 = vperm.xlu0 %7133, %v1265
      %v7135 = vpop.permute.xlu0 %7134
      %v7137 = vsel %vm7087, %v7099, 0.0
      %v7138 = vsel %vm7088, %v7103, 0.0
      %v7139 = vsel %vm7089, %v7107, 0.0
      %v7140 = vsel %vm7090, %v7111, 0.0
      %v7141 = vsel %vm7091, %v7115, 0.0
      %v7142 = vsel %vm7092, %v7119, 0.0
      %v7143 = vsel %vm7093, %v7123, 0.0
      %v7144 = vsel %vm7094, %v7127, 0.0
      %v7145 = vsel %vm7095, %v7131, 0.0
      %v7146 = vsel %vm7096, %v7135, 0.0
      %v7147 = vadd.f32 %v7047, %v7137
      %v7148 = vadd.f32 %v7048, %v7138
      %v7149 = vadd.f32 %v7049, %v7139
      %v7150 = vadd.f32 %v7050, %v7140
      %v7151 = vadd.f32 %v7051, %v7141
      %v7152 = vadd.f32 %v7052, %v7142
      %v7153 = vadd.f32 %v7053, %v7143
      %v7154 = vadd.f32 %v7054, %v7144
      %v7155 = vadd.f32 %v7055, %v7145
      %v7156 = vadd.f32 %v7056, %v7146
      %7157 = vset.pattern.permute.xlu0 52
      %7158 = vperm.xlu0 %7157, %v1266
      %v7159 = vpop.permute.xlu0 %7158
      %7160 = vset.pattern.permute.xlu0 52
      %7161 = vperm.xlu0 %7160, %v1267
      %v7162 = vpop.permute.xlu0 %7161
      %7163 = vset.pattern.permute.xlu0 52
      %7164 = vperm.xlu0 %7163, %v1268
      %v7165 = vpop.permute.xlu0 %7164
      %7166 = vset.pattern.permute.xlu0 52
      %7167 = vperm.xlu0 %7166, %v1269
      %v7168 = vpop.permute.xlu0 %7167
      %7169 = vset.pattern.permute.xlu0 52
      %7170 = vperm.xlu0 %7169, %v1270
      %v7171 = vpop.permute.xlu0 %7170
      %7172 = vset.pattern.permute.xlu0 52
      %7173 = vperm.xlu0 %7172, %v1271
      %v7174 = vpop.permute.xlu0 %7173
      %7175 = vset.pattern.permute.xlu0 52
      %7176 = vperm.xlu0 %7175, %v1272
      %v7177 = vpop.permute.xlu0 %7176
      %7178 = vset.pattern.permute.xlu0 52
      %7179 = vperm.xlu0 %7178, %v1273
      %v7180 = vpop.permute.xlu0 %7179
      %7181 = vset.pattern.permute.xlu0 52
      %7182 = vperm.xlu0 %7181, %v1274
      %v7183 = vpop.permute.xlu0 %7182
      %7184 = vset.pattern.permute.xlu0 52
      %7185 = vperm.xlu0 %7184, %v1275
      %v7186 = vpop.permute.xlu0 %7185
      %vm7187 = vcmp.eq.s32.totalorder %v5105, %v7159
      %vm7188 = vcmp.eq.s32.totalorder %v5105, %v7162
      %vm7189 = vcmp.eq.s32.totalorder %v5105, %v7165
      %vm7190 = vcmp.eq.s32.totalorder %v5105, %v7168
      %vm7191 = vcmp.eq.s32.totalorder %v5105, %v7171
      %vm7192 = vcmp.eq.s32.totalorder %v5105, %v7174
      %vm7193 = vcmp.eq.s32.totalorder %v5105, %v7177
      %vm7194 = vcmp.eq.s32.totalorder %v5105, %v7180
      %vm7195 = vcmp.eq.s32.totalorder %v5105, %v7183
      %vm7196 = vcmp.eq.s32.totalorder %v5105, %v7186
      %7197 = vset.pattern.permute.xlu0 52
      %7198 = vperm.xlu0 %7197, %v1318
      %v7199 = vpop.permute.xlu0 %7198
      %7201 = vset.pattern.permute.xlu0 52
      %7202 = vperm.xlu0 %7201, %v1319
      %v7203 = vpop.permute.xlu0 %7202
      %7205 = vset.pattern.permute.xlu0 52
      %7206 = vperm.xlu0 %7205, %v1320
      %v7207 = vpop.permute.xlu0 %7206
      %7209 = vset.pattern.permute.xlu0 52
      %7210 = vperm.xlu0 %7209, %v1321
      %v7211 = vpop.permute.xlu0 %7210
      %7213 = vset.pattern.permute.xlu0 52
      %7214 = vperm.xlu0 %7213, %v1322
      %v7215 = vpop.permute.xlu0 %7214
      %7217 = vset.pattern.permute.xlu0 52
      %7218 = vperm.xlu0 %7217, %v1323
      %v7219 = vpop.permute.xlu0 %7218
      %7221 = vset.pattern.permute.xlu0 52
      %7222 = vperm.xlu0 %7221, %v1324
      %v7223 = vpop.permute.xlu0 %7222
      %7225 = vset.pattern.permute.xlu0 52
      %7226 = vperm.xlu0 %7225, %v1325
      %v7227 = vpop.permute.xlu0 %7226
      %7229 = vset.pattern.permute.xlu0 52
      %7230 = vperm.xlu0 %7229, %v1326
      %v7231 = vpop.permute.xlu0 %7230
      %7233 = vset.pattern.permute.xlu0 52
      %7234 = vperm.xlu0 %7233, %v1327
      %v7235 = vpop.permute.xlu0 %7234
      %v7237 = vsel %vm7187, %v7199, 0.0
      %v7238 = vsel %vm7188, %v7203, 0.0
      %v7239 = vsel %vm7189, %v7207, 0.0
      %v7240 = vsel %vm7190, %v7211, 0.0
      %v7241 = vsel %vm7191, %v7215, 0.0
      %v7242 = vsel %vm7192, %v7219, 0.0
      %v7243 = vsel %vm7193, %v7223, 0.0
      %v7244 = vsel %vm7194, %v7227, 0.0
      %v7245 = vsel %vm7195, %v7231, 0.0
      %v7246 = vsel %vm7196, %v7235, 0.0
      %7247 = vset.pattern.permute.xlu0 52
      %7248 = vperm.xlu0 %7247, %v1388
      %v7249 = vpop.permute.xlu0 %7248
      %7250 = vset.pattern.permute.xlu0 52
      %7251 = vperm.xlu0 %7250, %v1389
      %v7252 = vpop.permute.xlu0 %7251
      %7253 = vset.pattern.permute.xlu0 52
      %7254 = vperm.xlu0 %7253, %v1390
      %v7255 = vpop.permute.xlu0 %7254
      %7256 = vset.pattern.permute.xlu0 52
      %7257 = vperm.xlu0 %7256, %v1391
      %v7258 = vpop.permute.xlu0 %7257
      %7259 = vset.pattern.permute.xlu0 52
      %7260 = vperm.xlu0 %7259, %v1392
      %v7261 = vpop.permute.xlu0 %7260
      %7262 = vset.pattern.permute.xlu0 52
      %7263 = vperm.xlu0 %7262, %v1393
      %v7264 = vpop.permute.xlu0 %7263
      %7265 = vset.pattern.permute.xlu0 52
      %7266 = vperm.xlu0 %7265, %v1394
      %v7267 = vpop.permute.xlu0 %7266
      %7268 = vset.pattern.permute.xlu0 52
      %7269 = vperm.xlu0 %7268, %v1395
      %v7270 = vpop.permute.xlu0 %7269
      %7271 = vset.pattern.permute.xlu0 52
      %7272 = vperm.xlu0 %7271, %v1396
      %v7273 = vpop.permute.xlu0 %7272
      %7274 = vset.pattern.permute.xlu0 52
      %7275 = vperm.xlu0 %7274, %v1397
      %v7276 = vpop.permute.xlu0 %7275
      %vm7277 = vcmp.eq.s32.totalorder %v5105, %v7249
      %vm7278 = vcmp.eq.s32.totalorder %v5105, %v7252
      %vm7279 = vcmp.eq.s32.totalorder %v5105, %v7255
      %vm7280 = vcmp.eq.s32.totalorder %v5105, %v7258
      %vm7281 = vcmp.eq.s32.totalorder %v5105, %v7261
      %vm7282 = vcmp.eq.s32.totalorder %v5105, %v7264
      %vm7283 = vcmp.eq.s32.totalorder %v5105, %v7267
      %vm7284 = vcmp.eq.s32.totalorder %v5105, %v7270
      %vm7285 = vcmp.eq.s32.totalorder %v5105, %v7273
      %vm7286 = vcmp.eq.s32.totalorder %v5105, %v7276
      %7287 = vset.pattern.permute.xlu0 52
      %7288 = vperm.xlu0 %7287, %v1256
      %v7289 = vpop.permute.xlu0 %7288
      %7291 = vset.pattern.permute.xlu0 52
      %7292 = vperm.xlu0 %7291, %v1257
      %v7293 = vpop.permute.xlu0 %7292
      %7295 = vset.pattern.permute.xlu0 52
      %7296 = vperm.xlu0 %7295, %v1258
      %v7297 = vpop.permute.xlu0 %7296
      %7299 = vset.pattern.permute.xlu0 52
      %7300 = vperm.xlu0 %7299, %v1259
      %v7301 = vpop.permute.xlu0 %7300
      %7303 = vset.pattern.permute.xlu0 52
      %7304 = vperm.xlu0 %7303, %v1260
      %v7305 = vpop.permute.xlu0 %7304
      %7307 = vset.pattern.permute.xlu0 52
      %7308 = vperm.xlu0 %7307, %v1261
      %v7309 = vpop.permute.xlu0 %7308
      %7311 = vset.pattern.permute.xlu0 52
      %7312 = vperm.xlu0 %7311, %v1262
      %v7313 = vpop.permute.xlu0 %7312
      %7315 = vset.pattern.permute.xlu0 52
      %7316 = vperm.xlu0 %7315, %v1263
      %v7317 = vpop.permute.xlu0 %7316
      %7319 = vset.pattern.permute.xlu0 52
      %7320 = vperm.xlu0 %7319, %v1264
      %v7321 = vpop.permute.xlu0 %7320
      %7323 = vset.pattern.permute.xlu0 52
      %7324 = vperm.xlu0 %7323, %v1265
      %v7325 = vpop.permute.xlu0 %7324
      %v7327 = vsel %vm7277, %v7289, 0.0
      %v7328 = vsel %vm7278, %v7293, 0.0
      %v7329 = vsel %vm7279, %v7297, 0.0
      %v7330 = vsel %vm7280, %v7301, 0.0
      %v7331 = vsel %vm7281, %v7305, 0.0
      %v7332 = vsel %vm7282, %v7309, 0.0
      %v7333 = vsel %vm7283, %v7313, 0.0
      %v7334 = vsel %vm7284, %v7317, 0.0
      %v7335 = vsel %vm7285, %v7321, 0.0
      %v7336 = vsel %vm7286, %v7325, 0.0
      %v7337 = vadd.f32 %v7237, %v7327
      %v7338 = vadd.f32 %v7238, %v7328
      %v7339 = vadd.f32 %v7239, %v7329
      %v7340 = vadd.f32 %v7240, %v7330
      %v7341 = vadd.f32 %v7241, %v7331
      %v7342 = vadd.f32 %v7242, %v7332
      %v7343 = vadd.f32 %v7243, %v7333
      %v7344 = vadd.f32 %v7244, %v7334
      %v7345 = vadd.f32 %v7245, %v7335
      %v7346 = vadd.f32 %v7246, %v7336
      %7347 = vset.pattern.permute.xlu0 74
      %7348 = vperm.xlu0 %7347, %v1110
      %v7349 = vpop.permute.xlu0 %7348
      %7351 = vset.pattern.permute.xlu0 74
      %7352 = vperm.xlu0 %7351, %v1125
      %v7353 = vpop.permute.xlu0 %7352
      %7355 = vset.pattern.permute.xlu0 74
      %7356 = vperm.xlu0 %7355, %v1140
      %v7357 = vpop.permute.xlu0 %7356
      %7359 = vset.pattern.permute.xlu0 74
      %7360 = vperm.xlu0 %7359, %v1155
      %v7361 = vpop.permute.xlu0 %7360
      %7363 = vset.pattern.permute.xlu0 74
      %7364 = vperm.xlu0 %7363, %v1170
      %v7365 = vpop.permute.xlu0 %7364
      %7367 = vset.pattern.permute.xlu0 74
      %7368 = vperm.xlu0 %7367, %v1185
      %v7369 = vpop.permute.xlu0 %7368
      %7371 = vset.pattern.permute.xlu0 74
      %7372 = vperm.xlu0 %7371, %v1200
      %v7373 = vpop.permute.xlu0 %7372
      %7375 = vset.pattern.permute.xlu0 74
      %7376 = vperm.xlu0 %7375, %v1215
      %v7377 = vpop.permute.xlu0 %7376
      %7379 = vset.pattern.permute.xlu0 74
      %7380 = vperm.xlu0 %7379, %v1230
      %v7381 = vpop.permute.xlu0 %7380
      %7383 = vset.pattern.permute.xlu0 74
      %7384 = vperm.xlu0 %7383, %v1245
      %v7385 = vpop.permute.xlu0 %7384
      %v7387 = vmul.f32 %v7349, %v7147
      %v7388 = vmul.f32 %v7353, %v7148
      %v7389 = vmul.f32 %v7357, %v7149
      %v7390 = vmul.f32 %v7361, %v7150
      %v7391 = vmul.f32 %v7365, %v7151
      %v7392 = vmul.f32 %v7369, %v7152
      %v7393 = vmul.f32 %v7373, %v7153
      %v7394 = vmul.f32 %v7377, %v7154
      %v7395 = vmul.f32 %v7381, %v7155
      %v7396 = vmul.f32 %v7385, %v7156
      %v7397 = vmul.f32 %v7387, %v7337
      %v7398 = vmul.f32 %v7388, %v7338
      %v7399 = vmul.f32 %v7389, %v7339
      %v7400 = vmul.f32 %v7390, %v7340
      %v7401 = vmul.f32 %v7391, %v7341
      %v7402 = vmul.f32 %v7392, %v7342
      %v7403 = vmul.f32 %v7393, %v7343
      %v7404 = vmul.f32 %v7394, %v7344
      %v7405 = vmul.f32 %v7395, %v7345
      %v7406 = vmul.f32 %v7396, %v7346
      %v7407 = vadd.f32 %v7397, 0.0
      %v7408 = vadd.f32 %v7398, 0.0
      %v7409 = vadd.f32 %v7399, 0.0
      %v7410 = vadd.f32 %v7400, 0.0
      %v7411 = vadd.f32 %v7401, 0.0
      %v7412 = vadd.f32 %v7402, 0.0
      %v7413 = vadd.f32 %v7403, 0.0
      %v7414 = vadd.f32 %v7404, 0.0
      %v7415 = vadd.f32 %v7405, 0.0
      %v7416 = vadd.f32 %v7406, 0.0
      %7417 = vset.pattern.permute.xlu0 55
      %7418 = vperm.xlu0 %7417, %v1266
      %v7419 = vpop.permute.xlu0 %7418
      %7420 = vset.pattern.permute.xlu0 55
      %7421 = vperm.xlu0 %7420, %v1267
      %v7422 = vpop.permute.xlu0 %7421
      %7423 = vset.pattern.permute.xlu0 55
      %7424 = vperm.xlu0 %7423, %v1268
      %v7425 = vpop.permute.xlu0 %7424
      %7426 = vset.pattern.permute.xlu0 55
      %7427 = vperm.xlu0 %7426, %v1269
      %v7428 = vpop.permute.xlu0 %7427
      %7429 = vset.pattern.permute.xlu0 55
      %7430 = vperm.xlu0 %7429, %v1270
      %v7431 = vpop.permute.xlu0 %7430
      %7432 = vset.pattern.permute.xlu0 55
      %7433 = vperm.xlu0 %7432, %v1271
      %v7434 = vpop.permute.xlu0 %7433
      %7435 = vset.pattern.permute.xlu0 55
      %7436 = vperm.xlu0 %7435, %v1272
      %v7437 = vpop.permute.xlu0 %7436
      %7438 = vset.pattern.permute.xlu0 55
      %7439 = vperm.xlu0 %7438, %v1273
      %v7440 = vpop.permute.xlu0 %7439
      %7441 = vset.pattern.permute.xlu0 55
      %7442 = vperm.xlu0 %7441, %v1274
      %v7443 = vpop.permute.xlu0 %7442
      %7444 = vset.pattern.permute.xlu0 55
      %7445 = vperm.xlu0 %7444, %v1275
      %v7446 = vpop.permute.xlu0 %7445
      %vm7447 = vcmp.eq.s32.totalorder %v951, %v7419
      %vm7448 = vcmp.eq.s32.totalorder %v951, %v7422
      %vm7449 = vcmp.eq.s32.totalorder %v951, %v7425
      %vm7450 = vcmp.eq.s32.totalorder %v951, %v7428
      %vm7451 = vcmp.eq.s32.totalorder %v951, %v7431
      %vm7452 = vcmp.eq.s32.totalorder %v951, %v7434
      %vm7453 = vcmp.eq.s32.totalorder %v951, %v7437
      %vm7454 = vcmp.eq.s32.totalorder %v951, %v7440
      %vm7455 = vcmp.eq.s32.totalorder %v951, %v7443
      %vm7456 = vcmp.eq.s32.totalorder %v951, %v7446
      %7457 = vset.pattern.permute.xlu0 55
      %7458 = vperm.xlu0 %7457, %v1318
      %v7459 = vpop.permute.xlu0 %7458
      %7461 = vset.pattern.permute.xlu0 55
      %7462 = vperm.xlu0 %7461, %v1319
      %v7463 = vpop.permute.xlu0 %7462
      %7465 = vset.pattern.permute.xlu0 55
      %7466 = vperm.xlu0 %7465, %v1320
      %v7467 = vpop.permute.xlu0 %7466
      %7469 = vset.pattern.permute.xlu0 55
      %7470 = vperm.xlu0 %7469, %v1321
      %v7471 = vpop.permute.xlu0 %7470
      %7473 = vset.pattern.permute.xlu0 55
      %7474 = vperm.xlu0 %7473, %v1322
      %v7475 = vpop.permute.xlu0 %7474
      %7477 = vset.pattern.permute.xlu0 55
      %7478 = vperm.xlu0 %7477, %v1323
      %v7479 = vpop.permute.xlu0 %7478
      %7481 = vset.pattern.permute.xlu0 55
      %7482 = vperm.xlu0 %7481, %v1324
      %v7483 = vpop.permute.xlu0 %7482
      %7485 = vset.pattern.permute.xlu0 55
      %7486 = vperm.xlu0 %7485, %v1325
      %v7487 = vpop.permute.xlu0 %7486
      %7489 = vset.pattern.permute.xlu0 55
      %7490 = vperm.xlu0 %7489, %v1326
      %v7491 = vpop.permute.xlu0 %7490
      %7493 = vset.pattern.permute.xlu0 55
      %7494 = vperm.xlu0 %7493, %v1327
      %v7495 = vpop.permute.xlu0 %7494
      %v7497 = vsel %vm7447, %v7459, 0.0
      %v7498 = vsel %vm7448, %v7463, 0.0
      %v7499 = vsel %vm7449, %v7467, 0.0
      %v7500 = vsel %vm7450, %v7471, 0.0
      %v7501 = vsel %vm7451, %v7475, 0.0
      %v7502 = vsel %vm7452, %v7479, 0.0
      %v7503 = vsel %vm7453, %v7483, 0.0
      %v7504 = vsel %vm7454, %v7487, 0.0
      %v7505 = vsel %vm7455, %v7491, 0.0
      %v7506 = vsel %vm7456, %v7495, 0.0
      %7507 = vset.pattern.permute.xlu0 55
      %7508 = vperm.xlu0 %7507, %v1388
      %v7509 = vpop.permute.xlu0 %7508
      %7510 = vset.pattern.permute.xlu0 55
      %7511 = vperm.xlu0 %7510, %v1389
      %v7512 = vpop.permute.xlu0 %7511
      %7513 = vset.pattern.permute.xlu0 55
      %7514 = vperm.xlu0 %7513, %v1390
      %v7515 = vpop.permute.xlu0 %7514
      %7516 = vset.pattern.permute.xlu0 55
      %7517 = vperm.xlu0 %7516, %v1391
      %v7518 = vpop.permute.xlu0 %7517
      %7519 = vset.pattern.permute.xlu0 55
      %7520 = vperm.xlu0 %7519, %v1392
      %v7521 = vpop.permute.xlu0 %7520
      %7522 = vset.pattern.permute.xlu0 55
      %7523 = vperm.xlu0 %7522, %v1393
      %v7524 = vpop.permute.xlu0 %7523
      %7525 = vset.pattern.permute.xlu0 55
      %7526 = vperm.xlu0 %7525, %v1394
      %v7527 = vpop.permute.xlu0 %7526
      %7528 = vset.pattern.permute.xlu0 55
      %7529 = vperm.xlu0 %7528, %v1395
      %v7530 = vpop.permute.xlu0 %7529
      %7531 = vset.pattern.permute.xlu0 55
      %7532 = vperm.xlu0 %7531, %v1396
      %v7533 = vpop.permute.xlu0 %7532
      %7534 = vset.pattern.permute.xlu0 55
      %7535 = vperm.xlu0 %7534, %v1397
      %v7536 = vpop.permute.xlu0 %7535
      %vm7537 = vcmp.eq.s32.totalorder %v951, %v7509
      %vm7538 = vcmp.eq.s32.totalorder %v951, %v7512
      %vm7539 = vcmp.eq.s32.totalorder %v951, %v7515
      %vm7540 = vcmp.eq.s32.totalorder %v951, %v7518
      %vm7541 = vcmp.eq.s32.totalorder %v951, %v7521
      %vm7542 = vcmp.eq.s32.totalorder %v951, %v7524
      %vm7543 = vcmp.eq.s32.totalorder %v951, %v7527
      %vm7544 = vcmp.eq.s32.totalorder %v951, %v7530
      %vm7545 = vcmp.eq.s32.totalorder %v951, %v7533
      %vm7546 = vcmp.eq.s32.totalorder %v951, %v7536
      %7547 = vset.pattern.permute.xlu0 55
      %7548 = vperm.xlu0 %7547, %v1256
      %v7549 = vpop.permute.xlu0 %7548
      %7551 = vset.pattern.permute.xlu0 55
      %7552 = vperm.xlu0 %7551, %v1257
      %v7553 = vpop.permute.xlu0 %7552
      %7555 = vset.pattern.permute.xlu0 55
      %7556 = vperm.xlu0 %7555, %v1258
      %v7557 = vpop.permute.xlu0 %7556
      %7559 = vset.pattern.permute.xlu0 55
      %7560 = vperm.xlu0 %7559, %v1259
      %v7561 = vpop.permute.xlu0 %7560
      %7563 = vset.pattern.permute.xlu0 55
      %7564 = vperm.xlu0 %7563, %v1260
      %v7565 = vpop.permute.xlu0 %7564
      %7567 = vset.pattern.permute.xlu0 55
      %7568 = vperm.xlu0 %7567, %v1261
      %v7569 = vpop.permute.xlu0 %7568
      %7571 = vset.pattern.permute.xlu0 55
      %7572 = vperm.xlu0 %7571, %v1262
      %v7573 = vpop.permute.xlu0 %7572
      %7575 = vset.pattern.permute.xlu0 55
      %7576 = vperm.xlu0 %7575, %v1263
      %v7577 = vpop.permute.xlu0 %7576
      %7579 = vset.pattern.permute.xlu0 55
      %7580 = vperm.xlu0 %7579, %v1264
      %v7581 = vpop.permute.xlu0 %7580
      %7583 = vset.pattern.permute.xlu0 55
      %7584 = vperm.xlu0 %7583, %v1265
      %v7585 = vpop.permute.xlu0 %7584
      %v7587 = vsel %vm7537, %v7549, 0.0
      %v7588 = vsel %vm7538, %v7553, 0.0
      %v7589 = vsel %vm7539, %v7557, 0.0
      %v7590 = vsel %vm7540, %v7561, 0.0
      %v7591 = vsel %vm7541, %v7565, 0.0
      %v7592 = vsel %vm7542, %v7569, 0.0
      %v7593 = vsel %vm7543, %v7573, 0.0
      %v7594 = vsel %vm7544, %v7577, 0.0
      %v7595 = vsel %vm7545, %v7581, 0.0
      %v7596 = vsel %vm7546, %v7585, 0.0
      %v7597 = vadd.f32 %v7497, %v7587
      %v7598 = vadd.f32 %v7498, %v7588
      %v7599 = vadd.f32 %v7499, %v7589
      %v7600 = vadd.f32 %v7500, %v7590
      %v7601 = vadd.f32 %v7501, %v7591
      %v7602 = vadd.f32 %v7502, %v7592
      %v7603 = vadd.f32 %v7503, %v7593
      %v7604 = vadd.f32 %v7504, %v7594
      %v7605 = vadd.f32 %v7505, %v7595
      %v7606 = vadd.f32 %v7506, %v7596
      %7607 = vset.pattern.permute.xlu0 54
      %7608 = vperm.xlu0 %7607, %v1266
      %v7609 = vpop.permute.xlu0 %7608
      %7610 = vset.pattern.permute.xlu0 54
      %7611 = vperm.xlu0 %7610, %v1267
      %v7612 = vpop.permute.xlu0 %7611
      %7613 = vset.pattern.permute.xlu0 54
      %7614 = vperm.xlu0 %7613, %v1268
      %v7615 = vpop.permute.xlu0 %7614
      %7616 = vset.pattern.permute.xlu0 54
      %7617 = vperm.xlu0 %7616, %v1269
      %v7618 = vpop.permute.xlu0 %7617
      %7619 = vset.pattern.permute.xlu0 54
      %7620 = vperm.xlu0 %7619, %v1270
      %v7621 = vpop.permute.xlu0 %7620
      %7622 = vset.pattern.permute.xlu0 54
      %7623 = vperm.xlu0 %7622, %v1271
      %v7624 = vpop.permute.xlu0 %7623
      %7625 = vset.pattern.permute.xlu0 54
      %7626 = vperm.xlu0 %7625, %v1272
      %v7627 = vpop.permute.xlu0 %7626
      %7628 = vset.pattern.permute.xlu0 54
      %7629 = vperm.xlu0 %7628, %v1273
      %v7630 = vpop.permute.xlu0 %7629
      %7631 = vset.pattern.permute.xlu0 54
      %7632 = vperm.xlu0 %7631, %v1274
      %v7633 = vpop.permute.xlu0 %7632
      %7634 = vset.pattern.permute.xlu0 54
      %7635 = vperm.xlu0 %7634, %v1275
      %v7636 = vpop.permute.xlu0 %7635
      %vm7637 = vcmp.eq.s32.totalorder %v5105, %v7609
      %vm7638 = vcmp.eq.s32.totalorder %v5105, %v7612
      %vm7639 = vcmp.eq.s32.totalorder %v5105, %v7615
      %vm7640 = vcmp.eq.s32.totalorder %v5105, %v7618
      %vm7641 = vcmp.eq.s32.totalorder %v5105, %v7621
      %vm7642 = vcmp.eq.s32.totalorder %v5105, %v7624
      %vm7643 = vcmp.eq.s32.totalorder %v5105, %v7627
      %vm7644 = vcmp.eq.s32.totalorder %v5105, %v7630
      %vm7645 = vcmp.eq.s32.totalorder %v5105, %v7633
      %vm7646 = vcmp.eq.s32.totalorder %v5105, %v7636
      %7647 = vset.pattern.permute.xlu0 54
      %7648 = vperm.xlu0 %7647, %v1318
      %v7649 = vpop.permute.xlu0 %7648
      %7651 = vset.pattern.permute.xlu0 54
      %7652 = vperm.xlu0 %7651, %v1319
      %v7653 = vpop.permute.xlu0 %7652
      %7655 = vset.pattern.permute.xlu0 54
      %7656 = vperm.xlu0 %7655, %v1320
      %v7657 = vpop.permute.xlu0 %7656
      %7659 = vset.pattern.permute.xlu0 54
      %7660 = vperm.xlu0 %7659, %v1321
      %v7661 = vpop.permute.xlu0 %7660
      %7663 = vset.pattern.permute.xlu0 54
      %7664 = vperm.xlu0 %7663, %v1322
      %v7665 = vpop.permute.xlu0 %7664
      %7667 = vset.pattern.permute.xlu0 54
      %7668 = vperm.xlu0 %7667, %v1323
      %v7669 = vpop.permute.xlu0 %7668
      %7671 = vset.pattern.permute.xlu0 54
      %7672 = vperm.xlu0 %7671, %v1324
      %v7673 = vpop.permute.xlu0 %7672
      %7675 = vset.pattern.permute.xlu0 54
      %7676 = vperm.xlu0 %7675, %v1325
      %v7677 = vpop.permute.xlu0 %7676
      %7679 = vset.pattern.permute.xlu0 54
      %7680 = vperm.xlu0 %7679, %v1326
      %v7681 = vpop.permute.xlu0 %7680
      %7683 = vset.pattern.permute.xlu0 54
      %7684 = vperm.xlu0 %7683, %v1327
      %v7685 = vpop.permute.xlu0 %7684
      %v7687 = vsel %vm7637, %v7649, 0.0
      %v7688 = vsel %vm7638, %v7653, 0.0
      %v7689 = vsel %vm7639, %v7657, 0.0
      %v7690 = vsel %vm7640, %v7661, 0.0
      %v7691 = vsel %vm7641, %v7665, 0.0
      %v7692 = vsel %vm7642, %v7669, 0.0
      %v7693 = vsel %vm7643, %v7673, 0.0
      %v7694 = vsel %vm7644, %v7677, 0.0
      %v7695 = vsel %vm7645, %v7681, 0.0
      %v7696 = vsel %vm7646, %v7685, 0.0
      %7697 = vset.pattern.permute.xlu0 54
      %7698 = vperm.xlu0 %7697, %v1388
      %v7699 = vpop.permute.xlu0 %7698
      %7700 = vset.pattern.permute.xlu0 54
      %7701 = vperm.xlu0 %7700, %v1389
      %v7702 = vpop.permute.xlu0 %7701
      %7703 = vset.pattern.permute.xlu0 54
      %7704 = vperm.xlu0 %7703, %v1390
      %v7705 = vpop.permute.xlu0 %7704
      %7706 = vset.pattern.permute.xlu0 54
      %7707 = vperm.xlu0 %7706, %v1391
      %v7708 = vpop.permute.xlu0 %7707
      %7709 = vset.pattern.permute.xlu0 54
      %7710 = vperm.xlu0 %7709, %v1392
      %v7711 = vpop.permute.xlu0 %7710
      %7712 = vset.pattern.permute.xlu0 54
      %7713 = vperm.xlu0 %7712, %v1393
      %v7714 = vpop.permute.xlu0 %7713
      %7715 = vset.pattern.permute.xlu0 54
      %7716 = vperm.xlu0 %7715, %v1394
      %v7717 = vpop.permute.xlu0 %7716
      %7718 = vset.pattern.permute.xlu0 54
      %7719 = vperm.xlu0 %7718, %v1395
      %v7720 = vpop.permute.xlu0 %7719
      %7721 = vset.pattern.permute.xlu0 54
      %7722 = vperm.xlu0 %7721, %v1396
      %v7723 = vpop.permute.xlu0 %7722
      %7724 = vset.pattern.permute.xlu0 54
      %7725 = vperm.xlu0 %7724, %v1397
      %v7726 = vpop.permute.xlu0 %7725
      %vm7727 = vcmp.eq.s32.totalorder %v5105, %v7699
      %vm7728 = vcmp.eq.s32.totalorder %v5105, %v7702
      %vm7729 = vcmp.eq.s32.totalorder %v5105, %v7705
      %vm7730 = vcmp.eq.s32.totalorder %v5105, %v7708
      %vm7731 = vcmp.eq.s32.totalorder %v5105, %v7711
      %vm7732 = vcmp.eq.s32.totalorder %v5105, %v7714
      %vm7733 = vcmp.eq.s32.totalorder %v5105, %v7717
      %vm7734 = vcmp.eq.s32.totalorder %v5105, %v7720
      %vm7735 = vcmp.eq.s32.totalorder %v5105, %v7723
      %vm7736 = vcmp.eq.s32.totalorder %v5105, %v7726
      %7737 = vset.pattern.permute.xlu0 54
      %7738 = vperm.xlu0 %7737, %v1256
      %v7739 = vpop.permute.xlu0 %7738
      %7741 = vset.pattern.permute.xlu0 54
      %7742 = vperm.xlu0 %7741, %v1257
      %v7743 = vpop.permute.xlu0 %7742
      %7745 = vset.pattern.permute.xlu0 54
      %7746 = vperm.xlu0 %7745, %v1258
      %v7747 = vpop.permute.xlu0 %7746
      %7749 = vset.pattern.permute.xlu0 54
      %7750 = vperm.xlu0 %7749, %v1259
      %v7751 = vpop.permute.xlu0 %7750
      %7753 = vset.pattern.permute.xlu0 54
      %7754 = vperm.xlu0 %7753, %v1260
      %v7755 = vpop.permute.xlu0 %7754
      %7757 = vset.pattern.permute.xlu0 54
      %7758 = vperm.xlu0 %7757, %v1261
      %v7759 = vpop.permute.xlu0 %7758
      %7761 = vset.pattern.permute.xlu0 54
      %7762 = vperm.xlu0 %7761, %v1262
      %v7763 = vpop.permute.xlu0 %7762
      %7765 = vset.pattern.permute.xlu0 54
      %7766 = vperm.xlu0 %7765, %v1263
      %v7767 = vpop.permute.xlu0 %7766
      %7769 = vset.pattern.permute.xlu0 54
      %7770 = vperm.xlu0 %7769, %v1264
      %v7771 = vpop.permute.xlu0 %7770
      %7773 = vset.pattern.permute.xlu0 54
      %7774 = vperm.xlu0 %7773, %v1265
      %v7775 = vpop.permute.xlu0 %7774
      %v7777 = vsel %vm7727, %v7739, 0.0
      %v7778 = vsel %vm7728, %v7743, 0.0
      %v7779 = vsel %vm7729, %v7747, 0.0
      %v7780 = vsel %vm7730, %v7751, 0.0
      %v7781 = vsel %vm7731, %v7755, 0.0
      %v7782 = vsel %vm7732, %v7759, 0.0
      %v7783 = vsel %vm7733, %v7763, 0.0
      %v7784 = vsel %vm7734, %v7767, 0.0
      %v7785 = vsel %vm7735, %v7771, 0.0
      %v7786 = vsel %vm7736, %v7775, 0.0
      %v7787 = vadd.f32 %v7687, %v7777
      %v7788 = vadd.f32 %v7688, %v7778
      %v7789 = vadd.f32 %v7689, %v7779
      %v7790 = vadd.f32 %v7690, %v7780
      %v7791 = vadd.f32 %v7691, %v7781
      %v7792 = vadd.f32 %v7692, %v7782
      %v7793 = vadd.f32 %v7693, %v7783
      %v7794 = vadd.f32 %v7694, %v7784
      %v7795 = vadd.f32 %v7695, %v7785
      %v7796 = vadd.f32 %v7696, %v7786
      %7797 = vset.pattern.permute.xlu0 75
      %7798 = vperm.xlu0 %7797, %v1110
      %v7799 = vpop.permute.xlu0 %7798
      %7801 = vset.pattern.permute.xlu0 75
      %7802 = vperm.xlu0 %7801, %v1125
      %v7803 = vpop.permute.xlu0 %7802
      %7805 = vset.pattern.permute.xlu0 75
      %7806 = vperm.xlu0 %7805, %v1140
      %v7807 = vpop.permute.xlu0 %7806
      %7809 = vset.pattern.permute.xlu0 75
      %7810 = vperm.xlu0 %7809, %v1155
      %v7811 = vpop.permute.xlu0 %7810
      %7813 = vset.pattern.permute.xlu0 75
      %7814 = vperm.xlu0 %7813, %v1170
      %v7815 = vpop.permute.xlu0 %7814
      %7817 = vset.pattern.permute.xlu0 75
      %7818 = vperm.xlu0 %7817, %v1185
      %v7819 = vpop.permute.xlu0 %7818
      %7821 = vset.pattern.permute.xlu0 75
      %7822 = vperm.xlu0 %7821, %v1200
      %v7823 = vpop.permute.xlu0 %7822
      %7825 = vset.pattern.permute.xlu0 75
      %7826 = vperm.xlu0 %7825, %v1215
      %v7827 = vpop.permute.xlu0 %7826
      %7829 = vset.pattern.permute.xlu0 75
      %7830 = vperm.xlu0 %7829, %v1230
      %v7831 = vpop.permute.xlu0 %7830
      %7833 = vset.pattern.permute.xlu0 75
      %7834 = vperm.xlu0 %7833, %v1245
      %v7835 = vpop.permute.xlu0 %7834
      %v7837 = vmul.f32 %v7799, %v7597
      %v7838 = vmul.f32 %v7803, %v7598
      %v7839 = vmul.f32 %v7807, %v7599
      %v7840 = vmul.f32 %v7811, %v7600
      %v7841 = vmul.f32 %v7815, %v7601
      %v7842 = vmul.f32 %v7819, %v7602
      %v7843 = vmul.f32 %v7823, %v7603
      %v7844 = vmul.f32 %v7827, %v7604
      %v7845 = vmul.f32 %v7831, %v7605
      %v7846 = vmul.f32 %v7835, %v7606
      %v7847 = vmul.f32 %v7837, %v7787
      %v7848 = vmul.f32 %v7838, %v7788
      %v7849 = vmul.f32 %v7839, %v7789
      %v7850 = vmul.f32 %v7840, %v7790
      %v7851 = vmul.f32 %v7841, %v7791
      %v7852 = vmul.f32 %v7842, %v7792
      %v7853 = vmul.f32 %v7843, %v7793
      %v7854 = vmul.f32 %v7844, %v7794
      %v7855 = vmul.f32 %v7845, %v7795
      %v7856 = vmul.f32 %v7846, %v7796
      %v7857 = vadd.f32 %v7407, %v7847
      %v7858 = vadd.f32 %v7408, %v7848
      %v7859 = vadd.f32 %v7409, %v7849
      %v7860 = vadd.f32 %v7410, %v7850
      %v7861 = vadd.f32 %v7411, %v7851
      %v7862 = vadd.f32 %v7412, %v7852
      %v7863 = vadd.f32 %v7413, %v7853
      %v7864 = vadd.f32 %v7414, %v7854
      %v7865 = vadd.f32 %v7415, %v7855
      %v7866 = vadd.f32 %v7416, %v7856
      %7877 = vrot.lane.b32.xlu0 %v7857, 32
      %v7878 = vpop.permute.xlu0 %7877
      %7879 = vrot.lane.b32.xlu0 %v7858, 32
      %v7880 = vpop.permute.xlu0 %7879
      %7881 = vrot.lane.b32.xlu0 %v7859, 32
      %v7882 = vpop.permute.xlu0 %7881
      %7883 = vrot.lane.b32.xlu0 %v7860, 32
      %v7884 = vpop.permute.xlu0 %7883
      %7885 = vrot.lane.b32.xlu0 %v7861, 32
      %v7886 = vpop.permute.xlu0 %7885
      %7887 = vrot.lane.b32.xlu0 %v7862, 32
      %v7888 = vpop.permute.xlu0 %7887
      %7889 = vrot.lane.b32.xlu0 %v7863, 32
      %v7890 = vpop.permute.xlu0 %7889
      %7891 = vrot.lane.b32.xlu0 %v7864, 32
      %v7892 = vpop.permute.xlu0 %7891
      %7893 = vrot.lane.b32.xlu0 %v7865, 32
      %v7894 = vpop.permute.xlu0 %7893
      %7895 = vrot.lane.b32.xlu0 %v7866, 32
      %v7896 = vpop.permute.xlu0 %7895
      %vm7907 = vcmask 392448
      %7908 = vst.msk [vmem:[#allocation2] sm:$0xff] %vm7907, %v7878
      %7909 = vst.msk [vmem:[#allocation2 + $0x10] sm:$0xff] %vm7907, %v7880
      %7910 = vst.msk [vmem:[#allocation2 + $0x20] sm:$0xff] %vm7907, %v7882
      %7911 = vst.msk [vmem:[#allocation2 + $0x30] sm:$0xff] %vm7907, %v7884
      %7912 = vst.msk [vmem:[#allocation2 + $0x40] sm:$0xff] %vm7907, %v7886
      %7913 = vst.msk [vmem:[#allocation2 + $0x50] sm:$0xff] %vm7907, %v7888
      %7914 = vst.msk [vmem:[#allocation2 + $0x60] sm:$0xff] %vm7907, %v7890
      %7915 = vst.msk [vmem:[#allocation2 + $0x70] sm:$0xff] %vm7907, %v7892
      %7916 = vst.msk [vmem:[#allocation2 + $0x80] sm:$0xff] %vm7907, %v7894
      %7917 = vst.msk [vmem:[#allocation2 + $0x90] sm:$0xff] %vm7907, %v7896
      %7918 = vset.pattern.permute.xlu0 61
      %7919 = vperm.xlu0 %7918, %v1266
      %v7920 = vpop.permute.xlu0 %7919
      %7921 = vset.pattern.permute.xlu0 61
      %7922 = vperm.xlu0 %7921, %v1267
      %v7923 = vpop.permute.xlu0 %7922
      %7924 = vset.pattern.permute.xlu0 61
      %7925 = vperm.xlu0 %7924, %v1268
      %v7926 = vpop.permute.xlu0 %7925
      %7927 = vset.pattern.permute.xlu0 61
      %7928 = vperm.xlu0 %7927, %v1269
      %v7929 = vpop.permute.xlu0 %7928
      %7930 = vset.pattern.permute.xlu0 61
      %7931 = vperm.xlu0 %7930, %v1270
      %v7932 = vpop.permute.xlu0 %7931
      %7933 = vset.pattern.permute.xlu0 61
      %7934 = vperm.xlu0 %7933, %v1271
      %v7935 = vpop.permute.xlu0 %7934
      %7936 = vset.pattern.permute.xlu0 61
      %7937 = vperm.xlu0 %7936, %v1272
      %v7938 = vpop.permute.xlu0 %7937
      %7939 = vset.pattern.permute.xlu0 61
      %7940 = vperm.xlu0 %7939, %v1273
      %v7941 = vpop.permute.xlu0 %7940
      %7942 = vset.pattern.permute.xlu0 61
      %7943 = vperm.xlu0 %7942, %v1274
      %v7944 = vpop.permute.xlu0 %7943
      %7945 = vset.pattern.permute.xlu0 61
      %7946 = vperm.xlu0 %7945, %v1275
      %v7947 = vpop.permute.xlu0 %7946
      %vm7948 = vcmp.eq.s32.totalorder %v951, %v7920
      %vm7949 = vcmp.eq.s32.totalorder %v951, %v7923
      %vm7950 = vcmp.eq.s32.totalorder %v951, %v7926
      %vm7951 = vcmp.eq.s32.totalorder %v951, %v7929
      %vm7952 = vcmp.eq.s32.totalorder %v951, %v7932
      %vm7953 = vcmp.eq.s32.totalorder %v951, %v7935
      %vm7954 = vcmp.eq.s32.totalorder %v951, %v7938
      %vm7955 = vcmp.eq.s32.totalorder %v951, %v7941
      %vm7956 = vcmp.eq.s32.totalorder %v951, %v7944
      %vm7957 = vcmp.eq.s32.totalorder %v951, %v7947
      %7958 = vset.pattern.permute.xlu0 61
      %7959 = vperm.xlu0 %7958, %v1318
      %v7960 = vpop.permute.xlu0 %7959
      %7962 = vset.pattern.permute.xlu0 61
      %7963 = vperm.xlu0 %7962, %v1319
      %v7964 = vpop.permute.xlu0 %7963
      %7966 = vset.pattern.permute.xlu0 61
      %7967 = vperm.xlu0 %7966, %v1320
      %v7968 = vpop.permute.xlu0 %7967
      %7970 = vset.pattern.permute.xlu0 61
      %7971 = vperm.xlu0 %7970, %v1321
      %v7972 = vpop.permute.xlu0 %7971
      %7974 = vset.pattern.permute.xlu0 61
      %7975 = vperm.xlu0 %7974, %v1322
      %v7976 = vpop.permute.xlu0 %7975
      %7978 = vset.pattern.permute.xlu0 61
      %7979 = vperm.xlu0 %7978, %v1323
      %v7980 = vpop.permute.xlu0 %7979
      %7982 = vset.pattern.permute.xlu0 61
      %7983 = vperm.xlu0 %7982, %v1324
      %v7984 = vpop.permute.xlu0 %7983
      %7986 = vset.pattern.permute.xlu0 61
      %7987 = vperm.xlu0 %7986, %v1325
      %v7988 = vpop.permute.xlu0 %7987
      %7990 = vset.pattern.permute.xlu0 61
      %7991 = vperm.xlu0 %7990, %v1326
      %v7992 = vpop.permute.xlu0 %7991
      %7994 = vset.pattern.permute.xlu0 61
      %7995 = vperm.xlu0 %7994, %v1327
      %v7996 = vpop.permute.xlu0 %7995
      %v7998 = vsel %vm7948, %v7960, 0.0
      %v7999 = vsel %vm7949, %v7964, 0.0
      %v8000 = vsel %vm7950, %v7968, 0.0
      %v8001 = vsel %vm7951, %v7972, 0.0
      %v8002 = vsel %vm7952, %v7976, 0.0
      %v8003 = vsel %vm7953, %v7980, 0.0
      %v8004 = vsel %vm7954, %v7984, 0.0
      %v8005 = vsel %vm7955, %v7988, 0.0
      %v8006 = vsel %vm7956, %v7992, 0.0
      %v8007 = vsel %vm7957, %v7996, 0.0
      %8008 = vset.pattern.permute.xlu0 61
      %8009 = vperm.xlu0 %8008, %v1388
      %v8010 = vpop.permute.xlu0 %8009
      %8011 = vset.pattern.permute.xlu0 61
      %8012 = vperm.xlu0 %8011, %v1389
      %v8013 = vpop.permute.xlu0 %8012
      %8014 = vset.pattern.permute.xlu0 61
      %8015 = vperm.xlu0 %8014, %v1390
      %v8016 = vpop.permute.xlu0 %8015
      %8017 = vset.pattern.permute.xlu0 61
      %8018 = vperm.xlu0 %8017, %v1391
      %v8019 = vpop.permute.xlu0 %8018
      %8020 = vset.pattern.permute.xlu0 61
      %8021 = vperm.xlu0 %8020, %v1392
      %v8022 = vpop.permute.xlu0 %8021
      %8023 = vset.pattern.permute.xlu0 61
      %8024 = vperm.xlu0 %8023, %v1393
      %v8025 = vpop.permute.xlu0 %8024
      %8026 = vset.pattern.permute.xlu0 61
      %8027 = vperm.xlu0 %8026, %v1394
      %v8028 = vpop.permute.xlu0 %8027
      %8029 = vset.pattern.permute.xlu0 61
      %8030 = vperm.xlu0 %8029, %v1395
      %v8031 = vpop.permute.xlu0 %8030
      %8032 = vset.pattern.permute.xlu0 61
      %8033 = vperm.xlu0 %8032, %v1396
      %v8034 = vpop.permute.xlu0 %8033
      %8035 = vset.pattern.permute.xlu0 61
      %8036 = vperm.xlu0 %8035, %v1397
      %v8037 = vpop.permute.xlu0 %8036
      %vm8038 = vcmp.eq.s32.totalorder %v951, %v8010
      %vm8039 = vcmp.eq.s32.totalorder %v951, %v8013
      %vm8040 = vcmp.eq.s32.totalorder %v951, %v8016
      %vm8041 = vcmp.eq.s32.totalorder %v951, %v8019
      %vm8042 = vcmp.eq.s32.totalorder %v951, %v8022
      %vm8043 = vcmp.eq.s32.totalorder %v951, %v8025
      %vm8044 = vcmp.eq.s32.totalorder %v951, %v8028
      %vm8045 = vcmp.eq.s32.totalorder %v951, %v8031
      %vm8046 = vcmp.eq.s32.totalorder %v951, %v8034
      %vm8047 = vcmp.eq.s32.totalorder %v951, %v8037
      %8048 = vset.pattern.permute.xlu0 61
      %8049 = vperm.xlu0 %8048, %v1256
      %v8050 = vpop.permute.xlu0 %8049
      %8052 = vset.pattern.permute.xlu0 61
      %8053 = vperm.xlu0 %8052, %v1257
      %v8054 = vpop.permute.xlu0 %8053
      %8056 = vset.pattern.permute.xlu0 61
      %8057 = vperm.xlu0 %8056, %v1258
      %v8058 = vpop.permute.xlu0 %8057
      %8060 = vset.pattern.permute.xlu0 61
      %8061 = vperm.xlu0 %8060, %v1259
      %v8062 = vpop.permute.xlu0 %8061
      %8064 = vset.pattern.permute.xlu0 61
      %8065 = vperm.xlu0 %8064, %v1260
      %v8066 = vpop.permute.xlu0 %8065
      %8068 = vset.pattern.permute.xlu0 61
      %8069 = vperm.xlu0 %8068, %v1261
      %v8070 = vpop.permute.xlu0 %8069
      %8072 = vset.pattern.permute.xlu0 61
      %8073 = vperm.xlu0 %8072, %v1262
      %v8074 = vpop.permute.xlu0 %8073
      %8076 = vset.pattern.permute.xlu0 61
      %8077 = vperm.xlu0 %8076, %v1263
      %v8078 = vpop.permute.xlu0 %8077
      %8080 = vset.pattern.permute.xlu0 61
      %8081 = vperm.xlu0 %8080, %v1264
      %v8082 = vpop.permute.xlu0 %8081
      %8084 = vset.pattern.permute.xlu0 61
      %8085 = vperm.xlu0 %8084, %v1265
      %v8086 = vpop.permute.xlu0 %8085
      %v8088 = vsel %vm8038, %v8050, 0.0
      %v8089 = vsel %vm8039, %v8054, 0.0
      %v8090 = vsel %vm8040, %v8058, 0.0
      %v8091 = vsel %vm8041, %v8062, 0.0
      %v8092 = vsel %vm8042, %v8066, 0.0
      %v8093 = vsel %vm8043, %v8070, 0.0
      %v8094 = vsel %vm8044, %v8074, 0.0
      %v8095 = vsel %vm8045, %v8078, 0.0
      %v8096 = vsel %vm8046, %v8082, 0.0
      %v8097 = vsel %vm8047, %v8086, 0.0
      %v8098 = vadd.f32 %v7998, %v8088
      %v8099 = vadd.f32 %v7999, %v8089
      %v8100 = vadd.f32 %v8000, %v8090
      %v8101 = vadd.f32 %v8001, %v8091
      %v8102 = vadd.f32 %v8002, %v8092
      %v8103 = vadd.f32 %v8003, %v8093
      %v8104 = vadd.f32 %v8004, %v8094
      %v8105 = vadd.f32 %v8005, %v8095
      %v8106 = vadd.f32 %v8006, %v8096
      %v8107 = vadd.f32 %v8007, %v8097
      %8108 = vset.pattern.permute.xlu0 60
      %8109 = vperm.xlu0 %8108, %v1266
      %v8110 = vpop.permute.xlu0 %8109
      %8111 = vset.pattern.permute.xlu0 60
      %8112 = vperm.xlu0 %8111, %v1267
      %v8113 = vpop.permute.xlu0 %8112
      %8114 = vset.pattern.permute.xlu0 60
      %8115 = vperm.xlu0 %8114, %v1268
      %v8116 = vpop.permute.xlu0 %8115
      %8117 = vset.pattern.permute.xlu0 60
      %8118 = vperm.xlu0 %8117, %v1269
      %v8119 = vpop.permute.xlu0 %8118
      %8120 = vset.pattern.permute.xlu0 60
      %8121 = vperm.xlu0 %8120, %v1270
      %v8122 = vpop.permute.xlu0 %8121
      %8123 = vset.pattern.permute.xlu0 60
      %8124 = vperm.xlu0 %8123, %v1271
      %v8125 = vpop.permute.xlu0 %8124
      %8126 = vset.pattern.permute.xlu0 60
      %8127 = vperm.xlu0 %8126, %v1272
      %v8128 = vpop.permute.xlu0 %8127
      %8129 = vset.pattern.permute.xlu0 60
      %8130 = vperm.xlu0 %8129, %v1273
      %v8131 = vpop.permute.xlu0 %8130
      %8132 = vset.pattern.permute.xlu0 60
      %8133 = vperm.xlu0 %8132, %v1274
      %v8134 = vpop.permute.xlu0 %8133
      %8135 = vset.pattern.permute.xlu0 60
      %8136 = vperm.xlu0 %8135, %v1275
      %v8137 = vpop.permute.xlu0 %8136
      %vm8138 = vcmp.eq.s32.totalorder %v5105, %v8110
      %vm8139 = vcmp.eq.s32.totalorder %v5105, %v8113
      %vm8140 = vcmp.eq.s32.totalorder %v5105, %v8116
      %vm8141 = vcmp.eq.s32.totalorder %v5105, %v8119
      %vm8142 = vcmp.eq.s32.totalorder %v5105, %v8122
      %vm8143 = vcmp.eq.s32.totalorder %v5105, %v8125
      %vm8144 = vcmp.eq.s32.totalorder %v5105, %v8128
      %vm8145 = vcmp.eq.s32.totalorder %v5105, %v8131
      %vm8146 = vcmp.eq.s32.totalorder %v5105, %v8134
      %vm8147 = vcmp.eq.s32.totalorder %v5105, %v8137
      %8148 = vset.pattern.permute.xlu0 60
      %8149 = vperm.xlu0 %8148, %v1318
      %v8150 = vpop.permute.xlu0 %8149
      %8152 = vset.pattern.permute.xlu0 60
      %8153 = vperm.xlu0 %8152, %v1319
      %v8154 = vpop.permute.xlu0 %8153
      %8156 = vset.pattern.permute.xlu0 60
      %8157 = vperm.xlu0 %8156, %v1320
      %v8158 = vpop.permute.xlu0 %8157
      %8160 = vset.pattern.permute.xlu0 60
      %8161 = vperm.xlu0 %8160, %v1321
      %v8162 = vpop.permute.xlu0 %8161
      %8164 = vset.pattern.permute.xlu0 60
      %8165 = vperm.xlu0 %8164, %v1322
      %v8166 = vpop.permute.xlu0 %8165
      %8168 = vset.pattern.permute.xlu0 60
      %8169 = vperm.xlu0 %8168, %v1323
      %v8170 = vpop.permute.xlu0 %8169
      %8172 = vset.pattern.permute.xlu0 60
      %8173 = vperm.xlu0 %8172, %v1324
      %v8174 = vpop.permute.xlu0 %8173
      %8176 = vset.pattern.permute.xlu0 60
      %8177 = vperm.xlu0 %8176, %v1325
      %v8178 = vpop.permute.xlu0 %8177
      %8180 = vset.pattern.permute.xlu0 60
      %8181 = vperm.xlu0 %8180, %v1326
      %v8182 = vpop.permute.xlu0 %8181
      %8184 = vset.pattern.permute.xlu0 60
      %8185 = vperm.xlu0 %8184, %v1327
      %v8186 = vpop.permute.xlu0 %8185
      %v8188 = vsel %vm8138, %v8150, 0.0
      %v8189 = vsel %vm8139, %v8154, 0.0
      %v8190 = vsel %vm8140, %v8158, 0.0
      %v8191 = vsel %vm8141, %v8162, 0.0
      %v8192 = vsel %vm8142, %v8166, 0.0
      %v8193 = vsel %vm8143, %v8170, 0.0
      %v8194 = vsel %vm8144, %v8174, 0.0
      %v8195 = vsel %vm8145, %v8178, 0.0
      %v8196 = vsel %vm8146, %v8182, 0.0
      %v8197 = vsel %vm8147, %v8186, 0.0
      %8198 = vset.pattern.permute.xlu0 60
      %8199 = vperm.xlu0 %8198, %v1388
      %v8200 = vpop.permute.xlu0 %8199
      %8201 = vset.pattern.permute.xlu0 60
      %8202 = vperm.xlu0 %8201, %v1389
      %v8203 = vpop.permute.xlu0 %8202
      %8204 = vset.pattern.permute.xlu0 60
      %8205 = vperm.xlu0 %8204, %v1390
      %v8206 = vpop.permute.xlu0 %8205
      %8207 = vset.pattern.permute.xlu0 60
      %8208 = vperm.xlu0 %8207, %v1391
      %v8209 = vpop.permute.xlu0 %8208
      %8210 = vset.pattern.permute.xlu0 60
      %8211 = vperm.xlu0 %8210, %v1392
      %v8212 = vpop.permute.xlu0 %8211
      %8213 = vset.pattern.permute.xlu0 60
      %8214 = vperm.xlu0 %8213, %v1393
      %v8215 = vpop.permute.xlu0 %8214
      %8216 = vset.pattern.permute.xlu0 60
      %8217 = vperm.xlu0 %8216, %v1394
      %v8218 = vpop.permute.xlu0 %8217
      %8219 = vset.pattern.permute.xlu0 60
      %8220 = vperm.xlu0 %8219, %v1395
      %v8221 = vpop.permute.xlu0 %8220
      %8222 = vset.pattern.permute.xlu0 60
      %8223 = vperm.xlu0 %8222, %v1396
      %v8224 = vpop.permute.xlu0 %8223
      %8225 = vset.pattern.permute.xlu0 60
      %8226 = vperm.xlu0 %8225, %v1397
      %v8227 = vpop.permute.xlu0 %8226
      %vm8228 = vcmp.eq.s32.totalorder %v5105, %v8200
      %vm8229 = vcmp.eq.s32.totalorder %v5105, %v8203
      %vm8230 = vcmp.eq.s32.totalorder %v5105, %v8206
      %vm8231 = vcmp.eq.s32.totalorder %v5105, %v8209
      %vm8232 = vcmp.eq.s32.totalorder %v5105, %v8212
      %vm8233 = vcmp.eq.s32.totalorder %v5105, %v8215
      %vm8234 = vcmp.eq.s32.totalorder %v5105, %v8218
      %vm8235 = vcmp.eq.s32.totalorder %v5105, %v8221
      %vm8236 = vcmp.eq.s32.totalorder %v5105, %v8224
      %vm8237 = vcmp.eq.s32.totalorder %v5105, %v8227
      %8238 = vset.pattern.permute.xlu0 60
      %8239 = vperm.xlu0 %8238, %v1256
      %v8240 = vpop.permute.xlu0 %8239
      %8242 = vset.pattern.permute.xlu0 60
      %8243 = vperm.xlu0 %8242, %v1257
      %v8244 = vpop.permute.xlu0 %8243
      %8246 = vset.pattern.permute.xlu0 60
      %8247 = vperm.xlu0 %8246, %v1258
      %v8248 = vpop.permute.xlu0 %8247
      %8250 = vset.pattern.permute.xlu0 60
      %8251 = vperm.xlu0 %8250, %v1259
      %v8252 = vpop.permute.xlu0 %8251
      %8254 = vset.pattern.permute.xlu0 60
      %8255 = vperm.xlu0 %8254, %v1260
      %v8256 = vpop.permute.xlu0 %8255
      %8258 = vset.pattern.permute.xlu0 60
      %8259 = vperm.xlu0 %8258, %v1261
      %v8260 = vpop.permute.xlu0 %8259
      %8262 = vset.pattern.permute.xlu0 60
      %8263 = vperm.xlu0 %8262, %v1262
      %v8264 = vpop.permute.xlu0 %8263
      %8266 = vset.pattern.permute.xlu0 60
      %8267 = vperm.xlu0 %8266, %v1263
      %v8268 = vpop.permute.xlu0 %8267
      %8270 = vset.pattern.permute.xlu0 60
      %8271 = vperm.xlu0 %8270, %v1264
      %v8272 = vpop.permute.xlu0 %8271
      %8274 = vset.pattern.permute.xlu0 60
      %8275 = vperm.xlu0 %8274, %v1265
      %v8276 = vpop.permute.xlu0 %8275
      %v8278 = vsel %vm8228, %v8240, 0.0
      %v8279 = vsel %vm8229, %v8244, 0.0
      %v8280 = vsel %vm8230, %v8248, 0.0
      %v8281 = vsel %vm8231, %v8252, 0.0
      %v8282 = vsel %vm8232, %v8256, 0.0
      %v8283 = vsel %vm8233, %v8260, 0.0
      %v8284 = vsel %vm8234, %v8264, 0.0
      %v8285 = vsel %vm8235, %v8268, 0.0
      %v8286 = vsel %vm8236, %v8272, 0.0
      %v8287 = vsel %vm8237, %v8276, 0.0
      %v8288 = vadd.f32 %v8188, %v8278
      %v8289 = vadd.f32 %v8189, %v8279
      %v8290 = vadd.f32 %v8190, %v8280
      %v8291 = vadd.f32 %v8191, %v8281
      %v8292 = vadd.f32 %v8192, %v8282
      %v8293 = vadd.f32 %v8193, %v8283
      %v8294 = vadd.f32 %v8194, %v8284
      %v8295 = vadd.f32 %v8195, %v8285
      %v8296 = vadd.f32 %v8196, %v8286
      %v8297 = vadd.f32 %v8197, %v8287
      %8298 = vset.pattern.permute.xlu0 78
      %8299 = vperm.xlu0 %8298, %v1110
      %v8300 = vpop.permute.xlu0 %8299
      %8302 = vset.pattern.permute.xlu0 78
      %8303 = vperm.xlu0 %8302, %v1125
      %v8304 = vpop.permute.xlu0 %8303
      %8306 = vset.pattern.permute.xlu0 78
      %8307 = vperm.xlu0 %8306, %v1140
      %v8308 = vpop.permute.xlu0 %8307
      %8310 = vset.pattern.permute.xlu0 78
      %8311 = vperm.xlu0 %8310, %v1155
      %v8312 = vpop.permute.xlu0 %8311
      %8314 = vset.pattern.permute.xlu0 78
      %8315 = vperm.xlu0 %8314, %v1170
      %v8316 = vpop.permute.xlu0 %8315
      %8318 = vset.pattern.permute.xlu0 78
      %8319 = vperm.xlu0 %8318, %v1185
      %v8320 = vpop.permute.xlu0 %8319
      %8322 = vset.pattern.permute.xlu0 78
      %8323 = vperm.xlu0 %8322, %v1200
      %v8324 = vpop.permute.xlu0 %8323
      %8326 = vset.pattern.permute.xlu0 78
      %8327 = vperm.xlu0 %8326, %v1215
      %v8328 = vpop.permute.xlu0 %8327
      %8330 = vset.pattern.permute.xlu0 78
      %8331 = vperm.xlu0 %8330, %v1230
      %v8332 = vpop.permute.xlu0 %8331
      %8334 = vset.pattern.permute.xlu0 78
      %8335 = vperm.xlu0 %8334, %v1245
      %v8336 = vpop.permute.xlu0 %8335
      %v8338 = vmul.f32 %v8300, %v8098
      %v8339 = vmul.f32 %v8304, %v8099
      %v8340 = vmul.f32 %v8308, %v8100
      %v8341 = vmul.f32 %v8312, %v8101
      %v8342 = vmul.f32 %v8316, %v8102
      %v8343 = vmul.f32 %v8320, %v8103
      %v8344 = vmul.f32 %v8324, %v8104
      %v8345 = vmul.f32 %v8328, %v8105
      %v8346 = vmul.f32 %v8332, %v8106
      %v8347 = vmul.f32 %v8336, %v8107
      %v8348 = vmul.f32 %v8338, %v8288
      %v8349 = vmul.f32 %v8339, %v8289
      %v8350 = vmul.f32 %v8340, %v8290
      %v8351 = vmul.f32 %v8341, %v8291
      %v8352 = vmul.f32 %v8342, %v8292
      %v8353 = vmul.f32 %v8343, %v8293
      %v8354 = vmul.f32 %v8344, %v8294
      %v8355 = vmul.f32 %v8345, %v8295
      %v8356 = vmul.f32 %v8346, %v8296
      %v8357 = vmul.f32 %v8347, %v8297
      %v8358 = vadd.f32 %v8348, 0.0
      %v8359 = vadd.f32 %v8349, 0.0
      %v8360 = vadd.f32 %v8350, 0.0
      %v8361 = vadd.f32 %v8351, 0.0
      %v8362 = vadd.f32 %v8352, 0.0
      %v8363 = vadd.f32 %v8353, 0.0
      %v8364 = vadd.f32 %v8354, 0.0
      %v8365 = vadd.f32 %v8355, 0.0
      %v8366 = vadd.f32 %v8356, 0.0
      %v8367 = vadd.f32 %v8357, 0.0
      %8368 = vset.pattern.permute.xlu0 63
      %8369 = vperm.xlu0 %8368, %v1266
      %v8370 = vpop.permute.xlu0 %8369
      %8371 = vset.pattern.permute.xlu0 63
      %8372 = vperm.xlu0 %8371, %v1267
      %v8373 = vpop.permute.xlu0 %8372
      %8374 = vset.pattern.permute.xlu0 63
      %8375 = vperm.xlu0 %8374, %v1268
      %v8376 = vpop.permute.xlu0 %8375
      %8377 = vset.pattern.permute.xlu0 63
      %8378 = vperm.xlu0 %8377, %v1269
      %v8379 = vpop.permute.xlu0 %8378
      %8380 = vset.pattern.permute.xlu0 63
      %8381 = vperm.xlu0 %8380, %v1270
      %v8382 = vpop.permute.xlu0 %8381
      %8383 = vset.pattern.permute.xlu0 63
      %8384 = vperm.xlu0 %8383, %v1271
      %v8385 = vpop.permute.xlu0 %8384
      %8386 = vset.pattern.permute.xlu0 63
      %8387 = vperm.xlu0 %8386, %v1272
      %v8388 = vpop.permute.xlu0 %8387
      %8389 = vset.pattern.permute.xlu0 63
      %8390 = vperm.xlu0 %8389, %v1273
      %v8391 = vpop.permute.xlu0 %8390
      %8392 = vset.pattern.permute.xlu0 63
      %8393 = vperm.xlu0 %8392, %v1274
      %v8394 = vpop.permute.xlu0 %8393
      %8395 = vset.pattern.permute.xlu0 63
      %8396 = vperm.xlu0 %8395, %v1275
      %v8397 = vpop.permute.xlu0 %8396
      %vm8398 = vcmp.eq.s32.totalorder %v951, %v8370
      %vm8399 = vcmp.eq.s32.totalorder %v951, %v8373
      %vm8400 = vcmp.eq.s32.totalorder %v951, %v8376
      %vm8401 = vcmp.eq.s32.totalorder %v951, %v8379
      %vm8402 = vcmp.eq.s32.totalorder %v951, %v8382
      %vm8403 = vcmp.eq.s32.totalorder %v951, %v8385
      %vm8404 = vcmp.eq.s32.totalorder %v951, %v8388
      %vm8405 = vcmp.eq.s32.totalorder %v951, %v8391
      %vm8406 = vcmp.eq.s32.totalorder %v951, %v8394
      %vm8407 = vcmp.eq.s32.totalorder %v951, %v8397
      %8408 = vset.pattern.permute.xlu0 63
      %8409 = vperm.xlu0 %8408, %v1318
      %v8410 = vpop.permute.xlu0 %8409
      %8412 = vset.pattern.permute.xlu0 63
      %8413 = vperm.xlu0 %8412, %v1319
      %v8414 = vpop.permute.xlu0 %8413
      %8416 = vset.pattern.permute.xlu0 63
      %8417 = vperm.xlu0 %8416, %v1320
      %v8418 = vpop.permute.xlu0 %8417
      %8420 = vset.pattern.permute.xlu0 63
      %8421 = vperm.xlu0 %8420, %v1321
      %v8422 = vpop.permute.xlu0 %8421
      %8424 = vset.pattern.permute.xlu0 63
      %8425 = vperm.xlu0 %8424, %v1322
      %v8426 = vpop.permute.xlu0 %8425
      %8428 = vset.pattern.permute.xlu0 63
      %8429 = vperm.xlu0 %8428, %v1323
      %v8430 = vpop.permute.xlu0 %8429
      %8432 = vset.pattern.permute.xlu0 63
      %8433 = vperm.xlu0 %8432, %v1324
      %v8434 = vpop.permute.xlu0 %8433
      %8436 = vset.pattern.permute.xlu0 63
      %8437 = vperm.xlu0 %8436, %v1325
      %v8438 = vpop.permute.xlu0 %8437
      %8440 = vset.pattern.permute.xlu0 63
      %8441 = vperm.xlu0 %8440, %v1326
      %v8442 = vpop.permute.xlu0 %8441
      %8444 = vset.pattern.permute.xlu0 63
      %8445 = vperm.xlu0 %8444, %v1327
      %v8446 = vpop.permute.xlu0 %8445
      %v8448 = vsel %vm8398, %v8410, 0.0
      %v8449 = vsel %vm8399, %v8414, 0.0
      %v8450 = vsel %vm8400, %v8418, 0.0
      %v8451 = vsel %vm8401, %v8422, 0.0
      %v8452 = vsel %vm8402, %v8426, 0.0
      %v8453 = vsel %vm8403, %v8430, 0.0
      %v8454 = vsel %vm8404, %v8434, 0.0
      %v8455 = vsel %vm8405, %v8438, 0.0
      %v8456 = vsel %vm8406, %v8442, 0.0
      %v8457 = vsel %vm8407, %v8446, 0.0
      %8458 = vset.pattern.permute.xlu0 63
      %8459 = vperm.xlu0 %8458, %v1388
      %v8460 = vpop.permute.xlu0 %8459
      %8461 = vset.pattern.permute.xlu0 63
      %8462 = vperm.xlu0 %8461, %v1389
      %v8463 = vpop.permute.xlu0 %8462
      %8464 = vset.pattern.permute.xlu0 63
      %8465 = vperm.xlu0 %8464, %v1390
      %v8466 = vpop.permute.xlu0 %8465
      %8467 = vset.pattern.permute.xlu0 63
      %8468 = vperm.xlu0 %8467, %v1391
      %v8469 = vpop.permute.xlu0 %8468
      %8470 = vset.pattern.permute.xlu0 63
      %8471 = vperm.xlu0 %8470, %v1392
      %v8472 = vpop.permute.xlu0 %8471
      %8473 = vset.pattern.permute.xlu0 63
      %8474 = vperm.xlu0 %8473, %v1393
      %v8475 = vpop.permute.xlu0 %8474
      %8476 = vset.pattern.permute.xlu0 63
      %8477 = vperm.xlu0 %8476, %v1394
      %v8478 = vpop.permute.xlu0 %8477
      %8479 = vset.pattern.permute.xlu0 63
      %8480 = vperm.xlu0 %8479, %v1395
      %v8481 = vpop.permute.xlu0 %8480
      %8482 = vset.pattern.permute.xlu0 63
      %8483 = vperm.xlu0 %8482, %v1396
      %v8484 = vpop.permute.xlu0 %8483
      %8485 = vset.pattern.permute.xlu0 63
      %8486 = vperm.xlu0 %8485, %v1397
      %v8487 = vpop.permute.xlu0 %8486
      %vm8488 = vcmp.eq.s32.totalorder %v951, %v8460
      %vm8489 = vcmp.eq.s32.totalorder %v951, %v8463
      %vm8490 = vcmp.eq.s32.totalorder %v951, %v8466
      %vm8491 = vcmp.eq.s32.totalorder %v951, %v8469
      %vm8492 = vcmp.eq.s32.totalorder %v951, %v8472
      %vm8493 = vcmp.eq.s32.totalorder %v951, %v8475
      %vm8494 = vcmp.eq.s32.totalorder %v951, %v8478
      %vm8495 = vcmp.eq.s32.totalorder %v951, %v8481
      %vm8496 = vcmp.eq.s32.totalorder %v951, %v8484
      %vm8497 = vcmp.eq.s32.totalorder %v951, %v8487
      %8498 = vset.pattern.permute.xlu0 63
      %8499 = vperm.xlu0 %8498, %v1256
      %v8500 = vpop.permute.xlu0 %8499
      %8502 = vset.pattern.permute.xlu0 63
      %8503 = vperm.xlu0 %8502, %v1257
      %v8504 = vpop.permute.xlu0 %8503
      %8506 = vset.pattern.permute.xlu0 63
      %8507 = vperm.xlu0 %8506, %v1258
      %v8508 = vpop.permute.xlu0 %8507
      %8510 = vset.pattern.permute.xlu0 63
      %8511 = vperm.xlu0 %8510, %v1259
      %v8512 = vpop.permute.xlu0 %8511
      %8514 = vset.pattern.permute.xlu0 63
      %8515 = vperm.xlu0 %8514, %v1260
      %v8516 = vpop.permute.xlu0 %8515
      %8518 = vset.pattern.permute.xlu0 63
      %8519 = vperm.xlu0 %8518, %v1261
      %v8520 = vpop.permute.xlu0 %8519
      %8522 = vset.pattern.permute.xlu0 63
      %8523 = vperm.xlu0 %8522, %v1262
      %v8524 = vpop.permute.xlu0 %8523
      %8526 = vset.pattern.permute.xlu0 63
      %8527 = vperm.xlu0 %8526, %v1263
      %v8528 = vpop.permute.xlu0 %8527
      %8530 = vset.pattern.permute.xlu0 63
      %8531 = vperm.xlu0 %8530, %v1264
      %v8532 = vpop.permute.xlu0 %8531
      %8534 = vset.pattern.permute.xlu0 63
      %8535 = vperm.xlu0 %8534, %v1265
      %v8536 = vpop.permute.xlu0 %8535
      %v8538 = vsel %vm8488, %v8500, 0.0
      %v8539 = vsel %vm8489, %v8504, 0.0
      %v8540 = vsel %vm8490, %v8508, 0.0
      %v8541 = vsel %vm8491, %v8512, 0.0
      %v8542 = vsel %vm8492, %v8516, 0.0
      %v8543 = vsel %vm8493, %v8520, 0.0
      %v8544 = vsel %vm8494, %v8524, 0.0
      %v8545 = vsel %vm8495, %v8528, 0.0
      %v8546 = vsel %vm8496, %v8532, 0.0
      %v8547 = vsel %vm8497, %v8536, 0.0
      %v8548 = vadd.f32 %v8448, %v8538
      %v8549 = vadd.f32 %v8449, %v8539
      %v8550 = vadd.f32 %v8450, %v8540
      %v8551 = vadd.f32 %v8451, %v8541
      %v8552 = vadd.f32 %v8452, %v8542
      %v8553 = vadd.f32 %v8453, %v8543
      %v8554 = vadd.f32 %v8454, %v8544
      %v8555 = vadd.f32 %v8455, %v8545
      %v8556 = vadd.f32 %v8456, %v8546
      %v8557 = vadd.f32 %v8457, %v8547
      %8558 = vset.pattern.permute.xlu0 62
      %8559 = vperm.xlu0 %8558, %v1266
      %v8560 = vpop.permute.xlu0 %8559
      %8561 = vset.pattern.permute.xlu0 62
      %8562 = vperm.xlu0 %8561, %v1267
      %v8563 = vpop.permute.xlu0 %8562
      %8564 = vset.pattern.permute.xlu0 62
      %8565 = vperm.xlu0 %8564, %v1268
      %v8566 = vpop.permute.xlu0 %8565
      %8567 = vset.pattern.permute.xlu0 62
      %8568 = vperm.xlu0 %8567, %v1269
      %v8569 = vpop.permute.xlu0 %8568
      %8570 = vset.pattern.permute.xlu0 62
      %8571 = vperm.xlu0 %8570, %v1270
      %v8572 = vpop.permute.xlu0 %8571
      %8573 = vset.pattern.permute.xlu0 62
      %8574 = vperm.xlu0 %8573, %v1271
      %v8575 = vpop.permute.xlu0 %8574
      %8576 = vset.pattern.permute.xlu0 62
      %8577 = vperm.xlu0 %8576, %v1272
      %v8578 = vpop.permute.xlu0 %8577
      %8579 = vset.pattern.permute.xlu0 62
      %8580 = vperm.xlu0 %8579, %v1273
      %v8581 = vpop.permute.xlu0 %8580
      %8582 = vset.pattern.permute.xlu0 62
      %8583 = vperm.xlu0 %8582, %v1274
      %v8584 = vpop.permute.xlu0 %8583
      %8585 = vset.pattern.permute.xlu0 62
      %8586 = vperm.xlu0 %8585, %v1275
      %v8587 = vpop.permute.xlu0 %8586
      %vm8588 = vcmp.eq.s32.totalorder %v5105, %v8560
      %vm8589 = vcmp.eq.s32.totalorder %v5105, %v8563
      %vm8590 = vcmp.eq.s32.totalorder %v5105, %v8566
      %vm8591 = vcmp.eq.s32.totalorder %v5105, %v8569
      %vm8592 = vcmp.eq.s32.totalorder %v5105, %v8572
      %vm8593 = vcmp.eq.s32.totalorder %v5105, %v8575
      %vm8594 = vcmp.eq.s32.totalorder %v5105, %v8578
      %vm8595 = vcmp.eq.s32.totalorder %v5105, %v8581
      %vm8596 = vcmp.eq.s32.totalorder %v5105, %v8584
      %vm8597 = vcmp.eq.s32.totalorder %v5105, %v8587
      %8598 = vset.pattern.permute.xlu0 62
      %8599 = vperm.xlu0 %8598, %v1318
      %v8600 = vpop.permute.xlu0 %8599
      %8602 = vset.pattern.permute.xlu0 62
      %8603 = vperm.xlu0 %8602, %v1319
      %v8604 = vpop.permute.xlu0 %8603
      %8606 = vset.pattern.permute.xlu0 62
      %8607 = vperm.xlu0 %8606, %v1320
      %v8608 = vpop.permute.xlu0 %8607
      %8610 = vset.pattern.permute.xlu0 62
      %8611 = vperm.xlu0 %8610, %v1321
      %v8612 = vpop.permute.xlu0 %8611
      %8614 = vset.pattern.permute.xlu0 62
      %8615 = vperm.xlu0 %8614, %v1322
      %v8616 = vpop.permute.xlu0 %8615
      %8618 = vset.pattern.permute.xlu0 62
      %8619 = vperm.xlu0 %8618, %v1323
      %v8620 = vpop.permute.xlu0 %8619
      %8622 = vset.pattern.permute.xlu0 62
      %8623 = vperm.xlu0 %8622, %v1324
      %v8624 = vpop.permute.xlu0 %8623
      %8626 = vset.pattern.permute.xlu0 62
      %8627 = vperm.xlu0 %8626, %v1325
      %v8628 = vpop.permute.xlu0 %8627
      %8630 = vset.pattern.permute.xlu0 62
      %8631 = vperm.xlu0 %8630, %v1326
      %v8632 = vpop.permute.xlu0 %8631
      %8634 = vset.pattern.permute.xlu0 62
      %8635 = vperm.xlu0 %8634, %v1327
      %v8636 = vpop.permute.xlu0 %8635
      %v8638 = vsel %vm8588, %v8600, 0.0
      %v8639 = vsel %vm8589, %v8604, 0.0
      %v8640 = vsel %vm8590, %v8608, 0.0
      %v8641 = vsel %vm8591, %v8612, 0.0
      %v8642 = vsel %vm8592, %v8616, 0.0
      %v8643 = vsel %vm8593, %v8620, 0.0
      %v8644 = vsel %vm8594, %v8624, 0.0
      %v8645 = vsel %vm8595, %v8628, 0.0
      %v8646 = vsel %vm8596, %v8632, 0.0
      %v8647 = vsel %vm8597, %v8636, 0.0
      %8648 = vset.pattern.permute.xlu0 62
      %8649 = vperm.xlu0 %8648, %v1388
      %v8650 = vpop.permute.xlu0 %8649
      %8651 = vset.pattern.permute.xlu0 62
      %8652 = vperm.xlu0 %8651, %v1389
      %v8653 = vpop.permute.xlu0 %8652
      %8654 = vset.pattern.permute.xlu0 62
      %8655 = vperm.xlu0 %8654, %v1390
      %v8656 = vpop.permute.xlu0 %8655
      %8657 = vset.pattern.permute.xlu0 62
      %8658 = vperm.xlu0 %8657, %v1391
      %v8659 = vpop.permute.xlu0 %8658
      %8660 = vset.pattern.permute.xlu0 62
      %8661 = vperm.xlu0 %8660, %v1392
      %v8662 = vpop.permute.xlu0 %8661
      %8663 = vset.pattern.permute.xlu0 62
      %8664 = vperm.xlu0 %8663, %v1393
      %v8665 = vpop.permute.xlu0 %8664
      %8666 = vset.pattern.permute.xlu0 62
      %8667 = vperm.xlu0 %8666, %v1394
      %v8668 = vpop.permute.xlu0 %8667
      %8669 = vset.pattern.permute.xlu0 62
      %8670 = vperm.xlu0 %8669, %v1395
      %v8671 = vpop.permute.xlu0 %8670
      %8672 = vset.pattern.permute.xlu0 62
      %8673 = vperm.xlu0 %8672, %v1396
      %v8674 = vpop.permute.xlu0 %8673
      %8675 = vset.pattern.permute.xlu0 62
      %8676 = vperm.xlu0 %8675, %v1397
      %v8677 = vpop.permute.xlu0 %8676
      %vm8678 = vcmp.eq.s32.totalorder %v5105, %v8650
      %vm8679 = vcmp.eq.s32.totalorder %v5105, %v8653
      %vm8680 = vcmp.eq.s32.totalorder %v5105, %v8656
      %vm8681 = vcmp.eq.s32.totalorder %v5105, %v8659
      %vm8682 = vcmp.eq.s32.totalorder %v5105, %v8662
      %vm8683 = vcmp.eq.s32.totalorder %v5105, %v8665
      %vm8684 = vcmp.eq.s32.totalorder %v5105, %v8668
      %vm8685 = vcmp.eq.s32.totalorder %v5105, %v8671
      %vm8686 = vcmp.eq.s32.totalorder %v5105, %v8674
      %vm8687 = vcmp.eq.s32.totalorder %v5105, %v8677
      %8688 = vset.pattern.permute.xlu0 62
      %8689 = vperm.xlu0 %8688, %v1256
      %v8690 = vpop.permute.xlu0 %8689
      %8692 = vset.pattern.permute.xlu0 62
      %8693 = vperm.xlu0 %8692, %v1257
      %v8694 = vpop.permute.xlu0 %8693
      %8696 = vset.pattern.permute.xlu0 62
      %8697 = vperm.xlu0 %8696, %v1258
      %v8698 = vpop.permute.xlu0 %8697
      %8700 = vset.pattern.permute.xlu0 62
      %8701 = vperm.xlu0 %8700, %v1259
      %v8702 = vpop.permute.xlu0 %8701
      %8704 = vset.pattern.permute.xlu0 62
      %8705 = vperm.xlu0 %8704, %v1260
      %v8706 = vpop.permute.xlu0 %8705
      %8708 = vset.pattern.permute.xlu0 62
      %8709 = vperm.xlu0 %8708, %v1261
      %v8710 = vpop.permute.xlu0 %8709
      %8712 = vset.pattern.permute.xlu0 62
      %8713 = vperm.xlu0 %8712, %v1262
      %v8714 = vpop.permute.xlu0 %8713
      %8716 = vset.pattern.permute.xlu0 62
      %8717 = vperm.xlu0 %8716, %v1263
      %v8718 = vpop.permute.xlu0 %8717
      %8720 = vset.pattern.permute.xlu0 62
      %8721 = vperm.xlu0 %8720, %v1264
      %v8722 = vpop.permute.xlu0 %8721
      %8724 = vset.pattern.permute.xlu0 62
      %8725 = vperm.xlu0 %8724, %v1265
      %v8726 = vpop.permute.xlu0 %8725
      %v8728 = vsel %vm8678, %v8690, 0.0
      %v8729 = vsel %vm8679, %v8694, 0.0
      %v8730 = vsel %vm8680, %v8698, 0.0
      %v8731 = vsel %vm8681, %v8702, 0.0
      %v8732 = vsel %vm8682, %v8706, 0.0
      %v8733 = vsel %vm8683, %v8710, 0.0
      %v8734 = vsel %vm8684, %v8714, 0.0
      %v8735 = vsel %vm8685, %v8718, 0.0
      %v8736 = vsel %vm8686, %v8722, 0.0
      %v8737 = vsel %vm8687, %v8726, 0.0
      %v8738 = vadd.f32 %v8638, %v8728
      %v8739 = vadd.f32 %v8639, %v8729
      %v8740 = vadd.f32 %v8640, %v8730
      %v8741 = vadd.f32 %v8641, %v8731
      %v8742 = vadd.f32 %v8642, %v8732
      %v8743 = vadd.f32 %v8643, %v8733
      %v8744 = vadd.f32 %v8644, %v8734
      %v8745 = vadd.f32 %v8645, %v8735
      %v8746 = vadd.f32 %v8646, %v8736
      %v8747 = vadd.f32 %v8647, %v8737
      %8748 = vset.pattern.permute.xlu0 79
      %8749 = vperm.xlu0 %8748, %v1110
      %v8750 = vpop.permute.xlu0 %8749
      %8752 = vset.pattern.permute.xlu0 79
      %8753 = vperm.xlu0 %8752, %v1125
      %v8754 = vpop.permute.xlu0 %8753
      %8756 = vset.pattern.permute.xlu0 79
      %8757 = vperm.xlu0 %8756, %v1140
      %v8758 = vpop.permute.xlu0 %8757
      %8760 = vset.pattern.permute.xlu0 79
      %8761 = vperm.xlu0 %8760, %v1155
      %v8762 = vpop.permute.xlu0 %8761
      %8764 = vset.pattern.permute.xlu0 79
      %8765 = vperm.xlu0 %8764, %v1170
      %v8766 = vpop.permute.xlu0 %8765
      %8768 = vset.pattern.permute.xlu0 79
      %8769 = vperm.xlu0 %8768, %v1185
      %v8770 = vpop.permute.xlu0 %8769
      %8772 = vset.pattern.permute.xlu0 79
      %8773 = vperm.xlu0 %8772, %v1200
      %v8774 = vpop.permute.xlu0 %8773
      %8776 = vset.pattern.permute.xlu0 79
      %8777 = vperm.xlu0 %8776, %v1215
      %v8778 = vpop.permute.xlu0 %8777
      %8780 = vset.pattern.permute.xlu0 79
      %8781 = vperm.xlu0 %8780, %v1230
      %v8782 = vpop.permute.xlu0 %8781
      %8784 = vset.pattern.permute.xlu0 79
      %8785 = vperm.xlu0 %8784, %v1245
      %v8786 = vpop.permute.xlu0 %8785
      %v8788 = vmul.f32 %v8750, %v8548
      %v8789 = vmul.f32 %v8754, %v8549
      %v8790 = vmul.f32 %v8758, %v8550
      %v8791 = vmul.f32 %v8762, %v8551
      %v8792 = vmul.f32 %v8766, %v8552
      %v8793 = vmul.f32 %v8770, %v8553
      %v8794 = vmul.f32 %v8774, %v8554
      %v8795 = vmul.f32 %v8778, %v8555
      %v8796 = vmul.f32 %v8782, %v8556
      %v8797 = vmul.f32 %v8786, %v8557
      %v8798 = vmul.f32 %v8788, %v8738
      %v8799 = vmul.f32 %v8789, %v8739
      %v8800 = vmul.f32 %v8790, %v8740
      %v8801 = vmul.f32 %v8791, %v8741
      %v8802 = vmul.f32 %v8792, %v8742
      %v8803 = vmul.f32 %v8793, %v8743
      %v8804 = vmul.f32 %v8794, %v8744
      %v8805 = vmul.f32 %v8795, %v8745
      %v8806 = vmul.f32 %v8796, %v8746
      %v8807 = vmul.f32 %v8797, %v8747
      %v8808 = vadd.f32 %v8358, %v8798
      %v8809 = vadd.f32 %v8359, %v8799
      %v8810 = vadd.f32 %v8360, %v8800
      %v8811 = vadd.f32 %v8361, %v8801
      %v8812 = vadd.f32 %v8362, %v8802
      %v8813 = vadd.f32 %v8363, %v8803
      %v8814 = vadd.f32 %v8364, %v8804
      %v8815 = vadd.f32 %v8365, %v8805
      %v8816 = vadd.f32 %v8366, %v8806
      %v8817 = vadd.f32 %v8367, %v8807
      %8828 = vrot.lane.b32.xlu0 %v8808, 48
      %v8829 = vpop.permute.xlu0 %8828
      %8830 = vrot.lane.b32.xlu0 %v8809, 48
      %v8831 = vpop.permute.xlu0 %8830
      %8832 = vrot.lane.b32.xlu0 %v8810, 48
      %v8833 = vpop.permute.xlu0 %8832
      %8834 = vrot.lane.b32.xlu0 %v8811, 48
      %v8835 = vpop.permute.xlu0 %8834
      %8836 = vrot.lane.b32.xlu0 %v8812, 48
      %v8837 = vpop.permute.xlu0 %8836
      %8838 = vrot.lane.b32.xlu0 %v8813, 48
      %v8839 = vpop.permute.xlu0 %8838
      %8840 = vrot.lane.b32.xlu0 %v8814, 48
      %v8841 = vpop.permute.xlu0 %8840
      %8842 = vrot.lane.b32.xlu0 %v8815, 48
      %v8843 = vpop.permute.xlu0 %8842
      %8844 = vrot.lane.b32.xlu0 %v8816, 48
      %v8845 = vpop.permute.xlu0 %8844
      %8846 = vrot.lane.b32.xlu0 %v8817, 48
      %v8847 = vpop.permute.xlu0 %8846
      %vm8858 = vcmask 523648
      %8859 = vst.msk [vmem:[#allocation2] sm:$0xff] %vm8858, %v8829
      %8860 = vst.msk [vmem:[#allocation2 + $0x10] sm:$0xff] %vm8858, %v8831
      %8861 = vst.msk [vmem:[#allocation2 + $0x20] sm:$0xff] %vm8858, %v8833
      %8862 = vst.msk [vmem:[#allocation2 + $0x30] sm:$0xff] %vm8858, %v8835
      %8863 = vst.msk [vmem:[#allocation2 + $0x40] sm:$0xff] %vm8858, %v8837
      %8864 = vst.msk [vmem:[#allocation2 + $0x50] sm:$0xff] %vm8858, %v8839
      %8865 = vst.msk [vmem:[#allocation2 + $0x60] sm:$0xff] %vm8858, %v8841
      %8866 = vst.msk [vmem:[#allocation2 + $0x70] sm:$0xff] %vm8858, %v8843
      %8867 = vst.msk [vmem:[#allocation2 + $0x80] sm:$0xff] %vm8858, %v8845
      %8868 = vst.msk [vmem:[#allocation2 + $0x90] sm:$0xff] %vm8858, %v8847
      %v8869 = vsel %vm5049, %v821, 0.0
      %v8870 = vsel %vm5049, %v822, 0.0
      %v8871 = vsel %vm5058, %v821, 0.0
      %v8872 = vsel %vm5058, %v822, 0.0
      %v8873 = vsel %vm5067, %v821, 0.0
      %v8874 = vsel %vm5067, %v822, 0.0
      %v8875 = vsel %vm5076, %v821, 0.0
      %v8876 = vsel %vm5076, %v822, 0.0
      %v8877 = vld [vmem:[#allocation2] sm:$0xff]
      %v8878 = vld [vmem:[#allocation2 + $0x10] sm:$0xff]
      %v8879 = vld [vmem:[#allocation2 + $0x20] sm:$0xff]
      %v8880 = vld [vmem:[#allocation2 + $0x30] sm:$0xff]
      %v8881 = vld [vmem:[#allocation2 + $0x40] sm:$0xff]
      %v8882 = vld [vmem:[#allocation2 + $0x50] sm:$0xff]
      %v8883 = vld [vmem:[#allocation2 + $0x60] sm:$0xff]
      %v8884 = vld [vmem:[#allocation2 + $0x70] sm:$0xff]
      %v8885 = vld [vmem:[#allocation2 + $0x80] sm:$0xff]
      %v8886 = vld [vmem:[#allocation2 + $0x90] sm:$0xff]
      %v8888 = vsel %vm665, %v8877, 0
      %v8891 = vsel %vm665, %v8878, 0
      %v8894 = vsel %vm665, %v8879, 0
      %v8897 = vsel %vm665, %v8880, 0
      %v8900 = vsel %vm665, %v8881, 0
      %v8903 = vsel %vm665, %v8882, 0
      %v8906 = vsel %vm665, %v8883, 0
      %v8909 = vsel %vm665, %v8884, 0
      %v8912 = vsel %vm665, %v8885, 0
      %v8915 = vsel %vm665, %v8886, 0
      %8917 = vmatpush.msra.mxu0 0.0
      %8918 = vmatpush.msra.mxu0 0.0
      %8919 = vmatpush.msra.mxu0 0.0
      %8920 = vmatpush.msra.mxu0 0.0
      %8921 = vmatpush.msra.mxu0 0.0
      %8922 = vmatpush.msra.mxu0 0.0
      %8923 = vmatpush.msra.mxu0 0.0
      %8924 = vmatpush.msra.mxu0 0.0
      %8925 = vmatpush.msra.mxu0 %v8876
      %8926 = vmatpush.msra.mxu0 %v8875
      %8927 = vmatpush.msra.mxu0 %v8874
      %8928 = vmatpush.msra.mxu0 %v8873
      %8929 = vmatpush.msra.mxu0 %v8872
      %8930 = vmatpush.msra.mxu0 %v8871
      %8931 = vmatpush.msra.mxu0 %v8870
      %8932 = vmatpush.msra.mxu0 %v8869
      %8933 = vmatmul.f32.gmra.mxu0 %v8888
      %v8934 = vpop.f32.mrf.mxu0
      %v8935 = vadd.f32 0.0, %v8934
      %8936 = vmatmul.f32.gmra.mxu0 %v8891
      %v8937 = vpop.f32.mrf.mxu0
      %v8938 = vadd.f32 0.0, %v8937
      %8939 = vmatmul.f32.gmra.mxu0 %v8894
      %v8940 = vpop.f32.mrf.mxu0
      %v8941 = vadd.f32 0.0, %v8940
      %8942 = vmatmul.f32.gmra.mxu0 %v8897
      %v8943 = vpop.f32.mrf.mxu0
      %v8944 = vadd.f32 0.0, %v8943
      %8945 = vmatmul.f32.gmra.mxu0 %v8900
      %v8946 = vpop.f32.mrf.mxu0
      %v8947 = vadd.f32 0.0, %v8946
      %8948 = vmatmul.f32.gmra.mxu0 %v8903
      %v8949 = vpop.f32.mrf.mxu0
      %v8950 = vadd.f32 0.0, %v8949
      %8951 = vmatmul.f32.gmra.mxu0 %v8906
      %v8952 = vpop.f32.mrf.mxu0
      %v8953 = vadd.f32 0.0, %v8952
      %8954 = vmatmul.f32.gmra.mxu0 %v8909
      %v8955 = vpop.f32.mrf.mxu0
      %v8956 = vadd.f32 0.0, %v8955
      %8957 = vmatmul.f32.gmra.mxu0 %v8912
      %v8958 = vpop.f32.mrf.mxu0
      %v8959 = vadd.f32 0.0, %v8958
      %8960 = vmatmul.f32.gmra.mxu0 %v8915
      %v8961 = vpop.f32.mrf.mxu0
      %v8962 = vadd.f32 0.0, %v8961
      %8963 = vdwg.mxu0
      %8964 = vmatpush.msra.mxu0 %v5066
      %8965 = vmatpush.msra.mxu0 %v5065
      %8966 = vmatpush.msra.mxu0 %v5064
      %8967 = vmatpush.msra.mxu0 %v5063
      %8968 = vmatpush.msra.mxu0 %v5062
      %8969 = vmatpush.msra.mxu0 %v5061
      %8970 = vmatpush.msra.mxu0 %v5060
      %8971 = vmatpush.msra.mxu0 %v5059
      %8972 = vmatpush.msra.mxu0 %v5057
      %8973 = vmatpush.msra.mxu0 %v5056
      %8974 = vmatpush.msra.mxu0 %v5055
      %8975 = vmatpush.msra.mxu0 %v5054
      %8976 = vmatpush.msra.mxu0 %v5053
      %8977 = vmatpush.msra.mxu0 %v5052
      %8978 = vmatpush.msra.mxu0 %v5051
      %8979 = vmatpush.msra.mxu0 %v5050
      %8980 = vmatmul.f32.gmra.mxu0 %v5085
      %v8981 = vpop.f32.mrf.mxu0
      %v8982 = vadd.f32 %v8935, %v8981
      %8983 = vmatmul.f32.gmra.mxu0 %v5087
      %v8984 = vpop.f32.mrf.mxu0
      %v8985 = vadd.f32 %v8938, %v8984
      %8986 = vmatmul.f32.gmra.mxu0 %v5089
      %v8987 = vpop.f32.mrf.mxu0
      %v8988 = vadd.f32 %v8941, %v8987
      %8989 = vmatmul.f32.gmra.mxu0 %v5091
      %v8990 = vpop.f32.mrf.mxu0
      %v8991 = vadd.f32 %v8944, %v8990
      %8992 = vmatmul.f32.gmra.mxu0 %v5093
      %v8993 = vpop.f32.mrf.mxu0
      %v8994 = vadd.f32 %v8947, %v8993
      %8995 = vmatmul.f32.gmra.mxu0 %v5095
      %v8996 = vpop.f32.mrf.mxu0
      %v8997 = vadd.f32 %v8950, %v8996
      %8998 = vmatmul.f32.gmra.mxu0 %v5097
      %v8999 = vpop.f32.mrf.mxu0
      %v9000 = vadd.f32 %v8953, %v8999
      %9001 = vmatmul.f32.gmra.mxu0 %v5099
      %v9002 = vpop.f32.mrf.mxu0
      %v9003 = vadd.f32 %v8956, %v9002
      %9004 = vmatmul.f32.gmra.mxu0 %v5101
      %v9005 = vpop.f32.mrf.mxu0
      %v9006 = vadd.f32 %v8959, %v9005
      %9007 = vmatmul.f32.gmra.mxu0 %v5103
      %v9008 = vpop.f32.mrf.mxu0
      %v9009 = vadd.f32 %v8962, %v9008
      %9010 = vdwg.mxu0
      %9011 = vmatpush.msra.mxu0 %v5084
      %9012 = vmatpush.msra.mxu0 %v5083
      %9013 = vmatpush.msra.mxu0 %v5082
      %9014 = vmatpush.msra.mxu0 %v5081
      %9015 = vmatpush.msra.mxu0 %v5080
      %9016 = vmatpush.msra.mxu0 %v5079
      %9017 = vmatpush.msra.mxu0 %v5078
      %9018 = vmatpush.msra.mxu0 %v5077
      %9019 = vmatpush.msra.mxu0 %v5075
      %9020 = vmatpush.msra.mxu0 %v5074
      %9021 = vmatpush.msra.mxu0 %v5073
      %9022 = vmatpush.msra.mxu0 %v5072
      %9023 = vmatpush.msra.mxu0 %v5071
      %9024 = vmatpush.msra.mxu0 %v5070
      %9025 = vmatpush.msra.mxu0 %v5069
      %9026 = vmatpush.msra.mxu0 %v5068
      %9027 = vmatmul.f32.gmra.mxu0 %v5086
      %v9028 = vpop.f32.mrf.mxu0
      %v9029 = vadd.f32 %v8982, %v9028
      %9030 = vmatmul.f32.gmra.mxu0 %v5088
      %v9031 = vpop.f32.mrf.mxu0
      %v9032 = vadd.f32 %v8985, %v9031
      %9033 = vmatmul.f32.gmra.mxu0 %v5090
      %v9034 = vpop.f32.mrf.mxu0
      %v9035 = vadd.f32 %v8988, %v9034
      %9036 = vmatmul.f32.gmra.mxu0 %v5092
      %v9037 = vpop.f32.mrf.mxu0
      %v9038 = vadd.f32 %v8991, %v9037
      %9039 = vmatmul.f32.gmra.mxu0 %v5094
      %v9040 = vpop.f32.mrf.mxu0
      %v9041 = vadd.f32 %v8994, %v9040
      %9042 = vmatmul.f32.gmra.mxu0 %v5096
      %v9043 = vpop.f32.mrf.mxu0
      %v9044 = vadd.f32 %v8997, %v9043
      %9045 = vmatmul.f32.gmra.mxu0 %v5098
      %v9046 = vpop.f32.mrf.mxu0
      %v9047 = vadd.f32 %v9000, %v9046
      %9048 = vmatmul.f32.gmra.mxu0 %v5100
      %v9049 = vpop.f32.mrf.mxu0
      %v9050 = vadd.f32 %v9003, %v9049
      %9051 = vmatmul.f32.gmra.mxu0 %v5102
      %v9052 = vpop.f32.mrf.mxu0
      %v9053 = vadd.f32 %v9006, %v9052
      %9054 = vmatmul.f32.gmra.mxu0 %v5104
      %v9055 = vpop.f32.mrf.mxu0
      %v9056 = vadd.f32 %v9009, %v9055
      %9057 = vdwg.mxu0
      %v9058 = vld [vmem:[%s6] sm:$0xff]
      %v9059 = vld [vmem:[%s6 + $0x8] sm:$0xff]
      %v9060 = vld [vmem:[%s6 + $0x10] sm:$0xff]
      %v9061 = vld [vmem:[%s6 + $0x18] sm:$0xff]
      %v9062 = vld [vmem:[%s7] sm:$0x1]
      %v9064 = vperm.slane %v9062, 0
      %v9067 = vsel %vm642, %v9029, 0
      %v9070 = vsel %vm642, %v9032, 0
      %v9073 = vsel %vm642, %v9035, 0
      %v9076 = vsel %vm642, %v9038, 0
      %v9079 = vsel %vm642, %v9041, 0
      %v9082 = vsel %vm642, %v9044, 0
      %v9085 = vsel %vm642, %v9047, 0
      %v9088 = vsel %vm642, %v9050, 0
      %v9091 = vsel %vm642, %v9053, 0
      %v9094 = vsel %vm642, %v9056, 0
      %9096 = vmatpush.msra.mxu0 0.0
      %9097 = vmatpush.msra.mxu0 0.0
      %9098 = vmatpush.msra.mxu0 0.0
      %9099 = vmatpush.msra.mxu0 0.0
      %9100 = vmatpush.msra.mxu0 0.0
      %9101 = vmatpush.msra.mxu0 0.0
      %9102 = vmatpush.msra.mxu0 0.0
      %9103 = vmatpush.msra.mxu0 0.0
      %9104 = vmatpush.msra.mxu0 0.0
      %9105 = vmatpush.msra.mxu0 0.0
      %9106 = vmatpush.msra.mxu0 0.0
      %9107 = vmatpush.msra.mxu0 0.0
      %9108 = vmatpush.msra.mxu0 %v9061
      %9109 = vmatpush.msra.mxu0 %v9060
      %9110 = vmatpush.msra.mxu0 %v9059
      %9111 = vmatpush.msra.mxu0 %v9058
      %9112 = vmatmul.f32.gmra.mxu0 %v9067
      %v9113 = vpop.f32.mrf.mxu0
      %v9114 = vadd.f32 %v9064, %v9113
      %9115 = vmatmul.f32.gmra.mxu0 %v9070
      %v9116 = vpop.f32.mrf.mxu0
      %v9117 = vadd.f32 %v9064, %v9116
      %9118 = vmatmul.f32.gmra.mxu0 %v9073
      %v9119 = vpop.f32.mrf.mxu0
      %v9120 = vadd.f32 %v9064, %v9119
      %9121 = vmatmul.f32.gmra.mxu0 %v9076
      %v9122 = vpop.f32.mrf.mxu0
      %v9123 = vadd.f32 %v9064, %v9122
      %9124 = vmatmul.f32.gmra.mxu0 %v9079
      %v9125 = vpop.f32.mrf.mxu0
      %v9126 = vadd.f32 %v9064, %v9125
      %9127 = vmatmul.f32.gmra.mxu0 %v9082
      %v9128 = vpop.f32.mrf.mxu0
      %v9129 = vadd.f32 %v9064, %v9128
      %9130 = vmatmul.f32.gmra.mxu0 %v9085
      %v9131 = vpop.f32.mrf.mxu0
      %v9132 = vadd.f32 %v9064, %v9131
      %9133 = vmatmul.f32.gmra.mxu0 %v9088
      %v9134 = vpop.f32.mrf.mxu0
      %v9135 = vadd.f32 %v9064, %v9134
      %9136 = vmatmul.f32.gmra.mxu0 %v9091
      %v9137 = vpop.f32.mrf.mxu0
      %v9138 = vadd.f32 %v9064, %v9137
      %9139 = vmatmul.f32.gmra.mxu0 %v9094
      %v9140 = vpop.f32.mrf.mxu0
      %v9141 = vadd.f32 %v9064, %v9140
      %9142 = vdwg.mxu0
      %v9143 = vadd.f32 %v582, %v9114
      %v9144 = vadd.f32 %v583, %v9117
      %v9145 = vadd.f32 %v584, %v9120
      %v9146 = vadd.f32 %v585, %v9123
      %v9147 = vadd.f32 %v586, %v9126
      %v9148 = vadd.f32 %v587, %v9129
      %v9149 = vadd.f32 %v588, %v9132
      %v9150 = vadd.f32 %v589, %v9135
      %v9151 = vadd.f32 %v590, %v9138
      %v9152 = vadd.f32 %v591, %v9141
      %v9153 = vld [vmem:[%s8] sm:$0x1]
      %v9154 = vld [vmem:[%s9] sm:$0x1]
      %v9155 = vsel %vm642, %v9143, 0.0
      %9156 = vadd.xlane.f32.xlu0 %v9155
      %v9157 = vpop.xlane.xlu0 %9156
      %v9158 = vsel %vm642, %v9144, 0.0
      %9159 = vadd.xlane.f32.xlu0 %v9158
      %v9160 = vpop.xlane.xlu0 %9159
      %v9161 = vsel %vm642, %v9145, 0.0
      %9162 = vadd.xlane.f32.xlu0 %v9161
      %v9163 = vpop.xlane.xlu0 %9162
      %v9164 = vsel %vm642, %v9146, 0.0
      %9165 = vadd.xlane.f32.xlu0 %v9164
      %v9166 = vpop.xlane.xlu0 %9165
      %v9167 = vsel %vm642, %v9147, 0.0
      %9168 = vadd.xlane.f32.xlu0 %v9167
      %v9169 = vpop.xlane.xlu0 %9168
      %v9170 = vsel %vm642, %v9148, 0.0
      %9171 = vadd.xlane.f32.xlu0 %v9170
      %v9172 = vpop.xlane.xlu0 %9171
      %v9173 = vsel %vm642, %v9149, 0.0
      %9174 = vadd.xlane.f32.xlu0 %v9173
      %v9175 = vpop.xlane.xlu0 %9174
      %v9176 = vsel %vm642, %v9150, 0.0
      %9177 = vadd.xlane.f32.xlu0 %v9176
      %v9178 = vpop.xlane.xlu0 %9177
      %v9179 = vsel %vm642, %v9151, 0.0
      %9180 = vadd.xlane.f32.xlu0 %v9179
      %v9181 = vpop.xlane.xlu0 %9180
      %v9182 = vsel %vm642, %v9152, 0.0
      %9183 = vadd.xlane.f32.xlu0 %v9182
      %v9184 = vpop.xlane.xlu0 %9183
      %v9185 = vrcp.pop 32.0
      %v9186 = vmul.f32 32.0, %v9185
      %v9187 = vsub.f32 1.0, %v9186
      %v9188 = vmul.f32 %v9185, %v9187
      %v9189 = vadd.f32 %v9185, %v9188
      %vm9190 = vweird.f32 %v9185
      %v9191 = vsel %vm9190, %v9185, %v9189
      %v9192 = vmul.f32 %v9157, %v9191
      %v9193 = vmul.f32 %v9160, %v9191
      %v9194 = vmul.f32 %v9163, %v9191
      %v9195 = vmul.f32 %v9166, %v9191
      %v9196 = vmul.f32 %v9169, %v9191
      %v9197 = vmul.f32 %v9172, %v9191
      %v9198 = vmul.f32 %v9175, %v9191
      %v9199 = vmul.f32 %v9178, %v9191
      %v9200 = vmul.f32 %v9181, %v9191
      %v9201 = vmul.f32 %v9184, %v9191
      %v9202 = vsub.f32 %v9143, %v9192
      %v9203 = vsub.f32 %v9144, %v9193
      %v9204 = vsub.f32 %v9145, %v9194
      %v9205 = vsub.f32 %v9146, %v9195
      %v9206 = vsub.f32 %v9147, %v9196
      %v9207 = vsub.f32 %v9148, %v9197
      %v9208 = vsub.f32 %v9149, %v9198
      %v9209 = vsub.f32 %v9150, %v9199
      %v9210 = vsub.f32 %v9151, %v9200
      %v9211 = vsub.f32 %v9152, %v9201
      %v9212 = vmul.f32 %v9202, %v9202
      %v9213 = vmul.f32 %v9203, %v9203
      %v9214 = vmul.f32 %v9204, %v9204
      %v9215 = vmul.f32 %v9205, %v9205
      %v9216 = vmul.f32 %v9206, %v9206
      %v9217 = vmul.f32 %v9207, %v9207
      %v9218 = vmul.f32 %v9208, %v9208
      %v9219 = vmul.f32 %v9209, %v9209
      %v9220 = vmul.f32 %v9210, %v9210
      %v9221 = vmul.f32 %v9211, %v9211
      %v9222 = vsel %vm642, %v9212, 0.0
      %9223 = vadd.xlane.f32.xlu0 %v9222
      %v9224 = vpop.xlane.xlu0 %9223
      %v9225 = vsel %vm642, %v9213, 0.0
      %9226 = vadd.xlane.f32.xlu0 %v9225
      %v9227 = vpop.xlane.xlu0 %9226
      %v9228 = vsel %vm642, %v9214, 0.0
      %9229 = vadd.xlane.f32.xlu0 %v9228
      %v9230 = vpop.xlane.xlu0 %9229
      %v9231 = vsel %vm642, %v9215, 0.0
      %9232 = vadd.xlane.f32.xlu0 %v9231
      %v9233 = vpop.xlane.xlu0 %9232
      %v9234 = vsel %vm642, %v9216, 0.0
      %9235 = vadd.xlane.f32.xlu0 %v9234
      %v9236 = vpop.xlane.xlu0 %9235
      %v9237 = vsel %vm642, %v9217, 0.0
      %9238 = vadd.xlane.f32.xlu0 %v9237
      %v9239 = vpop.xlane.xlu0 %9238
      %v9240 = vsel %vm642, %v9218, 0.0
      %9241 = vadd.xlane.f32.xlu0 %v9240
      %v9242 = vpop.xlane.xlu0 %9241
      %v9243 = vsel %vm642, %v9219, 0.0
      %9244 = vadd.xlane.f32.xlu0 %v9243
      %v9245 = vpop.xlane.xlu0 %9244
      %v9246 = vsel %vm642, %v9220, 0.0
      %9247 = vadd.xlane.f32.xlu0 %v9246
      %v9248 = vpop.xlane.xlu0 %9247
      %v9249 = vsel %vm642, %v9221, 0.0
      %9250 = vadd.xlane.f32.xlu0 %v9249
      %v9251 = vpop.xlane.xlu0 %9250
      %v9252 = vmul.f32 %v9224, %v9191
      %v9253 = vmul.f32 %v9227, %v9191
      %v9254 = vmul.f32 %v9230, %v9191
      %v9255 = vmul.f32 %v9233, %v9191
      %v9256 = vmul.f32 %v9236, %v9191
      %v9257 = vmul.f32 %v9239, %v9191
      %v9258 = vmul.f32 %v9242, %v9191
      %v9259 = vmul.f32 %v9245, %v9191
      %v9260 = vmul.f32 %v9248, %v9191
      %v9261 = vmul.f32 %v9251, %v9191
      %v9262 = vadd.f32 %v9252, 1e-05
      %v9263 = vadd.f32 %v9253, 1e-05
      %v9264 = vadd.f32 %v9254, 1e-05
      %v9265 = vadd.f32 %v9255, 1e-05
      %v9266 = vadd.f32 %v9256, 1e-05
      %v9267 = vadd.f32 %v9257, 1e-05
      %v9268 = vadd.f32 %v9258, 1e-05
      %v9269 = vadd.f32 %v9259, 1e-05
      %v9270 = vadd.f32 %v9260, 1e-05
      %v9271 = vadd.f32 %v9261, 1e-05
      %v9272 = vrsqrt.pop %v9262
      %v9273 = vmul.f32 %v9272, %v9262
      %v9274 = vmul.f32 %v9273, %v9272
      %v9275 = vmul.f32 0.5, %v9274
      %v9276 = vsub.f32 1.5, %v9275
      %v9277 = vmul.f32 %v9272, %v9276
      %vm9278 = vweird.f32 %v9262
      %vm9279 = vweird.f32 %v9272
      %vm9280 = vmor %vm9278, %vm9279
      %v9281 = vsel %vm9280, %v9272, %v9277
      %v9282 = vrsqrt.pop %v9263
      %v9283 = vmul.f32 %v9282, %v9263
      %v9284 = vmul.f32 %v9283, %v9282
      %v9285 = vmul.f32 0.5, %v9284
      %v9286 = vsub.f32 1.5, %v9285
      %v9287 = vmul.f32 %v9282, %v9286
      %vm9288 = vweird.f32 %v9263
      %vm9289 = vweird.f32 %v9282
      %vm9290 = vmor %vm9288, %vm9289
      %v9291 = vsel %vm9290, %v9282, %v9287
      %v9292 = vrsqrt.pop %v9264
      %v9293 = vmul.f32 %v9292, %v9264
      %v9294 = vmul.f32 %v9293, %v9292
      %v9295 = vmul.f32 0.5, %v9294
      %v9296 = vsub.f32 1.5, %v9295
      %v9297 = vmul.f32 %v9292, %v9296
      %vm9298 = vweird.f32 %v9264
      %vm9299 = vweird.f32 %v9292
      %vm9300 = vmor %vm9298, %vm9299
      %v9301 = vsel %vm9300, %v9292, %v9297
      %v9302 = vrsqrt.pop %v9265
      %v9303 = vmul.f32 %v9302, %v9265
      %v9304 = vmul.f32 %v9303, %v9302
      %v9305 = vmul.f32 0.5, %v9304
      %v9306 = vsub.f32 1.5, %v9305
      %v9307 = vmul.f32 %v9302, %v9306
      %vm9308 = vweird.f32 %v9265
      %vm9309 = vweird.f32 %v9302
      %vm9310 = vmor %vm9308, %vm9309
      %v9311 = vsel %vm9310, %v9302, %v9307
      %v9312 = vrsqrt.pop %v9266
      %v9313 = vmul.f32 %v9312, %v9266
      %v9314 = vmul.f32 %v9313, %v9312
      %v9315 = vmul.f32 0.5, %v9314
      %v9316 = vsub.f32 1.5, %v9315
      %v9317 = vmul.f32 %v9312, %v9316
      %vm9318 = vweird.f32 %v9266
      %vm9319 = vweird.f32 %v9312
      %vm9320 = vmor %vm9318, %vm9319
      %v9321 = vsel %vm9320, %v9312, %v9317
      %v9322 = vrsqrt.pop %v9267
      %v9323 = vmul.f32 %v9322, %v9267
      %v9324 = vmul.f32 %v9323, %v9322
      %v9325 = vmul.f32 0.5, %v9324
      %v9326 = vsub.f32 1.5, %v9325
      %v9327 = vmul.f32 %v9322, %v9326
      %vm9328 = vweird.f32 %v9267
      %vm9329 = vweird.f32 %v9322
      %vm9330 = vmor %vm9328, %vm9329
      %v9331 = vsel %vm9330, %v9322, %v9327
      %v9332 = vrsqrt.pop %v9268
      %v9333 = vmul.f32 %v9332, %v9268
      %v9334 = vmul.f32 %v9333, %v9332
      %v9335 = vmul.f32 0.5, %v9334
      %v9336 = vsub.f32 1.5, %v9335
      %v9337 = vmul.f32 %v9332, %v9336
      %vm9338 = vweird.f32 %v9268
      %vm9339 = vweird.f32 %v9332
      %vm9340 = vmor %vm9338, %vm9339
      %v9341 = vsel %vm9340, %v9332, %v9337
      %v9342 = vrsqrt.pop %v9269
      %v9343 = vmul.f32 %v9342, %v9269
      %v9344 = vmul.f32 %v9343, %v9342
      %v9345 = vmul.f32 0.5, %v9344
      %v9346 = vsub.f32 1.5, %v9345
      %v9347 = vmul.f32 %v9342, %v9346
      %vm9348 = vweird.f32 %v9269
      %vm9349 = vweird.f32 %v9342
      %vm9350 = vmor %vm9348, %vm9349
      %v9351 = vsel %vm9350, %v9342, %v9347
      %v9352 = vrsqrt.pop %v9270
      %v9353 = vmul.f32 %v9352, %v9270
      %v9354 = vmul.f32 %v9353, %v9352
      %v9355 = vmul.f32 0.5, %v9354
      %v9356 = vsub.f32 1.5, %v9355
      %v9357 = vmul.f32 %v9352, %v9356
      %vm9358 = vweird.f32 %v9270
      %vm9359 = vweird.f32 %v9352
      %vm9360 = vmor %vm9358, %vm9359
      %v9361 = vsel %vm9360, %v9352, %v9357
      %v9362 = vrsqrt.pop %v9271
      %v9363 = vmul.f32 %v9362, %v9271
      %v9364 = vmul.f32 %v9363, %v9362
      %v9365 = vmul.f32 0.5, %v9364
      %v9366 = vsub.f32 1.5, %v9365
      %v9367 = vmul.f32 %v9362, %v9366
      %vm9368 = vweird.f32 %v9271
      %vm9369 = vweird.f32 %v9362
      %vm9370 = vmor %vm9368, %vm9369
      %v9371 = vsel %vm9370, %v9362, %v9367
      %v9372 = vmul.f32 %v9202, %v9281
      %v9373 = vmul.f32 %v9203, %v9291
      %v9374 = vmul.f32 %v9204, %v9301
      %v9375 = vmul.f32 %v9205, %v9311
      %v9376 = vmul.f32 %v9206, %v9321
      %v9377 = vmul.f32 %v9207, %v9331
      %v9378 = vmul.f32 %v9208, %v9341
      %v9379 = vmul.f32 %v9209, %v9351
      %v9380 = vmul.f32 %v9210, %v9361
      %v9381 = vmul.f32 %v9211, %v9371
      %v9383 = vperm.slane %v9153, 0
      %v9385 = vmul.f32 %v9372, %v9383
      %v9386 = vmul.f32 %v9373, %v9383
      %v9387 = vmul.f32 %v9374, %v9383
      %v9388 = vmul.f32 %v9375, %v9383
      %v9389 = vmul.f32 %v9376, %v9383
      %v9390 = vmul.f32 %v9377, %v9383
      %v9391 = vmul.f32 %v9378, %v9383
      %v9392 = vmul.f32 %v9379, %v9383
      %v9393 = vmul.f32 %v9380, %v9383
      %v9394 = vmul.f32 %v9381, %v9383
      %v9396 = vperm.slane %v9154, 0
      %v9398 = vadd.f32 %v9385, %v9396
      %v9399 = vadd.f32 %v9386, %v9396
      %v9400 = vadd.f32 %v9387, %v9396
      %v9401 = vadd.f32 %v9388, %v9396
      %v9402 = vadd.f32 %v9389, %v9396
      %v9403 = vadd.f32 %v9390, %v9396
      %v9404 = vadd.f32 %v9391, %v9396
      %v9405 = vadd.f32 %v9392, %v9396
      %v9406 = vadd.f32 %v9393, %v9396
      %v9407 = vadd.f32 %v9394, %v9396
      %v9408 = vld [vmem:[%s10] sm:$0xff]
      %v9409 = vld [vmem:[%s10 + $0x8] sm:$0xff]
      %v9410 = vld [vmem:[%s10 + $0x10] sm:$0xff]
      %v9411 = vld [vmem:[%s10 + $0x18] sm:$0xff]
      %v9412 = vld [vmem:[%s11] sm:$0x1]
      %v9414 = vperm.slane %v9412, 0
      %v9417 = vsel %vm642, %v9398, 0
      %v9420 = vsel %vm642, %v9399, 0
      %v9423 = vsel %vm642, %v9400, 0
      %v9426 = vsel %vm642, %v9401, 0
      %v9429 = vsel %vm642, %v9402, 0
      %v9432 = vsel %vm642, %v9403, 0
      %v9435 = vsel %vm642, %v9404, 0
      %v9438 = vsel %vm642, %v9405, 0
      %v9441 = vsel %vm642, %v9406, 0
      %v9444 = vsel %vm642, %v9407, 0
      %9446 = vmatpush.msra.mxu0 0.0
      %9447 = vmatpush.msra.mxu0 0.0
      %9448 = vmatpush.msra.mxu0 0.0
      %9449 = vmatpush.msra.mxu0 0.0
      %9450 = vmatpush.msra.mxu0 0.0
      %9451 = vmatpush.msra.mxu0 0.0
      %9452 = vmatpush.msra.mxu0 0.0
      %9453 = vmatpush.msra.mxu0 0.0
      %9454 = vmatpush.msra.mxu0 0.0
      %9455 = vmatpush.msra.mxu0 0.0
      %9456 = vmatpush.msra.mxu0 0.0
      %9457 = vmatpush.msra.mxu0 0.0
      %9458 = vmatpush.msra.mxu0 %v9411
      %9459 = vmatpush.msra.mxu0 %v9410
      %9460 = vmatpush.msra.mxu0 %v9409
      %9461 = vmatpush.msra.mxu0 %v9408
      %9462 = vmatmul.f32.gmra.mxu0 %v9417
      %v9463 = vpop.f32.mrf.mxu0
      %v9464 = vadd.f32 %v9414, %v9463
      %9465 = vmatmul.f32.gmra.mxu0 %v9420
      %v9466 = vpop.f32.mrf.mxu0
      %v9467 = vadd.f32 %v9414, %v9466
      %9468 = vmatmul.f32.gmra.mxu0 %v9423
      %v9469 = vpop.f32.mrf.mxu0
      %v9470 = vadd.f32 %v9414, %v9469
      %9471 = vmatmul.f32.gmra.mxu0 %v9426
      %v9472 = vpop.f32.mrf.mxu0
      %v9473 = vadd.f32 %v9414, %v9472
      %9474 = vmatmul.f32.gmra.mxu0 %v9429
      %v9475 = vpop.f32.mrf.mxu0
      %v9476 = vadd.f32 %v9414, %v9475
      %9477 = vmatmul.f32.gmra.mxu0 %v9432
      %v9478 = vpop.f32.mrf.mxu0
      %v9479 = vadd.f32 %v9414, %v9478
      %9480 = vmatmul.f32.gmra.mxu0 %v9435
      %v9481 = vpop.f32.mrf.mxu0
      %v9482 = vadd.f32 %v9414, %v9481
      %9483 = vmatmul.f32.gmra.mxu0 %v9438
      %v9484 = vpop.f32.mrf.mxu0
      %v9485 = vadd.f32 %v9414, %v9484
      %9486 = vmatmul.f32.gmra.mxu0 %v9441
      %v9487 = vpop.f32.mrf.mxu0
      %v9488 = vadd.f32 %v9414, %v9487
      %9489 = vmatmul.f32.gmra.mxu0 %v9444
      %v9490 = vpop.f32.mrf.mxu0
      %v9491 = vadd.f32 %v9414, %v9490
      %9492 = vdwg.mxu0
      %v9493 = vmax.f32 %v9464, 0.0
      %v9494 = vmax.f32 %v9467, 0.0
      %v9495 = vmax.f32 %v9470, 0.0
      %v9496 = vmax.f32 %v9473, 0.0
      %v9497 = vmax.f32 %v9476, 0.0
      %v9498 = vmax.f32 %v9479, 0.0
      %v9499 = vmax.f32 %v9482, 0.0
      %v9500 = vmax.f32 %v9485, 0.0
      %v9501 = vmax.f32 %v9488, 0.0
      %v9502 = vmax.f32 %v9491, 0.0
      %v9503 = vld [vmem:[%s12] sm:$0xff]
      %v9504 = vld [vmem:[%s12 + $0x8] sm:$0xff]
      %v9505 = vld [vmem:[%s12 + $0x10] sm:$0xff]
      %v9506 = vld [vmem:[%s12 + $0x18] sm:$0xff]
      %v9507 = vld [vmem:[%s12 + $0x20] sm:$0xff]
      %v9508 = vld [vmem:[%s12 + $0x28] sm:$0xff]
      %v9509 = vld [vmem:[%s12 + $0x30] sm:$0xff]
      %v9510 = vld [vmem:[%s12 + $0x38] sm:$0xff]
      %v9511 = vld [vmem:[%s13] sm:$0x1]
      %v9513 = vperm.slane %v9511, 0
      %v9516 = vsel %vm665, %v9493, 0
      %v9519 = vsel %vm665, %v9494, 0
      %v9522 = vsel %vm665, %v9495, 0
      %v9525 = vsel %vm665, %v9496, 0
      %v9528 = vsel %vm665, %v9497, 0
      %v9531 = vsel %vm665, %v9498, 0
      %v9534 = vsel %vm665, %v9499, 0
      %v9537 = vsel %vm665, %v9500, 0
      %v9540 = vsel %vm665, %v9501, 0
      %v9543 = vsel %vm665, %v9502, 0
      %9545 = vmatpush.msra.mxu0 0.0
      %9546 = vmatpush.msra.mxu0 0.0
      %9547 = vmatpush.msra.mxu0 0.0
      %9548 = vmatpush.msra.mxu0 0.0
      %9549 = vmatpush.msra.mxu0 0.0
      %9550 = vmatpush.msra.mxu0 0.0
      %9551 = vmatpush.msra.mxu0 0.0
      %9552 = vmatpush.msra.mxu0 0.0
      %9553 = vmatpush.msra.mxu0 %v9510
      %9554 = vmatpush.msra.mxu0 %v9509
      %9555 = vmatpush.msra.mxu0 %v9508
      %9556 = vmatpush.msra.mxu0 %v9507
      %9557 = vmatpush.msra.mxu0 %v9506
      %9558 = vmatpush.msra.mxu0 %v9505
      %9559 = vmatpush.msra.mxu0 %v9504
      %9560 = vmatpush.msra.mxu0 %v9503
      %9561 = vmatmul.f32.gmra.mxu0 %v9516
      %v9562 = vpop.f32.mrf.mxu0
      %v9563 = vadd.f32 %v9513, %v9562
      %9564 = vmatmul.f32.gmra.mxu0 %v9519
      %v9565 = vpop.f32.mrf.mxu0
      %v9566 = vadd.f32 %v9513, %v9565
      %9567 = vmatmul.f32.gmra.mxu0 %v9522
      %v9568 = vpop.f32.mrf.mxu0
      %v9569 = vadd.f32 %v9513, %v9568
      %9570 = vmatmul.f32.gmra.mxu0 %v9525
      %v9571 = vpop.f32.mrf.mxu0
      %v9572 = vadd.f32 %v9513, %v9571
      %9573 = vmatmul.f32.gmra.mxu0 %v9528
      %v9574 = vpop.f32.mrf.mxu0
      %v9575 = vadd.f32 %v9513, %v9574
      %9576 = vmatmul.f32.gmra.mxu0 %v9531
      %v9577 = vpop.f32.mrf.mxu0
      %v9578 = vadd.f32 %v9513, %v9577
      %9579 = vmatmul.f32.gmra.mxu0 %v9534
      %v9580 = vpop.f32.mrf.mxu0
      %v9581 = vadd.f32 %v9513, %v9580
      %9582 = vmatmul.f32.gmra.mxu0 %v9537
      %v9583 = vpop.f32.mrf.mxu0
      %v9584 = vadd.f32 %v9513, %v9583
      %9585 = vmatmul.f32.gmra.mxu0 %v9540
      %v9586 = vpop.f32.mrf.mxu0
      %v9587 = vadd.f32 %v9513, %v9586
      %9588 = vmatmul.f32.gmra.mxu0 %v9543
      %v9589 = vpop.f32.mrf.mxu0
      %v9590 = vadd.f32 %v9513, %v9589
      %9591 = vdwg.mxu0
      %v9592 = vadd.f32 %v9398, %v9563
      %v9593 = vadd.f32 %v9399, %v9566
      %v9594 = vadd.f32 %v9400, %v9569
      %v9595 = vadd.f32 %v9401, %v9572
      %v9596 = vadd.f32 %v9402, %v9575
      %v9597 = vadd.f32 %v9403, %v9578
      %v9598 = vadd.f32 %v9404, %v9581
      %v9599 = vadd.f32 %v9405, %v9584
      %v9600 = vadd.f32 %v9406, %v9587
      %v9601 = vadd.f32 %v9407, %v9590
      %v9602 = vld [vmem:[%s14] sm:$0x1]
      %v9603 = vld [vmem:[%s15] sm:$0x1]
      %v9604 = vsel %vm642, %v9592, 0.0
      %9605 = vadd.xlane.f32.xlu0 %v9604
      %v9606 = vpop.xlane.xlu0 %9605
      %v9607 = vsel %vm642, %v9593, 0.0
      %9608 = vadd.xlane.f32.xlu0 %v9607
      %v9609 = vpop.xlane.xlu0 %9608
      %v9610 = vsel %vm642, %v9594, 0.0
      %9611 = vadd.xlane.f32.xlu0 %v9610
      %v9612 = vpop.xlane.xlu0 %9611
      %v9613 = vsel %vm642, %v9595, 0.0
      %9614 = vadd.xlane.f32.xlu0 %v9613
      %v9615 = vpop.xlane.xlu0 %9614
      %v9616 = vsel %vm642, %v9596, 0.0
      %9617 = vadd.xlane.f32.xlu0 %v9616
      %v9618 = vpop.xlane.xlu0 %9617
      %v9619 = vsel %vm642, %v9597, 0.0
      %9620 = vadd.xlane.f32.xlu0 %v9619
      %v9621 = vpop.xlane.xlu0 %9620
      %v9622 = vsel %vm642, %v9598, 0.0
      %9623 = vadd.xlane.f32.xlu0 %v9622
      %v9624 = vpop.xlane.xlu0 %9623
      %v9625 = vsel %vm642, %v9599, 0.0
      %9626 = vadd.xlane.f32.xlu0 %v9625
      %v9627 = vpop.xlane.xlu0 %9626
      %v9628 = vsel %vm642, %v9600, 0.0
      %9629 = vadd.xlane.f32.xlu0 %v9628
      %v9630 = vpop.xlane.xlu0 %9629
      %v9631 = vsel %vm642, %v9601, 0.0
      %9632 = vadd.xlane.f32.xlu0 %v9631
      %v9633 = vpop.xlane.xlu0 %9632
      %v9634 = vmul.f32 %v9606, %v9191
      %v9635 = vmul.f32 %v9609, %v9191
      %v9636 = vmul.f32 %v9612, %v9191
      %v9637 = vmul.f32 %v9615, %v9191
      %v9638 = vmul.f32 %v9618, %v9191
      %v9639 = vmul.f32 %v9621, %v9191
      %v9640 = vmul.f32 %v9624, %v9191
      %v9641 = vmul.f32 %v9627, %v9191
      %v9642 = vmul.f32 %v9630, %v9191
      %v9643 = vmul.f32 %v9633, %v9191
      %v9644 = vsub.f32 %v9592, %v9634
      %v9645 = vsub.f32 %v9593, %v9635
      %v9646 = vsub.f32 %v9594, %v9636
      %v9647 = vsub.f32 %v9595, %v9637
      %v9648 = vsub.f32 %v9596, %v9638
      %v9649 = vsub.f32 %v9597, %v9639
      %v9650 = vsub.f32 %v9598, %v9640
      %v9651 = vsub.f32 %v9599, %v9641
      %v9652 = vsub.f32 %v9600, %v9642
      %v9653 = vsub.f32 %v9601, %v9643
      %v9654 = vmul.f32 %v9644, %v9644
      %v9655 = vmul.f32 %v9645, %v9645
      %v9656 = vmul.f32 %v9646, %v9646
      %v9657 = vmul.f32 %v9647, %v9647
      %v9658 = vmul.f32 %v9648, %v9648
      %v9659 = vmul.f32 %v9649, %v9649
      %v9660 = vmul.f32 %v9650, %v9650
      %v9661 = vmul.f32 %v9651, %v9651
      %v9662 = vmul.f32 %v9652, %v9652
      %v9663 = vmul.f32 %v9653, %v9653
      %v9664 = vsel %vm642, %v9654, 0.0
      %9665 = vadd.xlane.f32.xlu0 %v9664
      %v9666 = vpop.xlane.xlu0 %9665
      %v9667 = vsel %vm642, %v9655, 0.0
      %9668 = vadd.xlane.f32.xlu0 %v9667
      %v9669 = vpop.xlane.xlu0 %9668
      %v9670 = vsel %vm642, %v9656, 0.0
      %9671 = vadd.xlane.f32.xlu0 %v9670
      %v9672 = vpop.xlane.xlu0 %9671
      %v9673 = vsel %vm642, %v9657, 0.0
      %9674 = vadd.xlane.f32.xlu0 %v9673
      %v9675 = vpop.xlane.xlu0 %9674
      %v9676 = vsel %vm642, %v9658, 0.0
      %9677 = vadd.xlane.f32.xlu0 %v9676
      %v9678 = vpop.xlane.xlu0 %9677
      %v9679 = vsel %vm642, %v9659, 0.0
      %9680 = vadd.xlane.f32.xlu0 %v9679
      %v9681 = vpop.xlane.xlu0 %9680
      %v9682 = vsel %vm642, %v9660, 0.0
      %9683 = vadd.xlane.f32.xlu0 %v9682
      %v9684 = vpop.xlane.xlu0 %9683
      %v9685 = vsel %vm642, %v9661, 0.0
      %9686 = vadd.xlane.f32.xlu0 %v9685
      %v9687 = vpop.xlane.xlu0 %9686
      %v9688 = vsel %vm642, %v9662, 0.0
      %9689 = vadd.xlane.f32.xlu0 %v9688
      %v9690 = vpop.xlane.xlu0 %9689
      %v9691 = vsel %vm642, %v9663, 0.0
      %9692 = vadd.xlane.f32.xlu0 %v9691
      %v9693 = vpop.xlane.xlu0 %9692
      %v9694 = vmul.f32 %v9666, %v9191
      %v9695 = vmul.f32 %v9669, %v9191
      %v9696 = vmul.f32 %v9672, %v9191
      %v9697 = vmul.f32 %v9675, %v9191
      %v9698 = vmul.f32 %v9678, %v9191
      %v9699 = vmul.f32 %v9681, %v9191
      %v9700 = vmul.f32 %v9684, %v9191
      %v9701 = vmul.f32 %v9687, %v9191
      %v9702 = vmul.f32 %v9690, %v9191
      %v9703 = vmul.f32 %v9693, %v9191
      %v9704 = vadd.f32 %v9694, 1e-05
      %v9705 = vadd.f32 %v9695, 1e-05
      %v9706 = vadd.f32 %v9696, 1e-05
      %v9707 = vadd.f32 %v9697, 1e-05
      %v9708 = vadd.f32 %v9698, 1e-05
      %v9709 = vadd.f32 %v9699, 1e-05
      %v9710 = vadd.f32 %v9700, 1e-05
      %v9711 = vadd.f32 %v9701, 1e-05
      %v9712 = vadd.f32 %v9702, 1e-05
      %v9713 = vadd.f32 %v9703, 1e-05
      %v9714 = vrsqrt.pop %v9704
      %v9715 = vmul.f32 %v9714, %v9704
      %v9716 = vmul.f32 %v9715, %v9714
      %v9717 = vmul.f32 0.5, %v9716
      %v9718 = vsub.f32 1.5, %v9717
      %v9719 = vmul.f32 %v9714, %v9718
      %vm9720 = vweird.f32 %v9704
      %vm9721 = vweird.f32 %v9714
      %vm9722 = vmor %vm9720, %vm9721
      %v9723 = vsel %vm9722, %v9714, %v9719
      %v9724 = vrsqrt.pop %v9705
      %v9725 = vmul.f32 %v9724, %v9705
      %v9726 = vmul.f32 %v9725, %v9724
      %v9727 = vmul.f32 0.5, %v9726
      %v9728 = vsub.f32 1.5, %v9727
      %v9729 = vmul.f32 %v9724, %v9728
      %vm9730 = vweird.f32 %v9705
      %vm9731 = vweird.f32 %v9724
      %vm9732 = vmor %vm9730, %vm9731
      %v9733 = vsel %vm9732, %v9724, %v9729
      %v9734 = vrsqrt.pop %v9706
      %v9735 = vmul.f32 %v9734, %v9706
      %v9736 = vmul.f32 %v9735, %v9734
      %v9737 = vmul.f32 0.5, %v9736
      %v9738 = vsub.f32 1.5, %v9737
      %v9739 = vmul.f32 %v9734, %v9738
      %vm9740 = vweird.f32 %v9706
      %vm9741 = vweird.f32 %v9734
      %vm9742 = vmor %vm9740, %vm9741
      %v9743 = vsel %vm9742, %v9734, %v9739
      %v9744 = vrsqrt.pop %v9707
      %v9745 = vmul.f32 %v9744, %v9707
      %v9746 = vmul.f32 %v9745, %v9744
      %v9747 = vmul.f32 0.5, %v9746
      %v9748 = vsub.f32 1.5, %v9747
      %v9749 = vmul.f32 %v9744, %v9748
      %vm9750 = vweird.f32 %v9707
      %vm9751 = vweird.f32 %v9744
      %vm9752 = vmor %vm9750, %vm9751
      %v9753 = vsel %vm9752, %v9744, %v9749
      %v9754 = vrsqrt.pop %v9708
      %v9755 = vmul.f32 %v9754, %v9708
      %v9756 = vmul.f32 %v9755, %v9754
      %v9757 = vmul.f32 0.5, %v9756
      %v9758 = vsub.f32 1.5, %v9757
      %v9759 = vmul.f32 %v9754, %v9758
      %vm9760 = vweird.f32 %v9708
      %vm9761 = vweird.f32 %v9754
      %vm9762 = vmor %vm9760, %vm9761
      %v9763 = vsel %vm9762, %v9754, %v9759
      %v9764 = vrsqrt.pop %v9709
      %v9765 = vmul.f32 %v9764, %v9709
      %v9766 = vmul.f32 %v9765, %v9764
      %v9767 = vmul.f32 0.5, %v9766
      %v9768 = vsub.f32 1.5, %v9767
      %v9769 = vmul.f32 %v9764, %v9768
      %vm9770 = vweird.f32 %v9709
      %vm9771 = vweird.f32 %v9764
      %vm9772 = vmor %vm9770, %vm9771
      %v9773 = vsel %vm9772, %v9764, %v9769
      %v9774 = vrsqrt.pop %v9710
      %v9775 = vmul.f32 %v9774, %v9710
      %v9776 = vmul.f32 %v9775, %v9774
      %v9777 = vmul.f32 0.5, %v9776
      %v9778 = vsub.f32 1.5, %v9777
      %v9779 = vmul.f32 %v9774, %v9778
      %vm9780 = vweird.f32 %v9710
      %vm9781 = vweird.f32 %v9774
      %vm9782 = vmor %vm9780, %vm9781
      %v9783 = vsel %vm9782, %v9774, %v9779
      %v9784 = vrsqrt.pop %v9711
      %v9785 = vmul.f32 %v9784, %v9711
      %v9786 = vmul.f32 %v9785, %v9784
      %v9787 = vmul.f32 0.5, %v9786
      %v9788 = vsub.f32 1.5, %v9787
      %v9789 = vmul.f32 %v9784, %v9788
      %vm9790 = vweird.f32 %v9711
      %vm9791 = vweird.f32 %v9784
      %vm9792 = vmor %vm9790, %vm9791
      %v9793 = vsel %vm9792, %v9784, %v9789
      %v9794 = vrsqrt.pop %v9712
      %v9795 = vmul.f32 %v9794, %v9712
      %v9796 = vmul.f32 %v9795, %v9794
      %v9797 = vmul.f32 0.5, %v9796
      %v9798 = vsub.f32 1.5, %v9797
      %v9799 = vmul.f32 %v9794, %v9798
      %vm9800 = vweird.f32 %v9712
      %vm9801 = vweird.f32 %v9794
      %vm9802 = vmor %vm9800, %vm9801
      %v9803 = vsel %vm9802, %v9794, %v9799
      %v9804 = vrsqrt.pop %v9713
      %v9805 = vmul.f32 %v9804, %v9713
      %v9806 = vmul.f32 %v9805, %v9804
      %v9807 = vmul.f32 0.5, %v9806
      %v9808 = vsub.f32 1.5, %v9807
      %v9809 = vmul.f32 %v9804, %v9808
      %vm9810 = vweird.f32 %v9713
      %vm9811 = vweird.f32 %v9804
      %vm9812 = vmor %vm9810, %vm9811
      %v9813 = vsel %vm9812, %v9804, %v9809
      %v9814 = vmul.f32 %v9644, %v9723
      %v9815 = vmul.f32 %v9645, %v9733
      %v9816 = vmul.f32 %v9646, %v9743
      %v9817 = vmul.f32 %v9647, %v9753
      %v9818 = vmul.f32 %v9648, %v9763
      %v9819 = vmul.f32 %v9649, %v9773
      %v9820 = vmul.f32 %v9650, %v9783
      %v9821 = vmul.f32 %v9651, %v9793
      %v9822 = vmul.f32 %v9652, %v9803
      %v9823 = vmul.f32 %v9653, %v9813
      %v9825 = vperm.slane %v9602, 0
      %v9827 = vmul.f32 %v9814, %v9825
      %v9828 = vmul.f32 %v9815, %v9825
      %v9829 = vmul.f32 %v9816, %v9825
      %v9830 = vmul.f32 %v9817, %v9825
      %v9831 = vmul.f32 %v9818, %v9825
      %v9832 = vmul.f32 %v9819, %v9825
      %v9833 = vmul.f32 %v9820, %v9825
      %v9834 = vmul.f32 %v9821, %v9825
      %v9835 = vmul.f32 %v9822, %v9825
      %v9836 = vmul.f32 %v9823, %v9825
      %v9838 = vperm.slane %v9603, 0
      %v9840 = vadd.f32 %v9827, %v9838
      %v9841 = vadd.f32 %v9828, %v9838
      %v9842 = vadd.f32 %v9829, %v9838
      %v9843 = vadd.f32 %v9830, %v9838
      %v9844 = vadd.f32 %v9831, %v9838
      %v9845 = vadd.f32 %v9832, %v9838
      %v9846 = vadd.f32 %v9833, %v9838
      %v9847 = vadd.f32 %v9834, %v9838
      %v9848 = vadd.f32 %v9835, %v9838
      %v9849 = vadd.f32 %v9836, %v9838
      %9850 = vst.msk [vmem:[%s581] sm:$0xff] %vm642, %v9840
      %9851 = vst.msk [vmem:[%s581 + $0x8] sm:$0xff] %vm642, %v9841
      %9852 = vst.msk [vmem:[%s581 + $0x10] sm:$0xff] %vm642, %v9842
      %9853 = vst.msk [vmem:[%s581 + $0x18] sm:$0xff] %vm642, %v9843
      %9854 = vst.msk [vmem:[%s581 + $0x20] sm:$0xff] %vm642, %v9844
      %9855 = vst.msk [vmem:[%s581 + $0x28] sm:$0xff] %vm642, %v9845
      %9856 = vst.msk [vmem:[%s581 + $0x30] sm:$0xff] %vm642, %v9846
      %9857 = vst.msk [vmem:[%s581 + $0x38] sm:$0xff] %vm642, %v9847
      %9858 = vst.msk [vmem:[%s581 + $0x40] sm:$0xff] %vm642, %v9848
      %9859 = vst.msk [vmem:[%s581 + $0x48] sm:$0xff] %vm642, %v9849
      %p9860 = scmp.lt.s32.totalorder %s27, 1
      %s9861 = scalar_select %p9860, %s27, 1
      %s9862 = smul.addr %s9861, 10
      %s9863 = smul.addr %s9862, 8
      %s9864 = scalar_lea.vmem %s16, %s9863
      // Predicated region
      $region85: #{deformable_encoder_layer_forward.1} parent=83 // pred_check
        %p9865 = pneg %p401
      $region86: #{deformable_encoder_layer_forward.1} parent=83 // pred_check_branch
        %9867 = sbr.rel (%p9865) target = $region88
      $region87: #{deformable_encoder_layer_forward.1} parent=83 // pred_region
        _
      $region88: #{deformable_encoder_layer_forward.1} parent=83 // pred_fallthru
        _
    $region84: #{deformable_encoder_layer_forward.1} parent=5 // pred_fallthru
      _
    %p9868 = scmp.le.s32.totalorder 2, %s22
    // Predicated region
    $region89: #{deformable_encoder_layer_forward.1} parent=5 // pred_check
      %p9869 = pneg %p9868
    $region90: #{deformable_encoder_layer_forward.1} parent=5 // pred_check_branch
      %9871 = sbr.rel (%p9869) target = $region92
    $region91: #{deformable_encoder_layer_forward.1} parent=5 // pred_region
      %s9872 = ssub.s32 %s22, 2
      // Predicated region
      $region93: #{deformable_encoder_layer_forward.1} parent=91 // pred_check
        %p9873 = pneg %p407
      $region94: #{deformable_encoder_layer_forward.1} parent=91 // pred_check_branch
        %9875 = sbr.rel (%p9873) target = $region96
      $region95: #{deformable_encoder_layer_forward.1} parent=91 // pred_region
        %p9876 = scmp.lt.s32.totalorder %s28, 1
        %s9877 = scalar_select %p9876, %s28, 1
        %s9878 = smul.addr %s9877, 10
        %s9879 = smul.addr %s9878, 8
        %s9880 = scalar_lea.vmem %s16, %s9879
      $region96: #{deformable_encoder_layer_forward.1} parent=91 // pred_fallthru
        _
    $region92: #{deformable_encoder_layer_forward.1} parent=5 // pred_fallthru
      _
  $region6: #{deformable_encoder_layer_forward.1} parent=0 // loop_footer
    %s26 = sadd.s32 1, %s22
  $region7: #{deformable_encoder_layer_forward.1} parent=0 // loop_footer_branch
    %21 = sbr.rel target = $region3
  $region8: #{deformable_encoder_layer_forward.1} parent=0 // loop_exit
    _

</llo_original>
